<compile_context>
chip_gen: v7x
topology: tpu7x:2x2x1
jax: 0.10.0
libtpu: 0.0.40
codegen_flags: <defaults>
</compile_context>

<pallas_src>
from functools import partial

import jax
import jax.numpy as jnp
from jax.experimental import pallas as pl
from jax.experimental.pallas import tpu as pltpu

LANE = 128   # TPU lane width; channel padding target
PADL = 8     # 8-aligned left offset of the interior inside the halo scratch


def _round_up(x, m):
    return ((x + m - 1) // m) * m


# ---------------------------------------------------------------------------
# Pallas kernels
# ---------------------------------------------------------------------------

def _make_conv_kernel(H, W, CPin, CPout, apply_act):
    """Fused [BN+ReLU prologue] + zero-halo + im2col 3x3 conv + BN-stats kernel."""

    def kernel(x_ref, scale_ref, shift_ref, w_ref, b_ref,
               y_ref, sum_ref, ssq_ref, xpad_ref, patch_ref):
        # -- prologue: (optionally) apply folded BN scale/shift + ReLU of the
        # -- previous layer, then place the result in the interior of a zeroed
        # -- halo buffer (interior starts at sublane offset PADL -> aligned store).
        xpad_ref[...] = jnp.zeros_like(xpad_ref)
        xin = x_ref[0].astype(jnp.float32)                     # (H, W, CPin)
        if apply_act:
            xin = jnp.maximum(xin * scale_ref[...] + shift_ref[...], 0.0)
        xpad_ref[1:H + 1, PADL:PADL + W, :] = xin

        # -- im2col: build one lane-dense (H*W, 9*CPin) patch block in VMEM
        for kh in range(3):
            for kw in range(3):
                tap = kh * 3 + kw
                col0 = PADL - 1 + kw                           # halo at PADL-1
                patch_ref[:, tap * CPin:(tap + 1) * CPin] = (
                    xpad_ref[kh:kh + H, col0:col0 + W, :]
                    .reshape(H * W, CPin).astype(patch_ref.dtype))

        # -- single MXU matmul (bf16 x bf16, f32 accumulation) + bias
        acc = jnp.dot(patch_ref[...], w_ref[...],
                      preferred_element_type=jnp.float32)      # (H*W, CPout)
        acc = acc + b_ref[...]

        # -- outputs: bf16 activation + per-image one-pass BN partial stats (f32)
        y_ref[...] = acc.reshape(1, H, W, CPout).astype(y_ref.dtype)
        sum_ref[...] = jnp.sum(acc, axis=0).reshape(1, 1, CPout)
        ssq_ref[...] = jnp.sum(acc * acc, axis=0).reshape(1, 1, CPout)

    return kernel


def _bn_relu_kernel(y_ref, scale_ref, shift_ref, o_ref):
    """Final folded BN + ReLU on lane-dense (rows, C) tiles."""
    o_ref[...] = jnp.maximum(
        y_ref[...].astype(jnp.float32) * scale_ref[...] + shift_ref[...], 0.0)


# ---------------------------------------------------------------------------
# pallas_call wrappers
# ---------------------------------------------------------------------------

def conv3x3_bn_stats(x, scale, shift, w_flat, b, *, apply_act):
    """x: (N,H,W,CPin) bf16 -> (y (N,H,W,CPout) bf16, sum/ssq (N,1,CPout) f32)."""
    N, H, W, CPin = x.shape
    CPout = w_flat.shape[-1]
    kernel = _make_conv_kernel(H, W, CPin, CPout, apply_act)
    return pl.pallas_call(
        kernel,
        out_shape=(
            jax.ShapeDtypeStruct((N, H, W, CPout), jnp.bfloat16),
            jax.ShapeDtypeStruct((N, 1, CPout), jnp.float32),
            jax.ShapeDtypeStruct((N, 1, CPout), jnp.float32),
        ),
        grid=(N,),
        in_specs=[
            pl.BlockSpec((1, H, W, CPin), lambda n: (n, 0, 0, 0)),
            pl.BlockSpec((1, CPin), lambda n: (0, 0)),
            pl.BlockSpec((1, CPin), lambda n: (0, 0)),
            pl.BlockSpec((9 * CPin, CPout), lambda n: (0, 0)),
            pl.BlockSpec((1, CPout), lambda n: (0, 0)),
        ],
        out_specs=(
            pl.BlockSpec((1, H, W, CPout), lambda n: (n, 0, 0, 0)),
            pl.BlockSpec((1, 1, CPout), lambda n: (n, 0, 0)),
            pl.BlockSpec((1, 1, CPout), lambda n: (n, 0, 0)),
        ),
        scratch_shapes=[
            pltpu.VMEM((H + 2, W + 2 * PADL, CPin), jnp.float32),  # zero halo
            pltpu.VMEM((H * W, 9 * CPin), jnp.bfloat16),           # im2col block
        ],
        compiler_params=pltpu.CompilerParams(
            dimension_semantics=("parallel",),
            vmem_limit_bytes=32 * 1024 * 1024),
    )(x, scale, shift, w_flat, b)


def bn_relu_apply(y, scale, shift):
    """Final BN+ReLU: y (N,H,W,C) bf16 -> (N,H,W,C) f32, lane-dense 2D tiles."""
    N, H, W, C = y.shape
    rows = N * H * W
    tile = rows // 2 if (rows % 2 == 0 and (rows // 2) % 8 == 0) else rows
    out = pl.pallas_call(
        _bn_relu_kernel,
        out_shape=jax.ShapeDtypeStruct((rows, C), jnp.float32),
        grid=(rows // tile,),
        in_specs=[
            pl.BlockSpec((tile, C), lambda r: (r, 0)),
            pl.BlockSpec((1, C), lambda r: (0, 0)),
            pl.BlockSpec((1, C), lambda r: (0, 0)),
        ],
        out_specs=pl.BlockSpec((tile, C), lambda r: (r, 0)),
        compiler_params=pltpu.CompilerParams(
            dimension_semantics=("parallel",)),
    )(y.reshape(rows, C), scale, shift)
    return out.reshape(N, H, W, C)


# ---------------------------------------------------------------------------
# BN glue (tiny per-channel vectors only -- no full-activation HBM pass)
# ---------------------------------------------------------------------------

def _bn_scale_shift(sum_n, ssq_n, gamma, beta, count, eps=1e-5):
    s = jnp.sum(sum_n, axis=(0, 1))
    ss = jnp.sum(ssq_n, axis=(0, 1))
    mean = s / count
    var = jnp.maximum(ss / count - mean * mean, 0.0)   # biased, one-pass, f32
    inv_std = jax.lax.rsqrt(var + eps)
    scale = gamma * inv_std
    shift = beta - mean * scale
    return scale.reshape(1, -1), shift.reshape(1, -1)


# ---------------------------------------------------------------------------
# Forward
# ---------------------------------------------------------------------------

@partial(jax.jit, static_argnames=("out_channels",))
def double_conv_forward(x_nchw, pp, out_channels):
    N, Cin, H, W = x_nchw.shape
    CPin = pp["w1"].shape[0] // 9

    # NCHW -> NHWC, zero-pad channels to the 128-lane width, bf16 intermediates
    x = jnp.transpose(x_nchw, (0, 2, 3, 1))
    x = jnp.pad(x, ((0, 0), (0, 0), (0, 0), (0, CPin - Cin))).astype(jnp.bfloat16)

    dummy = jnp.zeros((1, CPin), jnp.float32)
    count = N * H * W

    y1, s1, q1 = conv3x3_bn_stats(x, dummy, dummy, pp["w1"], pp["b1"],
                                  apply_act=False)
    scale1, shift1 = _bn_scale_shift(s1, q1, pp["g1"], pp["be1"], count)
    y2, s2, q2 = conv3x3_bn_stats(y1, scale1, shift1, pp["w2"], pp["b2"],
                                  apply_act=True)
    scale2, shift2 = _bn_scale_shift(s2, q2, pp["g2"], pp["be2"], count)
    out = bn_relu_apply(y2, scale2, shift2)             # (N, H, W, CPout) f32

    out = out[..., :out_channels]
    return jnp.transpose(out, (0, 3, 1, 2))             # NHWC -> NCHW


# ---------------------------------------------------------------------------
# Parameters
# ---------------------------------------------------------------------------

def init_params(key, in_channels, mid_channels, out_channels):
    kw1, kb1, kw2, kb2 = jax.random.split(key, 4)
    return dict(
        w1=jax.random.normal(kw1, (3, 3, in_channels, mid_channels),
                             jnp.float32) * 0.1,
        b1=jax.random.normal(kb1, (mid_channels,), jnp.float32) * 0.1,
        g1=jnp.ones((mid_channels,), jnp.float32),
        be1=jnp.zeros((mid_channels,), jnp.float32),
        w2=jax.random.normal(kw2, (3, 3, mid_channels, out_channels),
                             jnp.float32) * 0.1,
        b2=jax.random.normal(kb2, (out_channels,), jnp.float32) * 0.1,
        g2=jnp.ones((out_channels,), jnp.float32),
        be2=jnp.zeros((out_channels,), jnp.float32),
    )


def prepare_params(params):
    """Pad channels to 128 lanes and pre-flatten conv weights for im2col."""
    Cin, Cmid = params["w1"].shape[2], params["w1"].shape[3]
    Cout = params["w2"].shape[3]
    CPin, CPmid, CPout = (_round_up(max(c, LANE), LANE) for c in (Cin, Cmid, Cout))

    def pad_w(w, cpi, cpo):
        _, _, ci, co = w.shape
        wp = jnp.zeros((3, 3, cpi, cpo), jnp.float32).at[:, :, :ci, :co].set(w)
        return wp.reshape(9 * cpi, cpo).astype(jnp.bfloat16)  # row=(kh*3+kw)*cpi+ci

    def pad_vec(v, cp):
        return jnp.zeros((cp,), jnp.float32).at[:v.shape[0]].set(v)

    return dict(
        w1=pad_w(params["w1"], CPin, CPmid),
        b1=pad_vec(params["b1"], CPmid).reshape(1, CPmid),
        g1=pad_vec(params["g1"], CPmid),
        be1=pad_vec(params["be1"], CPmid),
        w2=pad_w(params["w2"], CPmid, CPout),
        b2=pad_vec(params["b2"], CPout).reshape(1, CPout),
        g2=pad_vec(params["g2"], CPout),
        be2=pad_vec(params["be2"], CPout),
    )


# ---------------------------------------------------------------------------
# Pure-JAX reference (f32) for correctness checking
# ---------------------------------------------------------------------------

def _reference_forward(x_nchw, params, eps=1e-5):
    def conv_bn_relu(x, w, b, g, be):
        y = jax.lax.conv_general_dilated(
            x, w, window_strides=(1, 1), padding=((1, 1), (1, 1)),
            dimension_numbers=("NCHW", "HWIO", "NCHW"),
            precision=jax.lax.Precision.HIGHEST)
        y = y + b.reshape(1, -1, 1, 1)
        mean = jnp.mean(y, axis=(0, 2, 3), keepdims=True)
        var = jnp.var(y, axis=(0, 2, 3), keepdims=True)      # biased, as PyTorch BN
        yn = (y - mean) * jax.lax.rsqrt(var + eps)
        return jnp.maximum(yn * g.reshape(1, -1, 1, 1) + be.reshape(1, -1, 1, 1), 0.0)

    h = conv_bn_relu(x_nchw, params["w1"], params["b1"], params["g1"], params["be1"])
    return conv_bn_relu(h, params["w2"], params["b2"], params["g2"], params["be2"])


if __name__ == "__main__":
    N, Cin, H, W = 2, 4, 16, 16
    Cmid, Cout = 8, 8

    key = jax.random.PRNGKey(0)
    kx, kp = jax.random.split(key)
    x = jax.random.normal(kx, (N, Cin, H, W), jnp.float32)
    params = init_params(kp, Cin, Cmid, Cout)
    pp = prepare_params(params)

    out = double_conv_forward(x, pp, out_channels=Cout)
    out = jax.block_until_ready(out)

    assert out.shape == (N, Cout, H, W), out.shape
    assert bool(jnp.all(jnp.isfinite(out)))
    assert bool(jnp.all(out >= 0.0))                 # ReLU output is non-negative

    ref = _reference_forward(x, params)
    max_err = float(jnp.max(jnp.abs(out - ref)))
    assert max_err < 2e-1, max_err                   # bf16 MXU path vs f32 reference
    print("KERNEL_OK")
</pallas_src>

<mosaic_0001>
module attributes {stable_mosaic.version = 11 : i64} {
  func.func @kernel(%arg0: i32, %arg1: memref<1x16x16x128xbf16, #tpu.memory_space<vmem>>, %arg2: memref<1x128xf32, #tpu.memory_space<vmem>>, %arg3: memref<1x128xf32, #tpu.memory_space<vmem>>, %arg4: memref<1152x128xbf16, #tpu.memory_space<vmem>>, %arg5: memref<1x128xf32, #tpu.memory_space<vmem>>, %arg6: memref<1x16x16x128xbf16, #tpu.memory_space<vmem>>, %arg7: memref<1x1x128xf32, #tpu.memory_space<vmem>>, %arg8: memref<1x1x128xf32, #tpu.memory_space<vmem>>, %arg9: memref<18x32x128xf32, #tpu.memory_space<vmem>>, %arg10: memref<256x1152xbf16, #tpu.memory_space<vmem>>) attributes {dimension_semantics = [#tpu.dimension_semantics<parallel>], iteration_bounds = array<i64: 2>, scalar_prefetch = 0 : i64, scratch_operands = 2 : i64, tpu.core_type = #tpu.core_type<tc>, window_params = [{transform_indices = @transform_0, window_bounds = array<i64: 1, 16, 16, 128>}, {pipeline_mode = #tpu.pipeline_mode<synchronous>, transform_indices = @transform_1, window_bounds = array<i64: 1, 128>}, {pipeline_mode = #tpu.pipeline_mode<synchronous>, transform_indices = @transform_2, window_bounds = array<i64: 1, 128>}, {pipeline_mode = #tpu.pipeline_mode<synchronous>, transform_indices = @transform_3, window_bounds = array<i64: 1152, 128>}, {pipeline_mode = #tpu.pipeline_mode<synchronous>, transform_indices = @transform_4, window_bounds = array<i64: 1, 128>}, {transform_indices = @transform_5, window_bounds = array<i64: 1, 16, 16, 128>}, {transform_indices = @transform_6, window_bounds = array<i64: 1, 1, 128>}, {transform_indices = @transform_7, window_bounds = array<i64: 1, 1, 128>}]} {
    %cst = arith.constant 0.000000e+00 : f32
    %0 = vector.broadcast %cst : f32 to vector<18x32x128xf32>
    %c0 = arith.constant 0 : index
    %c0_0 = arith.constant 0 : index
    %c0_1 = arith.constant 0 : index
    %1 = vector.load %arg9[%c0, %c0_0, %c0_1] : memref<18x32x128xf32, #tpu.memory_space<vmem>>, vector<18x32x128xf32>
    tpu.vector_store %arg9[%c0, %c0_0, %c0_1], %0 {strides = array<i32>} : memref<18x32x128xf32, #tpu.memory_space<vmem>>, vector<18x32x128xf32>,
    %c0_2 = arith.constant 0 : index
    %c0_3 = arith.constant 0 : index
    %c0_4 = arith.constant 0 : index
    %c0_5 = arith.constant 0 : index
    %2 = vector.load %arg1[%c0_2, %c0_3, %c0_4, %c0_5] : memref<1x16x16x128xbf16, #tpu.memory_space<vmem>>, vector<1x16x16x128xbf16>
    %3 = vector.shape_cast %2 : vector<1x16x16x128xbf16> to vector<16x16x128xbf16>
    %4 = arith.extf %3 : vector<16x16x128xbf16> to vector<16x16x128xf32>
    %c1 = arith.constant 1 : index
    %c8 = arith.constant 8 : index
    %c0_6 = arith.constant 0 : index
    %5 = vector.load %arg9[%c1, %c8, %c0_6] : memref<18x32x128xf32, #tpu.memory_space<vmem>>, vector<16x16x128xf32>
    tpu.vector_store %arg9[%c1, %c8, %c0_6], %4 {strides = array<i32>} : memref<18x32x128xf32, #tpu.memory_space<vmem>>, vector<16x16x128xf32>,
    %c0_7 = arith.constant 0 : index
    %c7 = arith.constant 7 : index
    %c0_8 = arith.constant 0 : index
    %6 = vector.load %arg9[%c0_7, %c7, %c0_8] : memref<18x32x128xf32, #tpu.memory_space<vmem>>, vector<16x16x128xf32>
    %7 = vector.shape_cast %6 : vector<16x16x128xf32> to vector<256x128xf32>
    %8 = arith.truncf %7 : vector<256x128xf32> to vector<256x128xbf16>
    %c0_9 = arith.constant 0 : index
    %c0_10 = arith.constant 0 : index
    %9 = vector.load %arg10[%c0_9, %c0_10] : memref<256x1152xbf16, #tpu.memory_space<vmem>>, vector<256x128xbf16>
    tpu.vector_store %arg10[%c0_9, %c0_10], %8 {strides = array<i32>} : memref<256x1152xbf16, #tpu.memory_space<vmem>>, vector<256x128xbf16>,
    %c0_11 = arith.constant 0 : index
    %c8_12 = arith.constant 8 : index
    %c0_13 = arith.constant 0 : index
    %10 = vector.load %arg9[%c0_11, %c8_12, %c0_13] : memref<18x32x128xf32, #tpu.memory_space<vmem>>, vector<16x16x128xf32>
    %11 = vector.shape_cast %10 : vector<16x16x128xf32> to vector<256x128xf32>
    %12 = arith.truncf %11 : vector<256x128xf32> to vector<256x128xbf16>
    %c0_14 = arith.constant 0 : index
    %c128 = arith.constant 128 : index
    %13 = vector.load %arg10[%c0_14, %c128] : memref<256x1152xbf16, #tpu.memory_space<vmem>>, vector<256x128xbf16>
    tpu.vector_store %arg10[%c0_14, %c128], %12 {strides = array<i32>} : memref<256x1152xbf16, #tpu.memory_space<vmem>>, vector<256x128xbf16>,
    %c0_15 = arith.constant 0 : index
    %c9 = arith.constant 9 : index
    %c0_16 = arith.constant 0 : index
    %14 = vector.load %arg9[%c0_15, %c9, %c0_16] : memref<18x32x128xf32, #tpu.memory_space<vmem>>, vector<16x16x128xf32>
    %15 = vector.shape_cast %14 : vector<16x16x128xf32> to vector<256x128xf32>
    %16 = arith.truncf %15 : vector<256x128xf32> to vector<256x128xbf16>
    %c0_17 = arith.constant 0 : index
    %c256 = arith.constant 256 : index
    %17 = vector.load %arg10[%c0_17, %c256] : memref<256x1152xbf16, #tpu.memory_space<vmem>>, vector<256x128xbf16>
    tpu.vector_store %arg10[%c0_17, %c256], %16 {strides = array<i32>} : memref<256x1152xbf16, #tpu.memory_space<vmem>>, vector<256x128xbf16>,
    %c1_18 = arith.constant 1 : index
    %c7_19 = arith.constant 7 : index
    %c0_20 = arith.constant 0 : index
    %18 = vector.load %arg9[%c1_18, %c7_19, %c0_20] : memref<18x32x128xf32, #tpu.memory_space<vmem>>, vector<16x16x128xf32>
    %19 = vector.shape_cast %18 : vector<16x16x128xf32> to vector<256x128xf32>
    %20 = arith.truncf %19 : vector<256x128xf32> to vector<256x128xbf16>
    %c0_21 = arith.constant 0 : index
    %c384 = arith.constant 384 : index
    %21 = vector.load %arg10[%c0_21, %c384] : memref<256x1152xbf16, #tpu.memory_space<vmem>>, vector<256x128xbf16>
    tpu.vector_store %arg10[%c0_21, %c384], %20 {strides = array<i32>} : memref<256x1152xbf16, #tpu.memory_space<vmem>>, vector<256x128xbf16>,
    %c1_22 = arith.constant 1 : index
    %c8_23 = arith.constant 8 : index
    %c0_24 = arith.constant 0 : index
    %22 = vector.load %arg9[%c1_22, %c8_23, %c0_24] : memref<18x32x128xf32, #tpu.memory_space<vmem>>, vector<16x16x128xf32>
    %23 = vector.shape_cast %22 : vector<16x16x128xf32> to vector<256x128xf32>
    %24 = arith.truncf %23 : vector<256x128xf32> to vector<256x128xbf16>
    %c0_25 = arith.constant 0 : index
    %c512 = arith.constant 512 : index
    %25 = vector.load %arg10[%c0_25, %c512] : memref<256x1152xbf16, #tpu.memory_space<vmem>>, vector<256x128xbf16>
    tpu.vector_store %arg10[%c0_25, %c512], %24 {strides = array<i32>} : memref<256x1152xbf16, #tpu.memory_space<vmem>>, vector<256x128xbf16>,
    %c1_26 = arith.constant 1 : index
    %c9_27 = arith.constant 9 : index
    %c0_28 = arith.constant 0 : index
    %26 = vector.load %arg9[%c1_26, %c9_27, %c0_28] : memref<18x32x128xf32, #tpu.memory_space<vmem>>, vector<16x16x128xf32>
    %27 = vector.shape_cast %26 : vector<16x16x128xf32> to vector<256x128xf32>
    %28 = arith.truncf %27 : vector<256x128xf32> to vector<256x128xbf16>
    %c0_29 = arith.constant 0 : index
    %c640 = arith.constant 640 : index
    %29 = vector.load %arg10[%c0_29, %c640] : memref<256x1152xbf16, #tpu.memory_space<vmem>>, vector<256x128xbf16>
    tpu.vector_store %arg10[%c0_29, %c640], %28 {strides = array<i32>} : memref<256x1152xbf16, #tpu.memory_space<vmem>>, vector<256x128xbf16>,
    %c2 = arith.constant 2 : index
    %c7_30 = arith.constant 7 : index
    %c0_31 = arith.constant 0 : index
    %30 = vector.load %arg9[%c2, %c7_30, %c0_31] : memref<18x32x128xf32, #tpu.memory_space<vmem>>, vector<16x16x128xf32>
    %31 = vector.shape_cast %30 : vector<16x16x128xf32> to vector<256x128xf32>
    %32 = arith.truncf %31 : vector<256x128xf32> to vector<256x128xbf16>
    %c0_32 = arith.constant 0 : index
    %c768 = arith.constant 768 : index
    %33 = vector.load %arg10[%c0_32, %c768] : memref<256x1152xbf16, #tpu.memory_space<vmem>>, vector<256x128xbf16>
    tpu.vector_store %arg10[%c0_32, %c768], %32 {strides = array<i32>} : memref<256x1152xbf16, #tpu.memory_space<vmem>>, vector<256x128xbf16>,
    %c2_33 = arith.constant 2 : index
    %c8_34 = arith.constant 8 : index
    %c0_35 = arith.constant 0 : index
    %34 = vector.load %arg9[%c2_33, %c8_34, %c0_35] : memref<18x32x128xf32, #tpu.memory_space<vmem>>, vector<16x16x128xf32>
    %35 = vector.shape_cast %34 : vector<16x16x128xf32> to vector<256x128xf32>
    %36 = arith.truncf %35 : vector<256x128xf32> to vector<256x128xbf16>
    %c0_36 = arith.constant 0 : index
    %c896 = arith.constant 896 : index
    %37 = vector.load %arg10[%c0_36, %c896] : memref<256x1152xbf16, #tpu.memory_space<vmem>>, vector<256x128xbf16>
    tpu.vector_store %arg10[%c0_36, %c896], %36 {strides = array<i32>} : memref<256x1152xbf16, #tpu.memory_space<vmem>>, vector<256x128xbf16>,
    %c2_37 = arith.constant 2 : index
    %c9_38 = arith.constant 9 : index
    %c0_39 = arith.constant 0 : index
    %38 = vector.load %arg9[%c2_37, %c9_38, %c0_39] : memref<18x32x128xf32, #tpu.memory_space<vmem>>, vector<16x16x128xf32>
    %39 = vector.shape_cast %38 : vector<16x16x128xf32> to vector<256x128xf32>
    %40 = arith.truncf %39 : vector<256x128xf32> to vector<256x128xbf16>
    %c0_40 = arith.constant 0 : index
    %c1024 = arith.constant 1024 : index
    %41 = vector.load %arg10[%c0_40, %c1024] : memref<256x1152xbf16, #tpu.memory_space<vmem>>, vector<256x128xbf16>
    tpu.vector_store %arg10[%c0_40, %c1024], %40 {strides = array<i32>} : memref<256x1152xbf16, #tpu.memory_space<vmem>>, vector<256x128xbf16>,
    %c0_41 = arith.constant 0 : index
    %c0_42 = arith.constant 0 : index
    %42 = vector.load %arg10[%c0_41, %c0_42] : memref<256x1152xbf16, #tpu.memory_space<vmem>>, vector<256x1152xbf16>
    %c0_43 = arith.constant 0 : index
    %c0_44 = arith.constant 0 : index
    %43 = vector.load %arg4[%c0_43, %c0_44] : memref<1152x128xbf16, #tpu.memory_space<vmem>>, vector<1152x128xbf16>
    %cst_45 = arith.constant dense<0.000000e+00> : vector<256x128xf32>
    %44 = tpu.matmul %42, %43, %cst_45 {dimension_numbers = #tpu.dot_dimension_numbers<[1], [0], [0], [1], [0, 0, 1, 1], [], []>} : vector<256x1152xbf16>, vector<1152x128xbf16>, vector<256x128xf32> -> vector<256x128xf32>
    %c0_46 = arith.constant 0 : index
    %c0_47 = arith.constant 0 : index
    %45 = vector.load %arg5[%c0_46, %c0_47] : memref<1x128xf32, #tpu.memory_space<vmem>>, vector<1x128xf32>
    %46 = vector.broadcast %45 : vector<1x128xf32> to vector<256x128xf32>
    %47 = arith.addf %44, %46 : vector<256x128xf32>
    %48 = vector.shape_cast %47 : vector<256x128xf32> to vector<1x16x16x128xf32>
    %49 = arith.truncf %48 : vector<1x16x16x128xf32> to vector<1x16x16x128xbf16>
    %c0_48 = arith.constant 0 : index
    %c0_49 = arith.constant 0 : index
    %c0_50 = arith.constant 0 : index
    %c0_51 = arith.constant 0 : index
    %50 = vector.load %arg6[%c0_48, %c0_49, %c0_50, %c0_51] : memref<1x16x16x128xbf16, #tpu.memory_space<vmem>>, vector<1x16x16x128xbf16>
    tpu.vector_store %arg6[%c0_48, %c0_49, %c0_50, %c0_51], %49 {strides = array<i32>} : memref<1x16x16x128xbf16, #tpu.memory_space<vmem>>, vector<1x16x16x128xbf16>,
    %cst_52 = arith.constant dense<0.000000e+00> : vector<128xf32>
    %51 = vector.multi_reduction <add>, %47, %cst_52 [0] : vector<256x128xf32> to vector<128xf32>
    %52 = vector.shape_cast %51 : vector<128xf32> to vector<1x1x128xf32>
    %c0_53 = arith.constant 0 : index
    %c0_54 = arith.constant 0 : index
    %c0_55 = arith.constant 0 : index
    %53 = vector.load %arg7[%c0_53, %c0_54, %c0_55] : memref<1x1x128xf32, #tpu.memory_space<vmem>>, vector<1x1x128xf32>
    tpu.vector_store %arg7[%c0_53, %c0_54, %c0_55], %52 {strides = array<i32>} : memref<1x1x128xf32, #tpu.memory_space<vmem>>, vector<1x1x128xf32>,
    %54 = arith.mulf %47, %47 : vector<256x128xf32>
    %cst_56 = arith.constant dense<0.000000e+00> : vector<128xf32>
    %55 = vector.multi_reduction <add>, %54, %cst_56 [0] : vector<256x128xf32> to vector<128xf32>
    %56 = vector.shape_cast %55 : vector<128xf32> to vector<1x1x128xf32>
    %c0_57 = arith.constant 0 : index
    %c0_58 = arith.constant 0 : index
    %c0_59 = arith.constant 0 : index
    %57 = vector.load %arg8[%c0_57, %c0_58, %c0_59] : memref<1x1x128xf32, #tpu.memory_space<vmem>>, vector<1x1x128xf32>
    tpu.vector_store %arg8[%c0_57, %c0_58, %c0_59], %56 {strides = array<i32>} : memref<1x1x128xf32, #tpu.memory_space<vmem>>, vector<1x1x128xf32>,
    return
  }
  func.func @transform_0(%arg0: i32) -> (i32, i32, i32, i32) {
    %c0_i32 = arith.constant 0 : i32
    %c0_i32_0 = arith.constant 0 : i32
    %c0_i32_1 = arith.constant 0 : i32
    %c0_i32_2 = arith.constant 0 : i32
    return %arg0, %c0_i32, %c0_i32_0, %c0_i32_1 : i32, i32, i32, i32
  }
  func.func @transform_1(%arg0: i32) -> (i32, i32) {
    %c0_i32 = arith.constant 0 : i32
    %c0_i32_0 = arith.constant 0 : i32
    %c0_i32_1 = arith.constant 0 : i32
    return %c0_i32, %c0_i32_0 : i32, i32
  }
  func.func @transform_2(%arg0: i32) -> (i32, i32) {
    %c0_i32 = arith.constant 0 : i32
    %c0_i32_0 = arith.constant 0 : i32
    %c0_i32_1 = arith.constant 0 : i32
    return %c0_i32, %c0_i32_0 : i32, i32
  }
  func.func @transform_3(%arg0: i32) -> (i32, i32) {
    %c0_i32 = arith.constant 0 : i32
    %c0_i32_0 = arith.constant 0 : i32
    %c0_i32_1 = arith.constant 0 : i32
    return %c0_i32, %c0_i32_0 : i32, i32
  }
  func.func @transform_4(%arg0: i32) -> (i32, i32) {
    %c0_i32 = arith.constant 0 : i32
    %c0_i32_0 = arith.constant 0 : i32
    %c0_i32_1 = arith.constant 0 : i32
    return %c0_i32, %c0_i32_0 : i32, i32
  }
  func.func @transform_5(%arg0: i32) -> (i32, i32, i32, i32) {
    %c0_i32 = arith.constant 0 : i32
    %c0_i32_0 = arith.constant 0 : i32
    %c0_i32_1 = arith.constant 0 : i32
    %c0_i32_2 = arith.constant 0 : i32
    return %arg0, %c0_i32, %c0_i32_0, %c0_i32_1 : i32, i32, i32, i32
  }
  func.func @transform_6(%arg0: i32) -> (i32, i32, i32) {
    %c0_i32 = arith.constant 0 : i32
    %c0_i32_0 = arith.constant 0 : i32
    %c0_i32_1 = arith.constant 0 : i32
    return %arg0, %c0_i32, %c0_i32_0 : i32, i32, i32
  }
  func.func @transform_7(%arg0: i32) -> (i32, i32, i32) {
    %c0_i32 = arith.constant 0 : i32
    %c0_i32_0 = arith.constant 0 : i32
    %c0_i32_1 = arith.constant 0 : i32
    return %arg0, %c0_i32, %c0_i32_0 : i32, i32, i32
  }
}

module attributes {stable_mosaic.version = 11 : i64} {
  func.func @_bn_relu_kernel(%arg0: i32, %arg1: memref<256x128xbf16, #tpu.memory_space<vmem>>, %arg2: memref<1x128xf32, #tpu.memory_space<vmem>>, %arg3: memref<1x128xf32, #tpu.memory_space<vmem>>, %arg4: memref<256x128xf32, #tpu.memory_space<vmem>>) attributes {dimension_semantics = [#tpu.dimension_semantics<parallel>], iteration_bounds = array<i64: 2>, scalar_prefetch = 0 : i64, scratch_operands = 0 : i64, tpu.core_type = #tpu.core_type<tc>, window_params = [{transform_indices = @transform_0, window_bounds = array<i64: 256, 128>}, {pipeline_mode = #tpu.pipeline_mode<synchronous>, transform_indices = @transform_1, window_bounds = array<i64: 1, 128>}, {pipeline_mode = #tpu.pipeline_mode<synchronous>, transform_indices = @transform_2, window_bounds = array<i64: 1, 128>}, {transform_indices = @transform_3, window_bounds = array<i64: 256, 128>}]} {
    %c0 = arith.constant 0 : index
    %c0_0 = arith.constant 0 : index
    %0 = vector.load %arg1[%c0, %c0_0] : memref<256x128xbf16, #tpu.memory_space<vmem>>, vector<256x128xbf16>
    %1 = arith.extf %0 : vector<256x128xbf16> to vector<256x128xf32>
    %c0_1 = arith.constant 0 : index
    %c0_2 = arith.constant 0 : index
    %2 = vector.load %arg2[%c0_1, %c0_2] : memref<1x128xf32, #tpu.memory_space<vmem>>, vector<1x128xf32>
    %3 = vector.broadcast %2 : vector<1x128xf32> to vector<256x128xf32>
    %4 = arith.mulf %1, %3 : vector<256x128xf32>
    %c0_3 = arith.constant 0 : index
    %c0_4 = arith.constant 0 : index
    %5 = vector.load %arg3[%c0_3, %c0_4] : memref<1x128xf32, #tpu.memory_space<vmem>>, vector<1x128xf32>
    %6 = vector.broadcast %5 : vector<1x128xf32> to vector<256x128xf32>
    %7 = arith.addf %4, %6 : vector<256x128xf32>
    %cst = arith.constant 0.000000e+00 : f32
    %8 = vector.broadcast %cst : f32 to vector<256x128xf32>
    %9 = arith.maximumf %7, %8 : vector<256x128xf32>
    %c0_5 = arith.constant 0 : index
    %c0_6 = arith.constant 0 : index
    %10 = vector.load %arg4[%c0_5, %c0_6] : memref<256x128xf32, #tpu.memory_space<vmem>>, vector<256x128xf32>
    tpu.vector_store %arg4[%c0_5, %c0_6], %9 {strides = array<i32>} : memref<256x128xf32, #tpu.memory_space<vmem>>, vector<256x128xf32>,
    return
  }
  func.func @transform_0(%arg0: i32) -> (i32, i32) {
    %c0_i32 = arith.constant 0 : i32
    %c0_i32_0 = arith.constant 0 : i32
    return %arg0, %c0_i32 : i32, i32
  }
  func.func @transform_1(%arg0: i32) -> (i32, i32) {
    %c0_i32 = arith.constant 0 : i32
    %c0_i32_0 = arith.constant 0 : i32
    %c0_i32_1 = arith.constant 0 : i32
    return %c0_i32, %c0_i32_0 : i32, i32
  }
  func.func @transform_2(%arg0: i32) -> (i32, i32) {
    %c0_i32 = arith.constant 0 : i32
    %c0_i32_0 = arith.constant 0 : i32
    %c0_i32_1 = arith.constant 0 : i32
    return %c0_i32, %c0_i32_0 : i32, i32
  }
  func.func @transform_3(%arg0: i32) -> (i32, i32) {
    %c0_i32 = arith.constant 0 : i32
    %c0_i32_0 = arith.constant 0 : i32
    return %arg0, %c0_i32 : i32, i32
  }
}

module attributes {stable_mosaic.version = 11 : i64} {
  func.func @kernel(%arg0: i32, %arg1: memref<1x16x16x128xbf16, #tpu.memory_space<vmem>>, %arg2: memref<1x128xf32, #tpu.memory_space<vmem>>, %arg3: memref<1x128xf32, #tpu.memory_space<vmem>>, %arg4: memref<1152x128xbf16, #tpu.memory_space<vmem>>, %arg5: memref<1x128xf32, #tpu.memory_space<vmem>>, %arg6: memref<1x16x16x128xbf16, #tpu.memory_space<vmem>>, %arg7: memref<1x1x128xf32, #tpu.memory_space<vmem>>, %arg8: memref<1x1x128xf32, #tpu.memory_space<vmem>>, %arg9: memref<18x32x128xf32, #tpu.memory_space<vmem>>, %arg10: memref<256x1152xbf16, #tpu.memory_space<vmem>>) attributes {dimension_semantics = [#tpu.dimension_semantics<parallel>], iteration_bounds = array<i64: 2>, scalar_prefetch = 0 : i64, scratch_operands = 2 : i64, tpu.core_type = #tpu.core_type<tc>, window_params = [{transform_indices = @transform_0, window_bounds = array<i64: 1, 16, 16, 128>}, {pipeline_mode = #tpu.pipeline_mode<synchronous>, transform_indices = @transform_1, window_bounds = array<i64: 1, 128>}, {pipeline_mode = #tpu.pipeline_mode<synchronous>, transform_indices = @transform_2, window_bounds = array<i64: 1, 128>}, {pipeline_mode = #tpu.pipeline_mode<synchronous>, transform_indices = @transform_3, window_bounds = array<i64: 1152, 128>}, {pipeline_mode = #tpu.pipeline_mode<synchronous>, transform_indices = @transform_4, window_bounds = array<i64: 1, 128>}, {transform_indices = @transform_5, window_bounds = array<i64: 1, 16, 16, 128>}, {transform_indices = @transform_6, window_bounds = array<i64: 1, 1, 128>}, {transform_indices = @transform_7, window_bounds = array<i64: 1, 1, 128>}]} {
    %cst = arith.constant 0.000000e+00 : f32
    %0 = vector.broadcast %cst : f32 to vector<18x32x128xf32>
    %c0 = arith.constant 0 : index
    %c0_0 = arith.constant 0 : index
    %c0_1 = arith.constant 0 : index
    %1 = vector.load %arg9[%c0, %c0_0, %c0_1] : memref<18x32x128xf32, #tpu.memory_space<vmem>>, vector<18x32x128xf32>
    tpu.vector_store %arg9[%c0, %c0_0, %c0_1], %0 {strides = array<i32>} : memref<18x32x128xf32, #tpu.memory_space<vmem>>, vector<18x32x128xf32>,
    %c0_2 = arith.constant 0 : index
    %c0_3 = arith.constant 0 : index
    %c0_4 = arith.constant 0 : index
    %c0_5 = arith.constant 0 : index
    %2 = vector.load %arg1[%c0_2, %c0_3, %c0_4, %c0_5] : memref<1x16x16x128xbf16, #tpu.memory_space<vmem>>, vector<1x16x16x128xbf16>
    %3 = vector.shape_cast %2 : vector<1x16x16x128xbf16> to vector<16x16x128xbf16>
    %4 = arith.extf %3 : vector<16x16x128xbf16> to vector<16x16x128xf32>
    %c0_6 = arith.constant 0 : index
    %c0_7 = arith.constant 0 : index
    %5 = vector.load %arg2[%c0_6, %c0_7] : memref<1x128xf32, #tpu.memory_space<vmem>>, vector<1x128xf32>
    %6 = vector.shape_cast %5 : vector<1x128xf32> to vector<1x1x128xf32>
    %7 = vector.broadcast %6 : vector<1x1x128xf32> to vector<16x16x128xf32>
    %8 = arith.mulf %4, %7 : vector<16x16x128xf32>
    %c0_8 = arith.constant 0 : index
    %c0_9 = arith.constant 0 : index
    %9 = vector.load %arg3[%c0_8, %c0_9] : memref<1x128xf32, #tpu.memory_space<vmem>>, vector<1x128xf32>
    %10 = vector.shape_cast %9 : vector<1x128xf32> to vector<1x1x128xf32>
    %11 = vector.broadcast %10 : vector<1x1x128xf32> to vector<16x16x128xf32>
    %12 = arith.addf %8, %11 : vector<16x16x128xf32>
    %cst_10 = arith.constant 0.000000e+00 : f32
    %13 = vector.broadcast %cst_10 : f32 to vector<16x16x128xf32>
    %14 = arith.maximumf %12, %13 : vector<16x16x128xf32>
    %c1 = arith.constant 1 : index
    %c8 = arith.constant 8 : index
    %c0_11 = arith.constant 0 : index
    %15 = vector.load %arg9[%c1, %c8, %c0_11] : memref<18x32x128xf32, #tpu.memory_space<vmem>>, vector<16x16x128xf32>
    tpu.vector_store %arg9[%c1, %c8, %c0_11], %14 {strides = array<i32>} : memref<18x32x128xf32, #tpu.memory_space<vmem>>, vector<16x16x128xf32>,
    %c0_12 = arith.constant 0 : index
    %c7 = arith.constant 7 : index
    %c0_13 = arith.constant 0 : index
    %16 = vector.load %arg9[%c0_12, %c7, %c0_13] : memref<18x32x128xf32, #tpu.memory_space<vmem>>, vector<16x16x128xf32>
    %17 = vector.shape_cast %16 : vector<16x16x128xf32> to vector<256x128xf32>
    %18 = arith.truncf %17 : vector<256x128xf32> to vector<256x128xbf16>
    %c0_14 = arith.constant 0 : index
    %c0_15 = arith.constant 0 : index
    %19 = vector.load %arg10[%c0_14, %c0_15] : memref<256x1152xbf16, #tpu.memory_space<vmem>>, vector<256x128xbf16>
    tpu.vector_store %arg10[%c0_14, %c0_15], %18 {strides = array<i32>} : memref<256x1152xbf16, #tpu.memory_space<vmem>>, vector<256x128xbf16>,
    %c0_16 = arith.constant 0 : index
    %c8_17 = arith.constant 8 : index
    %c0_18 = arith.constant 0 : index
    %20 = vector.load %arg9[%c0_16, %c8_17, %c0_18] : memref<18x32x128xf32, #tpu.memory_space<vmem>>, vector<16x16x128xf32>
    %21 = vector.shape_cast %20 : vector<16x16x128xf32> to vector<256x128xf32>
    %22 = arith.truncf %21 : vector<256x128xf32> to vector<256x128xbf16>
    %c0_19 = arith.constant 0 : index
    %c128 = arith.constant 128 : index
    %23 = vector.load %arg10[%c0_19, %c128] : memref<256x1152xbf16, #tpu.memory_space<vmem>>, vector<256x128xbf16>
    tpu.vector_store %arg10[%c0_19, %c128], %22 {strides = array<i32>} : memref<256x1152xbf16, #tpu.memory_space<vmem>>, vector<256x128xbf16>,
    %c0_20 = arith.constant 0 : index
    %c9 = arith.constant 9 : index
    %c0_21 = arith.constant 0 : index
    %24 = vector.load %arg9[%c0_20, %c9, %c0_21] : memref<18x32x128xf32, #tpu.memory_space<vmem>>, vector<16x16x128xf32>
    %25 = vector.shape_cast %24 : vector<16x16x128xf32> to vector<256x128xf32>
    %26 = arith.truncf %25 : vector<256x128xf32> to vector<256x128xbf16>
    %c0_22 = arith.constant 0 : index
    %c256 = arith.constant 256 : index
    %27 = vector.load %arg10[%c0_22, %c256] : memref<256x1152xbf16, #tpu.memory_space<vmem>>, vector<256x128xbf16>
    tpu.vector_store %arg10[%c0_22, %c256], %26 {strides = array<i32>} : memref<256x1152xbf16, #tpu.memory_space<vmem>>, vector<256x128xbf16>,
    %c1_23 = arith.constant 1 : index
    %c7_24 = arith.constant 7 : index
    %c0_25 = arith.constant 0 : index
    %28 = vector.load %arg9[%c1_23, %c7_24, %c0_25] : memref<18x32x128xf32, #tpu.memory_space<vmem>>, vector<16x16x128xf32>
    %29 = vector.shape_cast %28 : vector<16x16x128xf32> to vector<256x128xf32>
    %30 = arith.truncf %29 : vector<256x128xf32> to vector<256x128xbf16>
    %c0_26 = arith.constant 0 : index
    %c384 = arith.constant 384 : index
    %31 = vector.load %arg10[%c0_26, %c384] : memref<256x1152xbf16, #tpu.memory_space<vmem>>, vector<256x128xbf16>
    tpu.vector_store %arg10[%c0_26, %c384], %30 {strides = array<i32>} : memref<256x1152xbf16, #tpu.memory_space<vmem>>, vector<256x128xbf16>,
    %c1_27 = arith.constant 1 : index
    %c8_28 = arith.constant 8 : index
    %c0_29 = arith.constant 0 : index
    %32 = vector.load %arg9[%c1_27, %c8_28, %c0_29] : memref<18x32x128xf32, #tpu.memory_space<vmem>>, vector<16x16x128xf32>
    %33 = vector.shape_cast %32 : vector<16x16x128xf32> to vector<256x128xf32>
    %34 = arith.truncf %33 : vector<256x128xf32> to vector<256x128xbf16>
    %c0_30 = arith.constant 0 : index
    %c512 = arith.constant 512 : index
    %35 = vector.load %arg10[%c0_30, %c512] : memref<256x1152xbf16, #tpu.memory_space<vmem>>, vector<256x128xbf16>
    tpu.vector_store %arg10[%c0_30, %c512], %34 {strides = array<i32>} : memref<256x1152xbf16, #tpu.memory_space<vmem>>, vector<256x128xbf16>,
    %c1_31 = arith.constant 1 : index
    %c9_32 = arith.constant 9 : index
    %c0_33 = arith.constant 0 : index
    %36 = vector.load %arg9[%c1_31, %c9_32, %c0_33] : memref<18x32x128xf32, #tpu.memory_space<vmem>>, vector<16x16x128xf32>
    %37 = vector.shape_cast %36 : vector<16x16x128xf32> to vector<256x128xf32>
    %38 = arith.truncf %37 : vector<256x128xf32> to vector<256x128xbf16>
    %c0_34 = arith.constant 0 : index
    %c640 = arith.constant 640 : index
    %39 = vector.load %arg10[%c0_34, %c640] : memref<256x1152xbf16, #tpu.memory_space<vmem>>, vector<256x128xbf16>
    tpu.vector_store %arg10[%c0_34, %c640], %38 {strides = array<i32>} : memref<256x1152xbf16, #tpu.memory_space<vmem>>, vector<256x128xbf16>,
    %c2 = arith.constant 2 : index
    %c7_35 = arith.constant 7 : index
    %c0_36 = arith.constant 0 : index
    %40 = vector.load %arg9[%c2, %c7_35, %c0_36] : memref<18x32x128xf32, #tpu.memory_space<vmem>>, vector<16x16x128xf32>
    %41 = vector.shape_cast %40 : vector<16x16x128xf32> to vector<256x128xf32>
    %42 = arith.truncf %41 : vector<256x128xf32> to vector<256x128xbf16>
    %c0_37 = arith.constant 0 : index
    %c768 = arith.constant 768 : index
    %43 = vector.load %arg10[%c0_37, %c768] : memref<256x1152xbf16, #tpu.memory_space<vmem>>, vector<256x128xbf16>
    tpu.vector_store %arg10[%c0_37, %c768], %42 {strides = array<i32>} : memref<256x1152xbf16, #tpu.memory_space<vmem>>, vector<256x128xbf16>,
    %c2_38 = arith.constant 2 : index
    %c8_39 = arith.constant 8 : index
    %c0_40 = arith.constant 0 : index
    %44 = vector.load %arg9[%c2_38, %c8_39, %c0_40] : memref<18x32x128xf32, #tpu.memory_space<vmem>>, vector<16x16x128xf32>
    %45 = vector.shape_cast %44 : vector<16x16x128xf32> to vector<256x128xf32>
    %46 = arith.truncf %45 : vector<256x128xf32> to vector<256x128xbf16>
    %c0_41 = arith.constant 0 : index
    %c896 = arith.constant 896 : index
    %47 = vector.load %arg10[%c0_41, %c896] : memref<256x1152xbf16, #tpu.memory_space<vmem>>, vector<256x128xbf16>
    tpu.vector_store %arg10[%c0_41, %c896], %46 {strides = array<i32>} : memref<256x1152xbf16, #tpu.memory_space<vmem>>, vector<256x128xbf16>,
    %c2_42 = arith.constant 2 : index
    %c9_43 = arith.constant 9 : index
    %c0_44 = arith.constant 0 : index
    %48 = vector.load %arg9[%c2_42, %c9_43, %c0_44] : memref<18x32x128xf32, #tpu.memory_space<vmem>>, vector<16x16x128xf32>
    %49 = vector.shape_cast %48 : vector<16x16x128xf32> to vector<256x128xf32>
    %50 = arith.truncf %49 : vector<256x128xf32> to vector<256x128xbf16>
    %c0_45 = arith.constant 0 : index
    %c1024 = arith.constant 1024 : index
    %51 = vector.load %arg10[%c0_45, %c1024] : memref<256x1152xbf16, #tpu.memory_space<vmem>>, vector<256x128xbf16>
    tpu.vector_store %arg10[%c0_45, %c1024], %50 {strides = array<i32>} : memref<256x1152xbf16, #tpu.memory_space<vmem>>, vector<256x128xbf16>,
    %c0_46 = arith.constant 0 : index
    %c0_47 = arith.constant 0 : index
    %52 = vector.load %arg10[%c0_46, %c0_47] : memref<256x1152xbf16, #tpu.memory_space<vmem>>, vector<256x1152xbf16>
    %c0_48 = arith.constant 0 : index
    %c0_49 = arith.constant 0 : index
    %53 = vector.load %arg4[%c0_48, %c0_49] : memref<1152x128xbf16, #tpu.memory_space<vmem>>, vector<1152x128xbf16>
    %cst_50 = arith.constant dense<0.000000e+00> : vector<256x128xf32>
    %54 = tpu.matmul %52, %53, %cst_50 {dimension_numbers = #tpu.dot_dimension_numbers<[1], [0], [0], [1], [0, 0, 1, 1], [], []>} : vector<256x1152xbf16>, vector<1152x128xbf16>, vector<256x128xf32> -> vector<256x128xf32>
    %c0_51 = arith.constant 0 : index
    %c0_52 = arith.constant 0 : index
    %55 = vector.load %arg5[%c0_51, %c0_52] : memref<1x128xf32, #tpu.memory_space<vmem>>, vector<1x128xf32>
    %56 = vector.broadcast %55 : vector<1x128xf32> to vector<256x128xf32>
    %57 = arith.addf %54, %56 : vector<256x128xf32>
    %58 = vector.shape_cast %57 : vector<256x128xf32> to vector<1x16x16x128xf32>
    %59 = arith.truncf %58 : vector<1x16x16x128xf32> to vector<1x16x16x128xbf16>
    %c0_53 = arith.constant 0 : index
    %c0_54 = arith.constant 0 : index
    %c0_55 = arith.constant 0 : index
    %c0_56 = arith.constant 0 : index
    %60 = vector.load %arg6[%c0_53, %c0_54, %c0_55, %c0_56] : memref<1x16x16x128xbf16, #tpu.memory_space<vmem>>, vector<1x16x16x128xbf16>
    tpu.vector_store %arg6[%c0_53, %c0_54, %c0_55, %c0_56], %59 {strides = array<i32>} : memref<1x16x16x128xbf16, #tpu.memory_space<vmem>>, vector<1x16x16x128xbf16>,
    %cst_57 = arith.constant dense<0.000000e+00> : vector<128xf32>
    %61 = vector.multi_reduction <add>, %57, %cst_57 [0] : vector<256x128xf32> to vector<128xf32>
    %62 = vector.shape_cast %61 : vector<128xf32> to vector<1x1x128xf32>
    %c0_58 = arith.constant 0 : index
    %c0_59 = arith.constant 0 : index
    %c0_60 = arith.constant 0 : index
    %63 = vector.load %arg7[%c0_58, %c0_59, %c0_60] : memref<1x1x128xf32, #tpu.memory_space<vmem>>, vector<1x1x128xf32>
    tpu.vector_store %arg7[%c0_58, %c0_59, %c0_60], %62 {strides = array<i32>} : memref<1x1x128xf32, #tpu.memory_space<vmem>>, vector<1x1x128xf32>,
    %64 = arith.mulf %57, %57 : vector<256x128xf32>
    %cst_61 = arith.constant dense<0.000000e+00> : vector<128xf32>
    %65 = vector.multi_reduction <add>, %64, %cst_61 [0] : vector<256x128xf32> to vector<128xf32>
    %66 = vector.shape_cast %65 : vector<128xf32> to vector<1x1x128xf32>
    %c0_62 = arith.constant 0 : index
    %c0_63 = arith.constant 0 : index
    %c0_64 = arith.constant 0 : index
    %67 = vector.load %arg8[%c0_62, %c0_63, %c0_64] : memref<1x1x128xf32, #tpu.memory_space<vmem>>, vector<1x1x128xf32>
    tpu.vector_store %arg8[%c0_62, %c0_63, %c0_64], %66 {strides = array<i32>} : memref<1x1x128xf32, #tpu.memory_space<vmem>>, vector<1x1x128xf32>,
    return
  }
  func.func @transform_0(%arg0: i32) -> (i32, i32, i32, i32) {
    %c0_i32 = arith.constant 0 : i32
    %c0_i32_0 = arith.constant 0 : i32
    %c0_i32_1 = arith.constant 0 : i32
    %c0_i32_2 = arith.constant 0 : i32
    return %arg0, %c0_i32, %c0_i32_0, %c0_i32_1 : i32, i32, i32, i32
  }
  func.func @transform_1(%arg0: i32) -> (i32, i32) {
    %c0_i32 = arith.constant 0 : i32
    %c0_i32_0 = arith.constant 0 : i32
    %c0_i32_1 = arith.constant 0 : i32
    return %c0_i32, %c0_i32_0 : i32, i32
  }
  func.func @transform_2(%arg0: i32) -> (i32, i32) {
    %c0_i32 = arith.constant 0 : i32
    %c0_i32_0 = arith.constant 0 : i32
    %c0_i32_1 = arith.constant 0 : i32
    return %c0_i32, %c0_i32_0 : i32, i32
  }
  func.func @transform_3(%arg0: i32) -> (i32, i32) {
    %c0_i32 = arith.constant 0 : i32
    %c0_i32_0 = arith.constant 0 : i32
    %c0_i32_1 = arith.constant 0 : i32
    return %c0_i32, %c0_i32_0 : i32, i32
  }
  func.func @transform_4(%arg0: i32) -> (i32, i32) {
    %c0_i32 = arith.constant 0 : i32
    %c0_i32_0 = arith.constant 0 : i32
    %c0_i32_1 = arith.constant 0 : i32
    return %c0_i32, %c0_i32_0 : i32, i32
  }
  func.func @transform_5(%arg0: i32) -> (i32, i32, i32, i32) {
    %c0_i32 = arith.constant 0 : i32
    %c0_i32_0 = arith.constant 0 : i32
    %c0_i32_1 = arith.constant 0 : i32
    %c0_i32_2 = arith.constant 0 : i32
    return %arg0, %c0_i32, %c0_i32_0, %c0_i32_1 : i32, i32, i32, i32
  }
  func.func @transform_6(%arg0: i32) -> (i32, i32, i32) {
    %c0_i32 = arith.constant 0 : i32
    %c0_i32_0 = arith.constant 0 : i32
    %c0_i32_1 = arith.constant 0 : i32
    return %arg0, %c0_i32, %c0_i32_0 : i32, i32, i32
  }
  func.func @transform_7(%arg0: i32) -> (i32, i32, i32) {
    %c0_i32 = arith.constant 0 : i32
    %c0_i32_0 = arith.constant 0 : i32
    %c0_i32_1 = arith.constant 0 : i32
    return %arg0, %c0_i32, %c0_i32_0 : i32, i32, i32
  }
}

</mosaic_0001>

<llo_original>
// kernel: double_conv_forward.5
$region0: #{double_conv_forward.5}
  #allocation0 [shape = 'u32[]', space=smem, size = 0x4, offset = 0x4, fixed_abs, tag = 'smem constant byte address 0x4 - core index']
  #allocation1 [shape = 'u32[144,128]{1,0:T(1,128)}', space=vmem, size = 0x12000, scoped, tag = 'internal scratch']
  %s0 = inlined_call_operand.vmem [shape: bf16[512,128], index: 0, kind: input, shape index: {}]
  %s1 = inlined_call_operand.vmem [shape: f32[1,128], index: 1, kind: input, shape index: {}]
  %s2 = inlined_call_operand.vmem [shape: f32[1,128], index: 2, kind: input, shape index: {}]
  %s3 = inlined_call_operand.vmem [shape: f32[512,128], index: 3, kind: output, shape index: {}]
  %s4 = sld [smem:[#allocation0]]
  $region45: #{double_conv_forward.5} parent=0
    _
  %s6 = ssub.s32 1, %s4
  %s7 = scalar_select 0, %s6, %s4
  loop: start=0, step=1, limit=4
  $region2: #{double_conv_forward.5} parent=0 // loop_pre_header
    _
  $region3: #{double_conv_forward.5} parent=0 // loop_header
    %s9 = sphi 0, %s13
    %p10 = scmp.ge.s32.totalorder %s9, 4
    %s19 = sphi 0, %s21
    %s22 = sphi 0, %s19
    %s23 = sphi 0, %s22
    %s39 = sphi 0, %s23
    %s43 = sphi 0, %s43
    %s45 = sphi 0, %s43
    %s46 = sphi 0, %s45
    %s60 = sphi 0, %s46
    %s64 = sphi 0, %s64
    %s66 = sphi 0, %s64
    %s67 = sphi 0, %s66
    %s81 = sphi 0, %s67
    %s87 = sphi 0, %s89
    %s90 = sphi 0, %s87
    %s91 = sphi 0, %s90
    %s107 = sphi 0, %s91
  $region4: #{double_conv_forward.5} parent=0 // loop_header_branch
    %12 = sbr.rel (%p10) target = $region8
  $region5: #{double_conv_forward.5} parent=0 // loop_body
    %s14 = ssub.s32 %s9, 1
    %s15 = ssub.s32 %s9, 2
    %s16 = sadd.s32 %s9, 1
    %s17 = ssub.s32 %s9, %s16
    %p18 = scmp.eq.s32.totalorder %s17, 0
    %s20 = sadd.s32 %s19, 1
    %s21 = scalar_select %p18, %s19, %s20
    %p24 = pneg %p18
    %p25 = scmp.eq.s32.totalorder %s9, 1
    %p26 = por %p24, %p25
    %p27 = scmp.ne.s32.totalorder %s19, %s22
    %p28 = scmp.eq.s32.totalorder %s9, 0
    %p29 = por %p27, %p28
    %p30 = scmp.ne.s32.totalorder %s19, %s22
    %p31 = scmp.eq.s32.totalorder %s14, 1
    %p32 = por %p30, %p31
    %p33 = scmp.ne.s32.totalorder %s22, %s23
    %p34 = scmp.eq.s32.totalorder %s14, 0
    %p35 = por %p33, %p34
    %p36 = scmp.ne.s32.totalorder %s22, %s23
    %p37 = scmp.eq.s32.totalorder %s15, 1
    %p38 = por %p36, %p37
    %p40 = scmp.ne.s32.totalorder %s23, %s39
    %p41 = scmp.eq.s32.totalorder %s15, 0
    %p42 = por %p40, %p41
    %s44 = sadd.s32 %s43, 1
    %p47 = scmp.eq.s32.totalorder %s9, 1
    %p48 = scmp.ne.s32.totalorder %s43, %s45
    %p49 = scmp.eq.s32.totalorder %s9, 0
    %p50 = por %p48, %p49
    %p51 = scmp.ne.s32.totalorder %s43, %s45
    %p52 = scmp.eq.s32.totalorder %s14, 1
    %p53 = por %p51, %p52
    %p54 = scmp.ne.s32.totalorder %s45, %s46
    %p55 = scmp.eq.s32.totalorder %s14, 0
    %p56 = por %p54, %p55
    %p57 = scmp.ne.s32.totalorder %s45, %s46
    %p58 = scmp.eq.s32.totalorder %s15, 1
    %p59 = por %p57, %p58
    %p61 = scmp.ne.s32.totalorder %s46, %s60
    %p62 = scmp.eq.s32.totalorder %s15, 0
    %p63 = por %p61, %p62
    %s65 = sadd.s32 %s64, 1
    %p68 = scmp.eq.s32.totalorder %s9, 1
    %p69 = scmp.ne.s32.totalorder %s64, %s66
    %p70 = scmp.eq.s32.totalorder %s9, 0
    %p71 = por %p69, %p70
    %p72 = scmp.ne.s32.totalorder %s64, %s66
    %p73 = scmp.eq.s32.totalorder %s14, 1
    %p74 = por %p72, %p73
    %p75 = scmp.ne.s32.totalorder %s66, %s67
    %p76 = scmp.eq.s32.totalorder %s14, 0
    %p77 = por %p75, %p76
    %p78 = scmp.ne.s32.totalorder %s66, %s67
    %p79 = scmp.eq.s32.totalorder %s15, 1
    %p80 = por %p78, %p79
    %p82 = scmp.ne.s32.totalorder %s67, %s81
    %p83 = scmp.eq.s32.totalorder %s15, 0
    %p84 = por %p82, %p83
    %s85 = ssub.s32 %s9, %s16
    %p86 = scmp.eq.s32.totalorder %s85, 0
    %s88 = sadd.s32 %s87, 1
    %s89 = scalar_select %p86, %s87, %s88
    %p92 = pneg %p86
    %p93 = scmp.eq.s32.totalorder %s9, 1
    %p94 = por %p92, %p93
    %p95 = scmp.ne.s32.totalorder %s87, %s90
    %p96 = scmp.eq.s32.totalorder %s9, 0
    %p97 = por %p95, %p96
    %p98 = scmp.ne.s32.totalorder %s87, %s90
    %p99 = scmp.eq.s32.totalorder %s14, 1
    %p100 = por %p98, %p99
    %p101 = scmp.ne.s32.totalorder %s90, %s91
    %p102 = scmp.eq.s32.totalorder %s14, 0
    %p103 = por %p101, %p102
    %p104 = scmp.ne.s32.totalorder %s90, %s91
    %p105 = scmp.eq.s32.totalorder %s15, 1
    %p106 = por %p104, %p105
    %p108 = scmp.ne.s32.totalorder %s91, %s107
    %p109 = scmp.eq.s32.totalorder %s15, 0
    %p110 = por %p108, %p109
    %p111 = scmp.le.s32.totalorder 1, %s9
    %p112 = scmp.lt.s32.totalorder %s9, 3
    %p113 = pnand %p111, %p112
    %p114 = pneg %p113
    // Predicated region
    $region9: #{double_conv_forward.5} parent=5 // pred_check
      _
    $region10: #{double_conv_forward.5} parent=5 // pred_check_branch
      %116 = sbr.rel (%p113) target = $region12
    $region11: #{double_conv_forward.5} parent=5 // pred_region
      %s117 = ssub.s32 %s9, 1
      // Predicated region
      $region13: #{double_conv_forward.5} parent=11 // pred_check
        %p118 = pneg %p56
      $region14: #{double_conv_forward.5} parent=11 // pred_check_branch
        %120 = sbr.rel (%p118) target = $region16
      $region15: #{double_conv_forward.5} parent=11 // pred_region
        _
      $region16: #{double_conv_forward.5} parent=11 // pred_fallthru
        _
      // Predicated region
      $region17: #{double_conv_forward.5} parent=11 // pred_check
        %p121 = pneg %p77
      $region18: #{double_conv_forward.5} parent=11 // pred_check_branch
        %123 = sbr.rel (%p121) target = $region20
      $region19: #{double_conv_forward.5} parent=11 // pred_region
        _
      $region20: #{double_conv_forward.5} parent=11 // pred_fallthru
        _
    $region12: #{double_conv_forward.5} parent=5 // pred_fallthru
      _
    %p124 = scmp.lt.s32.totalorder %s9, 2
    // Predicated region
    $region21: #{double_conv_forward.5} parent=5 // pred_check
      %p125 = pneg %p124
    $region22: #{double_conv_forward.5} parent=5 // pred_check_branch
      %127 = sbr.rel (%p125) target = $region24
    $region23: #{double_conv_forward.5} parent=5 // pred_region
      // Predicated region
      $region25: #{double_conv_forward.5} parent=23 // pred_check
        %p128 = pneg %p29
      $region26: #{double_conv_forward.5} parent=23 // pred_check_branch
        %130 = sbr.rel (%p128) target = $region28
      $region27: #{double_conv_forward.5} parent=23 // pred_region
        %s131 = smul.u32 32, %s9
        %p132 = scmp.lt.s32.totalorder %s131, 63
        %s133 = scalar_select %p132, %s131, 63
        %s134 = smul.addr %s133, 4
        %s135 = scalar_lea.vmem %s0, %s134
        %s136 = smul.u32 32, %s9
      $region28: #{double_conv_forward.5} parent=23 // pred_fallthru
        _
    $region24: #{double_conv_forward.5} parent=5 // pred_fallthru
      _
    %p137 = scmp.le.s32.totalorder 1, %s9
    %p138 = scmp.lt.s32.totalorder %s9, 3
    %p139 = pnand %p137, %p138
    %p140 = pneg %p139
    // Predicated region
    $region29: #{double_conv_forward.5} parent=5 // pred_check
      _
    $region30: #{double_conv_forward.5} parent=5 // pred_check_branch
      %142 = sbr.rel (%p139) target = $region32
    $region31: #{double_conv_forward.5} parent=5 // pred_region
      %s143 = ssub.s32 %s9, 1
      %s144 = smul.u32 32, %s14
      %p145 = scmp.lt.s32.totalorder %s144, 63
      %s146 = scalar_select %p145, %s144, 63
      %s147 = smul.addr %s146, 4
      %s148 = scalar_lea.vmem %s0, %s147
      %p149 = pneg %p35
      %p150 = pneg %p32
      %p151 = pneg %p56
      %p152 = pneg %p53
      %p153 = pneg %p77
      %p154 = pneg %p74
      %p155 = pneg %p103
      %p156 = pneg %p100
      %s157 = smul.u32 32, %s14
      %p158 = scmp.lt.s32.totalorder %s157, 63
      %s159 = scalar_select %p158, %s157, 63
      %s160 = smul.addr %s159, 8
      %s161 = scalar_lea.vmem %s3, %s160
      %s162 = smul.u32 32, %s14
      %p163 = scmp.lt.s32.totalorder %s162, 63
      %s164 = scalar_select %p163, %s162, 63
      %s165 = smul.addr %s164, 4
      %s166 = scalar_lea.vmem %s0, %s165
      %s167 = smul.u32 32, %s14
      %s168 = smul.u32 32, %s14
      %p169 = scmp.lt.s32.totalorder %s168, 63
      %s170 = scalar_select %p169, %s168, 63
      %s171 = smul.addr %s170, 8
      %s172 = scalar_lea.vmem %s3, %s171
      %s173 = smul.u32 32, %s14
      %v174 = vld [vmem:[%s166] sm:$0xf]
      %v175 = vld [vmem:[%s166 + $0x4] sm:$0xf]
      %v176 = vld [vmem:[%s166 + $0x8] sm:$0xf]
      %v177 = vld [vmem:[%s166 + $0xc] sm:$0xf]
      %v178 = vld [vmem:[%s166 + $0x10] sm:$0xf]
      %v179 = vld [vmem:[%s166 + $0x14] sm:$0xf]
      %v180 = vld [vmem:[%s166 + $0x18] sm:$0xf]
      %v181 = vld [vmem:[%s166 + $0x1c] sm:$0xf]
      %v182 = vld [vmem:[%s166 + $0x20] sm:$0xf]
      %v183 = vld [vmem:[%s166 + $0x24] sm:$0xf]
      %v184 = vld [vmem:[%s166 + $0x28] sm:$0xf]
      %v185 = vld [vmem:[%s166 + $0x2c] sm:$0xf]
      %v186 = vld [vmem:[%s166 + $0x30] sm:$0xf]
      %v187 = vld [vmem:[%s166 + $0x34] sm:$0xf]
      %v188 = vld [vmem:[%s166 + $0x38] sm:$0xf]
      %v189 = vld [vmem:[%s166 + $0x3c] sm:$0xf]
      %v190 = vld [vmem:[%s166 + $0x40] sm:$0xf]
      %v191 = vld [vmem:[%s166 + $0x44] sm:$0xf]
      %v192 = vld [vmem:[%s166 + $0x48] sm:$0xf]
      %v193 = vld [vmem:[%s166 + $0x4c] sm:$0xf]
      %v194 = vld [vmem:[%s166 + $0x50] sm:$0xf]
      %v195 = vld [vmem:[%s166 + $0x54] sm:$0xf]
      %v196 = vld [vmem:[%s166 + $0x58] sm:$0xf]
      %v197 = vld [vmem:[%s166 + $0x5c] sm:$0xf]
      %v198 = vld [vmem:[%s166 + $0x60] sm:$0xf]
      %v199 = vld [vmem:[%s166 + $0x64] sm:$0xf]
      %v200 = vld [vmem:[%s166 + $0x68] sm:$0xf]
      %v201 = vld [vmem:[%s166 + $0x6c] sm:$0xf]
      %v202 = vld [vmem:[%s166 + $0x70] sm:$0xf]
      %v203 = vld [vmem:[%s166 + $0x74] sm:$0xf]
      %v204 = vld [vmem:[%s166 + $0x78] sm:$0xf]
      %v205 = vld [vmem:[%s166 + $0x7c] sm:$0xf]
      %v206 = vunpack.c.l.bf16 %v174
      %v207 = vunpack.c.l.bf16 %v175
      %v208 = vunpack.c.l.bf16 %v176
      %v209 = vunpack.c.l.bf16 %v177
      %v210 = vunpack.c.l.bf16 %v178
      %v211 = vunpack.c.l.bf16 %v179
      %v212 = vunpack.c.l.bf16 %v180
      %v213 = vunpack.c.l.bf16 %v181
      %v214 = vunpack.c.l.bf16 %v182
      %v215 = vunpack.c.l.bf16 %v183
      %v216 = vunpack.c.l.bf16 %v184
      %v217 = vunpack.c.l.bf16 %v185
      %v218 = vunpack.c.l.bf16 %v186
      %v219 = vunpack.c.l.bf16 %v187
      %v220 = vunpack.c.l.bf16 %v188
      %v221 = vunpack.c.l.bf16 %v189
      %v222 = vunpack.c.l.bf16 %v190
      %v223 = vunpack.c.l.bf16 %v191
      %v224 = vunpack.c.l.bf16 %v192
      %v225 = vunpack.c.l.bf16 %v193
      %v226 = vunpack.c.l.bf16 %v194
      %v227 = vunpack.c.l.bf16 %v195
      %v228 = vunpack.c.l.bf16 %v196
      %v229 = vunpack.c.l.bf16 %v197
      %v230 = vunpack.c.l.bf16 %v198
      %v231 = vunpack.c.l.bf16 %v199
      %v232 = vunpack.c.l.bf16 %v200
      %v233 = vunpack.c.l.bf16 %v201
      %v234 = vunpack.c.l.bf16 %v202
      %v235 = vunpack.c.l.bf16 %v203
      %v236 = vunpack.c.l.bf16 %v204
      %v237 = vunpack.c.l.bf16 %v205
      %v238 = vld [vmem:[%s1] sm:$0x1]
      %v240 = vlaneseq
      %v241 = vshrl.u32 %v240, 7
      %v242 = vsub.s32 0, %v241
      %v243 = vrot.slane %v238, %v242
      %v245 = vmul.f32 %v206, %v243
      %v246 = vmul.f32 %v207, %v243
      %v247 = vmul.f32 %v208, %v243
      %v248 = vmul.f32 %v209, %v243
      %v249 = vmul.f32 %v210, %v243
      %v250 = vmul.f32 %v211, %v243
      %v251 = vmul.f32 %v212, %v243
      %v252 = vmul.f32 %v213, %v243
      %v253 = vmul.f32 %v214, %v243
      %v254 = vmul.f32 %v215, %v243
      %v255 = vmul.f32 %v216, %v243
      %v256 = vmul.f32 %v217, %v243
      %v257 = vmul.f32 %v218, %v243
      %v258 = vmul.f32 %v219, %v243
      %v259 = vmul.f32 %v220, %v243
      %v260 = vmul.f32 %v221, %v243
      %v261 = vmul.f32 %v222, %v243
      %v262 = vmul.f32 %v223, %v243
      %v263 = vmul.f32 %v224, %v243
      %v264 = vmul.f32 %v225, %v243
      %v265 = vmul.f32 %v226, %v243
      %v266 = vmul.f32 %v227, %v243
      %v267 = vmul.f32 %v228, %v243
      %v268 = vmul.f32 %v229, %v243
      %v269 = vmul.f32 %v230, %v243
      %v270 = vmul.f32 %v231, %v243
      %v271 = vmul.f32 %v232, %v243
      %v272 = vmul.f32 %v233, %v243
      %v273 = vmul.f32 %v234, %v243
      %v274 = vmul.f32 %v235, %v243
      %v275 = vmul.f32 %v236, %v243
      %v276 = vmul.f32 %v237, %v243
      %v277 = vld [vmem:[%s2] sm:$0x1]
      %v279 = vlaneseq
      %v280 = vshrl.u32 %v279, 7
      %v281 = vsub.s32 0, %v280
      %v282 = vrot.slane %v277, %v281
      %v284 = vadd.f32 %v245, %v282
      %v285 = vadd.f32 %v246, %v282
      %v286 = vadd.f32 %v247, %v282
      %v287 = vadd.f32 %v248, %v282
      %v288 = vadd.f32 %v249, %v282
      %v289 = vadd.f32 %v250, %v282
      %v290 = vadd.f32 %v251, %v282
      %v291 = vadd.f32 %v252, %v282
      %v292 = vadd.f32 %v253, %v282
      %v293 = vadd.f32 %v254, %v282
      %v294 = vadd.f32 %v255, %v282
      %v295 = vadd.f32 %v256, %v282
      %v296 = vadd.f32 %v257, %v282
      %v297 = vadd.f32 %v258, %v282
      %v298 = vadd.f32 %v259, %v282
      %v299 = vadd.f32 %v260, %v282
      %v300 = vadd.f32 %v261, %v282
      %v301 = vadd.f32 %v262, %v282
      %v302 = vadd.f32 %v263, %v282
      %v303 = vadd.f32 %v264, %v282
      %v304 = vadd.f32 %v265, %v282
      %v305 = vadd.f32 %v266, %v282
      %v306 = vadd.f32 %v267, %v282
      %v307 = vadd.f32 %v268, %v282
      %v308 = vadd.f32 %v269, %v282
      %v309 = vadd.f32 %v270, %v282
      %v310 = vadd.f32 %v271, %v282
      %v311 = vadd.f32 %v272, %v282
      %v312 = vadd.f32 %v273, %v282
      %v313 = vadd.f32 %v274, %v282
      %v314 = vadd.f32 %v275, %v282
      %v315 = vadd.f32 %v276, %v282
      %v316 = vmax.f32 %v284, 0.0
      %v317 = vmax.f32 %v285, 0.0
      %v318 = vmax.f32 %v286, 0.0
      %v319 = vmax.f32 %v287, 0.0
      %v320 = vmax.f32 %v288, 0.0
      %v321 = vmax.f32 %v289, 0.0
      %v322 = vmax.f32 %v290, 0.0
      %v323 = vmax.f32 %v291, 0.0
      %v324 = vmax.f32 %v292, 0.0
      %v325 = vmax.f32 %v293, 0.0
      %v326 = vmax.f32 %v294, 0.0
      %v327 = vmax.f32 %v295, 0.0
      %v328 = vmax.f32 %v296, 0.0
      %v329 = vmax.f32 %v297, 0.0
      %v330 = vmax.f32 %v298, 0.0
      %v331 = vmax.f32 %v299, 0.0
      %v332 = vmax.f32 %v300, 0.0
      %v333 = vmax.f32 %v301, 0.0
      %v334 = vmax.f32 %v302, 0.0
      %v335 = vmax.f32 %v303, 0.0
      %v336 = vmax.f32 %v304, 0.0
      %v337 = vmax.f32 %v305, 0.0
      %v338 = vmax.f32 %v306, 0.0
      %v339 = vmax.f32 %v307, 0.0
      %v340 = vmax.f32 %v308, 0.0
      %v341 = vmax.f32 %v309, 0.0
      %v342 = vmax.f32 %v310, 0.0
      %v343 = vmax.f32 %v311, 0.0
      %v344 = vmax.f32 %v312, 0.0
      %v345 = vmax.f32 %v313, 0.0
      %v346 = vmax.f32 %v314, 0.0
      %v347 = vmax.f32 %v315, 0.0
      %348 = vst [vmem:[%s172] sm:$0xff] %v316
      %349 = vst [vmem:[%s172 + $0x8] sm:$0xff] %v317
      %350 = vst [vmem:[%s172 + $0x10] sm:$0xff] %v318
      %351 = vst [vmem:[%s172 + $0x18] sm:$0xff] %v319
      %352 = vst [vmem:[%s172 + $0x20] sm:$0xff] %v320
      %353 = vst [vmem:[%s172 + $0x28] sm:$0xff] %v321
      %354 = vst [vmem:[%s172 + $0x30] sm:$0xff] %v322
      %355 = vst [vmem:[%s172 + $0x38] sm:$0xff] %v323
      %356 = vst [vmem:[%s172 + $0x40] sm:$0xff] %v324
      %357 = vst [vmem:[%s172 + $0x48] sm:$0xff] %v325
      %358 = vst [vmem:[%s172 + $0x50] sm:$0xff] %v326
      %359 = vst [vmem:[%s172 + $0x58] sm:$0xff] %v327
      %360 = vst [vmem:[%s172 + $0x60] sm:$0xff] %v328
      %361 = vst [vmem:[%s172 + $0x68] sm:$0xff] %v329
      %362 = vst [vmem:[%s172 + $0x70] sm:$0xff] %v330
      %363 = vst [vmem:[%s172 + $0x78] sm:$0xff] %v331
      %364 = vst [vmem:[%s172 + $0x80] sm:$0xff] %v332
      %365 = vst [vmem:[%s172 + $0x88] sm:$0xff] %v333
      %366 = vst [vmem:[%s172 + $0x90] sm:$0xff] %v334
      %367 = vst [vmem:[%s172 + $0x98] sm:$0xff] %v335
      %368 = vst [vmem:[%s172 + $0xa0] sm:$0xff] %v336
      %369 = vst [vmem:[%s172 + $0xa8] sm:$0xff] %v337
      %370 = vst [vmem:[%s172 + $0xb0] sm:$0xff] %v338
      %371 = vst [vmem:[%s172 + $0xb8] sm:$0xff] %v339
      %372 = vst [vmem:[%s172 + $0xc0] sm:$0xff] %v340
      %373 = vst [vmem:[%s172 + $0xc8] sm:$0xff] %v341
      %374 = vst [vmem:[%s172 + $0xd0] sm:$0xff] %v342
      %375 = vst [vmem:[%s172 + $0xd8] sm:$0xff] %v343
      %376 = vst [vmem:[%s172 + $0xe0] sm:$0xff] %v344
      %377 = vst [vmem:[%s172 + $0xe8] sm:$0xff] %v345
      %378 = vst [vmem:[%s172 + $0xf0] sm:$0xff] %v346
      %379 = vst [vmem:[%s172 + $0xf8] sm:$0xff] %v347
      %s380 = smul.u32 32, %s14
      %p381 = scmp.lt.s32.totalorder %s380, 63
      %s382 = scalar_select %p381, %s380, 63
      %s383 = smul.addr %s382, 8
      %s384 = scalar_lea.vmem %s3, %s383
      // Predicated region
      $region33: #{double_conv_forward.5} parent=31 // pred_check
        %p385 = pneg %p100
      $region34: #{double_conv_forward.5} parent=31 // pred_check_branch
        %387 = sbr.rel (%p385) target = $region36
      $region35: #{double_conv_forward.5} parent=31 // pred_region
        %s388 = smul.u32 32, %s14
      $region36: #{double_conv_forward.5} parent=31 // pred_fallthru
        _
    $region32: #{double_conv_forward.5} parent=5 // pred_fallthru
      _
    %p389 = scmp.le.s32.totalorder 2, %s9
    // Predicated region
    $region37: #{double_conv_forward.5} parent=5 // pred_check
      %p390 = pneg %p389
    $region38: #{double_conv_forward.5} parent=5 // pred_check_branch
      %392 = sbr.rel (%p390) target = $region40
    $region39: #{double_conv_forward.5} parent=5 // pred_region
      %s393 = ssub.s32 %s9, 2
      // Predicated region
      $region41: #{double_conv_forward.5} parent=39 // pred_check
        %p394 = pneg %p106
      $region42: #{double_conv_forward.5} parent=39 // pred_check_branch
        %396 = sbr.rel (%p394) target = $region44
      $region43: #{double_conv_forward.5} parent=39 // pred_region
        %s397 = smul.u32 32, %s15
        %p398 = scmp.lt.s32.totalorder %s397, 63
        %s399 = scalar_select %p398, %s397, 63
        %s400 = smul.addr %s399, 8
        %s401 = scalar_lea.vmem %s3, %s400
      $region44: #{double_conv_forward.5} parent=39 // pred_fallthru
        _
    $region40: #{double_conv_forward.5} parent=5 // pred_fallthru
      _
  $region6: #{double_conv_forward.5} parent=0 // loop_footer
    %s13 = sadd.s32 1, %s9
  $region7: #{double_conv_forward.5} parent=0 // loop_footer_branch
    %8 = sbr.rel target = $region3
  $region8: #{double_conv_forward.5} parent=0 // loop_exit
    _

// kernel: double_conv_forward.4
$region0: #{double_conv_forward.4}
  #allocation0 [shape = 'u32[]', space=smem, size = 0x4, offset = 0x4, fixed_abs, tag = 'smem constant byte address 0x4 - core index']
  #allocation1 [shape = 'u32[144,128]{1,0:T(1,128)}', space=vmem, size = 0x12000, scoped, tag = 'internal scratch']
  #allocation2 [shape = 'f32[18,32,128]{2,1,0:T(8,128)}', space=vmem, size = 0x48000, scoped, tag = 'scratch operand']
  #allocation3 [shape = 'bf16[256,1152]{1,0:T(16,128)(2,1)}', space=vmem, size = 0x90000, scoped, tag = 'scratch operand']
  %s0 = inlined_call_operand.vmem [shape: bf16[2,16,16,128], index: 0, kind: input, shape index: {}]
  %s1 = inlined_call_operand.vmem [shape: f32[1,128], index: 1, kind: input, shape index: {}]
  %s2 = inlined_call_operand.vmem [shape: f32[1,128], index: 2, kind: input, shape index: {}]
  %s3 = inlined_call_operand.vmem [shape: bf16[1152,128], index: 3, kind: input, shape index: {}]
  %s4 = inlined_call_operand.vmem [shape: f32[1,128], index: 4, kind: input, shape index: {}]
  %s5 = inlined_call_operand.vmem [shape: bf16[2,16,16,128], index: 5, kind: output, shape index: {0}]
  %s6 = inlined_call_operand.vmem [shape: f32[2,1,128], index: 6, kind: output, shape index: {1}]
  %s7 = inlined_call_operand.vmem [shape: f32[2,1,128], index: 7, kind: output, shape index: {2}]
  %8 = xla_tuple %s5, %s6, %s7
  %s9 = sld [smem:[#allocation0]]
  $region69: #{double_conv_forward.4} parent=0
    _
  %s11 = ssub.s32 1, %s9
  %s12 = scalar_select 0, %s11, %s9
  loop: start=0, step=1, limit=4
  $region2: #{double_conv_forward.4} parent=0 // loop_pre_header
    _
  $region3: #{double_conv_forward.4} parent=0 // loop_header
    %s14 = sphi 0, %s18
    %p15 = scmp.ge.s32.totalorder %s14, 4
    %s24 = sphi 0, %s26
    %s27 = sphi 0, %s24
    %s28 = sphi 0, %s27
    %s44 = sphi 0, %s28
    %s48 = sphi 0, %s48
    %s50 = sphi 0, %s48
    %s51 = sphi 0, %s50
    %s65 = sphi 0, %s51
    %s69 = sphi 0, %s69
    %s71 = sphi 0, %s69
    %s72 = sphi 0, %s71
    %s86 = sphi 0, %s72
    %s90 = sphi 0, %s90
    %s92 = sphi 0, %s90
    %s93 = sphi 0, %s92
    %s107 = sphi 0, %s93
    %s111 = sphi 0, %s111
    %s113 = sphi 0, %s111
    %s114 = sphi 0, %s113
    %s128 = sphi 0, %s114
    %s134 = sphi 0, %s136
    %s137 = sphi 0, %s134
    %s138 = sphi 0, %s137
    %s154 = sphi 0, %s138
    %s160 = sphi 0, %s162
    %s163 = sphi 0, %s160
    %s164 = sphi 0, %s163
    %s180 = sphi 0, %s164
    %s186 = sphi 0, %s188
    %s189 = sphi 0, %s186
    %s190 = sphi 0, %s189
    %s206 = sphi 0, %s190
  $region4: #{double_conv_forward.4} parent=0 // loop_header_branch
    %17 = sbr.rel (%p15) target = $region8
  $region5: #{double_conv_forward.4} parent=0 // loop_body
    %s19 = ssub.s32 %s14, 1
    %s20 = ssub.s32 %s14, 2
    %s21 = sadd.s32 %s14, 1
    %s22 = ssub.s32 %s14, %s21
    %p23 = scmp.eq.s32.totalorder %s22, 0
    %s25 = sadd.s32 %s24, 1
    %s26 = scalar_select %p23, %s24, %s25
    %p29 = pneg %p23
    %p30 = scmp.eq.s32.totalorder %s14, 1
    %p31 = por %p29, %p30
    %p32 = scmp.ne.s32.totalorder %s24, %s27
    %p33 = scmp.eq.s32.totalorder %s14, 0
    %p34 = por %p32, %p33
    %p35 = scmp.ne.s32.totalorder %s24, %s27
    %p36 = scmp.eq.s32.totalorder %s19, 1
    %p37 = por %p35, %p36
    %p38 = scmp.ne.s32.totalorder %s27, %s28
    %p39 = scmp.eq.s32.totalorder %s19, 0
    %p40 = por %p38, %p39
    %p41 = scmp.ne.s32.totalorder %s27, %s28
    %p42 = scmp.eq.s32.totalorder %s20, 1
    %p43 = por %p41, %p42
    %p45 = scmp.ne.s32.totalorder %s28, %s44
    %p46 = scmp.eq.s32.totalorder %s20, 0
    %p47 = por %p45, %p46
    %s49 = sadd.s32 %s48, 1
    %p52 = scmp.eq.s32.totalorder %s14, 1
    %p53 = scmp.ne.s32.totalorder %s48, %s50
    %p54 = scmp.eq.s32.totalorder %s14, 0
    %p55 = por %p53, %p54
    %p56 = scmp.ne.s32.totalorder %s48, %s50
    %p57 = scmp.eq.s32.totalorder %s19, 1
    %p58 = por %p56, %p57
    %p59 = scmp.ne.s32.totalorder %s50, %s51
    %p60 = scmp.eq.s32.totalorder %s19, 0
    %p61 = por %p59, %p60
    %p62 = scmp.ne.s32.totalorder %s50, %s51
    %p63 = scmp.eq.s32.totalorder %s20, 1
    %p64 = por %p62, %p63
    %p66 = scmp.ne.s32.totalorder %s51, %s65
    %p67 = scmp.eq.s32.totalorder %s20, 0
    %p68 = por %p66, %p67
    %s70 = sadd.s32 %s69, 1
    %p73 = scmp.eq.s32.totalorder %s14, 1
    %p74 = scmp.ne.s32.totalorder %s69, %s71
    %p75 = scmp.eq.s32.totalorder %s14, 0
    %p76 = por %p74, %p75
    %p77 = scmp.ne.s32.totalorder %s69, %s71
    %p78 = scmp.eq.s32.totalorder %s19, 1
    %p79 = por %p77, %p78
    %p80 = scmp.ne.s32.totalorder %s71, %s72
    %p81 = scmp.eq.s32.totalorder %s19, 0
    %p82 = por %p80, %p81
    %p83 = scmp.ne.s32.totalorder %s71, %s72
    %p84 = scmp.eq.s32.totalorder %s20, 1
    %p85 = por %p83, %p84
    %p87 = scmp.ne.s32.totalorder %s72, %s86
    %p88 = scmp.eq.s32.totalorder %s20, 0
    %p89 = por %p87, %p88
    %s91 = sadd.s32 %s90, 1
    %p94 = scmp.eq.s32.totalorder %s14, 1
    %p95 = scmp.ne.s32.totalorder %s90, %s92
    %p96 = scmp.eq.s32.totalorder %s14, 0
    %p97 = por %p95, %p96
    %p98 = scmp.ne.s32.totalorder %s90, %s92
    %p99 = scmp.eq.s32.totalorder %s19, 1
    %p100 = por %p98, %p99
    %p101 = scmp.ne.s32.totalorder %s92, %s93
    %p102 = scmp.eq.s32.totalorder %s19, 0
    %p103 = por %p101, %p102
    %p104 = scmp.ne.s32.totalorder %s92, %s93
    %p105 = scmp.eq.s32.totalorder %s20, 1
    %p106 = por %p104, %p105
    %p108 = scmp.ne.s32.totalorder %s93, %s107
    %p109 = scmp.eq.s32.totalorder %s20, 0
    %p110 = por %p108, %p109
    %s112 = sadd.s32 %s111, 1
    %p115 = scmp.eq.s32.totalorder %s14, 1
    %p116 = scmp.ne.s32.totalorder %s111, %s113
    %p117 = scmp.eq.s32.totalorder %s14, 0
    %p118 = por %p116, %p117
    %p119 = scmp.ne.s32.totalorder %s111, %s113
    %p120 = scmp.eq.s32.totalorder %s19, 1
    %p121 = por %p119, %p120
    %p122 = scmp.ne.s32.totalorder %s113, %s114
    %p123 = scmp.eq.s32.totalorder %s19, 0
    %p124 = por %p122, %p123
    %p125 = scmp.ne.s32.totalorder %s113, %s114
    %p126 = scmp.eq.s32.totalorder %s20, 1
    %p127 = por %p125, %p126
    %p129 = scmp.ne.s32.totalorder %s114, %s128
    %p130 = scmp.eq.s32.totalorder %s20, 0
    %p131 = por %p129, %p130
    %s132 = ssub.s32 %s14, %s21
    %p133 = scmp.eq.s32.totalorder %s132, 0
    %s135 = sadd.s32 %s134, 1
    %s136 = scalar_select %p133, %s134, %s135
    %p139 = pneg %p133
    %p140 = scmp.eq.s32.totalorder %s14, 1
    %p141 = por %p139, %p140
    %p142 = scmp.ne.s32.totalorder %s134, %s137
    %p143 = scmp.eq.s32.totalorder %s14, 0
    %p144 = por %p142, %p143
    %p145 = scmp.ne.s32.totalorder %s134, %s137
    %p146 = scmp.eq.s32.totalorder %s19, 1
    %p147 = por %p145, %p146
    %p148 = scmp.ne.s32.totalorder %s137, %s138
    %p149 = scmp.eq.s32.totalorder %s19, 0
    %p150 = por %p148, %p149
    %p151 = scmp.ne.s32.totalorder %s137, %s138
    %p152 = scmp.eq.s32.totalorder %s20, 1
    %p153 = por %p151, %p152
    %p155 = scmp.ne.s32.totalorder %s138, %s154
    %p156 = scmp.eq.s32.totalorder %s20, 0
    %p157 = por %p155, %p156
    %s158 = ssub.s32 %s14, %s21
    %p159 = scmp.eq.s32.totalorder %s158, 0
    %s161 = sadd.s32 %s160, 1
    %s162 = scalar_select %p159, %s160, %s161
    %p165 = pneg %p159
    %p166 = scmp.eq.s32.totalorder %s14, 1
    %p167 = por %p165, %p166
    %p168 = scmp.ne.s32.totalorder %s160, %s163
    %p169 = scmp.eq.s32.totalorder %s14, 0
    %p170 = por %p168, %p169
    %p171 = scmp.ne.s32.totalorder %s160, %s163
    %p172 = scmp.eq.s32.totalorder %s19, 1
    %p173 = por %p171, %p172
    %p174 = scmp.ne.s32.totalorder %s163, %s164
    %p175 = scmp.eq.s32.totalorder %s19, 0
    %p176 = por %p174, %p175
    %p177 = scmp.ne.s32.totalorder %s163, %s164
    %p178 = scmp.eq.s32.totalorder %s20, 1
    %p179 = por %p177, %p178
    %p181 = scmp.ne.s32.totalorder %s164, %s180
    %p182 = scmp.eq.s32.totalorder %s20, 0
    %p183 = por %p181, %p182
    %s184 = ssub.s32 %s14, %s21
    %p185 = scmp.eq.s32.totalorder %s184, 0
    %s187 = sadd.s32 %s186, 1
    %s188 = scalar_select %p185, %s186, %s187
    %p191 = pneg %p185
    %p192 = scmp.eq.s32.totalorder %s14, 1
    %p193 = por %p191, %p192
    %p194 = scmp.ne.s32.totalorder %s186, %s189
    %p195 = scmp.eq.s32.totalorder %s14, 0
    %p196 = por %p194, %p195
    %p197 = scmp.ne.s32.totalorder %s186, %s189
    %p198 = scmp.eq.s32.totalorder %s19, 1
    %p199 = por %p197, %p198
    %p200 = scmp.ne.s32.totalorder %s189, %s190
    %p201 = scmp.eq.s32.totalorder %s19, 0
    %p202 = por %p200, %p201
    %p203 = scmp.ne.s32.totalorder %s189, %s190
    %p204 = scmp.eq.s32.totalorder %s20, 1
    %p205 = por %p203, %p204
    %p207 = scmp.ne.s32.totalorder %s190, %s206
    %p208 = scmp.eq.s32.totalorder %s20, 0
    %p209 = por %p207, %p208
    %p210 = scmp.le.s32.totalorder 1, %s14
    %p211 = scmp.lt.s32.totalorder %s14, 3
    %p212 = pnand %p210, %p211
    %p213 = pneg %p212
    // Predicated region
    $region9: #{double_conv_forward.4} parent=5 // pred_check
      _
    $region10: #{double_conv_forward.4} parent=5 // pred_check_branch
      %215 = sbr.rel (%p212) target = $region12
    $region11: #{double_conv_forward.4} parent=5 // pred_region
      %s216 = ssub.s32 %s14, 1
      // Predicated region
      $region13: #{double_conv_forward.4} parent=11 // pred_check
        %p217 = pneg %p61
      $region14: #{double_conv_forward.4} parent=11 // pred_check_branch
        %219 = sbr.rel (%p217) target = $region16
      $region15: #{double_conv_forward.4} parent=11 // pred_region
        _
      $region16: #{double_conv_forward.4} parent=11 // pred_fallthru
        _
      // Predicated region
      $region17: #{double_conv_forward.4} parent=11 // pred_check
        %p220 = pneg %p82
      $region18: #{double_conv_forward.4} parent=11 // pred_check_branch
        %222 = sbr.rel (%p220) target = $region20
      $region19: #{double_conv_forward.4} parent=11 // pred_region
        _
      $region20: #{double_conv_forward.4} parent=11 // pred_fallthru
        _
      // Predicated region
      $region21: #{double_conv_forward.4} parent=11 // pred_check
        %p223 = pneg %p103
      $region22: #{double_conv_forward.4} parent=11 // pred_check_branch
        %225 = sbr.rel (%p223) target = $region24
      $region23: #{double_conv_forward.4} parent=11 // pred_region
        _
      $region24: #{double_conv_forward.4} parent=11 // pred_fallthru
        _
      // Predicated region
      $region25: #{double_conv_forward.4} parent=11 // pred_check
        %p226 = pneg %p124
      $region26: #{double_conv_forward.4} parent=11 // pred_check_branch
        %228 = sbr.rel (%p226) target = $region28
      $region27: #{double_conv_forward.4} parent=11 // pred_region
        _
      $region28: #{double_conv_forward.4} parent=11 // pred_fallthru
        _
    $region12: #{double_conv_forward.4} parent=5 // pred_fallthru
      _
    %p229 = scmp.lt.s32.totalorder %s14, 2
    // Predicated region
    $region29: #{double_conv_forward.4} parent=5 // pred_check
      %p230 = pneg %p229
    $region30: #{double_conv_forward.4} parent=5 // pred_check_branch
      %232 = sbr.rel (%p230) target = $region32
    $region31: #{double_conv_forward.4} parent=5 // pred_region
      // Predicated region
      $region33: #{double_conv_forward.4} parent=31 // pred_check
        %p233 = pneg %p34
      $region34: #{double_conv_forward.4} parent=31 // pred_check_branch
        %235 = sbr.rel (%p233) target = $region36
      $region35: #{double_conv_forward.4} parent=31 // pred_region
        %p236 = scmp.lt.s32.totalorder %s14, 1
        %s237 = scalar_select %p236, %s14, 1
        %s238 = smul.addr %s237, 32
        %s239 = smul.addr %s238, 4
        %s240 = scalar_lea.vmem %s0, %s239
      $region36: #{double_conv_forward.4} parent=31 // pred_fallthru
        _
    $region32: #{double_conv_forward.4} parent=5 // pred_fallthru
      _
    %p241 = scmp.le.s32.totalorder 1, %s14
    %p242 = scmp.lt.s32.totalorder %s14, 3
    %p243 = pnand %p241, %p242
    %p244 = pneg %p243
    // Predicated region
    $region37: #{double_conv_forward.4} parent=5 // pred_check
      _
    $region38: #{double_conv_forward.4} parent=5 // pred_check_branch
      %246 = sbr.rel (%p243) target = $region40
    $region39: #{double_conv_forward.4} parent=5 // pred_region
      %s247 = ssub.s32 %s14, 1
      %p248 = scmp.lt.s32.totalorder %s19, 1
      %s249 = scalar_select %p248, %s19, 1
      %s250 = smul.addr %s249, 32
      %s251 = smul.addr %s250, 4
      %s252 = scalar_lea.vmem %s0, %s251
      %p253 = pneg %p40
      %p254 = pneg %p37
      %p255 = pneg %p61
      %p256 = pneg %p58
      %p257 = pneg %p82
      %p258 = pneg %p79
      %p259 = pneg %p103
      %p260 = pneg %p100
      %p261 = pneg %p124
      %p262 = pneg %p121
      %p263 = pneg %p150
      %p264 = pneg %p147
      %p265 = scmp.lt.s32.totalorder %s19, 1
      %s266 = scalar_select %p265, %s19, 1
      %s267 = smul.addr %s266, 32
      %s268 = smul.addr %s267, 4
      %s269 = scalar_lea.vmem %s5, %s268
      %p270 = pneg %p176
      %p271 = pneg %p173
      %p272 = scmp.lt.s32.totalorder %s19, 1
      %s273 = scalar_select %p272, %s19, 1
      %s274 = scalar_lea.vmem %s6, %s273
      %p275 = pneg %p202
      %p276 = pneg %p199
      %p277 = scmp.lt.s32.totalorder %s19, 1
      %s278 = scalar_select %p277, %s19, 1
      %s279 = scalar_lea.vmem %s7, %s278
      %p280 = scmp.lt.s32.totalorder %s19, 1
      %s281 = scalar_select %p280, %s19, 1
      %s282 = smul.addr %s281, 32
      %s283 = smul.addr %s282, 4
      %s284 = scalar_lea.vmem %s0, %s283
      %p285 = scmp.lt.s32.totalorder %s19, 1
      %s286 = scalar_select %p285, %s19, 1
      %s287 = smul.addr %s286, 32
      %s288 = smul.addr %s287, 4
      %s289 = scalar_lea.vmem %s5, %s288
      %p290 = scmp.lt.s32.totalorder %s19, 1
      %s291 = scalar_select %p290, %s19, 1
      %s292 = scalar_lea.vmem %s6, %s291
      %p293 = scmp.lt.s32.totalorder %s19, 1
      %s294 = scalar_select %p293, %s19, 1
      %s295 = scalar_lea.vmem %s7, %s294
      %297 = vst [vmem:[#allocation2] sm:$0xff] 0.0
      %298 = vst [vmem:[#allocation2 + $0x8] sm:$0xff] 0.0
      %299 = vst [vmem:[#allocation2 + $0x10] sm:$0xff] 0.0
      %300 = vst [vmem:[#allocation2 + $0x18] sm:$0xff] 0.0
      %301 = vst [vmem:[#allocation2 + $0x20] sm:$0xff] 0.0
      %302 = vst [vmem:[#allocation2 + $0x28] sm:$0xff] 0.0
      %303 = vst [vmem:[#allocation2 + $0x30] sm:$0xff] 0.0
      %304 = vst [vmem:[#allocation2 + $0x38] sm:$0xff] 0.0
      %305 = vst [vmem:[#allocation2 + $0x40] sm:$0xff] 0.0
      %306 = vst [vmem:[#allocation2 + $0x48] sm:$0xff] 0.0
      %307 = vst [vmem:[#allocation2 + $0x50] sm:$0xff] 0.0
      %308 = vst [vmem:[#allocation2 + $0x58] sm:$0xff] 0.0
      %309 = vst [vmem:[#allocation2 + $0x60] sm:$0xff] 0.0
      %310 = vst [vmem:[#allocation2 + $0x68] sm:$0xff] 0.0
      %311 = vst [vmem:[#allocation2 + $0x70] sm:$0xff] 0.0
      %312 = vst [vmem:[#allocation2 + $0x78] sm:$0xff] 0.0
      %313 = vst [vmem:[#allocation2 + $0x80] sm:$0xff] 0.0
      %314 = vst [vmem:[#allocation2 + $0x88] sm:$0xff] 0.0
      %315 = vst [vmem:[#allocation2 + $0x90] sm:$0xff] 0.0
      %316 = vst [vmem:[#allocation2 + $0x98] sm:$0xff] 0.0
      %317 = vst [vmem:[#allocation2 + $0xa0] sm:$0xff] 0.0
      %318 = vst [vmem:[#allocation2 + $0xa8] sm:$0xff] 0.0
      %319 = vst [vmem:[#allocation2 + $0xb0] sm:$0xff] 0.0
      %320 = vst [vmem:[#allocation2 + $0xb8] sm:$0xff] 0.0
      %321 = vst [vmem:[#allocation2 + $0xc0] sm:$0xff] 0.0
      %322 = vst [vmem:[#allocation2 + $0xc8] sm:$0xff] 0.0
      %323 = vst [vmem:[#allocation2 + $0xd0] sm:$0xff] 0.0
      %324 = vst [vmem:[#allocation2 + $0xd8] sm:$0xff] 0.0
      %325 = vst [vmem:[#allocation2 + $0xe0] sm:$0xff] 0.0
      %326 = vst [vmem:[#allocation2 + $0xe8] sm:$0xff] 0.0
      %327 = vst [vmem:[#allocation2 + $0xf0] sm:$0xff] 0.0
      %328 = vst [vmem:[#allocation2 + $0xf8] sm:$0xff] 0.0
      %329 = vst [vmem:[#allocation2 + $0x100] sm:$0xff] 0.0
      %330 = vst [vmem:[#allocation2 + $0x108] sm:$0xff] 0.0
      %331 = vst [vmem:[#allocation2 + $0x110] sm:$0xff] 0.0
      %332 = vst [vmem:[#allocation2 + $0x118] sm:$0xff] 0.0
      %333 = vst [vmem:[#allocation2 + $0x120] sm:$0xff] 0.0
      %334 = vst [vmem:[#allocation2 + $0x128] sm:$0xff] 0.0
      %335 = vst [vmem:[#allocation2 + $0x130] sm:$0xff] 0.0
      %336 = vst [vmem:[#allocation2 + $0x138] sm:$0xff] 0.0
      %337 = vst [vmem:[#allocation2 + $0x140] sm:$0xff] 0.0
      %338 = vst [vmem:[#allocation2 + $0x148] sm:$0xff] 0.0
      %339 = vst [vmem:[#allocation2 + $0x150] sm:$0xff] 0.0
      %340 = vst [vmem:[#allocation2 + $0x158] sm:$0xff] 0.0
      %341 = vst [vmem:[#allocation2 + $0x160] sm:$0xff] 0.0
      %342 = vst [vmem:[#allocation2 + $0x168] sm:$0xff] 0.0
      %343 = vst [vmem:[#allocation2 + $0x170] sm:$0xff] 0.0
      %344 = vst [vmem:[#allocation2 + $0x178] sm:$0xff] 0.0
      %345 = vst [vmem:[#allocation2 + $0x180] sm:$0xff] 0.0
      %346 = vst [vmem:[#allocation2 + $0x188] sm:$0xff] 0.0
      %347 = vst [vmem:[#allocation2 + $0x190] sm:$0xff] 0.0
      %348 = vst [vmem:[#allocation2 + $0x198] sm:$0xff] 0.0
      %349 = vst [vmem:[#allocation2 + $0x1a0] sm:$0xff] 0.0
      %350 = vst [vmem:[#allocation2 + $0x1a8] sm:$0xff] 0.0
      %351 = vst [vmem:[#allocation2 + $0x1b0] sm:$0xff] 0.0
      %352 = vst [vmem:[#allocation2 + $0x1b8] sm:$0xff] 0.0
      %353 = vst [vmem:[#allocation2 + $0x1c0] sm:$0xff] 0.0
      %354 = vst [vmem:[#allocation2 + $0x1c8] sm:$0xff] 0.0
      %355 = vst [vmem:[#allocation2 + $0x1d0] sm:$0xff] 0.0
      %356 = vst [vmem:[#allocation2 + $0x1d8] sm:$0xff] 0.0
      %357 = vst [vmem:[#allocation2 + $0x1e0] sm:$0xff] 0.0
      %358 = vst [vmem:[#allocation2 + $0x1e8] sm:$0xff] 0.0
      %359 = vst [vmem:[#allocation2 + $0x1f0] sm:$0xff] 0.0
      %360 = vst [vmem:[#allocation2 + $0x1f8] sm:$0xff] 0.0
      %361 = vst [vmem:[#allocation2 + $0x200] sm:$0xff] 0.0
      %362 = vst [vmem:[#allocation2 + $0x208] sm:$0xff] 0.0
      %363 = vst [vmem:[#allocation2 + $0x210] sm:$0xff] 0.0
      %364 = vst [vmem:[#allocation2 + $0x218] sm:$0xff] 0.0
      %365 = vst [vmem:[#allocation2 + $0x220] sm:$0xff] 0.0
      %366 = vst [vmem:[#allocation2 + $0x228] sm:$0xff] 0.0
      %367 = vst [vmem:[#allocation2 + $0x230] sm:$0xff] 0.0
      %368 = vst [vmem:[#allocation2 + $0x238] sm:$0xff] 0.0
      %v369 = vld [vmem:[%s284] sm:$0xf]
      %v370 = vld [vmem:[%s284 + $0x4] sm:$0xf]
      %v371 = vld [vmem:[%s284 + $0x8] sm:$0xf]
      %v372 = vld [vmem:[%s284 + $0xc] sm:$0xf]
      %v373 = vld [vmem:[%s284 + $0x10] sm:$0xf]
      %v374 = vld [vmem:[%s284 + $0x14] sm:$0xf]
      %v375 = vld [vmem:[%s284 + $0x18] sm:$0xf]
      %v376 = vld [vmem:[%s284 + $0x1c] sm:$0xf]
      %v377 = vld [vmem:[%s284 + $0x20] sm:$0xf]
      %v378 = vld [vmem:[%s284 + $0x24] sm:$0xf]
      %v379 = vld [vmem:[%s284 + $0x28] sm:$0xf]
      %v380 = vld [vmem:[%s284 + $0x2c] sm:$0xf]
      %v381 = vld [vmem:[%s284 + $0x30] sm:$0xf]
      %v382 = vld [vmem:[%s284 + $0x34] sm:$0xf]
      %v383 = vld [vmem:[%s284 + $0x38] sm:$0xf]
      %v384 = vld [vmem:[%s284 + $0x3c] sm:$0xf]
      %v385 = vld [vmem:[%s284 + $0x40] sm:$0xf]
      %v386 = vld [vmem:[%s284 + $0x44] sm:$0xf]
      %v387 = vld [vmem:[%s284 + $0x48] sm:$0xf]
      %v388 = vld [vmem:[%s284 + $0x4c] sm:$0xf]
      %v389 = vld [vmem:[%s284 + $0x50] sm:$0xf]
      %v390 = vld [vmem:[%s284 + $0x54] sm:$0xf]
      %v391 = vld [vmem:[%s284 + $0x58] sm:$0xf]
      %v392 = vld [vmem:[%s284 + $0x5c] sm:$0xf]
      %v393 = vld [vmem:[%s284 + $0x60] sm:$0xf]
      %v394 = vld [vmem:[%s284 + $0x64] sm:$0xf]
      %v395 = vld [vmem:[%s284 + $0x68] sm:$0xf]
      %v396 = vld [vmem:[%s284 + $0x6c] sm:$0xf]
      %v397 = vld [vmem:[%s284 + $0x70] sm:$0xf]
      %v398 = vld [vmem:[%s284 + $0x74] sm:$0xf]
      %v399 = vld [vmem:[%s284 + $0x78] sm:$0xf]
      %v400 = vld [vmem:[%s284 + $0x7c] sm:$0xf]
      %v401 = vunpack.c.l.bf16 %v369
      %v402 = vunpack.c.l.bf16 %v370
      %v403 = vunpack.c.l.bf16 %v371
      %v404 = vunpack.c.l.bf16 %v372
      %v405 = vunpack.c.l.bf16 %v373
      %v406 = vunpack.c.l.bf16 %v374
      %v407 = vunpack.c.l.bf16 %v375
      %v408 = vunpack.c.l.bf16 %v376
      %v409 = vunpack.c.l.bf16 %v377
      %v410 = vunpack.c.l.bf16 %v378
      %v411 = vunpack.c.l.bf16 %v379
      %v412 = vunpack.c.l.bf16 %v380
      %v413 = vunpack.c.l.bf16 %v381
      %v414 = vunpack.c.l.bf16 %v382
      %v415 = vunpack.c.l.bf16 %v383
      %v416 = vunpack.c.l.bf16 %v384
      %v417 = vunpack.c.l.bf16 %v385
      %v418 = vunpack.c.l.bf16 %v386
      %v419 = vunpack.c.l.bf16 %v387
      %v420 = vunpack.c.l.bf16 %v388
      %v421 = vunpack.c.l.bf16 %v389
      %v422 = vunpack.c.l.bf16 %v390
      %v423 = vunpack.c.l.bf16 %v391
      %v424 = vunpack.c.l.bf16 %v392
      %v425 = vunpack.c.l.bf16 %v393
      %v426 = vunpack.c.l.bf16 %v394
      %v427 = vunpack.c.l.bf16 %v395
      %v428 = vunpack.c.l.bf16 %v396
      %v429 = vunpack.c.l.bf16 %v397
      %v430 = vunpack.c.l.bf16 %v398
      %v431 = vunpack.c.l.bf16 %v399
      %v432 = vunpack.c.l.bf16 %v400
      %v433 = vld [vmem:[%s1] sm:$0x1]
      %v435 = vlaneseq
      %v436 = vshrl.u32 %v435, 7
      %v437 = vsub.s32 0, %v436
      %v438 = vrot.slane %v433, %v437
      %v440 = vmul.f32 %v401, %v438
      %v441 = vmul.f32 %v402, %v438
      %v442 = vmul.f32 %v403, %v438
      %v443 = vmul.f32 %v404, %v438
      %v444 = vmul.f32 %v405, %v438
      %v445 = vmul.f32 %v406, %v438
      %v446 = vmul.f32 %v407, %v438
      %v447 = vmul.f32 %v408, %v438
      %v448 = vmul.f32 %v409, %v438
      %v449 = vmul.f32 %v410, %v438
      %v450 = vmul.f32 %v411, %v438
      %v451 = vmul.f32 %v412, %v438
      %v452 = vmul.f32 %v413, %v438
      %v453 = vmul.f32 %v414, %v438
      %v454 = vmul.f32 %v415, %v438
      %v455 = vmul.f32 %v416, %v438
      %v456 = vmul.f32 %v417, %v438
      %v457 = vmul.f32 %v418, %v438
      %v458 = vmul.f32 %v419, %v438
      %v459 = vmul.f32 %v420, %v438
      %v460 = vmul.f32 %v421, %v438
      %v461 = vmul.f32 %v422, %v438
      %v462 = vmul.f32 %v423, %v438
      %v463 = vmul.f32 %v424, %v438
      %v464 = vmul.f32 %v425, %v438
      %v465 = vmul.f32 %v426, %v438
      %v466 = vmul.f32 %v427, %v438
      %v467 = vmul.f32 %v428, %v438
      %v468 = vmul.f32 %v429, %v438
      %v469 = vmul.f32 %v430, %v438
      %v470 = vmul.f32 %v431, %v438
      %v471 = vmul.f32 %v432, %v438
      %v472 = vld [vmem:[%s2] sm:$0x1]
      %v474 = vlaneseq
      %v475 = vshrl.u32 %v474, 7
      %v476 = vsub.s32 0, %v475
      %v477 = vrot.slane %v472, %v476
      %v479 = vadd.f32 %v440, %v477
      %v480 = vadd.f32 %v441, %v477
      %v481 = vadd.f32 %v442, %v477
      %v482 = vadd.f32 %v443, %v477
      %v483 = vadd.f32 %v444, %v477
      %v484 = vadd.f32 %v445, %v477
      %v485 = vadd.f32 %v446, %v477
      %v486 = vadd.f32 %v447, %v477
      %v487 = vadd.f32 %v448, %v477
      %v488 = vadd.f32 %v449, %v477
      %v489 = vadd.f32 %v450, %v477
      %v490 = vadd.f32 %v451, %v477
      %v491 = vadd.f32 %v452, %v477
      %v492 = vadd.f32 %v453, %v477
      %v493 = vadd.f32 %v454, %v477
      %v494 = vadd.f32 %v455, %v477
      %v495 = vadd.f32 %v456, %v477
      %v496 = vadd.f32 %v457, %v477
      %v497 = vadd.f32 %v458, %v477
      %v498 = vadd.f32 %v459, %v477
      %v499 = vadd.f32 %v460, %v477
      %v500 = vadd.f32 %v461, %v477
      %v501 = vadd.f32 %v462, %v477
      %v502 = vadd.f32 %v463, %v477
      %v503 = vadd.f32 %v464, %v477
      %v504 = vadd.f32 %v465, %v477
      %v505 = vadd.f32 %v466, %v477
      %v506 = vadd.f32 %v467, %v477
      %v507 = vadd.f32 %v468, %v477
      %v508 = vadd.f32 %v469, %v477
      %v509 = vadd.f32 %v470, %v477
      %v510 = vadd.f32 %v471, %v477
      %v511 = vmax.f32 %v479, 0.0
      %v512 = vmax.f32 %v480, 0.0
      %v513 = vmax.f32 %v481, 0.0
      %v514 = vmax.f32 %v482, 0.0
      %v515 = vmax.f32 %v483, 0.0
      %v516 = vmax.f32 %v484, 0.0
      %v517 = vmax.f32 %v485, 0.0
      %v518 = vmax.f32 %v486, 0.0
      %v519 = vmax.f32 %v487, 0.0
      %v520 = vmax.f32 %v488, 0.0
      %v521 = vmax.f32 %v489, 0.0
      %v522 = vmax.f32 %v490, 0.0
      %v523 = vmax.f32 %v491, 0.0
      %v524 = vmax.f32 %v492, 0.0
      %v525 = vmax.f32 %v493, 0.0
      %v526 = vmax.f32 %v494, 0.0
      %v527 = vmax.f32 %v495, 0.0
      %v528 = vmax.f32 %v496, 0.0
      %v529 = vmax.f32 %v497, 0.0
      %v530 = vmax.f32 %v498, 0.0
      %v531 = vmax.f32 %v499, 0.0
      %v532 = vmax.f32 %v500, 0.0
      %v533 = vmax.f32 %v501, 0.0
      %v534 = vmax.f32 %v502, 0.0
      %v535 = vmax.f32 %v503, 0.0
      %v536 = vmax.f32 %v504, 0.0
      %v537 = vmax.f32 %v505, 0.0
      %v538 = vmax.f32 %v506, 0.0
      %v539 = vmax.f32 %v507, 0.0
      %v540 = vmax.f32 %v508, 0.0
      %v541 = vmax.f32 %v509, 0.0
      %v542 = vmax.f32 %v510, 0.0
      %s543 = scalar_lea.vmem [#allocation2], 32
      %544 = vst [vmem:[%s543 + $0x8] sm:$0xff] %v511
      %545 = vst [vmem:[%s543 + $0x10] sm:$0xff] %v512
      %546 = vst [vmem:[%s543 + $0x28] sm:$0xff] %v513
      %547 = vst [vmem:[%s543 + $0x30] sm:$0xff] %v514
      %548 = vst [vmem:[%s543 + $0x48] sm:$0xff] %v515
      %549 = vst [vmem:[%s543 + $0x50] sm:$0xff] %v516
      %550 = vst [vmem:[%s543 + $0x68] sm:$0xff] %v517
      %551 = vst [vmem:[%s543 + $0x70] sm:$0xff] %v518
      %552 = vst [vmem:[%s543 + $0x88] sm:$0xff] %v519
      %553 = vst [vmem:[%s543 + $0x90] sm:$0xff] %v520
      %554 = vst [vmem:[%s543 + $0xa8] sm:$0xff] %v521
      %555 = vst [vmem:[%s543 + $0xb0] sm:$0xff] %v522
      %556 = vst [vmem:[%s543 + $0xc8] sm:$0xff] %v523
      %557 = vst [vmem:[%s543 + $0xd0] sm:$0xff] %v524
      %558 = vst [vmem:[%s543 + $0xe8] sm:$0xff] %v525
      %559 = vst [vmem:[%s543 + $0xf0] sm:$0xff] %v526
      %560 = vst [vmem:[%s543 + $0x108] sm:$0xff] %v527
      %561 = vst [vmem:[%s543 + $0x110] sm:$0xff] %v528
      %562 = vst [vmem:[%s543 + $0x128] sm:$0xff] %v529
      %563 = vst [vmem:[%s543 + $0x130] sm:$0xff] %v530
      %564 = vst [vmem:[%s543 + $0x148] sm:$0xff] %v531
      %565 = vst [vmem:[%s543 + $0x150] sm:$0xff] %v532
      %566 = vst [vmem:[%s543 + $0x168] sm:$0xff] %v533
      %567 = vst [vmem:[%s543 + $0x170] sm:$0xff] %v534
      %568 = vst [vmem:[%s543 + $0x188] sm:$0xff] %v535
      %569 = vst [vmem:[%s543 + $0x190] sm:$0xff] %v536
      %570 = vst [vmem:[%s543 + $0x1a8] sm:$0xff] %v537
      %571 = vst [vmem:[%s543 + $0x1b0] sm:$0xff] %v538
      %572 = vst [vmem:[%s543 + $0x1c8] sm:$0xff] %v539
      %573 = vst [vmem:[%s543 + $0x1d0] sm:$0xff] %v540
      %574 = vst [vmem:[%s543 + $0x1e8] sm:$0xff] %v541
      %575 = vst [vmem:[%s543 + $0x1f0] sm:$0xff] %v542
      %v576 = vld [vmem:[#allocation2 + $0x7] sm:$0xff]
      %v577 = vld [vmem:[#allocation2 + $0xf] sm:$0xff]
      %v578 = vld [vmem:[#allocation2 + $0x27] sm:$0xff]
      %v579 = vld [vmem:[#allocation2 + $0x2f] sm:$0xff]
      %v580 = vld [vmem:[#allocation2 + $0x47] sm:$0xff]
      %v581 = vld [vmem:[#allocation2 + $0x4f] sm:$0xff]
      %v582 = vld [vmem:[#allocation2 + $0x67] sm:$0xff]
      %v583 = vld [vmem:[#allocation2 + $0x6f] sm:$0xff]
      %v584 = vld [vmem:[#allocation2 + $0x87] sm:$0xff]
      %v585 = vld [vmem:[#allocation2 + $0x8f] sm:$0xff]
      %v586 = vld [vmem:[#allocation2 + $0xa7] sm:$0xff]
      %v587 = vld [vmem:[#allocation2 + $0xaf] sm:$0xff]
      %v588 = vld [vmem:[#allocation2 + $0xc7] sm:$0xff]
      %v589 = vld [vmem:[#allocation2 + $0xcf] sm:$0xff]
      %v590 = vld [vmem:[#allocation2 + $0xe7] sm:$0xff]
      %v591 = vld [vmem:[#allocation2 + $0xef] sm:$0xff]
      %v592 = vld [vmem:[#allocation2 + $0x107] sm:$0xff]
      %v593 = vld [vmem:[#allocation2 + $0x10f] sm:$0xff]
      %v594 = vld [vmem:[#allocation2 + $0x127] sm:$0xff]
      %v595 = vld [vmem:[#allocation2 + $0x12f] sm:$0xff]
      %v596 = vld [vmem:[#allocation2 + $0x147] sm:$0xff]
      %v597 = vld [vmem:[#allocation2 + $0x14f] sm:$0xff]
      %v598 = vld [vmem:[#allocation2 + $0x167] sm:$0xff]
      %v599 = vld [vmem:[#allocation2 + $0x16f] sm:$0xff]
      %v600 = vld [vmem:[#allocation2 + $0x187] sm:$0xff]
      %v601 = vld [vmem:[#allocation2 + $0x18f] sm:$0xff]
      %v602 = vld [vmem:[#allocation2 + $0x1a7] sm:$0xff]
      %v603 = vld [vmem:[#allocation2 + $0x1af] sm:$0xff]
      %v604 = vld [vmem:[#allocation2 + $0x1c7] sm:$0xff]
      %v605 = vld [vmem:[#allocation2 + $0x1cf] sm:$0xff]
      %v606 = vld [vmem:[#allocation2 + $0x1e7] sm:$0xff]
      %v607 = vld [vmem:[#allocation2 + $0x1ef] sm:$0xff]
      %v608 = vpack.c.bf16 %v577, %v576
      %v609 = vpack.c.bf16 %v579, %v578
      %v610 = vpack.c.bf16 %v581, %v580
      %v611 = vpack.c.bf16 %v583, %v582
      %v612 = vpack.c.bf16 %v585, %v584
      %v613 = vpack.c.bf16 %v587, %v586
      %v614 = vpack.c.bf16 %v589, %v588
      %v615 = vpack.c.bf16 %v591, %v590
      %v616 = vpack.c.bf16 %v593, %v592
      %v617 = vpack.c.bf16 %v595, %v594
      %v618 = vpack.c.bf16 %v597, %v596
      %v619 = vpack.c.bf16 %v599, %v598
      %v620 = vpack.c.bf16 %v601, %v600
      %v621 = vpack.c.bf16 %v603, %v602
      %v622 = vpack.c.bf16 %v605, %v604
      %v623 = vpack.c.bf16 %v607, %v606
      %624 = vst [vmem:[#allocation3] sm:$0xff] %v608
      %625 = vst [vmem:[#allocation3 + $0x48] sm:$0xff] %v609
      %626 = vst [vmem:[#allocation3 + $0x90] sm:$0xff] %v610
      %627 = vst [vmem:[#allocation3 + $0xd8] sm:$0xff] %v611
      %628 = vst [vmem:[#allocation3 + $0x120] sm:$0xff] %v612
      %629 = vst [vmem:[#allocation3 + $0x168] sm:$0xff] %v613
      %630 = vst [vmem:[#allocation3 + $0x1b0] sm:$0xff] %v614
      %631 = vst [vmem:[#allocation3 + $0x1f8] sm:$0xff] %v615
      %632 = vst [vmem:[#allocation3 + $0x240] sm:$0xff] %v616
      %633 = vst [vmem:[#allocation3 + $0x288] sm:$0xff] %v617
      %634 = vst [vmem:[#allocation3 + $0x2d0] sm:$0xff] %v618
      %635 = vst [vmem:[#allocation3 + $0x318] sm:$0xff] %v619
      %636 = vst [vmem:[#allocation3 + $0x360] sm:$0xff] %v620
      %637 = vst [vmem:[#allocation3 + $0x3a8] sm:$0xff] %v621
      %638 = vst [vmem:[#allocation3 + $0x3f0] sm:$0xff] %v622
      %639 = vst [vmem:[#allocation3 + $0x438] sm:$0xff] %v623
      %v640 = vld [vmem:[#allocation2 + $0x8] sm:$0xff]
      %v641 = vld [vmem:[#allocation2 + $0x10] sm:$0xff]
      %v642 = vld [vmem:[#allocation2 + $0x28] sm:$0xff]
      %v643 = vld [vmem:[#allocation2 + $0x30] sm:$0xff]
      %v644 = vld [vmem:[#allocation2 + $0x48] sm:$0xff]
      %v645 = vld [vmem:[#allocation2 + $0x50] sm:$0xff]
      %v646 = vld [vmem:[#allocation2 + $0x68] sm:$0xff]
      %v647 = vld [vmem:[#allocation2 + $0x70] sm:$0xff]
      %v648 = vld [vmem:[#allocation2 + $0x88] sm:$0xff]
      %v649 = vld [vmem:[#allocation2 + $0x90] sm:$0xff]
      %v650 = vld [vmem:[#allocation2 + $0xa8] sm:$0xff]
      %v651 = vld [vmem:[#allocation2 + $0xb0] sm:$0xff]
      %v652 = vld [vmem:[#allocation2 + $0xc8] sm:$0xff]
      %v653 = vld [vmem:[#allocation2 + $0xd0] sm:$0xff]
      %v654 = vld [vmem:[#allocation2 + $0xe8] sm:$0xff]
      %v655 = vld [vmem:[#allocation2 + $0xf0] sm:$0xff]
      %v656 = vld [vmem:[#allocation2 + $0x108] sm:$0xff]
      %v657 = vld [vmem:[#allocation2 + $0x110] sm:$0xff]
      %v658 = vld [vmem:[#allocation2 + $0x128] sm:$0xff]
      %v659 = vld [vmem:[#allocation2 + $0x130] sm:$0xff]
      %v660 = vld [vmem:[#allocation2 + $0x148] sm:$0xff]
      %v661 = vld [vmem:[#allocation2 + $0x150] sm:$0xff]
      %v662 = vld [vmem:[#allocation2 + $0x168] sm:$0xff]
      %v663 = vld [vmem:[#allocation2 + $0x170] sm:$0xff]
      %v664 = vld [vmem:[#allocation2 + $0x188] sm:$0xff]
      %v665 = vld [vmem:[#allocation2 + $0x190] sm:$0xff]
      %v666 = vld [vmem:[#allocation2 + $0x1a8] sm:$0xff]
      %v667 = vld [vmem:[#allocation2 + $0x1b0] sm:$0xff]
      %v668 = vld [vmem:[#allocation2 + $0x1c8] sm:$0xff]
      %v669 = vld [vmem:[#allocation2 + $0x1d0] sm:$0xff]
      %v670 = vld [vmem:[#allocation2 + $0x1e8] sm:$0xff]
      %v671 = vld [vmem:[#allocation2 + $0x1f0] sm:$0xff]
      %v672 = vpack.c.bf16 %v641, %v640
      %v673 = vpack.c.bf16 %v643, %v642
      %v674 = vpack.c.bf16 %v645, %v644
      %v675 = vpack.c.bf16 %v647, %v646
      %v676 = vpack.c.bf16 %v649, %v648
      %v677 = vpack.c.bf16 %v651, %v650
      %v678 = vpack.c.bf16 %v653, %v652
      %v679 = vpack.c.bf16 %v655, %v654
      %v680 = vpack.c.bf16 %v657, %v656
      %v681 = vpack.c.bf16 %v659, %v658
      %v682 = vpack.c.bf16 %v661, %v660
      %v683 = vpack.c.bf16 %v663, %v662
      %v684 = vpack.c.bf16 %v665, %v664
      %v685 = vpack.c.bf16 %v667, %v666
      %v686 = vpack.c.bf16 %v669, %v668
      %v687 = vpack.c.bf16 %v671, %v670
      %688 = vst [vmem:[#allocation3 + $0x8] sm:$0xff] %v672
      %689 = vst [vmem:[#allocation3 + $0x50] sm:$0xff] %v673
      %690 = vst [vmem:[#allocation3 + $0x98] sm:$0xff] %v674
      %691 = vst [vmem:[#allocation3 + $0xe0] sm:$0xff] %v675
      %692 = vst [vmem:[#allocation3 + $0x128] sm:$0xff] %v676
      %693 = vst [vmem:[#allocation3 + $0x170] sm:$0xff] %v677
      %694 = vst [vmem:[#allocation3 + $0x1b8] sm:$0xff] %v678
      %695 = vst [vmem:[#allocation3 + $0x200] sm:$0xff] %v679
      %696 = vst [vmem:[#allocation3 + $0x248] sm:$0xff] %v680
      %697 = vst [vmem:[#allocation3 + $0x290] sm:$0xff] %v681
      %698 = vst [vmem:[#allocation3 + $0x2d8] sm:$0xff] %v682
      %699 = vst [vmem:[#allocation3 + $0x320] sm:$0xff] %v683
      %700 = vst [vmem:[#allocation3 + $0x368] sm:$0xff] %v684
      %701 = vst [vmem:[#allocation3 + $0x3b0] sm:$0xff] %v685
      %702 = vst [vmem:[#allocation3 + $0x3f8] sm:$0xff] %v686
      %703 = vst [vmem:[#allocation3 + $0x440] sm:$0xff] %v687
      %v704 = vld [vmem:[#allocation2 + $0x9] sm:$0xff]
      %v705 = vld [vmem:[#allocation2 + $0x11] sm:$0xff]
      %v706 = vld [vmem:[#allocation2 + $0x29] sm:$0xff]
      %v707 = vld [vmem:[#allocation2 + $0x31] sm:$0xff]
      %v708 = vld [vmem:[#allocation2 + $0x49] sm:$0xff]
      %v709 = vld [vmem:[#allocation2 + $0x51] sm:$0xff]
      %v710 = vld [vmem:[#allocation2 + $0x69] sm:$0xff]
      %v711 = vld [vmem:[#allocation2 + $0x71] sm:$0xff]
      %v712 = vld [vmem:[#allocation2 + $0x89] sm:$0xff]
      %v713 = vld [vmem:[#allocation2 + $0x91] sm:$0xff]
      %v714 = vld [vmem:[#allocation2 + $0xa9] sm:$0xff]
      %v715 = vld [vmem:[#allocation2 + $0xb1] sm:$0xff]
      %v716 = vld [vmem:[#allocation2 + $0xc9] sm:$0xff]
      %v717 = vld [vmem:[#allocation2 + $0xd1] sm:$0xff]
      %v718 = vld [vmem:[#allocation2 + $0xe9] sm:$0xff]
      %v719 = vld [vmem:[#allocation2 + $0xf1] sm:$0xff]
      %v720 = vld [vmem:[#allocation2 + $0x109] sm:$0xff]
      %v721 = vld [vmem:[#allocation2 + $0x111] sm:$0xff]
      %v722 = vld [vmem:[#allocation2 + $0x129] sm:$0xff]
      %v723 = vld [vmem:[#allocation2 + $0x131] sm:$0xff]
      %v724 = vld [vmem:[#allocation2 + $0x149] sm:$0xff]
      %v725 = vld [vmem:[#allocation2 + $0x151] sm:$0xff]
      %v726 = vld [vmem:[#allocation2 + $0x169] sm:$0xff]
      %v727 = vld [vmem:[#allocation2 + $0x171] sm:$0xff]
      %v728 = vld [vmem:[#allocation2 + $0x189] sm:$0xff]
      %v729 = vld [vmem:[#allocation2 + $0x191] sm:$0xff]
      %v730 = vld [vmem:[#allocation2 + $0x1a9] sm:$0xff]
      %v731 = vld [vmem:[#allocation2 + $0x1b1] sm:$0xff]
      %v732 = vld [vmem:[#allocation2 + $0x1c9] sm:$0xff]
      %v733 = vld [vmem:[#allocation2 + $0x1d1] sm:$0xff]
      %v734 = vld [vmem:[#allocation2 + $0x1e9] sm:$0xff]
      %v735 = vld [vmem:[#allocation2 + $0x1f1] sm:$0xff]
      %v736 = vpack.c.bf16 %v705, %v704
      %v737 = vpack.c.bf16 %v707, %v706
      %v738 = vpack.c.bf16 %v709, %v708
      %v739 = vpack.c.bf16 %v711, %v710
      %v740 = vpack.c.bf16 %v713, %v712
      %v741 = vpack.c.bf16 %v715, %v714
      %v742 = vpack.c.bf16 %v717, %v716
      %v743 = vpack.c.bf16 %v719, %v718
      %v744 = vpack.c.bf16 %v721, %v720
      %v745 = vpack.c.bf16 %v723, %v722
      %v746 = vpack.c.bf16 %v725, %v724
      %v747 = vpack.c.bf16 %v727, %v726
      %v748 = vpack.c.bf16 %v729, %v728
      %v749 = vpack.c.bf16 %v731, %v730
      %v750 = vpack.c.bf16 %v733, %v732
      %v751 = vpack.c.bf16 %v735, %v734
      %752 = vst [vmem:[#allocation3 + $0x10] sm:$0xff] %v736
      %753 = vst [vmem:[#allocation3 + $0x58] sm:$0xff] %v737
      %754 = vst [vmem:[#allocation3 + $0xa0] sm:$0xff] %v738
      %755 = vst [vmem:[#allocation3 + $0xe8] sm:$0xff] %v739
      %756 = vst [vmem:[#allocation3 + $0x130] sm:$0xff] %v740
      %757 = vst [vmem:[#allocation3 + $0x178] sm:$0xff] %v741
      %758 = vst [vmem:[#allocation3 + $0x1c0] sm:$0xff] %v742
      %759 = vst [vmem:[#allocation3 + $0x208] sm:$0xff] %v743
      %760 = vst [vmem:[#allocation3 + $0x250] sm:$0xff] %v744
      %761 = vst [vmem:[#allocation3 + $0x298] sm:$0xff] %v745
      %762 = vst [vmem:[#allocation3 + $0x2e0] sm:$0xff] %v746
      %763 = vst [vmem:[#allocation3 + $0x328] sm:$0xff] %v747
      %764 = vst [vmem:[#allocation3 + $0x370] sm:$0xff] %v748
      %765 = vst [vmem:[#allocation3 + $0x3b8] sm:$0xff] %v749
      %766 = vst [vmem:[#allocation3 + $0x400] sm:$0xff] %v750
      %767 = vst [vmem:[#allocation3 + $0x448] sm:$0xff] %v751
      %v768 = vld [vmem:[%s543 + $0x7] sm:$0xff]
      %v769 = vld [vmem:[%s543 + $0xf] sm:$0xff]
      %v770 = vld [vmem:[%s543 + $0x27] sm:$0xff]
      %v771 = vld [vmem:[%s543 + $0x2f] sm:$0xff]
      %v772 = vld [vmem:[%s543 + $0x47] sm:$0xff]
      %v773 = vld [vmem:[%s543 + $0x4f] sm:$0xff]
      %v774 = vld [vmem:[%s543 + $0x67] sm:$0xff]
      %v775 = vld [vmem:[%s543 + $0x6f] sm:$0xff]
      %v776 = vld [vmem:[%s543 + $0x87] sm:$0xff]
      %v777 = vld [vmem:[%s543 + $0x8f] sm:$0xff]
      %v778 = vld [vmem:[%s543 + $0xa7] sm:$0xff]
      %v779 = vld [vmem:[%s543 + $0xaf] sm:$0xff]
      %v780 = vld [vmem:[%s543 + $0xc7] sm:$0xff]
      %v781 = vld [vmem:[%s543 + $0xcf] sm:$0xff]
      %v782 = vld [vmem:[%s543 + $0xe7] sm:$0xff]
      %v783 = vld [vmem:[%s543 + $0xef] sm:$0xff]
      %v784 = vld [vmem:[%s543 + $0x107] sm:$0xff]
      %v785 = vld [vmem:[%s543 + $0x10f] sm:$0xff]
      %v786 = vld [vmem:[%s543 + $0x127] sm:$0xff]
      %v787 = vld [vmem:[%s543 + $0x12f] sm:$0xff]
      %v788 = vld [vmem:[%s543 + $0x147] sm:$0xff]
      %v789 = vld [vmem:[%s543 + $0x14f] sm:$0xff]
      %v790 = vld [vmem:[%s543 + $0x167] sm:$0xff]
      %v791 = vld [vmem:[%s543 + $0x16f] sm:$0xff]
      %v792 = vld [vmem:[%s543 + $0x187] sm:$0xff]
      %v793 = vld [vmem:[%s543 + $0x18f] sm:$0xff]
      %v794 = vld [vmem:[%s543 + $0x1a7] sm:$0xff]
      %v795 = vld [vmem:[%s543 + $0x1af] sm:$0xff]
      %v796 = vld [vmem:[%s543 + $0x1c7] sm:$0xff]
      %v797 = vld [vmem:[%s543 + $0x1cf] sm:$0xff]
      %v798 = vld [vmem:[%s543 + $0x1e7] sm:$0xff]
      %v799 = vld [vmem:[%s543 + $0x1ef] sm:$0xff]
      %v800 = vpack.c.bf16 %v769, %v768
      %v801 = vpack.c.bf16 %v771, %v770
      %v802 = vpack.c.bf16 %v773, %v772
      %v803 = vpack.c.bf16 %v775, %v774
      %v804 = vpack.c.bf16 %v777, %v776
      %v805 = vpack.c.bf16 %v779, %v778
      %v806 = vpack.c.bf16 %v781, %v780
      %v807 = vpack.c.bf16 %v783, %v782
      %v808 = vpack.c.bf16 %v785, %v784
      %v809 = vpack.c.bf16 %v787, %v786
      %v810 = vpack.c.bf16 %v789, %v788
      %v811 = vpack.c.bf16 %v791, %v790
      %v812 = vpack.c.bf16 %v793, %v792
      %v813 = vpack.c.bf16 %v795, %v794
      %v814 = vpack.c.bf16 %v797, %v796
      %v815 = vpack.c.bf16 %v799, %v798
      %816 = vst [vmem:[#allocation3 + $0x18] sm:$0xff] %v800
      %817 = vst [vmem:[#allocation3 + $0x60] sm:$0xff] %v801
      %818 = vst [vmem:[#allocation3 + $0xa8] sm:$0xff] %v802
      %819 = vst [vmem:[#allocation3 + $0xf0] sm:$0xff] %v803
      %820 = vst [vmem:[#allocation3 + $0x138] sm:$0xff] %v804
      %821 = vst [vmem:[#allocation3 + $0x180] sm:$0xff] %v805
      %822 = vst [vmem:[#allocation3 + $0x1c8] sm:$0xff] %v806
      %823 = vst [vmem:[#allocation3 + $0x210] sm:$0xff] %v807
      %824 = vst [vmem:[#allocation3 + $0x258] sm:$0xff] %v808
      %825 = vst [vmem:[#allocation3 + $0x2a0] sm:$0xff] %v809
      %826 = vst [vmem:[#allocation3 + $0x2e8] sm:$0xff] %v810
      %827 = vst [vmem:[#allocation3 + $0x330] sm:$0xff] %v811
      %828 = vst [vmem:[#allocation3 + $0x378] sm:$0xff] %v812
      %829 = vst [vmem:[#allocation3 + $0x3c0] sm:$0xff] %v813
      %830 = vst [vmem:[#allocation3 + $0x408] sm:$0xff] %v814
      %831 = vst [vmem:[#allocation3 + $0x450] sm:$0xff] %v815
      %v832 = vld [vmem:[%s543 + $0x8] sm:$0xff]
      %v833 = vld [vmem:[%s543 + $0x10] sm:$0xff]
      %v834 = vld [vmem:[%s543 + $0x28] sm:$0xff]
      %v835 = vld [vmem:[%s543 + $0x30] sm:$0xff]
      %v836 = vld [vmem:[%s543 + $0x48] sm:$0xff]
      %v837 = vld [vmem:[%s543 + $0x50] sm:$0xff]
      %v838 = vld [vmem:[%s543 + $0x68] sm:$0xff]
      %v839 = vld [vmem:[%s543 + $0x70] sm:$0xff]
      %v840 = vld [vmem:[%s543 + $0x88] sm:$0xff]
      %v841 = vld [vmem:[%s543 + $0x90] sm:$0xff]
      %v842 = vld [vmem:[%s543 + $0xa8] sm:$0xff]
      %v843 = vld [vmem:[%s543 + $0xb0] sm:$0xff]
      %v844 = vld [vmem:[%s543 + $0xc8] sm:$0xff]
      %v845 = vld [vmem:[%s543 + $0xd0] sm:$0xff]
      %v846 = vld [vmem:[%s543 + $0xe8] sm:$0xff]
      %v847 = vld [vmem:[%s543 + $0xf0] sm:$0xff]
      %v848 = vld [vmem:[%s543 + $0x108] sm:$0xff]
      %v849 = vld [vmem:[%s543 + $0x110] sm:$0xff]
      %v850 = vld [vmem:[%s543 + $0x128] sm:$0xff]
      %v851 = vld [vmem:[%s543 + $0x130] sm:$0xff]
      %v852 = vld [vmem:[%s543 + $0x148] sm:$0xff]
      %v853 = vld [vmem:[%s543 + $0x150] sm:$0xff]
      %v854 = vld [vmem:[%s543 + $0x168] sm:$0xff]
      %v855 = vld [vmem:[%s543 + $0x170] sm:$0xff]
      %v856 = vld [vmem:[%s543 + $0x188] sm:$0xff]
      %v857 = vld [vmem:[%s543 + $0x190] sm:$0xff]
      %v858 = vld [vmem:[%s543 + $0x1a8] sm:$0xff]
      %v859 = vld [vmem:[%s543 + $0x1b0] sm:$0xff]
      %v860 = vld [vmem:[%s543 + $0x1c8] sm:$0xff]
      %v861 = vld [vmem:[%s543 + $0x1d0] sm:$0xff]
      %v862 = vld [vmem:[%s543 + $0x1e8] sm:$0xff]
      %v863 = vld [vmem:[%s543 + $0x1f0] sm:$0xff]
      %v864 = vpack.c.bf16 %v833, %v832
      %v865 = vpack.c.bf16 %v835, %v834
      %v866 = vpack.c.bf16 %v837, %v836
      %v867 = vpack.c.bf16 %v839, %v838
      %v868 = vpack.c.bf16 %v841, %v840
      %v869 = vpack.c.bf16 %v843, %v842
      %v870 = vpack.c.bf16 %v845, %v844
      %v871 = vpack.c.bf16 %v847, %v846
      %v872 = vpack.c.bf16 %v849, %v848
      %v873 = vpack.c.bf16 %v851, %v850
      %v874 = vpack.c.bf16 %v853, %v852
      %v875 = vpack.c.bf16 %v855, %v854
      %v876 = vpack.c.bf16 %v857, %v856
      %v877 = vpack.c.bf16 %v859, %v858
      %v878 = vpack.c.bf16 %v861, %v860
      %v879 = vpack.c.bf16 %v863, %v862
      %880 = vst [vmem:[#allocation3 + $0x20] sm:$0xff] %v864
      %881 = vst [vmem:[#allocation3 + $0x68] sm:$0xff] %v865
      %882 = vst [vmem:[#allocation3 + $0xb0] sm:$0xff] %v866
      %883 = vst [vmem:[#allocation3 + $0xf8] sm:$0xff] %v867
      %884 = vst [vmem:[#allocation3 + $0x140] sm:$0xff] %v868
      %885 = vst [vmem:[#allocation3 + $0x188] sm:$0xff] %v869
      %886 = vst [vmem:[#allocation3 + $0x1d0] sm:$0xff] %v870
      %887 = vst [vmem:[#allocation3 + $0x218] sm:$0xff] %v871
      %888 = vst [vmem:[#allocation3 + $0x260] sm:$0xff] %v872
      %889 = vst [vmem:[#allocation3 + $0x2a8] sm:$0xff] %v873
      %890 = vst [vmem:[#allocation3 + $0x2f0] sm:$0xff] %v874
      %891 = vst [vmem:[#allocation3 + $0x338] sm:$0xff] %v875
      %892 = vst [vmem:[#allocation3 + $0x380] sm:$0xff] %v876
      %893 = vst [vmem:[#allocation3 + $0x3c8] sm:$0xff] %v877
      %894 = vst [vmem:[#allocation3 + $0x410] sm:$0xff] %v878
      %895 = vst [vmem:[#allocation3 + $0x458] sm:$0xff] %v879
      %v896 = vld [vmem:[%s543 + $0x9] sm:$0xff]
      %v897 = vld [vmem:[%s543 + $0x11] sm:$0xff]
      %v898 = vld [vmem:[%s543 + $0x29] sm:$0xff]
      %v899 = vld [vmem:[%s543 + $0x31] sm:$0xff]
      %v900 = vld [vmem:[%s543 + $0x49] sm:$0xff]
      %v901 = vld [vmem:[%s543 + $0x51] sm:$0xff]
      %v902 = vld [vmem:[%s543 + $0x69] sm:$0xff]
      %v903 = vld [vmem:[%s543 + $0x71] sm:$0xff]
      %v904 = vld [vmem:[%s543 + $0x89] sm:$0xff]
      %v905 = vld [vmem:[%s543 + $0x91] sm:$0xff]
      %v906 = vld [vmem:[%s543 + $0xa9] sm:$0xff]
      %v907 = vld [vmem:[%s543 + $0xb1] sm:$0xff]
      %v908 = vld [vmem:[%s543 + $0xc9] sm:$0xff]
      %v909 = vld [vmem:[%s543 + $0xd1] sm:$0xff]
      %v910 = vld [vmem:[%s543 + $0xe9] sm:$0xff]
      %v911 = vld [vmem:[%s543 + $0xf1] sm:$0xff]
      %v912 = vld [vmem:[%s543 + $0x109] sm:$0xff]
      %v913 = vld [vmem:[%s543 + $0x111] sm:$0xff]
      %v914 = vld [vmem:[%s543 + $0x129] sm:$0xff]
      %v915 = vld [vmem:[%s543 + $0x131] sm:$0xff]
      %v916 = vld [vmem:[%s543 + $0x149] sm:$0xff]
      %v917 = vld [vmem:[%s543 + $0x151] sm:$0xff]
      %v918 = vld [vmem:[%s543 + $0x169] sm:$0xff]
      %v919 = vld [vmem:[%s543 + $0x171] sm:$0xff]
      %v920 = vld [vmem:[%s543 + $0x189] sm:$0xff]
      %v921 = vld [vmem:[%s543 + $0x191] sm:$0xff]
      %v922 = vld [vmem:[%s543 + $0x1a9] sm:$0xff]
      %v923 = vld [vmem:[%s543 + $0x1b1] sm:$0xff]
      %v924 = vld [vmem:[%s543 + $0x1c9] sm:$0xff]
      %v925 = vld [vmem:[%s543 + $0x1d1] sm:$0xff]
      %v926 = vld [vmem:[%s543 + $0x1e9] sm:$0xff]
      %v927 = vld [vmem:[%s543 + $0x1f1] sm:$0xff]
      %v928 = vpack.c.bf16 %v897, %v896
      %v929 = vpack.c.bf16 %v899, %v898
      %v930 = vpack.c.bf16 %v901, %v900
      %v931 = vpack.c.bf16 %v903, %v902
      %v932 = vpack.c.bf16 %v905, %v904
      %v933 = vpack.c.bf16 %v907, %v906
      %v934 = vpack.c.bf16 %v909, %v908
      %v935 = vpack.c.bf16 %v911, %v910
      %v936 = vpack.c.bf16 %v913, %v912
      %v937 = vpack.c.bf16 %v915, %v914
      %v938 = vpack.c.bf16 %v917, %v916
      %v939 = vpack.c.bf16 %v919, %v918
      %v940 = vpack.c.bf16 %v921, %v920
      %v941 = vpack.c.bf16 %v923, %v922
      %v942 = vpack.c.bf16 %v925, %v924
      %v943 = vpack.c.bf16 %v927, %v926
      %944 = vst [vmem:[#allocation3 + $0x28] sm:$0xff] %v928
      %945 = vst [vmem:[#allocation3 + $0x70] sm:$0xff] %v929
      %946 = vst [vmem:[#allocation3 + $0xb8] sm:$0xff] %v930
      %947 = vst [vmem:[#allocation3 + $0x100] sm:$0xff] %v931
      %948 = vst [vmem:[#allocation3 + $0x148] sm:$0xff] %v932
      %949 = vst [vmem:[#allocation3 + $0x190] sm:$0xff] %v933
      %950 = vst [vmem:[#allocation3 + $0x1d8] sm:$0xff] %v934
      %951 = vst [vmem:[#allocation3 + $0x220] sm:$0xff] %v935
      %952 = vst [vmem:[#allocation3 + $0x268] sm:$0xff] %v936
      %953 = vst [vmem:[#allocation3 + $0x2b0] sm:$0xff] %v937
      %954 = vst [vmem:[#allocation3 + $0x2f8] sm:$0xff] %v938
      %955 = vst [vmem:[#allocation3 + $0x340] sm:$0xff] %v939
      %956 = vst [vmem:[#allocation3 + $0x388] sm:$0xff] %v940
      %957 = vst [vmem:[#allocation3 + $0x3d0] sm:$0xff] %v941
      %958 = vst [vmem:[#allocation3 + $0x418] sm:$0xff] %v942
      %959 = vst [vmem:[#allocation3 + $0x460] sm:$0xff] %v943
      %s960 = scalar_lea.vmem [#allocation2], 64
      %v961 = vld [vmem:[%s960 + $0x7] sm:$0xff]
      %v962 = vld [vmem:[%s960 + $0xf] sm:$0xff]
      %v963 = vld [vmem:[%s960 + $0x27] sm:$0xff]
      %v964 = vld [vmem:[%s960 + $0x2f] sm:$0xff]
      %v965 = vld [vmem:[%s960 + $0x47] sm:$0xff]
      %v966 = vld [vmem:[%s960 + $0x4f] sm:$0xff]
      %v967 = vld [vmem:[%s960 + $0x67] sm:$0xff]
      %v968 = vld [vmem:[%s960 + $0x6f] sm:$0xff]
      %v969 = vld [vmem:[%s960 + $0x87] sm:$0xff]
      %v970 = vld [vmem:[%s960 + $0x8f] sm:$0xff]
      %v971 = vld [vmem:[%s960 + $0xa7] sm:$0xff]
      %v972 = vld [vmem:[%s960 + $0xaf] sm:$0xff]
      %v973 = vld [vmem:[%s960 + $0xc7] sm:$0xff]
      %v974 = vld [vmem:[%s960 + $0xcf] sm:$0xff]
      %v975 = vld [vmem:[%s960 + $0xe7] sm:$0xff]
      %v976 = vld [vmem:[%s960 + $0xef] sm:$0xff]
      %v977 = vld [vmem:[%s960 + $0x107] sm:$0xff]
      %v978 = vld [vmem:[%s960 + $0x10f] sm:$0xff]
      %v979 = vld [vmem:[%s960 + $0x127] sm:$0xff]
      %v980 = vld [vmem:[%s960 + $0x12f] sm:$0xff]
      %v981 = vld [vmem:[%s960 + $0x147] sm:$0xff]
      %v982 = vld [vmem:[%s960 + $0x14f] sm:$0xff]
      %v983 = vld [vmem:[%s960 + $0x167] sm:$0xff]
      %v984 = vld [vmem:[%s960 + $0x16f] sm:$0xff]
      %v985 = vld [vmem:[%s960 + $0x187] sm:$0xff]
      %v986 = vld [vmem:[%s960 + $0x18f] sm:$0xff]
      %v987 = vld [vmem:[%s960 + $0x1a7] sm:$0xff]
      %v988 = vld [vmem:[%s960 + $0x1af] sm:$0xff]
      %v989 = vld [vmem:[%s960 + $0x1c7] sm:$0xff]
      %v990 = vld [vmem:[%s960 + $0x1cf] sm:$0xff]
      %v991 = vld [vmem:[%s960 + $0x1e7] sm:$0xff]
      %v992 = vld [vmem:[%s960 + $0x1ef] sm:$0xff]
      %v993 = vpack.c.bf16 %v962, %v961
      %v994 = vpack.c.bf16 %v964, %v963
      %v995 = vpack.c.bf16 %v966, %v965
      %v996 = vpack.c.bf16 %v968, %v967
      %v997 = vpack.c.bf16 %v970, %v969
      %v998 = vpack.c.bf16 %v972, %v971
      %v999 = vpack.c.bf16 %v974, %v973
      %v1000 = vpack.c.bf16 %v976, %v975
      %v1001 = vpack.c.bf16 %v978, %v977
      %v1002 = vpack.c.bf16 %v980, %v979
      %v1003 = vpack.c.bf16 %v982, %v981
      %v1004 = vpack.c.bf16 %v984, %v983
      %v1005 = vpack.c.bf16 %v986, %v985
      %v1006 = vpack.c.bf16 %v988, %v987
      %v1007 = vpack.c.bf16 %v990, %v989
      %v1008 = vpack.c.bf16 %v992, %v991
      %1009 = vst [vmem:[#allocation3 + $0x30] sm:$0xff] %v993
      %1010 = vst [vmem:[#allocation3 + $0x78] sm:$0xff] %v994
      %1011 = vst [vmem:[#allocation3 + $0xc0] sm:$0xff] %v995
      %1012 = vst [vmem:[#allocation3 + $0x108] sm:$0xff] %v996
      %1013 = vst [vmem:[#allocation3 + $0x150] sm:$0xff] %v997
      %1014 = vst [vmem:[#allocation3 + $0x198] sm:$0xff] %v998
      %1015 = vst [vmem:[#allocation3 + $0x1e0] sm:$0xff] %v999
      %1016 = vst [vmem:[#allocation3 + $0x228] sm:$0xff] %v1000
      %1017 = vst [vmem:[#allocation3 + $0x270] sm:$0xff] %v1001
      %1018 = vst [vmem:[#allocation3 + $0x2b8] sm:$0xff] %v1002
      %1019 = vst [vmem:[#allocation3 + $0x300] sm:$0xff] %v1003
      %1020 = vst [vmem:[#allocation3 + $0x348] sm:$0xff] %v1004
      %1021 = vst [vmem:[#allocation3 + $0x390] sm:$0xff] %v1005
      %1022 = vst [vmem:[#allocation3 + $0x3d8] sm:$0xff] %v1006
      %1023 = vst [vmem:[#allocation3 + $0x420] sm:$0xff] %v1007
      %1024 = vst [vmem:[#allocation3 + $0x468] sm:$0xff] %v1008
      %v1025 = vld [vmem:[%s960 + $0x8] sm:$0xff]
      %v1026 = vld [vmem:[%s960 + $0x10] sm:$0xff]
      %v1027 = vld [vmem:[%s960 + $0x28] sm:$0xff]
      %v1028 = vld [vmem:[%s960 + $0x30] sm:$0xff]
      %v1029 = vld [vmem:[%s960 + $0x48] sm:$0xff]
      %v1030 = vld [vmem:[%s960 + $0x50] sm:$0xff]
      %v1031 = vld [vmem:[%s960 + $0x68] sm:$0xff]
      %v1032 = vld [vmem:[%s960 + $0x70] sm:$0xff]
      %v1033 = vld [vmem:[%s960 + $0x88] sm:$0xff]
      %v1034 = vld [vmem:[%s960 + $0x90] sm:$0xff]
      %v1035 = vld [vmem:[%s960 + $0xa8] sm:$0xff]
      %v1036 = vld [vmem:[%s960 + $0xb0] sm:$0xff]
      %v1037 = vld [vmem:[%s960 + $0xc8] sm:$0xff]
      %v1038 = vld [vmem:[%s960 + $0xd0] sm:$0xff]
      %v1039 = vld [vmem:[%s960 + $0xe8] sm:$0xff]
      %v1040 = vld [vmem:[%s960 + $0xf0] sm:$0xff]
      %v1041 = vld [vmem:[%s960 + $0x108] sm:$0xff]
      %v1042 = vld [vmem:[%s960 + $0x110] sm:$0xff]
      %v1043 = vld [vmem:[%s960 + $0x128] sm:$0xff]
      %v1044 = vld [vmem:[%s960 + $0x130] sm:$0xff]
      %v1045 = vld [vmem:[%s960 + $0x148] sm:$0xff]
      %v1046 = vld [vmem:[%s960 + $0x150] sm:$0xff]
      %v1047 = vld [vmem:[%s960 + $0x168] sm:$0xff]
      %v1048 = vld [vmem:[%s960 + $0x170] sm:$0xff]
      %v1049 = vld [vmem:[%s960 + $0x188] sm:$0xff]
      %v1050 = vld [vmem:[%s960 + $0x190] sm:$0xff]
      %v1051 = vld [vmem:[%s960 + $0x1a8] sm:$0xff]
      %v1052 = vld [vmem:[%s960 + $0x1b0] sm:$0xff]
      %v1053 = vld [vmem:[%s960 + $0x1c8] sm:$0xff]
      %v1054 = vld [vmem:[%s960 + $0x1d0] sm:$0xff]
      %v1055 = vld [vmem:[%s960 + $0x1e8] sm:$0xff]
      %v1056 = vld [vmem:[%s960 + $0x1f0] sm:$0xff]
      %v1057 = vpack.c.bf16 %v1026, %v1025
      %v1058 = vpack.c.bf16 %v1028, %v1027
      %v1059 = vpack.c.bf16 %v1030, %v1029
      %v1060 = vpack.c.bf16 %v1032, %v1031
      %v1061 = vpack.c.bf16 %v1034, %v1033
      %v1062 = vpack.c.bf16 %v1036, %v1035
      %v1063 = vpack.c.bf16 %v1038, %v1037
      %v1064 = vpack.c.bf16 %v1040, %v1039
      %v1065 = vpack.c.bf16 %v1042, %v1041
      %v1066 = vpack.c.bf16 %v1044, %v1043
      %v1067 = vpack.c.bf16 %v1046, %v1045
      %v1068 = vpack.c.bf16 %v1048, %v1047
      %v1069 = vpack.c.bf16 %v1050, %v1049
      %v1070 = vpack.c.bf16 %v1052, %v1051
      %v1071 = vpack.c.bf16 %v1054, %v1053
      %v1072 = vpack.c.bf16 %v1056, %v1055
      %1073 = vst [vmem:[#allocation3 + $0x38] sm:$0xff] %v1057
      %1074 = vst [vmem:[#allocation3 + $0x80] sm:$0xff] %v1058
      %1075 = vst [vmem:[#allocation3 + $0xc8] sm:$0xff] %v1059
      %1076 = vst [vmem:[#allocation3 + $0x110] sm:$0xff] %v1060
      %1077 = vst [vmem:[#allocation3 + $0x158] sm:$0xff] %v1061
      %1078 = vst [vmem:[#allocation3 + $0x1a0] sm:$0xff] %v1062
      %1079 = vst [vmem:[#allocation3 + $0x1e8] sm:$0xff] %v1063
      %1080 = vst [vmem:[#allocation3 + $0x230] sm:$0xff] %v1064
      %1081 = vst [vmem:[#allocation3 + $0x278] sm:$0xff] %v1065
      %1082 = vst [vmem:[#allocation3 + $0x2c0] sm:$0xff] %v1066
      %1083 = vst [vmem:[#allocation3 + $0x308] sm:$0xff] %v1067
      %1084 = vst [vmem:[#allocation3 + $0x350] sm:$0xff] %v1068
      %1085 = vst [vmem:[#allocation3 + $0x398] sm:$0xff] %v1069
      %1086 = vst [vmem:[#allocation3 + $0x3e0] sm:$0xff] %v1070
      %1087 = vst [vmem:[#allocation3 + $0x428] sm:$0xff] %v1071
      %1088 = vst [vmem:[#allocation3 + $0x470] sm:$0xff] %v1072
      %v1089 = vld [vmem:[%s960 + $0x9] sm:$0xff]
      %v1090 = vld [vmem:[%s960 + $0x11] sm:$0xff]
      %v1091 = vld [vmem:[%s960 + $0x29] sm:$0xff]
      %v1092 = vld [vmem:[%s960 + $0x31] sm:$0xff]
      %v1093 = vld [vmem:[%s960 + $0x49] sm:$0xff]
      %v1094 = vld [vmem:[%s960 + $0x51] sm:$0xff]
      %v1095 = vld [vmem:[%s960 + $0x69] sm:$0xff]
      %v1096 = vld [vmem:[%s960 + $0x71] sm:$0xff]
      %v1097 = vld [vmem:[%s960 + $0x89] sm:$0xff]
      %v1098 = vld [vmem:[%s960 + $0x91] sm:$0xff]
      %v1099 = vld [vmem:[%s960 + $0xa9] sm:$0xff]
      %v1100 = vld [vmem:[%s960 + $0xb1] sm:$0xff]
      %v1101 = vld [vmem:[%s960 + $0xc9] sm:$0xff]
      %v1102 = vld [vmem:[%s960 + $0xd1] sm:$0xff]
      %v1103 = vld [vmem:[%s960 + $0xe9] sm:$0xff]
      %v1104 = vld [vmem:[%s960 + $0xf1] sm:$0xff]
      %v1105 = vld [vmem:[%s960 + $0x109] sm:$0xff]
      %v1106 = vld [vmem:[%s960 + $0x111] sm:$0xff]
      %v1107 = vld [vmem:[%s960 + $0x129] sm:$0xff]
      %v1108 = vld [vmem:[%s960 + $0x131] sm:$0xff]
      %v1109 = vld [vmem:[%s960 + $0x149] sm:$0xff]
      %v1110 = vld [vmem:[%s960 + $0x151] sm:$0xff]
      %v1111 = vld [vmem:[%s960 + $0x169] sm:$0xff]
      %v1112 = vld [vmem:[%s960 + $0x171] sm:$0xff]
      %v1113 = vld [vmem:[%s960 + $0x189] sm:$0xff]
      %v1114 = vld [vmem:[%s960 + $0x191] sm:$0xff]
      %v1115 = vld [vmem:[%s960 + $0x1a9] sm:$0xff]
      %v1116 = vld [vmem:[%s960 + $0x1b1] sm:$0xff]
      %v1117 = vld [vmem:[%s960 + $0x1c9] sm:$0xff]
      %v1118 = vld [vmem:[%s960 + $0x1d1] sm:$0xff]
      %v1119 = vld [vmem:[%s960 + $0x1e9] sm:$0xff]
      %v1120 = vld [vmem:[%s960 + $0x1f1] sm:$0xff]
      %v1121 = vpack.c.bf16 %v1090, %v1089
      %v1122 = vpack.c.bf16 %v1092, %v1091
      %v1123 = vpack.c.bf16 %v1094, %v1093
      %v1124 = vpack.c.bf16 %v1096, %v1095
      %v1125 = vpack.c.bf16 %v1098, %v1097
      %v1126 = vpack.c.bf16 %v1100, %v1099
      %v1127 = vpack.c.bf16 %v1102, %v1101
      %v1128 = vpack.c.bf16 %v1104, %v1103
      %v1129 = vpack.c.bf16 %v1106, %v1105
      %v1130 = vpack.c.bf16 %v1108, %v1107
      %v1131 = vpack.c.bf16 %v1110, %v1109
      %v1132 = vpack.c.bf16 %v1112, %v1111
      %v1133 = vpack.c.bf16 %v1114, %v1113
      %v1134 = vpack.c.bf16 %v1116, %v1115
      %v1135 = vpack.c.bf16 %v1118, %v1117
      %v1136 = vpack.c.bf16 %v1120, %v1119
      %1137 = vst [vmem:[#allocation3 + $0x40] sm:$0xff] %v1121
      %1138 = vst [vmem:[#allocation3 + $0x88] sm:$0xff] %v1122
      %1139 = vst [vmem:[#allocation3 + $0xd0] sm:$0xff] %v1123
      %1140 = vst [vmem:[#allocation3 + $0x118] sm:$0xff] %v1124
      %1141 = vst [vmem:[#allocation3 + $0x160] sm:$0xff] %v1125
      %1142 = vst [vmem:[#allocation3 + $0x1a8] sm:$0xff] %v1126
      %1143 = vst [vmem:[#allocation3 + $0x1f0] sm:$0xff] %v1127
      %1144 = vst [vmem:[#allocation3 + $0x238] sm:$0xff] %v1128
      %1145 = vst [vmem:[#allocation3 + $0x280] sm:$0xff] %v1129
      %1146 = vst [vmem:[#allocation3 + $0x2c8] sm:$0xff] %v1130
      %1147 = vst [vmem:[#allocation3 + $0x310] sm:$0xff] %v1131
      %1148 = vst [vmem:[#allocation3 + $0x358] sm:$0xff] %v1132
      %1149 = vst [vmem:[#allocation3 + $0x3a0] sm:$0xff] %v1133
      %1150 = vst [vmem:[#allocation3 + $0x3e8] sm:$0xff] %v1134
      %1151 = vst [vmem:[#allocation3 + $0x430] sm:$0xff] %v1135
      %1152 = vst [vmem:[#allocation3 + $0x478] sm:$0xff] %v1136
      %v1153 = vld [vmem:[#allocation3] sm:$0xff]
      %v1154 = vld [vmem:[#allocation3 + $0x8] sm:$0xff]
      %v1155 = vld [vmem:[#allocation3 + $0x10] sm:$0xff]
      %v1156 = vld [vmem:[#allocation3 + $0x18] sm:$0xff]
      %v1157 = vld [vmem:[#allocation3 + $0x20] sm:$0xff]
      %v1158 = vld [vmem:[#allocation3 + $0x28] sm:$0xff]
      %v1159 = vld [vmem:[#allocation3 + $0x30] sm:$0xff]
      %v1160 = vld [vmem:[#allocation3 + $0x38] sm:$0xff]
      %v1161 = vld [vmem:[#allocation3 + $0x40] sm:$0xff]
      %v1162 = vld [vmem:[#allocation3 + $0x48] sm:$0xff]
      %v1163 = vld [vmem:[#allocation3 + $0x50] sm:$0xff]
      %v1164 = vld [vmem:[#allocation3 + $0x58] sm:$0xff]
      %v1165 = vld [vmem:[#allocation3 + $0x60] sm:$0xff]
      %v1166 = vld [vmem:[#allocation3 + $0x68] sm:$0xff]
      %v1167 = vld [vmem:[#allocation3 + $0x70] sm:$0xff]
      %v1168 = vld [vmem:[#allocation3 + $0x78] sm:$0xff]
      %v1169 = vld [vmem:[#allocation3 + $0x80] sm:$0xff]
      %v1170 = vld [vmem:[#allocation3 + $0x88] sm:$0xff]
      %v1171 = vld [vmem:[#allocation3 + $0x90] sm:$0xff]
      %v1172 = vld [vmem:[#allocation3 + $0x98] sm:$0xff]
      %v1173 = vld [vmem:[#allocation3 + $0xa0] sm:$0xff]
      %v1174 = vld [vmem:[#allocation3 + $0xa8] sm:$0xff]
      %v1175 = vld [vmem:[#allocation3 + $0xb0] sm:$0xff]
      %v1176 = vld [vmem:[#allocation3 + $0xb8] sm:$0xff]
      %v1177 = vld [vmem:[#allocation3 + $0xc0] sm:$0xff]
      %v1178 = vld [vmem:[#allocation3 + $0xc8] sm:$0xff]
      %v1179 = vld [vmem:[#allocation3 + $0xd0] sm:$0xff]
      %v1180 = vld [vmem:[#allocation3 + $0xd8] sm:$0xff]
      %v1181 = vld [vmem:[#allocation3 + $0xe0] sm:$0xff]
      %v1182 = vld [vmem:[#allocation3 + $0xe8] sm:$0xff]
      %v1183 = vld [vmem:[#allocation3 + $0xf0] sm:$0xff]
      %v1184 = vld [vmem:[#allocation3 + $0xf8] sm:$0xff]
      %v1185 = vld [vmem:[#allocation3 + $0x100] sm:$0xff]
      %v1186 = vld [vmem:[#allocation3 + $0x108] sm:$0xff]
      %v1187 = vld [vmem:[#allocation3 + $0x110] sm:$0xff]
      %v1188 = vld [vmem:[#allocation3 + $0x118] sm:$0xff]
      %v1189 = vld [vmem:[#allocation3 + $0x120] sm:$0xff]
      %v1190 = vld [vmem:[#allocation3 + $0x128] sm:$0xff]
      %v1191 = vld [vmem:[#allocation3 + $0x130] sm:$0xff]
      %v1192 = vld [vmem:[#allocation3 + $0x138] sm:$0xff]
      %v1193 = vld [vmem:[#allocation3 + $0x140] sm:$0xff]
      %v1194 = vld [vmem:[#allocation3 + $0x148] sm:$0xff]
      %v1195 = vld [vmem:[#allocation3 + $0x150] sm:$0xff]
      %v1196 = vld [vmem:[#allocation3 + $0x158] sm:$0xff]
      %v1197 = vld [vmem:[#allocation3 + $0x160] sm:$0xff]
      %v1198 = vld [vmem:[#allocation3 + $0x168] sm:$0xff]
      %v1199 = vld [vmem:[#allocation3 + $0x170] sm:$0xff]
      %v1200 = vld [vmem:[#allocation3 + $0x178] sm:$0xff]
      %v1201 = vld [vmem:[#allocation3 + $0x180] sm:$0xff]
      %v1202 = vld [vmem:[#allocation3 + $0x188] sm:$0xff]
      %v1203 = vld [vmem:[#allocation3 + $0x190] sm:$0xff]
      %v1204 = vld [vmem:[#allocation3 + $0x198] sm:$0xff]
      %v1205 = vld [vmem:[#allocation3 + $0x1a0] sm:$0xff]
      %v1206 = vld [vmem:[#allocation3 + $0x1a8] sm:$0xff]
      %v1207 = vld [vmem:[#allocation3 + $0x1b0] sm:$0xff]
      %v1208 = vld [vmem:[#allocation3 + $0x1b8] sm:$0xff]
      %v1209 = vld [vmem:[#allocation3 + $0x1c0] sm:$0xff]
      %v1210 = vld [vmem:[#allocation3 + $0x1c8] sm:$0xff]
      %v1211 = vld [vmem:[#allocation3 + $0x1d0] sm:$0xff]
      %v1212 = vld [vmem:[#allocation3 + $0x1d8] sm:$0xff]
      %v1213 = vld [vmem:[#allocation3 + $0x1e0] sm:$0xff]
      %v1214 = vld [vmem:[#allocation3 + $0x1e8] sm:$0xff]
      %v1215 = vld [vmem:[#allocation3 + $0x1f0] sm:$0xff]
      %v1216 = vld [vmem:[#allocation3 + $0x1f8] sm:$0xff]
      %v1217 = vld [vmem:[#allocation3 + $0x200] sm:$0xff]
      %v1218 = vld [vmem:[#allocation3 + $0x208] sm:$0xff]
      %v1219 = vld [vmem:[#allocation3 + $0x210] sm:$0xff]
      %v1220 = vld [vmem:[#allocation3 + $0x218] sm:$0xff]
      %v1221 = vld [vmem:[#allocation3 + $0x220] sm:$0xff]
      %v1222 = vld [vmem:[#allocation3 + $0x228] sm:$0xff]
      %v1223 = vld [vmem:[#allocation3 + $0x230] sm:$0xff]
      %v1224 = vld [vmem:[#allocation3 + $0x238] sm:$0xff]
      %v1225 = vld [vmem:[#allocation3 + $0x240] sm:$0xff]
      %v1226 = vld [vmem:[#allocation3 + $0x248] sm:$0xff]
      %v1227 = vld [vmem:[#allocation3 + $0x250] sm:$0xff]
      %v1228 = vld [vmem:[#allocation3 + $0x258] sm:$0xff]
      %v1229 = vld [vmem:[#allocation3 + $0x260] sm:$0xff]
      %v1230 = vld [vmem:[#allocation3 + $0x268] sm:$0xff]
      %v1231 = vld [vmem:[#allocation3 + $0x270] sm:$0xff]
      %v1232 = vld [vmem:[#allocation3 + $0x278] sm:$0xff]
      %v1233 = vld [vmem:[#allocation3 + $0x280] sm:$0xff]
      %v1234 = vld [vmem:[#allocation3 + $0x288] sm:$0xff]
      %v1235 = vld [vmem:[#allocation3 + $0x290] sm:$0xff]
      %v1236 = vld [vmem:[#allocation3 + $0x298] sm:$0xff]
      %v1237 = vld [vmem:[#allocation3 + $0x2a0] sm:$0xff]
      %v1238 = vld [vmem:[#allocation3 + $0x2a8] sm:$0xff]
      %v1239 = vld [vmem:[#allocation3 + $0x2b0] sm:$0xff]
      %v1240 = vld [vmem:[#allocation3 + $0x2b8] sm:$0xff]
      %v1241 = vld [vmem:[#allocation3 + $0x2c0] sm:$0xff]
      %v1242 = vld [vmem:[#allocation3 + $0x2c8] sm:$0xff]
      %v1243 = vld [vmem:[#allocation3 + $0x2d0] sm:$0xff]
      %v1244 = vld [vmem:[#allocation3 + $0x2d8] sm:$0xff]
      %v1245 = vld [vmem:[#allocation3 + $0x2e0] sm:$0xff]
      %v1246 = vld [vmem:[#allocation3 + $0x2e8] sm:$0xff]
      %v1247 = vld [vmem:[#allocation3 + $0x2f0] sm:$0xff]
      %v1248 = vld [vmem:[#allocation3 + $0x2f8] sm:$0xff]
      %v1249 = vld [vmem:[#allocation3 + $0x300] sm:$0xff]
      %v1250 = vld [vmem:[#allocation3 + $0x308] sm:$0xff]
      %v1251 = vld [vmem:[#allocation3 + $0x310] sm:$0xff]
      %v1252 = vld [vmem:[#allocation3 + $0x318] sm:$0xff]
      %v1253 = vld [vmem:[#allocation3 + $0x320] sm:$0xff]
      %v1254 = vld [vmem:[#allocation3 + $0x328] sm:$0xff]
      %v1255 = vld [vmem:[#allocation3 + $0x330] sm:$0xff]
      %v1256 = vld [vmem:[#allocation3 + $0x338] sm:$0xff]
      %v1257 = vld [vmem:[#allocation3 + $0x340] sm:$0xff]
      %v1258 = vld [vmem:[#allocation3 + $0x348] sm:$0xff]
      %v1259 = vld [vmem:[#allocation3 + $0x350] sm:$0xff]
      %v1260 = vld [vmem:[#allocation3 + $0x358] sm:$0xff]
      %v1261 = vld [vmem:[#allocation3 + $0x360] sm:$0xff]
      %v1262 = vld [vmem:[#allocation3 + $0x368] sm:$0xff]
      %v1263 = vld [vmem:[#allocation3 + $0x370] sm:$0xff]
      %v1264 = vld [vmem:[#allocation3 + $0x378] sm:$0xff]
      %v1265 = vld [vmem:[#allocation3 + $0x380] sm:$0xff]
      %v1266 = vld [vmem:[#allocation3 + $0x388] sm:$0xff]
      %v1267 = vld [vmem:[#allocation3 + $0x390] sm:$0xff]
      %v1268 = vld [vmem:[#allocation3 + $0x398] sm:$0xff]
      %v1269 = vld [vmem:[#allocation3 + $0x3a0] sm:$0xff]
      %v1270 = vld [vmem:[#allocation3 + $0x3a8] sm:$0xff]
      %v1271 = vld [vmem:[#allocation3 + $0x3b0] sm:$0xff]
      %v1272 = vld [vmem:[#allocation3 + $0x3b8] sm:$0xff]
      %v1273 = vld [vmem:[#allocation3 + $0x3c0] sm:$0xff]
      %v1274 = vld [vmem:[#allocation3 + $0x3c8] sm:$0xff]
      %v1275 = vld [vmem:[#allocation3 + $0x3d0] sm:$0xff]
      %v1276 = vld [vmem:[#allocation3 + $0x3d8] sm:$0xff]
      %v1277 = vld [vmem:[#allocation3 + $0x3e0] sm:$0xff]
      %v1278 = vld [vmem:[#allocation3 + $0x3e8] sm:$0xff]
      %v1279 = vld [vmem:[#allocation3 + $0x3f0] sm:$0xff]
      %v1280 = vld [vmem:[#allocation3 + $0x3f8] sm:$0xff]
      %v1281 = vld [vmem:[#allocation3 + $0x400] sm:$0xff]
      %v1282 = vld [vmem:[#allocation3 + $0x408] sm:$0xff]
      %v1283 = vld [vmem:[#allocation3 + $0x410] sm:$0xff]
      %v1284 = vld [vmem:[#allocation3 + $0x418] sm:$0xff]
      %v1285 = vld [vmem:[#allocation3 + $0x420] sm:$0xff]
      %v1286 = vld [vmem:[#allocation3 + $0x428] sm:$0xff]
      %v1287 = vld [vmem:[#allocation3 + $0x430] sm:$0xff]
      %v1288 = vld [vmem:[#allocation3 + $0x438] sm:$0xff]
      %v1289 = vld [vmem:[#allocation3 + $0x440] sm:$0xff]
      %v1290 = vld [vmem:[#allocation3 + $0x448] sm:$0xff]
      %v1291 = vld [vmem:[#allocation3 + $0x450] sm:$0xff]
      %v1292 = vld [vmem:[#allocation3 + $0x458] sm:$0xff]
      %v1293 = vld [vmem:[#allocation3 + $0x460] sm:$0xff]
      %v1294 = vld [vmem:[#allocation3 + $0x468] sm:$0xff]
      %v1295 = vld [vmem:[#allocation3 + $0x470] sm:$0xff]
      %v1296 = vld [vmem:[#allocation3 + $0x478] sm:$0xff]
      %v1297 = vld [vmem:[%s3] sm:$0xf]
      %v1298 = vld [vmem:[%s3 + $0x4] sm:$0xf]
      %v1299 = vld [vmem:[%s3 + $0x8] sm:$0xf]
      %v1300 = vld [vmem:[%s3 + $0xc] sm:$0xf]
      %v1301 = vld [vmem:[%s3 + $0x10] sm:$0xf]
      %v1302 = vld [vmem:[%s3 + $0x14] sm:$0xf]
      %v1303 = vld [vmem:[%s3 + $0x18] sm:$0xf]
      %v1304 = vld [vmem:[%s3 + $0x1c] sm:$0xf]
      %v1305 = vld [vmem:[%s3 + $0x20] sm:$0xf]
      %v1306 = vld [vmem:[%s3 + $0x24] sm:$0xf]
      %v1307 = vld [vmem:[%s3 + $0x28] sm:$0xf]
      %v1308 = vld [vmem:[%s3 + $0x2c] sm:$0xf]
      %v1309 = vld [vmem:[%s3 + $0x30] sm:$0xf]
      %v1310 = vld [vmem:[%s3 + $0x34] sm:$0xf]
      %v1311 = vld [vmem:[%s3 + $0x38] sm:$0xf]
      %v1312 = vld [vmem:[%s3 + $0x3c] sm:$0xf]
      %v1313 = vld [vmem:[%s3 + $0x40] sm:$0xf]
      %v1314 = vld [vmem:[%s3 + $0x44] sm:$0xf]
      %v1315 = vld [vmem:[%s3 + $0x48] sm:$0xf]
      %v1316 = vld [vmem:[%s3 + $0x4c] sm:$0xf]
      %v1317 = vld [vmem:[%s3 + $0x50] sm:$0xf]
      %v1318 = vld [vmem:[%s3 + $0x54] sm:$0xf]
      %v1319 = vld [vmem:[%s3 + $0x58] sm:$0xf]
      %v1320 = vld [vmem:[%s3 + $0x5c] sm:$0xf]
      %v1321 = vld [vmem:[%s3 + $0x60] sm:$0xf]
      %v1322 = vld [vmem:[%s3 + $0x64] sm:$0xf]
      %v1323 = vld [vmem:[%s3 + $0x68] sm:$0xf]
      %v1324 = vld [vmem:[%s3 + $0x6c] sm:$0xf]
      %v1325 = vld [vmem:[%s3 + $0x70] sm:$0xf]
      %v1326 = vld [vmem:[%s3 + $0x74] sm:$0xf]
      %v1327 = vld [vmem:[%s3 + $0x78] sm:$0xf]
      %v1328 = vld [vmem:[%s3 + $0x7c] sm:$0xf]
      %v1329 = vld [vmem:[%s3 + $0x80] sm:$0xf]
      %v1330 = vld [vmem:[%s3 + $0x84] sm:$0xf]
      %v1331 = vld [vmem:[%s3 + $0x88] sm:$0xf]
      %v1332 = vld [vmem:[%s3 + $0x8c] sm:$0xf]
      %v1333 = vld [vmem:[%s3 + $0x90] sm:$0xf]
      %v1334 = vld [vmem:[%s3 + $0x94] sm:$0xf]
      %v1335 = vld [vmem:[%s3 + $0x98] sm:$0xf]
      %v1336 = vld [vmem:[%s3 + $0x9c] sm:$0xf]
      %v1337 = vld [vmem:[%s3 + $0xa0] sm:$0xf]
      %v1338 = vld [vmem:[%s3 + $0xa4] sm:$0xf]
      %v1339 = vld [vmem:[%s3 + $0xa8] sm:$0xf]
      %v1340 = vld [vmem:[%s3 + $0xac] sm:$0xf]
      %v1341 = vld [vmem:[%s3 + $0xb0] sm:$0xf]
      %v1342 = vld [vmem:[%s3 + $0xb4] sm:$0xf]
      %v1343 = vld [vmem:[%s3 + $0xb8] sm:$0xf]
      %v1344 = vld [vmem:[%s3 + $0xbc] sm:$0xf]
      %v1345 = vld [vmem:[%s3 + $0xc0] sm:$0xf]
      %v1346 = vld [vmem:[%s3 + $0xc4] sm:$0xf]
      %v1347 = vld [vmem:[%s3 + $0xc8] sm:$0xf]
      %v1348 = vld [vmem:[%s3 + $0xcc] sm:$0xf]
      %v1349 = vld [vmem:[%s3 + $0xd0] sm:$0xf]
      %v1350 = vld [vmem:[%s3 + $0xd4] sm:$0xf]
      %v1351 = vld [vmem:[%s3 + $0xd8] sm:$0xf]
      %v1352 = vld [vmem:[%s3 + $0xdc] sm:$0xf]
      %v1353 = vld [vmem:[%s3 + $0xe0] sm:$0xf]
      %v1354 = vld [vmem:[%s3 + $0xe4] sm:$0xf]
      %v1355 = vld [vmem:[%s3 + $0xe8] sm:$0xf]
      %v1356 = vld [vmem:[%s3 + $0xec] sm:$0xf]
      %v1357 = vld [vmem:[%s3 + $0xf0] sm:$0xf]
      %v1358 = vld [vmem:[%s3 + $0xf4] sm:$0xf]
      %v1359 = vld [vmem:[%s3 + $0xf8] sm:$0xf]
      %v1360 = vld [vmem:[%s3 + $0xfc] sm:$0xf]
      %v1361 = vld [vmem:[%s3 + $0x100] sm:$0xf]
      %v1362 = vld [vmem:[%s3 + $0x104] sm:$0xf]
      %v1363 = vld [vmem:[%s3 + $0x108] sm:$0xf]
      %v1364 = vld [vmem:[%s3 + $0x10c] sm:$0xf]
      %v1365 = vld [vmem:[%s3 + $0x110] sm:$0xf]
      %v1366 = vld [vmem:[%s3 + $0x114] sm:$0xf]
      %v1367 = vld [vmem:[%s3 + $0x118] sm:$0xf]
      %v1368 = vld [vmem:[%s3 + $0x11c] sm:$0xf]
      %v1369 = vld [vmem:[%s3 + $0x120] sm:$0xf]
      %v1370 = vld [vmem:[%s3 + $0x124] sm:$0xf]
      %v1371 = vld [vmem:[%s3 + $0x128] sm:$0xf]
      %v1372 = vld [vmem:[%s3 + $0x12c] sm:$0xf]
      %v1373 = vld [vmem:[%s3 + $0x130] sm:$0xf]
      %v1374 = vld [vmem:[%s3 + $0x134] sm:$0xf]
      %v1375 = vld [vmem:[%s3 + $0x138] sm:$0xf]
      %v1376 = vld [vmem:[%s3 + $0x13c] sm:$0xf]
      %v1377 = vld [vmem:[%s3 + $0x140] sm:$0xf]
      %v1378 = vld [vmem:[%s3 + $0x144] sm:$0xf]
      %v1379 = vld [vmem:[%s3 + $0x148] sm:$0xf]
      %v1380 = vld [vmem:[%s3 + $0x14c] sm:$0xf]
      %v1381 = vld [vmem:[%s3 + $0x150] sm:$0xf]
      %v1382 = vld [vmem:[%s3 + $0x154] sm:$0xf]
      %v1383 = vld [vmem:[%s3 + $0x158] sm:$0xf]
      %v1384 = vld [vmem:[%s3 + $0x15c] sm:$0xf]
      %v1385 = vld [vmem:[%s3 + $0x160] sm:$0xf]
      %v1386 = vld [vmem:[%s3 + $0x164] sm:$0xf]
      %v1387 = vld [vmem:[%s3 + $0x168] sm:$0xf]
      %v1388 = vld [vmem:[%s3 + $0x16c] sm:$0xf]
      %v1389 = vld [vmem:[%s3 + $0x170] sm:$0xf]
      %v1390 = vld [vmem:[%s3 + $0x174] sm:$0xf]
      %v1391 = vld [vmem:[%s3 + $0x178] sm:$0xf]
      %v1392 = vld [vmem:[%s3 + $0x17c] sm:$0xf]
      %v1393 = vld [vmem:[%s3 + $0x180] sm:$0xf]
      %v1394 = vld [vmem:[%s3 + $0x184] sm:$0xf]
      %v1395 = vld [vmem:[%s3 + $0x188] sm:$0xf]
      %v1396 = vld [vmem:[%s3 + $0x18c] sm:$0xf]
      %v1397 = vld [vmem:[%s3 + $0x190] sm:$0xf]
      %v1398 = vld [vmem:[%s3 + $0x194] sm:$0xf]
      %v1399 = vld [vmem:[%s3 + $0x198] sm:$0xf]
      %v1400 = vld [vmem:[%s3 + $0x19c] sm:$0xf]
      %v1401 = vld [vmem:[%s3 + $0x1a0] sm:$0xf]
      %v1402 = vld [vmem:[%s3 + $0x1a4] sm:$0xf]
      %v1403 = vld [vmem:[%s3 + $0x1a8] sm:$0xf]
      %v1404 = vld [vmem:[%s3 + $0x1ac] sm:$0xf]
      %v1405 = vld [vmem:[%s3 + $0x1b0] sm:$0xf]
      %v1406 = vld [vmem:[%s3 + $0x1b4] sm:$0xf]
      %v1407 = vld [vmem:[%s3 + $0x1b8] sm:$0xf]
      %v1408 = vld [vmem:[%s3 + $0x1bc] sm:$0xf]
      %v1409 = vld [vmem:[%s3 + $0x1c0] sm:$0xf]
      %v1410 = vld [vmem:[%s3 + $0x1c4] sm:$0xf]
      %v1411 = vld [vmem:[%s3 + $0x1c8] sm:$0xf]
      %v1412 = vld [vmem:[%s3 + $0x1cc] sm:$0xf]
      %v1413 = vld [vmem:[%s3 + $0x1d0] sm:$0xf]
      %v1414 = vld [vmem:[%s3 + $0x1d4] sm:$0xf]
      %v1415 = vld [vmem:[%s3 + $0x1d8] sm:$0xf]
      %v1416 = vld [vmem:[%s3 + $0x1dc] sm:$0xf]
      %v1417 = vld [vmem:[%s3 + $0x1e0] sm:$0xf]
      %v1418 = vld [vmem:[%s3 + $0x1e4] sm:$0xf]
      %v1419 = vld [vmem:[%s3 + $0x1e8] sm:$0xf]
      %v1420 = vld [vmem:[%s3 + $0x1ec] sm:$0xf]
      %v1421 = vld [vmem:[%s3 + $0x1f0] sm:$0xf]
      %v1422 = vld [vmem:[%s3 + $0x1f4] sm:$0xf]
      %v1423 = vld [vmem:[%s3 + $0x1f8] sm:$0xf]
      %v1424 = vld [vmem:[%s3 + $0x1fc] sm:$0xf]
      %v1425 = vld [vmem:[%s3 + $0x200] sm:$0xf]
      %v1426 = vld [vmem:[%s3 + $0x204] sm:$0xf]
      %v1427 = vld [vmem:[%s3 + $0x208] sm:$0xf]
      %v1428 = vld [vmem:[%s3 + $0x20c] sm:$0xf]
      %v1429 = vld [vmem:[%s3 + $0x210] sm:$0xf]
      %v1430 = vld [vmem:[%s3 + $0x214] sm:$0xf]
      %v1431 = vld [vmem:[%s3 + $0x218] sm:$0xf]
      %v1432 = vld [vmem:[%s3 + $0x21c] sm:$0xf]
      %v1433 = vld [vmem:[%s3 + $0x220] sm:$0xf]
      %v1434 = vld [vmem:[%s3 + $0x224] sm:$0xf]
      %v1435 = vld [vmem:[%s3 + $0x228] sm:$0xf]
      %v1436 = vld [vmem:[%s3 + $0x22c] sm:$0xf]
      %v1437 = vld [vmem:[%s3 + $0x230] sm:$0xf]
      %v1438 = vld [vmem:[%s3 + $0x234] sm:$0xf]
      %v1439 = vld [vmem:[%s3 + $0x238] sm:$0xf]
      %v1440 = vld [vmem:[%s3 + $0x23c] sm:$0xf]
      %v1441 = vld [vmem:[%s4] sm:$0x1]
      %v1443 = vlaneseq
      %v1444 = vshrl.u32 %v1443, 7
      %v1445 = vsub.s32 0, %v1444
      %v1446 = vrot.slane %v1441, %v1445
      %v1592 = vunpack.c.l.b16 %v1297
      %v1593 = vunpack.c.l.b16 %v1298
      %v1594 = vunpack.c.l.b16 %v1299
      %v1595 = vunpack.c.l.b16 %v1300
      %v1596 = vunpack.c.l.b16 %v1301
      %v1597 = vunpack.c.l.b16 %v1302
      %v1598 = vunpack.c.l.b16 %v1303
      %v1599 = vunpack.c.l.b16 %v1304
      %v1600 = vunpack.c.l.b16 %v1305
      %v1601 = vunpack.c.l.b16 %v1306
      %v1602 = vunpack.c.l.b16 %v1307
      %v1603 = vunpack.c.l.b16 %v1308
      %v1604 = vunpack.c.l.b16 %v1309
      %v1605 = vunpack.c.l.b16 %v1310
      %v1606 = vunpack.c.l.b16 %v1311
      %v1607 = vunpack.c.l.b16 %v1312
      %v1608 = vunpack.c.l.b16 %v1313
      %v1609 = vunpack.c.l.b16 %v1314
      %v1610 = vunpack.c.l.b16 %v1315
      %v1611 = vunpack.c.l.b16 %v1316
      %v1612 = vunpack.c.l.b16 %v1317
      %v1613 = vunpack.c.l.b16 %v1318
      %v1614 = vunpack.c.l.b16 %v1319
      %v1615 = vunpack.c.l.b16 %v1320
      %v1616 = vunpack.c.l.b16 %v1321
      %v1617 = vunpack.c.l.b16 %v1322
      %v1618 = vunpack.c.l.b16 %v1323
      %v1619 = vunpack.c.l.b16 %v1324
      %v1620 = vunpack.c.l.b16 %v1325
      %v1621 = vunpack.c.l.b16 %v1326
      %v1622 = vunpack.c.l.b16 %v1327
      %v1623 = vunpack.c.l.b16 %v1328
      %v1624 = vunpack.c.l.b16 %v1329
      %v1625 = vunpack.c.l.b16 %v1330
      %v1626 = vunpack.c.l.b16 %v1331
      %v1627 = vunpack.c.l.b16 %v1332
      %v1628 = vunpack.c.l.b16 %v1333
      %v1629 = vunpack.c.l.b16 %v1334
      %v1630 = vunpack.c.l.b16 %v1335
      %v1631 = vunpack.c.l.b16 %v1336
      %v1632 = vunpack.c.l.b16 %v1337
      %v1633 = vunpack.c.l.b16 %v1338
      %v1634 = vunpack.c.l.b16 %v1339
      %v1635 = vunpack.c.l.b16 %v1340
      %v1636 = vunpack.c.l.b16 %v1341
      %v1637 = vunpack.c.l.b16 %v1342
      %v1638 = vunpack.c.l.b16 %v1343
      %v1639 = vunpack.c.l.b16 %v1344
      %v1640 = vunpack.c.l.b16 %v1345
      %v1641 = vunpack.c.l.b16 %v1346
      %v1642 = vunpack.c.l.b16 %v1347
      %v1643 = vunpack.c.l.b16 %v1348
      %v1644 = vunpack.c.l.b16 %v1349
      %v1645 = vunpack.c.l.b16 %v1350
      %v1646 = vunpack.c.l.b16 %v1351
      %v1647 = vunpack.c.l.b16 %v1352
      %v1648 = vunpack.c.l.b16 %v1353
      %v1649 = vunpack.c.l.b16 %v1354
      %v1650 = vunpack.c.l.b16 %v1355
      %v1651 = vunpack.c.l.b16 %v1356
      %v1652 = vunpack.c.l.b16 %v1357
      %v1653 = vunpack.c.l.b16 %v1358
      %v1654 = vunpack.c.l.b16 %v1359
      %v1655 = vunpack.c.l.b16 %v1360
      %v1656 = vunpack.c.l.b16 %v1361
      %v1657 = vunpack.c.l.b16 %v1362
      %v1658 = vunpack.c.l.b16 %v1363
      %v1659 = vunpack.c.l.b16 %v1364
      %v1660 = vunpack.c.l.b16 %v1365
      %v1661 = vunpack.c.l.b16 %v1366
      %v1662 = vunpack.c.l.b16 %v1367
      %v1663 = vunpack.c.l.b16 %v1368
      %v1664 = vunpack.c.l.b16 %v1369
      %v1665 = vunpack.c.l.b16 %v1370
      %v1666 = vunpack.c.l.b16 %v1371
      %v1667 = vunpack.c.l.b16 %v1372
      %v1668 = vunpack.c.l.b16 %v1373
      %v1669 = vunpack.c.l.b16 %v1374
      %v1670 = vunpack.c.l.b16 %v1375
      %v1671 = vunpack.c.l.b16 %v1376
      %v1672 = vunpack.c.l.b16 %v1377
      %v1673 = vunpack.c.l.b16 %v1378
      %v1674 = vunpack.c.l.b16 %v1379
      %v1675 = vunpack.c.l.b16 %v1380
      %v1676 = vunpack.c.l.b16 %v1381
      %v1677 = vunpack.c.l.b16 %v1382
      %v1678 = vunpack.c.l.b16 %v1383
      %v1679 = vunpack.c.l.b16 %v1384
      %v1680 = vunpack.c.l.b16 %v1385
      %v1681 = vunpack.c.l.b16 %v1386
      %v1682 = vunpack.c.l.b16 %v1387
      %v1683 = vunpack.c.l.b16 %v1388
      %v1684 = vunpack.c.l.b16 %v1389
      %v1685 = vunpack.c.l.b16 %v1390
      %v1686 = vunpack.c.l.b16 %v1391
      %v1687 = vunpack.c.l.b16 %v1392
      %v1688 = vunpack.c.l.b16 %v1393
      %v1689 = vunpack.c.l.b16 %v1394
      %v1690 = vunpack.c.l.b16 %v1395
      %v1691 = vunpack.c.l.b16 %v1396
      %v1692 = vunpack.c.l.b16 %v1397
      %v1693 = vunpack.c.l.b16 %v1398
      %v1694 = vunpack.c.l.b16 %v1399
      %v1695 = vunpack.c.l.b16 %v1400
      %v1696 = vunpack.c.l.b16 %v1401
      %v1697 = vunpack.c.l.b16 %v1402
      %v1698 = vunpack.c.l.b16 %v1403
      %v1699 = vunpack.c.l.b16 %v1404
      %v1700 = vunpack.c.l.b16 %v1405
      %v1701 = vunpack.c.l.b16 %v1406
      %v1702 = vunpack.c.l.b16 %v1407
      %v1703 = vunpack.c.l.b16 %v1408
      %v1704 = vunpack.c.l.b16 %v1409
      %v1705 = vunpack.c.l.b16 %v1410
      %v1706 = vunpack.c.l.b16 %v1411
      %v1707 = vunpack.c.l.b16 %v1412
      %v1708 = vunpack.c.l.b16 %v1413
      %v1709 = vunpack.c.l.b16 %v1414
      %v1710 = vunpack.c.l.b16 %v1415
      %v1711 = vunpack.c.l.b16 %v1416
      %v1712 = vunpack.c.l.b16 %v1417
      %v1713 = vunpack.c.l.b16 %v1418
      %v1714 = vunpack.c.l.b16 %v1419
      %v1715 = vunpack.c.l.b16 %v1420
      %v1716 = vunpack.c.l.b16 %v1421
      %v1717 = vunpack.c.l.b16 %v1422
      %v1718 = vunpack.c.l.b16 %v1423
      %v1719 = vunpack.c.l.b16 %v1424
      %v1720 = vunpack.c.l.b16 %v1425
      %v1721 = vunpack.c.l.b16 %v1426
      %v1722 = vunpack.c.l.b16 %v1427
      %v1723 = vunpack.c.l.b16 %v1428
      %v1724 = vunpack.c.l.b16 %v1429
      %v1725 = vunpack.c.l.b16 %v1430
      %v1726 = vunpack.c.l.b16 %v1431
      %v1727 = vunpack.c.l.b16 %v1432
      %v1728 = vunpack.c.l.b16 %v1433
      %v1729 = vunpack.c.l.b16 %v1434
      %v1730 = vunpack.c.l.b16 %v1435
      %v1731 = vunpack.c.l.b16 %v1436
      %v1732 = vunpack.c.l.b16 %v1437
      %v1733 = vunpack.c.l.b16 %v1438
      %v1734 = vunpack.c.l.b16 %v1439
      %v1735 = vunpack.c.l.b16 %v1440
      %v1736 = vpack.c.b16 %v1593, %v1592
      %v1737 = vpack.c.b16 %v1595, %v1594
      %v1738 = vpack.c.b16 %v1597, %v1596
      %v1739 = vpack.c.b16 %v1599, %v1598
      %v1740 = vpack.c.b16 %v1601, %v1600
      %v1741 = vpack.c.b16 %v1603, %v1602
      %v1742 = vpack.c.b16 %v1605, %v1604
      %v1743 = vpack.c.b16 %v1607, %v1606
      %v1744 = vpack.c.b16 %v1609, %v1608
      %v1745 = vpack.c.b16 %v1611, %v1610
      %v1746 = vpack.c.b16 %v1613, %v1612
      %v1747 = vpack.c.b16 %v1615, %v1614
      %v1748 = vpack.c.b16 %v1617, %v1616
      %v1749 = vpack.c.b16 %v1619, %v1618
      %v1750 = vpack.c.b16 %v1621, %v1620
      %v1751 = vpack.c.b16 %v1623, %v1622
      %v1752 = vpack.c.b16 %v1625, %v1624
      %v1753 = vpack.c.b16 %v1627, %v1626
      %v1754 = vpack.c.b16 %v1629, %v1628
      %v1755 = vpack.c.b16 %v1631, %v1630
      %v1756 = vpack.c.b16 %v1633, %v1632
      %v1757 = vpack.c.b16 %v1635, %v1634
      %v1758 = vpack.c.b16 %v1637, %v1636
      %v1759 = vpack.c.b16 %v1639, %v1638
      %v1760 = vpack.c.b16 %v1641, %v1640
      %v1761 = vpack.c.b16 %v1643, %v1642
      %v1762 = vpack.c.b16 %v1645, %v1644
      %v1763 = vpack.c.b16 %v1647, %v1646
      %v1764 = vpack.c.b16 %v1649, %v1648
      %v1765 = vpack.c.b16 %v1651, %v1650
      %v1766 = vpack.c.b16 %v1653, %v1652
      %v1767 = vpack.c.b16 %v1655, %v1654
      %v1768 = vpack.c.b16 %v1657, %v1656
      %v1769 = vpack.c.b16 %v1659, %v1658
      %v1770 = vpack.c.b16 %v1661, %v1660
      %v1771 = vpack.c.b16 %v1663, %v1662
      %v1772 = vpack.c.b16 %v1665, %v1664
      %v1773 = vpack.c.b16 %v1667, %v1666
      %v1774 = vpack.c.b16 %v1669, %v1668
      %v1775 = vpack.c.b16 %v1671, %v1670
      %v1776 = vpack.c.b16 %v1673, %v1672
      %v1777 = vpack.c.b16 %v1675, %v1674
      %v1778 = vpack.c.b16 %v1677, %v1676
      %v1779 = vpack.c.b16 %v1679, %v1678
      %v1780 = vpack.c.b16 %v1681, %v1680
      %v1781 = vpack.c.b16 %v1683, %v1682
      %v1782 = vpack.c.b16 %v1685, %v1684
      %v1783 = vpack.c.b16 %v1687, %v1686
      %v1784 = vpack.c.b16 %v1689, %v1688
      %v1785 = vpack.c.b16 %v1691, %v1690
      %v1786 = vpack.c.b16 %v1693, %v1692
      %v1787 = vpack.c.b16 %v1695, %v1694
      %v1788 = vpack.c.b16 %v1697, %v1696
      %v1789 = vpack.c.b16 %v1699, %v1698
      %v1790 = vpack.c.b16 %v1701, %v1700
      %v1791 = vpack.c.b16 %v1703, %v1702
      %v1792 = vpack.c.b16 %v1705, %v1704
      %v1793 = vpack.c.b16 %v1707, %v1706
      %v1794 = vpack.c.b16 %v1709, %v1708
      %v1795 = vpack.c.b16 %v1711, %v1710
      %v1796 = vpack.c.b16 %v1713, %v1712
      %v1797 = vpack.c.b16 %v1715, %v1714
      %v1798 = vpack.c.b16 %v1717, %v1716
      %v1799 = vpack.c.b16 %v1719, %v1718
      %v1800 = vpack.c.b16 %v1721, %v1720
      %v1801 = vpack.c.b16 %v1723, %v1722
      %v1802 = vpack.c.b16 %v1725, %v1724
      %v1803 = vpack.c.b16 %v1727, %v1726
      %v1804 = vpack.c.b16 %v1729, %v1728
      %v1805 = vpack.c.b16 %v1731, %v1730
      %v1806 = vpack.c.b16 %v1733, %v1732
      %v1807 = vpack.c.b16 %v1735, %v1734
      %1880 = vmatprep.subr.bf16.mxu0 0
      %1881 = vmatpush1.bf16.msra.mxu0 %v1736
      %1882 = vmatprep.subr.bf16.mxu0 0
      %1883 = vmatpush1.bf16.msra.mxu0 %v1737
      %1884 = vmatprep.subr.bf16.mxu0 0
      %1885 = vmatpush1.bf16.msra.mxu0 %v1738
      %1886 = vmatprep.subr.bf16.mxu0 0
      %1887 = vmatpush1.bf16.msra.mxu0 %v1739
      %1888 = vmatprep.subr.bf16.mxu0 0
      %1889 = vmatpush1.bf16.msra.mxu0 %v1740
      %1890 = vmatprep.subr.bf16.mxu0 0
      %1891 = vmatpush1.bf16.msra.mxu0 %v1741
      %1892 = vmatprep.subr.bf16.mxu0 0
      %1893 = vmatpush1.bf16.msra.mxu0 %v1742
      %1894 = vmatprep.subr.bf16.mxu0 0
      %1895 = vmatpush1.bf16.msra.mxu0 %v1743
      %1896 = vmatprep.subr.bf16.mxu0 0
      %1897 = vmatpush1.bf16.msra.mxu0 %v1744
      %1898 = vmatprep.subr.bf16.mxu0 0
      %1899 = vmatpush1.bf16.msra.mxu0 %v1745
      %1900 = vmatprep.subr.bf16.mxu0 0
      %1901 = vmatpush1.bf16.msra.mxu0 %v1746
      %1902 = vmatprep.subr.bf16.mxu0 0
      %1903 = vmatpush1.bf16.msra.mxu0 %v1747
      %1904 = vmatprep.subr.bf16.mxu0 0
      %1905 = vmatpush1.bf16.msra.mxu0 %v1748
      %1906 = vmatprep.subr.bf16.mxu0 0
      %1907 = vmatpush1.bf16.msra.mxu0 %v1749
      %1908 = vmatprep.subr.bf16.mxu0 0
      %1909 = vmatpush1.bf16.msra.mxu0 %v1750
      %1910 = vmatprep.subr.bf16.mxu0 0
      %1911 = vmatpush1.bf16.msra.mxu0 %v1751
      %1912 = vmatprep.mubr.bf16.mxu0 %v1154
      %1913 = vmatmul.mubr.bf16.gmra.mrb[0].mxu0 %v1153
      %v1914 = vpop.f32.mrb[0].mxu0
      %v1915 = vadd.f32 %v1446, %v1914
      %v1916 = vpop.f32.mrb[0].mxu0
      %v1917 = vpop.f32.mrb[0].mxu0
      %v1918 = vadd.f32 %v1446, %v1917
      %v1919 = vpop.f32.mrb[0].mxu0
      %1920 = vmatprep.mubr.bf16.mxu0 %v1163
      %1921 = vmatmul.mubr.bf16.gmra.mrb[0].mxu0 %v1162
      %v1922 = vpop.f32.mrb[0].mxu0
      %v1923 = vadd.f32 %v1446, %v1922
      %v1924 = vpop.f32.mrb[0].mxu0
      %v1925 = vpop.f32.mrb[0].mxu0
      %v1926 = vadd.f32 %v1446, %v1925
      %v1927 = vpop.f32.mrb[0].mxu0
      %1928 = vmatprep.mubr.bf16.mxu0 %v1172
      %1929 = vmatmul.mubr.bf16.gmra.mrb[0].mxu0 %v1171
      %v1930 = vpop.f32.mrb[0].mxu0
      %v1931 = vadd.f32 %v1446, %v1930
      %v1932 = vpop.f32.mrb[0].mxu0
      %v1933 = vpop.f32.mrb[0].mxu0
      %v1934 = vadd.f32 %v1446, %v1933
      %v1935 = vpop.f32.mrb[0].mxu0
      %1936 = vmatprep.mubr.bf16.mxu0 %v1181
      %1937 = vmatmul.mubr.bf16.gmra.mrb[0].mxu0 %v1180
      %v1938 = vpop.f32.mrb[0].mxu0
      %v1939 = vadd.f32 %v1446, %v1938
      %v1940 = vpop.f32.mrb[0].mxu0
      %v1941 = vpop.f32.mrb[0].mxu0
      %v1942 = vadd.f32 %v1446, %v1941
      %v1943 = vpop.f32.mrb[0].mxu0
      %1944 = vmatprep.mubr.bf16.mxu0 %v1190
      %1945 = vmatmul.mubr.bf16.gmra.mrb[0].mxu0 %v1189
      %v1946 = vpop.f32.mrb[0].mxu0
      %v1947 = vadd.f32 %v1446, %v1946
      %v1948 = vpop.f32.mrb[0].mxu0
      %v1949 = vpop.f32.mrb[0].mxu0
      %v1950 = vadd.f32 %v1446, %v1949
      %v1951 = vpop.f32.mrb[0].mxu0
      %1952 = vmatprep.mubr.bf16.mxu0 %v1199
      %1953 = vmatmul.mubr.bf16.gmra.mrb[0].mxu0 %v1198
      %v1954 = vpop.f32.mrb[0].mxu0
      %v1955 = vadd.f32 %v1446, %v1954
      %v1956 = vpop.f32.mrb[0].mxu0
      %v1957 = vpop.f32.mrb[0].mxu0
      %v1958 = vadd.f32 %v1446, %v1957
      %v1959 = vpop.f32.mrb[0].mxu0
      %1960 = vmatprep.mubr.bf16.mxu0 %v1208
      %1961 = vmatmul.mubr.bf16.gmra.mrb[0].mxu0 %v1207
      %v1962 = vpop.f32.mrb[0].mxu0
      %v1963 = vadd.f32 %v1446, %v1962
      %v1964 = vpop.f32.mrb[0].mxu0
      %v1965 = vpop.f32.mrb[0].mxu0
      %v1966 = vadd.f32 %v1446, %v1965
      %v1967 = vpop.f32.mrb[0].mxu0
      %1968 = vmatprep.mubr.bf16.mxu0 %v1217
      %1969 = vmatmul.mubr.bf16.gmra.mrb[0].mxu0 %v1216
      %v1970 = vpop.f32.mrb[0].mxu0
      %v1971 = vadd.f32 %v1446, %v1970
      %v1972 = vpop.f32.mrb[0].mxu0
      %v1973 = vpop.f32.mrb[0].mxu0
      %v1974 = vadd.f32 %v1446, %v1973
      %v1975 = vpop.f32.mrb[0].mxu0
      %1976 = vmatprep.mubr.bf16.mxu0 %v1226
      %1977 = vmatmul.mubr.bf16.gmra.mrb[0].mxu0 %v1225
      %v1978 = vpop.f32.mrb[0].mxu0
      %v1979 = vadd.f32 %v1446, %v1978
      %v1980 = vpop.f32.mrb[0].mxu0
      %v1981 = vpop.f32.mrb[0].mxu0
      %v1982 = vadd.f32 %v1446, %v1981
      %v1983 = vpop.f32.mrb[0].mxu0
      %1984 = vmatprep.mubr.bf16.mxu0 %v1235
      %1985 = vmatmul.mubr.bf16.gmra.mrb[0].mxu0 %v1234
      %v1986 = vpop.f32.mrb[0].mxu0
      %v1987 = vadd.f32 %v1446, %v1986
      %v1988 = vpop.f32.mrb[0].mxu0
      %v1989 = vpop.f32.mrb[0].mxu0
      %v1990 = vadd.f32 %v1446, %v1989
      %v1991 = vpop.f32.mrb[0].mxu0
      %1992 = vmatprep.mubr.bf16.mxu0 %v1244
      %1993 = vmatmul.mubr.bf16.gmra.mrb[0].mxu0 %v1243
      %v1994 = vpop.f32.mrb[0].mxu0
      %v1995 = vadd.f32 %v1446, %v1994
      %v1996 = vpop.f32.mrb[0].mxu0
      %v1997 = vpop.f32.mrb[0].mxu0
      %v1998 = vadd.f32 %v1446, %v1997
      %v1999 = vpop.f32.mrb[0].mxu0
      %2000 = vmatprep.mubr.bf16.mxu0 %v1253
      %2001 = vmatmul.mubr.bf16.gmra.mrb[0].mxu0 %v1252
      %v2002 = vpop.f32.mrb[0].mxu0
      %v2003 = vadd.f32 %v1446, %v2002
      %v2004 = vpop.f32.mrb[0].mxu0
      %v2005 = vpop.f32.mrb[0].mxu0
      %v2006 = vadd.f32 %v1446, %v2005
      %v2007 = vpop.f32.mrb[0].mxu0
      %2008 = vmatprep.mubr.bf16.mxu0 %v1262
      %2009 = vmatmul.mubr.bf16.gmra.mrb[0].mxu0 %v1261
      %v2010 = vpop.f32.mrb[0].mxu0
      %v2011 = vadd.f32 %v1446, %v2010
      %v2012 = vpop.f32.mrb[0].mxu0
      %v2013 = vpop.f32.mrb[0].mxu0
      %v2014 = vadd.f32 %v1446, %v2013
      %v2015 = vpop.f32.mrb[0].mxu0
      %2016 = vmatprep.mubr.bf16.mxu0 %v1271
      %2017 = vmatmul.mubr.bf16.gmra.mrb[0].mxu0 %v1270
      %v2018 = vpop.f32.mrb[0].mxu0
      %v2019 = vadd.f32 %v1446, %v2018
      %v2020 = vpop.f32.mrb[0].mxu0
      %v2021 = vpop.f32.mrb[0].mxu0
      %v2022 = vadd.f32 %v1446, %v2021
      %v2023 = vpop.f32.mrb[0].mxu0
      %2024 = vmatprep.mubr.bf16.mxu0 %v1280
      %2025 = vmatmul.mubr.bf16.gmra.mrb[0].mxu0 %v1279
      %v2026 = vpop.f32.mrb[0].mxu0
      %v2027 = vadd.f32 %v1446, %v2026
      %v2028 = vpop.f32.mrb[0].mxu0
      %v2029 = vpop.f32.mrb[0].mxu0
      %v2030 = vadd.f32 %v1446, %v2029
      %v2031 = vpop.f32.mrb[0].mxu0
      %2032 = vmatprep.mubr.bf16.mxu0 %v1289
      %2033 = vmatmul.mubr.bf16.gmra.mrb[0].mxu0 %v1288
      %v2034 = vpop.f32.mrb[0].mxu0
      %v2035 = vadd.f32 %v1446, %v2034
      %v2036 = vpop.f32.mrb[0].mxu0
      %v2037 = vpop.f32.mrb[0].mxu0
      %v2038 = vadd.f32 %v1446, %v2037
      %v2039 = vpop.f32.mrb[0].mxu0
      %2040 = vdwg.mxu0
      %2041 = vmatprep.subr.bf16.mxu0 0
      %2042 = vmatpush1.bf16.msra.mxu0 %v1752
      %2043 = vmatprep.subr.bf16.mxu0 0
      %2044 = vmatpush1.bf16.msra.mxu0 %v1753
      %2045 = vmatprep.subr.bf16.mxu0 0
      %2046 = vmatpush1.bf16.msra.mxu0 %v1754
      %2047 = vmatprep.subr.bf16.mxu0 0
      %2048 = vmatpush1.bf16.msra.mxu0 %v1755
      %2049 = vmatprep.subr.bf16.mxu0 0
      %2050 = vmatpush1.bf16.msra.mxu0 %v1756
      %2051 = vmatprep.subr.bf16.mxu0 0
      %2052 = vmatpush1.bf16.msra.mxu0 %v1757
      %2053 = vmatprep.subr.bf16.mxu0 0
      %2054 = vmatpush1.bf16.msra.mxu0 %v1758
      %2055 = vmatprep.subr.bf16.mxu0 0
      %2056 = vmatpush1.bf16.msra.mxu0 %v1759
      %2057 = vmatprep.subr.bf16.mxu0 0
      %2058 = vmatpush1.bf16.msra.mxu0 %v1760
      %2059 = vmatprep.subr.bf16.mxu0 0
      %2060 = vmatpush1.bf16.msra.mxu0 %v1761
      %2061 = vmatprep.subr.bf16.mxu0 0
      %2062 = vmatpush1.bf16.msra.mxu0 %v1762
      %2063 = vmatprep.subr.bf16.mxu0 0
      %2064 = vmatpush1.bf16.msra.mxu0 %v1763
      %2065 = vmatprep.subr.bf16.mxu0 0
      %2066 = vmatpush1.bf16.msra.mxu0 %v1764
      %2067 = vmatprep.subr.bf16.mxu0 0
      %2068 = vmatpush1.bf16.msra.mxu0 %v1765
      %2069 = vmatprep.subr.bf16.mxu0 0
      %2070 = vmatpush1.bf16.msra.mxu0 %v1766
      %2071 = vmatprep.subr.bf16.mxu0 0
      %2072 = vmatpush1.bf16.msra.mxu0 %v1767
      %2073 = vmatprep.mubr.bf16.mxu0 %v1156
      %2074 = vmatmul.mubr.bf16.gmra.mrb[0].mxu0 %v1155
      %v2075 = vpop.f32.mrb[0].mxu0
      %v2076 = vadd.f32 %v1915, %v2075
      %v2077 = vpop.f32.mrb[0].mxu0
      %v2078 = vpop.f32.mrb[0].mxu0
      %v2079 = vadd.f32 %v1918, %v2078
      %v2080 = vpop.f32.mrb[0].mxu0
      %2081 = vmatprep.mubr.bf16.mxu0 %v1165
      %2082 = vmatmul.mubr.bf16.gmra.mrb[0].mxu0 %v1164
      %v2083 = vpop.f32.mrb[0].mxu0
      %v2084 = vadd.f32 %v1923, %v2083
      %v2085 = vpop.f32.mrb[0].mxu0
      %v2086 = vpop.f32.mrb[0].mxu0
      %v2087 = vadd.f32 %v1926, %v2086
      %v2088 = vpop.f32.mrb[0].mxu0
      %2089 = vmatprep.mubr.bf16.mxu0 %v1174
      %2090 = vmatmul.mubr.bf16.gmra.mrb[0].mxu0 %v1173
      %v2091 = vpop.f32.mrb[0].mxu0
      %v2092 = vadd.f32 %v1931, %v2091
      %v2093 = vpop.f32.mrb[0].mxu0
      %v2094 = vpop.f32.mrb[0].mxu0
      %v2095 = vadd.f32 %v1934, %v2094
      %v2096 = vpop.f32.mrb[0].mxu0
      %2097 = vmatprep.mubr.bf16.mxu0 %v1183
      %2098 = vmatmul.mubr.bf16.gmra.mrb[0].mxu0 %v1182
      %v2099 = vpop.f32.mrb[0].mxu0
      %v2100 = vadd.f32 %v1939, %v2099
      %v2101 = vpop.f32.mrb[0].mxu0
      %v2102 = vpop.f32.mrb[0].mxu0
      %v2103 = vadd.f32 %v1942, %v2102
      %v2104 = vpop.f32.mrb[0].mxu0
      %2105 = vmatprep.mubr.bf16.mxu0 %v1192
      %2106 = vmatmul.mubr.bf16.gmra.mrb[0].mxu0 %v1191
      %v2107 = vpop.f32.mrb[0].mxu0
      %v2108 = vadd.f32 %v1947, %v2107
      %v2109 = vpop.f32.mrb[0].mxu0
      %v2110 = vpop.f32.mrb[0].mxu0
      %v2111 = vadd.f32 %v1950, %v2110
      %v2112 = vpop.f32.mrb[0].mxu0
      %2113 = vmatprep.mubr.bf16.mxu0 %v1201
      %2114 = vmatmul.mubr.bf16.gmra.mrb[0].mxu0 %v1200
      %v2115 = vpop.f32.mrb[0].mxu0
      %v2116 = vadd.f32 %v1955, %v2115
      %v2117 = vpop.f32.mrb[0].mxu0
      %v2118 = vpop.f32.mrb[0].mxu0
      %v2119 = vadd.f32 %v1958, %v2118
      %v2120 = vpop.f32.mrb[0].mxu0
      %2121 = vmatprep.mubr.bf16.mxu0 %v1210
      %2122 = vmatmul.mubr.bf16.gmra.mrb[0].mxu0 %v1209
      %v2123 = vpop.f32.mrb[0].mxu0
      %v2124 = vadd.f32 %v1963, %v2123
      %v2125 = vpop.f32.mrb[0].mxu0
      %v2126 = vpop.f32.mrb[0].mxu0
      %v2127 = vadd.f32 %v1966, %v2126
      %v2128 = vpop.f32.mrb[0].mxu0
      %2129 = vmatprep.mubr.bf16.mxu0 %v1219
      %2130 = vmatmul.mubr.bf16.gmra.mrb[0].mxu0 %v1218
      %v2131 = vpop.f32.mrb[0].mxu0
      %v2132 = vadd.f32 %v1971, %v2131
      %v2133 = vpop.f32.mrb[0].mxu0
      %v2134 = vpop.f32.mrb[0].mxu0
      %v2135 = vadd.f32 %v1974, %v2134
      %v2136 = vpop.f32.mrb[0].mxu0
      %2137 = vmatprep.mubr.bf16.mxu0 %v1228
      %2138 = vmatmul.mubr.bf16.gmra.mrb[0].mxu0 %v1227
      %v2139 = vpop.f32.mrb[0].mxu0
      %v2140 = vadd.f32 %v1979, %v2139
      %v2141 = vpop.f32.mrb[0].mxu0
      %v2142 = vpop.f32.mrb[0].mxu0
      %v2143 = vadd.f32 %v1982, %v2142
      %v2144 = vpop.f32.mrb[0].mxu0
      %2145 = vmatprep.mubr.bf16.mxu0 %v1237
      %2146 = vmatmul.mubr.bf16.gmra.mrb[0].mxu0 %v1236
      %v2147 = vpop.f32.mrb[0].mxu0
      %v2148 = vadd.f32 %v1987, %v2147
      %v2149 = vpop.f32.mrb[0].mxu0
      %v2150 = vpop.f32.mrb[0].mxu0
      %v2151 = vadd.f32 %v1990, %v2150
      %v2152 = vpop.f32.mrb[0].mxu0
      %2153 = vmatprep.mubr.bf16.mxu0 %v1246
      %2154 = vmatmul.mubr.bf16.gmra.mrb[0].mxu0 %v1245
      %v2155 = vpop.f32.mrb[0].mxu0
      %v2156 = vadd.f32 %v1995, %v2155
      %v2157 = vpop.f32.mrb[0].mxu0
      %v2158 = vpop.f32.mrb[0].mxu0
      %v2159 = vadd.f32 %v1998, %v2158
      %v2160 = vpop.f32.mrb[0].mxu0
      %2161 = vmatprep.mubr.bf16.mxu0 %v1255
      %2162 = vmatmul.mubr.bf16.gmra.mrb[0].mxu0 %v1254
      %v2163 = vpop.f32.mrb[0].mxu0
      %v2164 = vadd.f32 %v2003, %v2163
      %v2165 = vpop.f32.mrb[0].mxu0
      %v2166 = vpop.f32.mrb[0].mxu0
      %v2167 = vadd.f32 %v2006, %v2166
      %v2168 = vpop.f32.mrb[0].mxu0
      %2169 = vmatprep.mubr.bf16.mxu0 %v1264
      %2170 = vmatmul.mubr.bf16.gmra.mrb[0].mxu0 %v1263
      %v2171 = vpop.f32.mrb[0].mxu0
      %v2172 = vadd.f32 %v2011, %v2171
      %v2173 = vpop.f32.mrb[0].mxu0
      %v2174 = vpop.f32.mrb[0].mxu0
      %v2175 = vadd.f32 %v2014, %v2174
      %v2176 = vpop.f32.mrb[0].mxu0
      %2177 = vmatprep.mubr.bf16.mxu0 %v1273
      %2178 = vmatmul.mubr.bf16.gmra.mrb[0].mxu0 %v1272
      %v2179 = vpop.f32.mrb[0].mxu0
      %v2180 = vadd.f32 %v2019, %v2179
      %v2181 = vpop.f32.mrb[0].mxu0
      %v2182 = vpop.f32.mrb[0].mxu0
      %v2183 = vadd.f32 %v2022, %v2182
      %v2184 = vpop.f32.mrb[0].mxu0
      %2185 = vmatprep.mubr.bf16.mxu0 %v1282
      %2186 = vmatmul.mubr.bf16.gmra.mrb[0].mxu0 %v1281
      %v2187 = vpop.f32.mrb[0].mxu0
      %v2188 = vadd.f32 %v2027, %v2187
      %v2189 = vpop.f32.mrb[0].mxu0
      %v2190 = vpop.f32.mrb[0].mxu0
      %v2191 = vadd.f32 %v2030, %v2190
      %v2192 = vpop.f32.mrb[0].mxu0
      %2193 = vmatprep.mubr.bf16.mxu0 %v1291
      %2194 = vmatmul.mubr.bf16.gmra.mrb[0].mxu0 %v1290
      %v2195 = vpop.f32.mrb[0].mxu0
      %v2196 = vadd.f32 %v2035, %v2195
      %v2197 = vpop.f32.mrb[0].mxu0
      %v2198 = vpop.f32.mrb[0].mxu0
      %v2199 = vadd.f32 %v2038, %v2198
      %v2200 = vpop.f32.mrb[0].mxu0
      %2201 = vdwg.mxu0
      %2202 = vmatprep.subr.bf16.mxu0 0
      %2203 = vmatpush1.bf16.msra.mxu0 %v1768
      %2204 = vmatprep.subr.bf16.mxu0 0
      %2205 = vmatpush1.bf16.msra.mxu0 %v1769
      %2206 = vmatprep.subr.bf16.mxu0 0
      %2207 = vmatpush1.bf16.msra.mxu0 %v1770
      %2208 = vmatprep.subr.bf16.mxu0 0
      %2209 = vmatpush1.bf16.msra.mxu0 %v1771
      %2210 = vmatprep.subr.bf16.mxu0 0
      %2211 = vmatpush1.bf16.msra.mxu0 %v1772
      %2212 = vmatprep.subr.bf16.mxu0 0
      %2213 = vmatpush1.bf16.msra.mxu0 %v1773
      %2214 = vmatprep.subr.bf16.mxu0 0
      %2215 = vmatpush1.bf16.msra.mxu0 %v1774
      %2216 = vmatprep.subr.bf16.mxu0 0
      %2217 = vmatpush1.bf16.msra.mxu0 %v1775
      %2218 = vmatprep.subr.bf16.mxu0 0
      %2219 = vmatpush1.bf16.msra.mxu0 %v1776
      %2220 = vmatprep.subr.bf16.mxu0 0
      %2221 = vmatpush1.bf16.msra.mxu0 %v1777
      %2222 = vmatprep.subr.bf16.mxu0 0
      %2223 = vmatpush1.bf16.msra.mxu0 %v1778
      %2224 = vmatprep.subr.bf16.mxu0 0
      %2225 = vmatpush1.bf16.msra.mxu0 %v1779
      %2226 = vmatprep.subr.bf16.mxu0 0
      %2227 = vmatpush1.bf16.msra.mxu0 %v1780
      %2228 = vmatprep.subr.bf16.mxu0 0
      %2229 = vmatpush1.bf16.msra.mxu0 %v1781
      %2230 = vmatprep.subr.bf16.mxu0 0
      %2231 = vmatpush1.bf16.msra.mxu0 %v1782
      %2232 = vmatprep.subr.bf16.mxu0 0
      %2233 = vmatpush1.bf16.msra.mxu0 %v1783
      %2234 = vmatprep.mubr.bf16.mxu0 %v1158
      %2235 = vmatmul.mubr.bf16.gmra.mrb[0].mxu0 %v1157
      %v2236 = vpop.f32.mrb[0].mxu0
      %v2237 = vadd.f32 %v2076, %v2236
      %v2238 = vpop.f32.mrb[0].mxu0
      %v2239 = vpop.f32.mrb[0].mxu0
      %v2240 = vadd.f32 %v2079, %v2239
      %v2241 = vpop.f32.mrb[0].mxu0
      %2242 = vmatprep.mubr.bf16.mxu0 %v1167
      %2243 = vmatmul.mubr.bf16.gmra.mrb[0].mxu0 %v1166
      %v2244 = vpop.f32.mrb[0].mxu0
      %v2245 = vadd.f32 %v2084, %v2244
      %v2246 = vpop.f32.mrb[0].mxu0
      %v2247 = vpop.f32.mrb[0].mxu0
      %v2248 = vadd.f32 %v2087, %v2247
      %v2249 = vpop.f32.mrb[0].mxu0
      %2250 = vmatprep.mubr.bf16.mxu0 %v1176
      %2251 = vmatmul.mubr.bf16.gmra.mrb[0].mxu0 %v1175
      %v2252 = vpop.f32.mrb[0].mxu0
      %v2253 = vadd.f32 %v2092, %v2252
      %v2254 = vpop.f32.mrb[0].mxu0
      %v2255 = vpop.f32.mrb[0].mxu0
      %v2256 = vadd.f32 %v2095, %v2255
      %v2257 = vpop.f32.mrb[0].mxu0
      %2258 = vmatprep.mubr.bf16.mxu0 %v1185
      %2259 = vmatmul.mubr.bf16.gmra.mrb[0].mxu0 %v1184
      %v2260 = vpop.f32.mrb[0].mxu0
      %v2261 = vadd.f32 %v2100, %v2260
      %v2262 = vpop.f32.mrb[0].mxu0
      %v2263 = vpop.f32.mrb[0].mxu0
      %v2264 = vadd.f32 %v2103, %v2263
      %v2265 = vpop.f32.mrb[0].mxu0
      %2266 = vmatprep.mubr.bf16.mxu0 %v1194
      %2267 = vmatmul.mubr.bf16.gmra.mrb[0].mxu0 %v1193
      %v2268 = vpop.f32.mrb[0].mxu0
      %v2269 = vadd.f32 %v2108, %v2268
      %v2270 = vpop.f32.mrb[0].mxu0
      %v2271 = vpop.f32.mrb[0].mxu0
      %v2272 = vadd.f32 %v2111, %v2271
      %v2273 = vpop.f32.mrb[0].mxu0
      %2274 = vmatprep.mubr.bf16.mxu0 %v1203
      %2275 = vmatmul.mubr.bf16.gmra.mrb[0].mxu0 %v1202
      %v2276 = vpop.f32.mrb[0].mxu0
      %v2277 = vadd.f32 %v2116, %v2276
      %v2278 = vpop.f32.mrb[0].mxu0
      %v2279 = vpop.f32.mrb[0].mxu0
      %v2280 = vadd.f32 %v2119, %v2279
      %v2281 = vpop.f32.mrb[0].mxu0
      %2282 = vmatprep.mubr.bf16.mxu0 %v1212
      %2283 = vmatmul.mubr.bf16.gmra.mrb[0].mxu0 %v1211
      %v2284 = vpop.f32.mrb[0].mxu0
      %v2285 = vadd.f32 %v2124, %v2284
      %v2286 = vpop.f32.mrb[0].mxu0
      %v2287 = vpop.f32.mrb[0].mxu0
      %v2288 = vadd.f32 %v2127, %v2287
      %v2289 = vpop.f32.mrb[0].mxu0
      %2290 = vmatprep.mubr.bf16.mxu0 %v1221
      %2291 = vmatmul.mubr.bf16.gmra.mrb[0].mxu0 %v1220
      %v2292 = vpop.f32.mrb[0].mxu0
      %v2293 = vadd.f32 %v2132, %v2292
      %v2294 = vpop.f32.mrb[0].mxu0
      %v2295 = vpop.f32.mrb[0].mxu0
      %v2296 = vadd.f32 %v2135, %v2295
      %v2297 = vpop.f32.mrb[0].mxu0
      %2298 = vmatprep.mubr.bf16.mxu0 %v1230
      %2299 = vmatmul.mubr.bf16.gmra.mrb[0].mxu0 %v1229
      %v2300 = vpop.f32.mrb[0].mxu0
      %v2301 = vadd.f32 %v2140, %v2300
      %v2302 = vpop.f32.mrb[0].mxu0
      %v2303 = vpop.f32.mrb[0].mxu0
      %v2304 = vadd.f32 %v2143, %v2303
      %v2305 = vpop.f32.mrb[0].mxu0
      %2306 = vmatprep.mubr.bf16.mxu0 %v1239
      %2307 = vmatmul.mubr.bf16.gmra.mrb[0].mxu0 %v1238
      %v2308 = vpop.f32.mrb[0].mxu0
      %v2309 = vadd.f32 %v2148, %v2308
      %v2310 = vpop.f32.mrb[0].mxu0
      %v2311 = vpop.f32.mrb[0].mxu0
      %v2312 = vadd.f32 %v2151, %v2311
      %v2313 = vpop.f32.mrb[0].mxu0
      %2314 = vmatprep.mubr.bf16.mxu0 %v1248
      %2315 = vmatmul.mubr.bf16.gmra.mrb[0].mxu0 %v1247
      %v2316 = vpop.f32.mrb[0].mxu0
      %v2317 = vadd.f32 %v2156, %v2316
      %v2318 = vpop.f32.mrb[0].mxu0
      %v2319 = vpop.f32.mrb[0].mxu0
      %v2320 = vadd.f32 %v2159, %v2319
      %v2321 = vpop.f32.mrb[0].mxu0
      %2322 = vmatprep.mubr.bf16.mxu0 %v1257
      %2323 = vmatmul.mubr.bf16.gmra.mrb[0].mxu0 %v1256
      %v2324 = vpop.f32.mrb[0].mxu0
      %v2325 = vadd.f32 %v2164, %v2324
      %v2326 = vpop.f32.mrb[0].mxu0
      %v2327 = vpop.f32.mrb[0].mxu0
      %v2328 = vadd.f32 %v2167, %v2327
      %v2329 = vpop.f32.mrb[0].mxu0
      %2330 = vmatprep.mubr.bf16.mxu0 %v1266
      %2331 = vmatmul.mubr.bf16.gmra.mrb[0].mxu0 %v1265
      %v2332 = vpop.f32.mrb[0].mxu0
      %v2333 = vadd.f32 %v2172, %v2332
      %v2334 = vpop.f32.mrb[0].mxu0
      %v2335 = vpop.f32.mrb[0].mxu0
      %v2336 = vadd.f32 %v2175, %v2335
      %v2337 = vpop.f32.mrb[0].mxu0
      %2338 = vmatprep.mubr.bf16.mxu0 %v1275
      %2339 = vmatmul.mubr.bf16.gmra.mrb[0].mxu0 %v1274
      %v2340 = vpop.f32.mrb[0].mxu0
      %v2341 = vadd.f32 %v2180, %v2340
      %v2342 = vpop.f32.mrb[0].mxu0
      %v2343 = vpop.f32.mrb[0].mxu0
      %v2344 = vadd.f32 %v2183, %v2343
      %v2345 = vpop.f32.mrb[0].mxu0
      %2346 = vmatprep.mubr.bf16.mxu0 %v1284
      %2347 = vmatmul.mubr.bf16.gmra.mrb[0].mxu0 %v1283
      %v2348 = vpop.f32.mrb[0].mxu0
      %v2349 = vadd.f32 %v2188, %v2348
      %v2350 = vpop.f32.mrb[0].mxu0
      %v2351 = vpop.f32.mrb[0].mxu0
      %v2352 = vadd.f32 %v2191, %v2351
      %v2353 = vpop.f32.mrb[0].mxu0
      %2354 = vmatprep.mubr.bf16.mxu0 %v1293
      %2355 = vmatmul.mubr.bf16.gmra.mrb[0].mxu0 %v1292
      %v2356 = vpop.f32.mrb[0].mxu0
      %v2357 = vadd.f32 %v2196, %v2356
      %v2358 = vpop.f32.mrb[0].mxu0
      %v2359 = vpop.f32.mrb[0].mxu0
      %v2360 = vadd.f32 %v2199, %v2359
      %v2361 = vpop.f32.mrb[0].mxu0
      %2362 = vdwg.mxu0
      %2363 = vmatprep.subr.bf16.mxu0 0
      %2364 = vmatpush1.bf16.msra.mxu0 %v1784
      %2365 = vmatprep.subr.bf16.mxu0 0
      %2366 = vmatpush1.bf16.msra.mxu0 %v1785
      %2367 = vmatprep.subr.bf16.mxu0 0
      %2368 = vmatpush1.bf16.msra.mxu0 %v1786
      %2369 = vmatprep.subr.bf16.mxu0 0
      %2370 = vmatpush1.bf16.msra.mxu0 %v1787
      %2371 = vmatprep.subr.bf16.mxu0 0
      %2372 = vmatpush1.bf16.msra.mxu0 %v1788
      %2373 = vmatprep.subr.bf16.mxu0 0
      %2374 = vmatpush1.bf16.msra.mxu0 %v1789
      %2375 = vmatprep.subr.bf16.mxu0 0
      %2376 = vmatpush1.bf16.msra.mxu0 %v1790
      %2377 = vmatprep.subr.bf16.mxu0 0
      %2378 = vmatpush1.bf16.msra.mxu0 %v1791
      %2379 = vmatprep.subr.bf16.mxu0 0
      %2380 = vmatpush1.bf16.msra.mxu0 %v1792
      %2381 = vmatprep.subr.bf16.mxu0 0
      %2382 = vmatpush1.bf16.msra.mxu0 %v1793
      %2383 = vmatprep.subr.bf16.mxu0 0
      %2384 = vmatpush1.bf16.msra.mxu0 %v1794
      %2385 = vmatprep.subr.bf16.mxu0 0
      %2386 = vmatpush1.bf16.msra.mxu0 %v1795
      %2387 = vmatprep.subr.bf16.mxu0 0
      %2388 = vmatpush1.bf16.msra.mxu0 %v1796
      %2389 = vmatprep.subr.bf16.mxu0 0
      %2390 = vmatpush1.bf16.msra.mxu0 %v1797
      %2391 = vmatprep.subr.bf16.mxu0 0
      %2392 = vmatpush1.bf16.msra.mxu0 %v1798
      %2393 = vmatprep.subr.bf16.mxu0 0
      %2394 = vmatpush1.bf16.msra.mxu0 %v1799
      %2395 = vmatprep.mubr.bf16.mxu0 %v1160
      %2396 = vmatmul.mubr.bf16.gmra.mrb[0].mxu0 %v1159
      %v2397 = vpop.f32.mrb[0].mxu0
      %v2398 = vadd.f32 %v2237, %v2397
      %v2399 = vpop.f32.mrb[0].mxu0
      %v2400 = vpop.f32.mrb[0].mxu0
      %v2401 = vadd.f32 %v2240, %v2400
      %v2402 = vpop.f32.mrb[0].mxu0
      %2403 = vmatprep.mubr.bf16.mxu0 %v1169
      %2404 = vmatmul.mubr.bf16.gmra.mrb[0].mxu0 %v1168
      %v2405 = vpop.f32.mrb[0].mxu0
      %v2406 = vadd.f32 %v2245, %v2405
      %v2407 = vpop.f32.mrb[0].mxu0
      %v2408 = vpop.f32.mrb[0].mxu0
      %v2409 = vadd.f32 %v2248, %v2408
      %v2410 = vpop.f32.mrb[0].mxu0
      %2411 = vmatprep.mubr.bf16.mxu0 %v1178
      %2412 = vmatmul.mubr.bf16.gmra.mrb[0].mxu0 %v1177
      %v2413 = vpop.f32.mrb[0].mxu0
      %v2414 = vadd.f32 %v2253, %v2413
      %v2415 = vpop.f32.mrb[0].mxu0
      %v2416 = vpop.f32.mrb[0].mxu0
      %v2417 = vadd.f32 %v2256, %v2416
      %v2418 = vpop.f32.mrb[0].mxu0
      %2419 = vmatprep.mubr.bf16.mxu0 %v1187
      %2420 = vmatmul.mubr.bf16.gmra.mrb[0].mxu0 %v1186
      %v2421 = vpop.f32.mrb[0].mxu0
      %v2422 = vadd.f32 %v2261, %v2421
      %v2423 = vpop.f32.mrb[0].mxu0
      %v2424 = vpop.f32.mrb[0].mxu0
      %v2425 = vadd.f32 %v2264, %v2424
      %v2426 = vpop.f32.mrb[0].mxu0
      %2427 = vmatprep.mubr.bf16.mxu0 %v1196
      %2428 = vmatmul.mubr.bf16.gmra.mrb[0].mxu0 %v1195
      %v2429 = vpop.f32.mrb[0].mxu0
      %v2430 = vadd.f32 %v2269, %v2429
      %v2431 = vpop.f32.mrb[0].mxu0
      %v2432 = vpop.f32.mrb[0].mxu0
      %v2433 = vadd.f32 %v2272, %v2432
      %v2434 = vpop.f32.mrb[0].mxu0
      %2435 = vmatprep.mubr.bf16.mxu0 %v1205
      %2436 = vmatmul.mubr.bf16.gmra.mrb[0].mxu0 %v1204
      %v2437 = vpop.f32.mrb[0].mxu0
      %v2438 = vadd.f32 %v2277, %v2437
      %v2439 = vpop.f32.mrb[0].mxu0
      %v2440 = vpop.f32.mrb[0].mxu0
      %v2441 = vadd.f32 %v2280, %v2440
      %v2442 = vpop.f32.mrb[0].mxu0
      %2443 = vmatprep.mubr.bf16.mxu0 %v1214
      %2444 = vmatmul.mubr.bf16.gmra.mrb[0].mxu0 %v1213
      %v2445 = vpop.f32.mrb[0].mxu0
      %v2446 = vadd.f32 %v2285, %v2445
      %v2447 = vpop.f32.mrb[0].mxu0
      %v2448 = vpop.f32.mrb[0].mxu0
      %v2449 = vadd.f32 %v2288, %v2448
      %v2450 = vpop.f32.mrb[0].mxu0
      %2451 = vmatprep.mubr.bf16.mxu0 %v1223
      %2452 = vmatmul.mubr.bf16.gmra.mrb[0].mxu0 %v1222
      %v2453 = vpop.f32.mrb[0].mxu0
      %v2454 = vadd.f32 %v2293, %v2453
      %v2455 = vpop.f32.mrb[0].mxu0
      %v2456 = vpop.f32.mrb[0].mxu0
      %v2457 = vadd.f32 %v2296, %v2456
      %v2458 = vpop.f32.mrb[0].mxu0
      %2459 = vmatprep.mubr.bf16.mxu0 %v1232
      %2460 = vmatmul.mubr.bf16.gmra.mrb[0].mxu0 %v1231
      %v2461 = vpop.f32.mrb[0].mxu0
      %v2462 = vadd.f32 %v2301, %v2461
      %v2463 = vpop.f32.mrb[0].mxu0
      %v2464 = vpop.f32.mrb[0].mxu0
      %v2465 = vadd.f32 %v2304, %v2464
      %v2466 = vpop.f32.mrb[0].mxu0
      %2467 = vmatprep.mubr.bf16.mxu0 %v1241
      %2468 = vmatmul.mubr.bf16.gmra.mrb[0].mxu0 %v1240
      %v2469 = vpop.f32.mrb[0].mxu0
      %v2470 = vadd.f32 %v2309, %v2469
      %v2471 = vpop.f32.mrb[0].mxu0
      %v2472 = vpop.f32.mrb[0].mxu0
      %v2473 = vadd.f32 %v2312, %v2472
      %v2474 = vpop.f32.mrb[0].mxu0
      %2475 = vmatprep.mubr.bf16.mxu0 %v1250
      %2476 = vmatmul.mubr.bf16.gmra.mrb[0].mxu0 %v1249
      %v2477 = vpop.f32.mrb[0].mxu0
      %v2478 = vadd.f32 %v2317, %v2477
      %v2479 = vpop.f32.mrb[0].mxu0
      %v2480 = vpop.f32.mrb[0].mxu0
      %v2481 = vadd.f32 %v2320, %v2480
      %v2482 = vpop.f32.mrb[0].mxu0
      %2483 = vmatprep.mubr.bf16.mxu0 %v1259
      %2484 = vmatmul.mubr.bf16.gmra.mrb[0].mxu0 %v1258
      %v2485 = vpop.f32.mrb[0].mxu0
      %v2486 = vadd.f32 %v2325, %v2485
      %v2487 = vpop.f32.mrb[0].mxu0
      %v2488 = vpop.f32.mrb[0].mxu0
      %v2489 = vadd.f32 %v2328, %v2488
      %v2490 = vpop.f32.mrb[0].mxu0
      %2491 = vmatprep.mubr.bf16.mxu0 %v1268
      %2492 = vmatmul.mubr.bf16.gmra.mrb[0].mxu0 %v1267
      %v2493 = vpop.f32.mrb[0].mxu0
      %v2494 = vadd.f32 %v2333, %v2493
      %v2495 = vpop.f32.mrb[0].mxu0
      %v2496 = vpop.f32.mrb[0].mxu0
      %v2497 = vadd.f32 %v2336, %v2496
      %v2498 = vpop.f32.mrb[0].mxu0
      %2499 = vmatprep.mubr.bf16.mxu0 %v1277
      %2500 = vmatmul.mubr.bf16.gmra.mrb[0].mxu0 %v1276
      %v2501 = vpop.f32.mrb[0].mxu0
      %v2502 = vadd.f32 %v2341, %v2501
      %v2503 = vpop.f32.mrb[0].mxu0
      %v2504 = vpop.f32.mrb[0].mxu0
      %v2505 = vadd.f32 %v2344, %v2504
      %v2506 = vpop.f32.mrb[0].mxu0
      %2507 = vmatprep.mubr.bf16.mxu0 %v1286
      %2508 = vmatmul.mubr.bf16.gmra.mrb[0].mxu0 %v1285
      %v2509 = vpop.f32.mrb[0].mxu0
      %v2510 = vadd.f32 %v2349, %v2509
      %v2511 = vpop.f32.mrb[0].mxu0
      %v2512 = vpop.f32.mrb[0].mxu0
      %v2513 = vadd.f32 %v2352, %v2512
      %v2514 = vpop.f32.mrb[0].mxu0
      %2515 = vmatprep.mubr.bf16.mxu0 %v1295
      %2516 = vmatmul.mubr.bf16.gmra.mrb[0].mxu0 %v1294
      %v2517 = vpop.f32.mrb[0].mxu0
      %v2518 = vadd.f32 %v2357, %v2517
      %v2519 = vpop.f32.mrb[0].mxu0
      %v2520 = vpop.f32.mrb[0].mxu0
      %v2521 = vadd.f32 %v2360, %v2520
      %v2522 = vpop.f32.mrb[0].mxu0
      %2523 = vdwg.mxu0
      %2524 = vmatprep.subr.bf16.mxu0 0
      %2525 = vmatpush1.bf16.msra.mxu0 %v1800
      %2526 = vmatprep.subr.bf16.mxu0 0
      %2527 = vmatpush1.bf16.msra.mxu0 %v1801
      %2528 = vmatprep.subr.bf16.mxu0 0
      %2529 = vmatpush1.bf16.msra.mxu0 %v1802
      %2530 = vmatprep.subr.bf16.mxu0 0
      %2531 = vmatpush1.bf16.msra.mxu0 %v1803
      %2532 = vmatprep.subr.bf16.mxu0 0
      %2533 = vmatpush1.bf16.msra.mxu0 %v1804
      %2534 = vmatprep.subr.bf16.mxu0 0
      %2535 = vmatpush1.bf16.msra.mxu0 %v1805
      %2536 = vmatprep.subr.bf16.mxu0 0
      %2537 = vmatpush1.bf16.msra.mxu0 %v1806
      %2538 = vmatprep.subr.bf16.mxu0 0
      %2539 = vmatpush1.bf16.msra.mxu0 %v1807
      %2540 = vmatprep.subr.bf16.mxu0 0
      %2541 = vmatpush1.bf16.msra.mxu0 0
      %2542 = vmatprep.subr.bf16.mxu0 0
      %2543 = vmatpush1.bf16.msra.mxu0 0
      %2544 = vmatprep.subr.bf16.mxu0 0
      %2545 = vmatpush1.bf16.msra.mxu0 0
      %2546 = vmatprep.subr.bf16.mxu0 0
      %2547 = vmatpush1.bf16.msra.mxu0 0
      %2548 = vmatprep.subr.bf16.mxu0 0
      %2549 = vmatpush1.bf16.msra.mxu0 0
      %2550 = vmatprep.subr.bf16.mxu0 0
      %2551 = vmatpush1.bf16.msra.mxu0 0
      %2552 = vmatprep.subr.bf16.mxu0 0
      %2553 = vmatpush1.bf16.msra.mxu0 0
      %2554 = vmatprep.subr.bf16.mxu0 0
      %2555 = vmatpush1.bf16.msra.mxu0 0
      %2556 = vmatprep.mubr.bf16.mxu0 0
      %2557 = vmatmul.mubr.bf16.gmra.mrb[0].mxu0 %v1161
      %v2558 = vpop.f32.mrb[0].mxu0
      %v2559 = vadd.f32 %v2398, %v2558
      %v2560 = vpop.f32.mrb[0].mxu0
      %v2561 = vpop.f32.mrb[0].mxu0
      %v2562 = vadd.f32 %v2401, %v2561
      %v2563 = vpop.f32.mrb[0].mxu0
      %2564 = vmatprep.mubr.bf16.mxu0 0
      %2565 = vmatmul.mubr.bf16.gmra.mrb[0].mxu0 %v1170
      %v2566 = vpop.f32.mrb[0].mxu0
      %v2567 = vadd.f32 %v2406, %v2566
      %v2568 = vpop.f32.mrb[0].mxu0
      %v2569 = vpop.f32.mrb[0].mxu0
      %v2570 = vadd.f32 %v2409, %v2569
      %v2571 = vpop.f32.mrb[0].mxu0
      %2572 = vmatprep.mubr.bf16.mxu0 0
      %2573 = vmatmul.mubr.bf16.gmra.mrb[0].mxu0 %v1179
      %v2574 = vpop.f32.mrb[0].mxu0
      %v2575 = vadd.f32 %v2414, %v2574
      %v2576 = vpop.f32.mrb[0].mxu0
      %v2577 = vpop.f32.mrb[0].mxu0
      %v2578 = vadd.f32 %v2417, %v2577
      %v2579 = vpop.f32.mrb[0].mxu0
      %2580 = vmatprep.mubr.bf16.mxu0 0
      %2581 = vmatmul.mubr.bf16.gmra.mrb[0].mxu0 %v1188
      %v2582 = vpop.f32.mrb[0].mxu0
      %v2583 = vadd.f32 %v2422, %v2582
      %v2584 = vpop.f32.mrb[0].mxu0
      %v2585 = vpop.f32.mrb[0].mxu0
      %v2586 = vadd.f32 %v2425, %v2585
      %v2587 = vpop.f32.mrb[0].mxu0
      %2588 = vmatprep.mubr.bf16.mxu0 0
      %2589 = vmatmul.mubr.bf16.gmra.mrb[0].mxu0 %v1197
      %v2590 = vpop.f32.mrb[0].mxu0
      %v2591 = vadd.f32 %v2430, %v2590
      %v2592 = vpop.f32.mrb[0].mxu0
      %v2593 = vpop.f32.mrb[0].mxu0
      %v2594 = vadd.f32 %v2433, %v2593
      %v2595 = vpop.f32.mrb[0].mxu0
      %2596 = vmatprep.mubr.bf16.mxu0 0
      %2597 = vmatmul.mubr.bf16.gmra.mrb[0].mxu0 %v1206
      %v2598 = vpop.f32.mrb[0].mxu0
      %v2599 = vadd.f32 %v2438, %v2598
      %v2600 = vpop.f32.mrb[0].mxu0
      %v2601 = vpop.f32.mrb[0].mxu0
      %v2602 = vadd.f32 %v2441, %v2601
      %v2603 = vpop.f32.mrb[0].mxu0
      %2604 = vmatprep.mubr.bf16.mxu0 0
      %2605 = vmatmul.mubr.bf16.gmra.mrb[0].mxu0 %v1215
      %v2606 = vpop.f32.mrb[0].mxu0
      %v2607 = vadd.f32 %v2446, %v2606
      %v2608 = vpop.f32.mrb[0].mxu0
      %v2609 = vpop.f32.mrb[0].mxu0
      %v2610 = vadd.f32 %v2449, %v2609
      %v2611 = vpop.f32.mrb[0].mxu0
      %2612 = vmatprep.mubr.bf16.mxu0 0
      %2613 = vmatmul.mubr.bf16.gmra.mrb[0].mxu0 %v1224
      %v2614 = vpop.f32.mrb[0].mxu0
      %v2615 = vadd.f32 %v2454, %v2614
      %v2616 = vpop.f32.mrb[0].mxu0
      %v2617 = vpop.f32.mrb[0].mxu0
      %v2618 = vadd.f32 %v2457, %v2617
      %v2619 = vpop.f32.mrb[0].mxu0
      %2620 = vmatprep.mubr.bf16.mxu0 0
      %2621 = vmatmul.mubr.bf16.gmra.mrb[0].mxu0 %v1233
      %v2622 = vpop.f32.mrb[0].mxu0
      %v2623 = vadd.f32 %v2462, %v2622
      %v2624 = vpop.f32.mrb[0].mxu0
      %v2625 = vpop.f32.mrb[0].mxu0
      %v2626 = vadd.f32 %v2465, %v2625
      %v2627 = vpop.f32.mrb[0].mxu0
      %2628 = vmatprep.mubr.bf16.mxu0 0
      %2629 = vmatmul.mubr.bf16.gmra.mrb[0].mxu0 %v1242
      %v2630 = vpop.f32.mrb[0].mxu0
      %v2631 = vadd.f32 %v2470, %v2630
      %v2632 = vpop.f32.mrb[0].mxu0
      %v2633 = vpop.f32.mrb[0].mxu0
      %v2634 = vadd.f32 %v2473, %v2633
      %v2635 = vpop.f32.mrb[0].mxu0
      %2636 = vmatprep.mubr.bf16.mxu0 0
      %2637 = vmatmul.mubr.bf16.gmra.mrb[0].mxu0 %v1251
      %v2638 = vpop.f32.mrb[0].mxu0
      %v2639 = vadd.f32 %v2478, %v2638
      %v2640 = vpop.f32.mrb[0].mxu0
      %v2641 = vpop.f32.mrb[0].mxu0
      %v2642 = vadd.f32 %v2481, %v2641
      %v2643 = vpop.f32.mrb[0].mxu0
      %2644 = vmatprep.mubr.bf16.mxu0 0
      %2645 = vmatmul.mubr.bf16.gmra.mrb[0].mxu0 %v1260
      %v2646 = vpop.f32.mrb[0].mxu0
      %v2647 = vadd.f32 %v2486, %v2646
      %v2648 = vpop.f32.mrb[0].mxu0
      %v2649 = vpop.f32.mrb[0].mxu0
      %v2650 = vadd.f32 %v2489, %v2649
      %v2651 = vpop.f32.mrb[0].mxu0
      %2652 = vmatprep.mubr.bf16.mxu0 0
      %2653 = vmatmul.mubr.bf16.gmra.mrb[0].mxu0 %v1269
      %v2654 = vpop.f32.mrb[0].mxu0
      %v2655 = vadd.f32 %v2494, %v2654
      %v2656 = vpop.f32.mrb[0].mxu0
      %v2657 = vpop.f32.mrb[0].mxu0
      %v2658 = vadd.f32 %v2497, %v2657
      %v2659 = vpop.f32.mrb[0].mxu0
      %2660 = vmatprep.mubr.bf16.mxu0 0
      %2661 = vmatmul.mubr.bf16.gmra.mrb[0].mxu0 %v1278
      %v2662 = vpop.f32.mrb[0].mxu0
      %v2663 = vadd.f32 %v2502, %v2662
      %v2664 = vpop.f32.mrb[0].mxu0
      %v2665 = vpop.f32.mrb[0].mxu0
      %v2666 = vadd.f32 %v2505, %v2665
      %v2667 = vpop.f32.mrb[0].mxu0
      %2668 = vmatprep.mubr.bf16.mxu0 0
      %2669 = vmatmul.mubr.bf16.gmra.mrb[0].mxu0 %v1287
      %v2670 = vpop.f32.mrb[0].mxu0
      %v2671 = vadd.f32 %v2510, %v2670
      %v2672 = vpop.f32.mrb[0].mxu0
      %v2673 = vpop.f32.mrb[0].mxu0
      %v2674 = vadd.f32 %v2513, %v2673
      %v2675 = vpop.f32.mrb[0].mxu0
      %2676 = vmatprep.mubr.bf16.mxu0 0
      %2677 = vmatmul.mubr.bf16.gmra.mrb[0].mxu0 %v1296
      %v2678 = vpop.f32.mrb[0].mxu0
      %v2679 = vadd.f32 %v2518, %v2678
      %v2680 = vpop.f32.mrb[0].mxu0
      %v2681 = vpop.f32.mrb[0].mxu0
      %v2682 = vadd.f32 %v2521, %v2681
      %v2683 = vpop.f32.mrb[0].mxu0
      %2684 = vdwg.mxu0
      %v2685 = vpack.c.bf16 %v2562, %v2559
      %v2686 = vpack.c.bf16 %v2570, %v2567
      %v2687 = vpack.c.bf16 %v2578, %v2575
      %v2688 = vpack.c.bf16 %v2586, %v2583
      %v2689 = vpack.c.bf16 %v2594, %v2591
      %v2690 = vpack.c.bf16 %v2602, %v2599
      %v2691 = vpack.c.bf16 %v2610, %v2607
      %v2692 = vpack.c.bf16 %v2618, %v2615
      %v2693 = vpack.c.bf16 %v2626, %v2623
      %v2694 = vpack.c.bf16 %v2634, %v2631
      %v2695 = vpack.c.bf16 %v2642, %v2639
      %v2696 = vpack.c.bf16 %v2650, %v2647
      %v2697 = vpack.c.bf16 %v2658, %v2655
      %v2698 = vpack.c.bf16 %v2666, %v2663
      %v2699 = vpack.c.bf16 %v2674, %v2671
      %v2700 = vpack.c.bf16 %v2682, %v2679
      %v2717 = vunpack.c.l.b16 %v2685
      %v2718 = vunpack.c.h.b16 %v2685
      %v2719 = vunpack.c.l.b16 %v2686
      %v2720 = vunpack.c.h.b16 %v2686
      %v2721 = vunpack.c.l.b16 %v2687
      %v2722 = vunpack.c.h.b16 %v2687
      %v2723 = vunpack.c.l.b16 %v2688
      %v2724 = vunpack.c.h.b16 %v2688
      %v2725 = vunpack.c.l.b16 %v2689
      %v2726 = vunpack.c.h.b16 %v2689
      %v2727 = vunpack.c.l.b16 %v2690
      %v2728 = vunpack.c.h.b16 %v2690
      %v2729 = vunpack.c.l.b16 %v2691
      %v2730 = vunpack.c.h.b16 %v2691
      %v2731 = vunpack.c.l.b16 %v2692
      %v2732 = vunpack.c.h.b16 %v2692
      %v2733 = vunpack.c.l.b16 %v2693
      %v2734 = vunpack.c.h.b16 %v2693
      %v2735 = vunpack.c.l.b16 %v2694
      %v2736 = vunpack.c.h.b16 %v2694
      %v2737 = vunpack.c.l.b16 %v2695
      %v2738 = vunpack.c.h.b16 %v2695
      %v2739 = vunpack.c.l.b16 %v2696
      %v2740 = vunpack.c.h.b16 %v2696
      %v2741 = vunpack.c.l.b16 %v2697
      %v2742 = vunpack.c.h.b16 %v2697
      %v2743 = vunpack.c.l.b16 %v2698
      %v2744 = vunpack.c.h.b16 %v2698
      %v2745 = vunpack.c.l.b16 %v2699
      %v2746 = vunpack.c.h.b16 %v2699
      %v2747 = vunpack.c.l.b16 %v2700
      %v2748 = vunpack.c.h.b16 %v2700
      %v2749 = vpack.c.b16 %v2717, %v2717
      %v2750 = vpack.c.b16 %v2718, %v2718
      %v2751 = vpack.c.b16 %v2719, %v2719
      %v2752 = vpack.c.b16 %v2720, %v2720
      %v2753 = vpack.c.b16 %v2721, %v2721
      %v2754 = vpack.c.b16 %v2722, %v2722
      %v2755 = vpack.c.b16 %v2723, %v2723
      %v2756 = vpack.c.b16 %v2724, %v2724
      %v2757 = vpack.c.b16 %v2725, %v2725
      %v2758 = vpack.c.b16 %v2726, %v2726
      %v2759 = vpack.c.b16 %v2727, %v2727
      %v2760 = vpack.c.b16 %v2728, %v2728
      %v2761 = vpack.c.b16 %v2729, %v2729
      %v2762 = vpack.c.b16 %v2730, %v2730
      %v2763 = vpack.c.b16 %v2731, %v2731
      %v2764 = vpack.c.b16 %v2732, %v2732
      %v2765 = vpack.c.b16 %v2733, %v2733
      %v2766 = vpack.c.b16 %v2734, %v2734
      %v2767 = vpack.c.b16 %v2735, %v2735
      %v2768 = vpack.c.b16 %v2736, %v2736
      %v2769 = vpack.c.b16 %v2737, %v2737
      %v2770 = vpack.c.b16 %v2738, %v2738
      %v2771 = vpack.c.b16 %v2739, %v2739
      %v2772 = vpack.c.b16 %v2740, %v2740
      %v2773 = vpack.c.b16 %v2741, %v2741
      %v2774 = vpack.c.b16 %v2742, %v2742
      %v2775 = vpack.c.b16 %v2743, %v2743
      %v2776 = vpack.c.b16 %v2744, %v2744
      %v2777 = vpack.c.b16 %v2745, %v2745
      %v2778 = vpack.c.b16 %v2746, %v2746
      %v2779 = vpack.c.b16 %v2747, %v2747
      %v2780 = vpack.c.b16 %v2748, %v2748
      %2813 = vst [vmem:[%s289] sm:$0xf] %v2749
      %2814 = vst [vmem:[%s289 + $0x4] sm:$0xf] %v2750
      %2815 = vst [vmem:[%s289 + $0x8] sm:$0xf] %v2751
      %2816 = vst [vmem:[%s289 + $0xc] sm:$0xf] %v2752
      %2817 = vst [vmem:[%s289 + $0x10] sm:$0xf] %v2753
      %2818 = vst [vmem:[%s289 + $0x14] sm:$0xf] %v2754
      %2819 = vst [vmem:[%s289 + $0x18] sm:$0xf] %v2755
      %2820 = vst [vmem:[%s289 + $0x1c] sm:$0xf] %v2756
      %2821 = vst [vmem:[%s289 + $0x20] sm:$0xf] %v2757
      %2822 = vst [vmem:[%s289 + $0x24] sm:$0xf] %v2758
      %2823 = vst [vmem:[%s289 + $0x28] sm:$0xf] %v2759
      %2824 = vst [vmem:[%s289 + $0x2c] sm:$0xf] %v2760
      %2825 = vst [vmem:[%s289 + $0x30] sm:$0xf] %v2761
      %2826 = vst [vmem:[%s289 + $0x34] sm:$0xf] %v2762
      %2827 = vst [vmem:[%s289 + $0x38] sm:$0xf] %v2763
      %2828 = vst [vmem:[%s289 + $0x3c] sm:$0xf] %v2764
      %2829 = vst [vmem:[%s289 + $0x40] sm:$0xf] %v2765
      %2830 = vst [vmem:[%s289 + $0x44] sm:$0xf] %v2766
      %2831 = vst [vmem:[%s289 + $0x48] sm:$0xf] %v2767
      %2832 = vst [vmem:[%s289 + $0x4c] sm:$0xf] %v2768
      %2833 = vst [vmem:[%s289 + $0x50] sm:$0xf] %v2769
      %2834 = vst [vmem:[%s289 + $0x54] sm:$0xf] %v2770
      %2835 = vst [vmem:[%s289 + $0x58] sm:$0xf] %v2771
      %2836 = vst [vmem:[%s289 + $0x5c] sm:$0xf] %v2772
      %2837 = vst [vmem:[%s289 + $0x60] sm:$0xf] %v2773
      %2838 = vst [vmem:[%s289 + $0x64] sm:$0xf] %v2774
      %2839 = vst [vmem:[%s289 + $0x68] sm:$0xf] %v2775
      %2840 = vst [vmem:[%s289 + $0x6c] sm:$0xf] %v2776
      %2841 = vst [vmem:[%s289 + $0x70] sm:$0xf] %v2777
      %2842 = vst [vmem:[%s289 + $0x74] sm:$0xf] %v2778
      %2843 = vst [vmem:[%s289 + $0x78] sm:$0xf] %v2779
      %2844 = vst [vmem:[%s289 + $0x7c] sm:$0xf] %v2780
      %v2845 = vadd.f32 %v2559, %v2562
      %v2846 = vadd.f32 %v2845, %v2567
      %v2847 = vadd.f32 %v2846, %v2570
      %v2848 = vadd.f32 %v2847, %v2575
      %v2849 = vadd.f32 %v2848, %v2578
      %v2850 = vadd.f32 %v2849, %v2583
      %v2851 = vadd.f32 %v2850, %v2586
      %v2852 = vadd.f32 %v2851, %v2591
      %v2853 = vadd.f32 %v2852, %v2594
      %v2854 = vadd.f32 %v2853, %v2599
      %v2855 = vadd.f32 %v2854, %v2602
      %v2856 = vadd.f32 %v2855, %v2607
      %v2857 = vadd.f32 %v2856, %v2610
      %v2858 = vadd.f32 %v2857, %v2615
      %v2859 = vadd.f32 %v2858, %v2618
      %v2860 = vadd.f32 %v2859, %v2623
      %v2861 = vadd.f32 %v2860, %v2626
      %v2862 = vadd.f32 %v2861, %v2631
      %v2863 = vadd.f32 %v2862, %v2634
      %v2864 = vadd.f32 %v2863, %v2639
      %v2865 = vadd.f32 %v2864, %v2642
      %v2866 = vadd.f32 %v2865, %v2647
      %v2867 = vadd.f32 %v2866, %v2650
      %v2868 = vadd.f32 %v2867, %v2655
      %v2869 = vadd.f32 %v2868, %v2658
      %v2870 = vadd.f32 %v2869, %v2663
      %v2871 = vadd.f32 %v2870, %v2666
      %v2872 = vadd.f32 %v2871, %v2671
      %v2873 = vadd.f32 %v2872, %v2674
      %v2874 = vadd.f32 %v2873, %v2679
      %v2875 = vadd.f32 %v2874, %v2682
      %v2876 = vrot.slane %v2875, 4
      %v2877 = vadd.f32 %v2875, %v2876
      %v2878 = vrot.slane %v2877, 2
      %v2879 = vadd.f32 %v2877, %v2878
      %v2880 = vrot.slane %v2879, 1
      %v2881 = vadd.f32 %v2879, %v2880
      %2882 = vst [vmem:[%s292] sm:$0x1] %v2881
      %v2883 = vmul.f32 %v2559, %v2559
      %v2884 = vmul.f32 %v2562, %v2562
      %v2885 = vmul.f32 %v2567, %v2567
      %v2886 = vmul.f32 %v2570, %v2570
      %v2887 = vmul.f32 %v2575, %v2575
      %v2888 = vmul.f32 %v2578, %v2578
      %v2889 = vmul.f32 %v2583, %v2583
      %v2890 = vmul.f32 %v2586, %v2586
      %v2891 = vmul.f32 %v2591, %v2591
      %v2892 = vmul.f32 %v2594, %v2594
      %v2893 = vmul.f32 %v2599, %v2599
      %v2894 = vmul.f32 %v2602, %v2602
      %v2895 = vmul.f32 %v2607, %v2607
      %v2896 = vmul.f32 %v2610, %v2610
      %v2897 = vmul.f32 %v2615, %v2615
      %v2898 = vmul.f32 %v2618, %v2618
      %v2899 = vmul.f32 %v2623, %v2623
      %v2900 = vmul.f32 %v2626, %v2626
      %v2901 = vmul.f32 %v2631, %v2631
      %v2902 = vmul.f32 %v2634, %v2634
      %v2903 = vmul.f32 %v2639, %v2639
      %v2904 = vmul.f32 %v2642, %v2642
      %v2905 = vmul.f32 %v2647, %v2647
      %v2906 = vmul.f32 %v2650, %v2650
      %v2907 = vmul.f32 %v2655, %v2655
      %v2908 = vmul.f32 %v2658, %v2658
      %v2909 = vmul.f32 %v2663, %v2663
      %v2910 = vmul.f32 %v2666, %v2666
      %v2911 = vmul.f32 %v2671, %v2671
      %v2912 = vmul.f32 %v2674, %v2674
      %v2913 = vmul.f32 %v2679, %v2679
      %v2914 = vmul.f32 %v2682, %v2682
      %v2915 = vadd.f32 %v2883, %v2884
      %v2916 = vadd.f32 %v2915, %v2885
      %v2917 = vadd.f32 %v2916, %v2886
      %v2918 = vadd.f32 %v2917, %v2887
      %v2919 = vadd.f32 %v2918, %v2888
      %v2920 = vadd.f32 %v2919, %v2889
      %v2921 = vadd.f32 %v2920, %v2890
      %v2922 = vadd.f32 %v2921, %v2891
      %v2923 = vadd.f32 %v2922, %v2892
      %v2924 = vadd.f32 %v2923, %v2893
      %v2925 = vadd.f32 %v2924, %v2894
      %v2926 = vadd.f32 %v2925, %v2895
      %v2927 = vadd.f32 %v2926, %v2896
      %v2928 = vadd.f32 %v2927, %v2897
      %v2929 = vadd.f32 %v2928, %v2898
      %v2930 = vadd.f32 %v2929, %v2899
      %v2931 = vadd.f32 %v2930, %v2900
      %v2932 = vadd.f32 %v2931, %v2901
      %v2933 = vadd.f32 %v2932, %v2902
      %v2934 = vadd.f32 %v2933, %v2903
      %v2935 = vadd.f32 %v2934, %v2904
      %v2936 = vadd.f32 %v2935, %v2905
      %v2937 = vadd.f32 %v2936, %v2906
      %v2938 = vadd.f32 %v2937, %v2907
      %v2939 = vadd.f32 %v2938, %v2908
      %v2940 = vadd.f32 %v2939, %v2909
      %v2941 = vadd.f32 %v2940, %v2910
      %v2942 = vadd.f32 %v2941, %v2911
      %v2943 = vadd.f32 %v2942, %v2912
      %v2944 = vadd.f32 %v2943, %v2913
      %v2945 = vadd.f32 %v2944, %v2914
      %v2946 = vrot.slane %v2945, 4
      %v2947 = vadd.f32 %v2945, %v2946
      %v2948 = vrot.slane %v2947, 2
      %v2949 = vadd.f32 %v2947, %v2948
      %v2950 = vrot.slane %v2949, 1
      %v2951 = vadd.f32 %v2949, %v2950
      %2952 = vst [vmem:[%s295] sm:$0x1] %v2951
      %p2953 = scmp.lt.s32.totalorder %s19, 1
      %s2954 = scalar_select %p2953, %s19, 1
      %s2955 = smul.addr %s2954, 32
      %s2956 = smul.addr %s2955, 4
      %s2957 = scalar_lea.vmem %s5, %s2956
      %p2958 = scmp.lt.s32.totalorder %s19, 1
      %s2959 = scalar_select %p2958, %s19, 1
      %s2960 = scalar_lea.vmem %s6, %s2959
      %p2961 = scmp.lt.s32.totalorder %s19, 1
      %s2962 = scalar_select %p2961, %s19, 1
      %s2963 = scalar_lea.vmem %s7, %s2962
      // Predicated region
      $region41: #{double_conv_forward.4} parent=39 // pred_check
        %p2964 = pneg %p147
      $region42: #{double_conv_forward.4} parent=39 // pred_check_branch
        %2966 = sbr.rel (%p2964) target = $region44
      $region43: #{double_conv_forward.4} parent=39 // pred_region
        _
      $region44: #{double_conv_forward.4} parent=39 // pred_fallthru
        _
      // Predicated region
      $region45: #{double_conv_forward.4} parent=39 // pred_check
        %p2967 = pneg %p173
      $region46: #{double_conv_forward.4} parent=39 // pred_check_branch
        %2969 = sbr.rel (%p2967) target = $region48
      $region47: #{double_conv_forward.4} parent=39 // pred_region
        _
      $region48: #{double_conv_forward.4} parent=39 // pred_fallthru
        _
      // Predicated region
      $region49: #{double_conv_forward.4} parent=39 // pred_check
        %p2970 = pneg %p199
      $region50: #{double_conv_forward.4} parent=39 // pred_check_branch
        %2972 = sbr.rel (%p2970) target = $region52
      $region51: #{double_conv_forward.4} parent=39 // pred_region
        _
      $region52: #{double_conv_forward.4} parent=39 // pred_fallthru
        _
    $region40: #{double_conv_forward.4} parent=5 // pred_fallthru
      _
    %p2973 = scmp.le.s32.totalorder 2, %s14
    // Predicated region
    $region53: #{double_conv_forward.4} parent=5 // pred_check
      %p2974 = pneg %p2973
    $region54: #{double_conv_forward.4} parent=5 // pred_check_branch
      %2976 = sbr.rel (%p2974) target = $region56
    $region55: #{double_conv_forward.4} parent=5 // pred_region
      %s2977 = ssub.s32 %s14, 2
      // Predicated region
      $region57: #{double_conv_forward.4} parent=55 // pred_check
        %p2978 = pneg %p153
      $region58: #{double_conv_forward.4} parent=55 // pred_check_branch
        %2980 = sbr.rel (%p2978) target = $region60
      $region59: #{double_conv_forward.4} parent=55 // pred_region
        %p2981 = scmp.lt.s32.totalorder %s20, 1
        %s2982 = scalar_select %p2981, %s20, 1
        %s2983 = smul.addr %s2982, 32
        %s2984 = smul.addr %s2983, 4
        %s2985 = scalar_lea.vmem %s5, %s2984
      $region60: #{double_conv_forward.4} parent=55 // pred_fallthru
        _
      // Predicated region
      $region61: #{double_conv_forward.4} parent=55 // pred_check
        %p2986 = pneg %p179
      $region62: #{double_conv_forward.4} parent=55 // pred_check_branch
        %2988 = sbr.rel (%p2986) target = $region64
      $region63: #{double_conv_forward.4} parent=55 // pred_region
        %p2989 = scmp.lt.s32.totalorder %s20, 1
        %s2990 = scalar_select %p2989, %s20, 1
        %s2991 = scalar_lea.vmem %s6, %s2990
      $region64: #{double_conv_forward.4} parent=55 // pred_fallthru
        _
      // Predicated region
      $region65: #{double_conv_forward.4} parent=55 // pred_check
        %p2992 = pneg %p205
      $region66: #{double_conv_forward.4} parent=55 // pred_check_branch
        %2994 = sbr.rel (%p2992) target = $region68
      $region67: #{double_conv_forward.4} parent=55 // pred_region
        %p2995 = scmp.lt.s32.totalorder %s20, 1
        %s2996 = scalar_select %p2995, %s20, 1
        %s2997 = scalar_lea.vmem %s7, %s2996
      $region68: #{double_conv_forward.4} parent=55 // pred_fallthru
        _
    $region56: #{double_conv_forward.4} parent=5 // pred_fallthru
      _
  $region6: #{double_conv_forward.4} parent=0 // loop_footer
    %s18 = sadd.s32 1, %s14
  $region7: #{double_conv_forward.4} parent=0 // loop_footer_branch
    %13 = sbr.rel target = $region3
  $region8: #{double_conv_forward.4} parent=0 // loop_exit
    _

// kernel: double_conv_forward.3
$region0: #{double_conv_forward.3}
  #allocation0 [shape = 'u32[]', space=smem, size = 0x4, offset = 0x4, fixed_abs, tag = 'smem constant byte address 0x4 - core index']
  #allocation1 [shape = 'u32[144,128]{1,0:T(1,128)}', space=vmem, size = 0x12000, scoped, tag = 'internal scratch']
  #allocation2 [shape = 'f32[18,32,128]{2,1,0:T(8,128)}', space=vmem, size = 0x48000, scoped, tag = 'scratch operand']
  #allocation3 [shape = 'bf16[256,1152]{1,0:T(16,128)(2,1)}', space=vmem, size = 0x90000, scoped, tag = 'scratch operand']
  %s0 = inlined_call_operand.vmem [shape: bf16[2,16,16,128], index: 0, kind: input, shape index: {}]
  %s1 = inlined_call_operand.vmem [shape: f32[1,128], index: 1, kind: input, shape index: {}, may-alias: {1,2}]
  %s2 = inlined_call_operand.vmem [shape: f32[1,128], index: 2, kind: input, shape index: {}, may-alias: {1,2}]
  %s3 = inlined_call_operand.vmem [shape: bf16[1152,128], index: 3, kind: input, shape index: {}]
  %s4 = inlined_call_operand.vmem [shape: f32[1,128], index: 4, kind: input, shape index: {}]
  %s5 = inlined_call_operand.vmem [shape: bf16[2,16,16,128], index: 5, kind: output, shape index: {0}]
  %s6 = inlined_call_operand.vmem [shape: f32[2,1,128], index: 6, kind: output, shape index: {1}]
  %s7 = inlined_call_operand.vmem [shape: f32[2,1,128], index: 7, kind: output, shape index: {2}]
  %8 = xla_tuple %s5, %s6, %s7
  %s9 = sld [smem:[#allocation0]]
  $region69: #{double_conv_forward.3} parent=0
    _
  %s11 = ssub.s32 1, %s9
  %s12 = scalar_select 0, %s11, %s9
  loop: start=0, step=1, limit=4
  $region2: #{double_conv_forward.3} parent=0 // loop_pre_header
    _
  $region3: #{double_conv_forward.3} parent=0 // loop_header
    %s14 = sphi 0, %s18
    %p15 = scmp.ge.s32.totalorder %s14, 4
    %s24 = sphi 0, %s26
    %s27 = sphi 0, %s24
    %s28 = sphi 0, %s27
    %s44 = sphi 0, %s28
    %s48 = sphi 0, %s48
    %s50 = sphi 0, %s48
    %s51 = sphi 0, %s50
    %s65 = sphi 0, %s51
    %s69 = sphi 0, %s69
    %s71 = sphi 0, %s69
    %s72 = sphi 0, %s71
    %s86 = sphi 0, %s72
    %s90 = sphi 0, %s90
    %s92 = sphi 0, %s90
    %s93 = sphi 0, %s92
    %s107 = sphi 0, %s93
    %s111 = sphi 0, %s111
    %s113 = sphi 0, %s111
    %s114 = sphi 0, %s113
    %s128 = sphi 0, %s114
    %s134 = sphi 0, %s136
    %s137 = sphi 0, %s134
    %s138 = sphi 0, %s137
    %s154 = sphi 0, %s138
    %s160 = sphi 0, %s162
    %s163 = sphi 0, %s160
    %s164 = sphi 0, %s163
    %s180 = sphi 0, %s164
    %s186 = sphi 0, %s188
    %s189 = sphi 0, %s186
    %s190 = sphi 0, %s189
    %s206 = sphi 0, %s190
  $region4: #{double_conv_forward.3} parent=0 // loop_header_branch
    %17 = sbr.rel (%p15) target = $region8
  $region5: #{double_conv_forward.3} parent=0 // loop_body
    %s19 = ssub.s32 %s14, 1
    %s20 = ssub.s32 %s14, 2
    %s21 = sadd.s32 %s14, 1
    %s22 = ssub.s32 %s14, %s21
    %p23 = scmp.eq.s32.totalorder %s22, 0
    %s25 = sadd.s32 %s24, 1
    %s26 = scalar_select %p23, %s24, %s25
    %p29 = pneg %p23
    %p30 = scmp.eq.s32.totalorder %s14, 1
    %p31 = por %p29, %p30
    %p32 = scmp.ne.s32.totalorder %s24, %s27
    %p33 = scmp.eq.s32.totalorder %s14, 0
    %p34 = por %p32, %p33
    %p35 = scmp.ne.s32.totalorder %s24, %s27
    %p36 = scmp.eq.s32.totalorder %s19, 1
    %p37 = por %p35, %p36
    %p38 = scmp.ne.s32.totalorder %s27, %s28
    %p39 = scmp.eq.s32.totalorder %s19, 0
    %p40 = por %p38, %p39
    %p41 = scmp.ne.s32.totalorder %s27, %s28
    %p42 = scmp.eq.s32.totalorder %s20, 1
    %p43 = por %p41, %p42
    %p45 = scmp.ne.s32.totalorder %s28, %s44
    %p46 = scmp.eq.s32.totalorder %s20, 0
    %p47 = por %p45, %p46
    %s49 = sadd.s32 %s48, 1
    %p52 = scmp.eq.s32.totalorder %s14, 1
    %p53 = scmp.ne.s32.totalorder %s48, %s50
    %p54 = scmp.eq.s32.totalorder %s14, 0
    %p55 = por %p53, %p54
    %p56 = scmp.ne.s32.totalorder %s48, %s50
    %p57 = scmp.eq.s32.totalorder %s19, 1
    %p58 = por %p56, %p57
    %p59 = scmp.ne.s32.totalorder %s50, %s51
    %p60 = scmp.eq.s32.totalorder %s19, 0
    %p61 = por %p59, %p60
    %p62 = scmp.ne.s32.totalorder %s50, %s51
    %p63 = scmp.eq.s32.totalorder %s20, 1
    %p64 = por %p62, %p63
    %p66 = scmp.ne.s32.totalorder %s51, %s65
    %p67 = scmp.eq.s32.totalorder %s20, 0
    %p68 = por %p66, %p67
    %s70 = sadd.s32 %s69, 1
    %p73 = scmp.eq.s32.totalorder %s14, 1
    %p74 = scmp.ne.s32.totalorder %s69, %s71
    %p75 = scmp.eq.s32.totalorder %s14, 0
    %p76 = por %p74, %p75
    %p77 = scmp.ne.s32.totalorder %s69, %s71
    %p78 = scmp.eq.s32.totalorder %s19, 1
    %p79 = por %p77, %p78
    %p80 = scmp.ne.s32.totalorder %s71, %s72
    %p81 = scmp.eq.s32.totalorder %s19, 0
    %p82 = por %p80, %p81
    %p83 = scmp.ne.s32.totalorder %s71, %s72
    %p84 = scmp.eq.s32.totalorder %s20, 1
    %p85 = por %p83, %p84
    %p87 = scmp.ne.s32.totalorder %s72, %s86
    %p88 = scmp.eq.s32.totalorder %s20, 0
    %p89 = por %p87, %p88
    %s91 = sadd.s32 %s90, 1
    %p94 = scmp.eq.s32.totalorder %s14, 1
    %p95 = scmp.ne.s32.totalorder %s90, %s92
    %p96 = scmp.eq.s32.totalorder %s14, 0
    %p97 = por %p95, %p96
    %p98 = scmp.ne.s32.totalorder %s90, %s92
    %p99 = scmp.eq.s32.totalorder %s19, 1
    %p100 = por %p98, %p99
    %p101 = scmp.ne.s32.totalorder %s92, %s93
    %p102 = scmp.eq.s32.totalorder %s19, 0
    %p103 = por %p101, %p102
    %p104 = scmp.ne.s32.totalorder %s92, %s93
    %p105 = scmp.eq.s32.totalorder %s20, 1
    %p106 = por %p104, %p105
    %p108 = scmp.ne.s32.totalorder %s93, %s107
    %p109 = scmp.eq.s32.totalorder %s20, 0
    %p110 = por %p108, %p109
    %s112 = sadd.s32 %s111, 1
    %p115 = scmp.eq.s32.totalorder %s14, 1
    %p116 = scmp.ne.s32.totalorder %s111, %s113
    %p117 = scmp.eq.s32.totalorder %s14, 0
    %p118 = por %p116, %p117
    %p119 = scmp.ne.s32.totalorder %s111, %s113
    %p120 = scmp.eq.s32.totalorder %s19, 1
    %p121 = por %p119, %p120
    %p122 = scmp.ne.s32.totalorder %s113, %s114
    %p123 = scmp.eq.s32.totalorder %s19, 0
    %p124 = por %p122, %p123
    %p125 = scmp.ne.s32.totalorder %s113, %s114
    %p126 = scmp.eq.s32.totalorder %s20, 1
    %p127 = por %p125, %p126
    %p129 = scmp.ne.s32.totalorder %s114, %s128
    %p130 = scmp.eq.s32.totalorder %s20, 0
    %p131 = por %p129, %p130
    %s132 = ssub.s32 %s14, %s21
    %p133 = scmp.eq.s32.totalorder %s132, 0
    %s135 = sadd.s32 %s134, 1
    %s136 = scalar_select %p133, %s134, %s135
    %p139 = pneg %p133
    %p140 = scmp.eq.s32.totalorder %s14, 1
    %p141 = por %p139, %p140
    %p142 = scmp.ne.s32.totalorder %s134, %s137
    %p143 = scmp.eq.s32.totalorder %s14, 0
    %p144 = por %p142, %p143
    %p145 = scmp.ne.s32.totalorder %s134, %s137
    %p146 = scmp.eq.s32.totalorder %s19, 1
    %p147 = por %p145, %p146
    %p148 = scmp.ne.s32.totalorder %s137, %s138
    %p149 = scmp.eq.s32.totalorder %s19, 0
    %p150 = por %p148, %p149
    %p151 = scmp.ne.s32.totalorder %s137, %s138
    %p152 = scmp.eq.s32.totalorder %s20, 1
    %p153 = por %p151, %p152
    %p155 = scmp.ne.s32.totalorder %s138, %s154
    %p156 = scmp.eq.s32.totalorder %s20, 0
    %p157 = por %p155, %p156
    %s158 = ssub.s32 %s14, %s21
    %p159 = scmp.eq.s32.totalorder %s158, 0
    %s161 = sadd.s32 %s160, 1
    %s162 = scalar_select %p159, %s160, %s161
    %p165 = pneg %p159
    %p166 = scmp.eq.s32.totalorder %s14, 1
    %p167 = por %p165, %p166
    %p168 = scmp.ne.s32.totalorder %s160, %s163
    %p169 = scmp.eq.s32.totalorder %s14, 0
    %p170 = por %p168, %p169
    %p171 = scmp.ne.s32.totalorder %s160, %s163
    %p172 = scmp.eq.s32.totalorder %s19, 1
    %p173 = por %p171, %p172
    %p174 = scmp.ne.s32.totalorder %s163, %s164
    %p175 = scmp.eq.s32.totalorder %s19, 0
    %p176 = por %p174, %p175
    %p177 = scmp.ne.s32.totalorder %s163, %s164
    %p178 = scmp.eq.s32.totalorder %s20, 1
    %p179 = por %p177, %p178
    %p181 = scmp.ne.s32.totalorder %s164, %s180
    %p182 = scmp.eq.s32.totalorder %s20, 0
    %p183 = por %p181, %p182
    %s184 = ssub.s32 %s14, %s21
    %p185 = scmp.eq.s32.totalorder %s184, 0
    %s187 = sadd.s32 %s186, 1
    %s188 = scalar_select %p185, %s186, %s187
    %p191 = pneg %p185
    %p192 = scmp.eq.s32.totalorder %s14, 1
    %p193 = por %p191, %p192
    %p194 = scmp.ne.s32.totalorder %s186, %s189
    %p195 = scmp.eq.s32.totalorder %s14, 0
    %p196 = por %p194, %p195
    %p197 = scmp.ne.s32.totalorder %s186, %s189
    %p198 = scmp.eq.s32.totalorder %s19, 1
    %p199 = por %p197, %p198
    %p200 = scmp.ne.s32.totalorder %s189, %s190
    %p201 = scmp.eq.s32.totalorder %s19, 0
    %p202 = por %p200, %p201
    %p203 = scmp.ne.s32.totalorder %s189, %s190
    %p204 = scmp.eq.s32.totalorder %s20, 1
    %p205 = por %p203, %p204
    %p207 = scmp.ne.s32.totalorder %s190, %s206
    %p208 = scmp.eq.s32.totalorder %s20, 0
    %p209 = por %p207, %p208
    %p210 = scmp.le.s32.totalorder 1, %s14
    %p211 = scmp.lt.s32.totalorder %s14, 3
    %p212 = pnand %p210, %p211
    %p213 = pneg %p212
    // Predicated region
    $region9: #{double_conv_forward.3} parent=5 // pred_check
      _
    $region10: #{double_conv_forward.3} parent=5 // pred_check_branch
      %215 = sbr.rel (%p212) target = $region12
    $region11: #{double_conv_forward.3} parent=5 // pred_region
      %s216 = ssub.s32 %s14, 1
      // Predicated region
      $region13: #{double_conv_forward.3} parent=11 // pred_check
        %p217 = pneg %p61
      $region14: #{double_conv_forward.3} parent=11 // pred_check_branch
        %219 = sbr.rel (%p217) target = $region16
      $region15: #{double_conv_forward.3} parent=11 // pred_region
        _
      $region16: #{double_conv_forward.3} parent=11 // pred_fallthru
        _
      // Predicated region
      $region17: #{double_conv_forward.3} parent=11 // pred_check
        %p220 = pneg %p82
      $region18: #{double_conv_forward.3} parent=11 // pred_check_branch
        %222 = sbr.rel (%p220) target = $region20
      $region19: #{double_conv_forward.3} parent=11 // pred_region
        _
      $region20: #{double_conv_forward.3} parent=11 // pred_fallthru
        _
      // Predicated region
      $region21: #{double_conv_forward.3} parent=11 // pred_check
        %p223 = pneg %p103
      $region22: #{double_conv_forward.3} parent=11 // pred_check_branch
        %225 = sbr.rel (%p223) target = $region24
      $region23: #{double_conv_forward.3} parent=11 // pred_region
        _
      $region24: #{double_conv_forward.3} parent=11 // pred_fallthru
        _
      // Predicated region
      $region25: #{double_conv_forward.3} parent=11 // pred_check
        %p226 = pneg %p124
      $region26: #{double_conv_forward.3} parent=11 // pred_check_branch
        %228 = sbr.rel (%p226) target = $region28
      $region27: #{double_conv_forward.3} parent=11 // pred_region
        _
      $region28: #{double_conv_forward.3} parent=11 // pred_fallthru
        _
    $region12: #{double_conv_forward.3} parent=5 // pred_fallthru
      _
    %p229 = scmp.lt.s32.totalorder %s14, 2
    // Predicated region
    $region29: #{double_conv_forward.3} parent=5 // pred_check
      %p230 = pneg %p229
    $region30: #{double_conv_forward.3} parent=5 // pred_check_branch
      %232 = sbr.rel (%p230) target = $region32
    $region31: #{double_conv_forward.3} parent=5 // pred_region
      // Predicated region
      $region33: #{double_conv_forward.3} parent=31 // pred_check
        %p233 = pneg %p34
      $region34: #{double_conv_forward.3} parent=31 // pred_check_branch
        %235 = sbr.rel (%p233) target = $region36
      $region35: #{double_conv_forward.3} parent=31 // pred_region
        %p236 = scmp.lt.s32.totalorder %s14, 1
        %s237 = scalar_select %p236, %s14, 1
        %s238 = smul.addr %s237, 32
        %s239 = smul.addr %s238, 4
        %s240 = scalar_lea.vmem %s0, %s239
      $region36: #{double_conv_forward.3} parent=31 // pred_fallthru
        _
    $region32: #{double_conv_forward.3} parent=5 // pred_fallthru
      _
    %p241 = scmp.le.s32.totalorder 1, %s14
    %p242 = scmp.lt.s32.totalorder %s14, 3
    %p243 = pnand %p241, %p242
    %p244 = pneg %p243
    // Predicated region
    $region37: #{double_conv_forward.3} parent=5 // pred_check
      _
    $region38: #{double_conv_forward.3} parent=5 // pred_check_branch
      %246 = sbr.rel (%p243) target = $region40
    $region39: #{double_conv_forward.3} parent=5 // pred_region
      %s247 = ssub.s32 %s14, 1
      %p248 = scmp.lt.s32.totalorder %s19, 1
      %s249 = scalar_select %p248, %s19, 1
      %s250 = smul.addr %s249, 32
      %s251 = smul.addr %s250, 4
      %s252 = scalar_lea.vmem %s0, %s251
      %p253 = pneg %p40
      %p254 = pneg %p37
      %p255 = pneg %p61
      %p256 = pneg %p58
      %p257 = pneg %p82
      %p258 = pneg %p79
      %p259 = pneg %p103
      %p260 = pneg %p100
      %p261 = pneg %p124
      %p262 = pneg %p121
      %p263 = pneg %p150
      %p264 = pneg %p147
      %p265 = scmp.lt.s32.totalorder %s19, 1
      %s266 = scalar_select %p265, %s19, 1
      %s267 = smul.addr %s266, 32
      %s268 = smul.addr %s267, 4
      %s269 = scalar_lea.vmem %s5, %s268
      %p270 = pneg %p176
      %p271 = pneg %p173
      %p272 = scmp.lt.s32.totalorder %s19, 1
      %s273 = scalar_select %p272, %s19, 1
      %s274 = scalar_lea.vmem %s6, %s273
      %p275 = pneg %p202
      %p276 = pneg %p199
      %p277 = scmp.lt.s32.totalorder %s19, 1
      %s278 = scalar_select %p277, %s19, 1
      %s279 = scalar_lea.vmem %s7, %s278
      %p280 = scmp.lt.s32.totalorder %s19, 1
      %s281 = scalar_select %p280, %s19, 1
      %s282 = smul.addr %s281, 32
      %s283 = smul.addr %s282, 4
      %s284 = scalar_lea.vmem %s0, %s283
      %p285 = scmp.lt.s32.totalorder %s19, 1
      %s286 = scalar_select %p285, %s19, 1
      %s287 = smul.addr %s286, 32
      %s288 = smul.addr %s287, 4
      %s289 = scalar_lea.vmem %s5, %s288
      %p290 = scmp.lt.s32.totalorder %s19, 1
      %s291 = scalar_select %p290, %s19, 1
      %s292 = scalar_lea.vmem %s6, %s291
      %p293 = scmp.lt.s32.totalorder %s19, 1
      %s294 = scalar_select %p293, %s19, 1
      %s295 = scalar_lea.vmem %s7, %s294
      %297 = vst [vmem:[#allocation2] sm:$0xff] 0.0
      %298 = vst [vmem:[#allocation2 + $0x8] sm:$0xff] 0.0
      %299 = vst [vmem:[#allocation2 + $0x10] sm:$0xff] 0.0
      %300 = vst [vmem:[#allocation2 + $0x18] sm:$0xff] 0.0
      %301 = vst [vmem:[#allocation2 + $0x20] sm:$0xff] 0.0
      %302 = vst [vmem:[#allocation2 + $0x28] sm:$0xff] 0.0
      %303 = vst [vmem:[#allocation2 + $0x30] sm:$0xff] 0.0
      %304 = vst [vmem:[#allocation2 + $0x38] sm:$0xff] 0.0
      %305 = vst [vmem:[#allocation2 + $0x40] sm:$0xff] 0.0
      %306 = vst [vmem:[#allocation2 + $0x48] sm:$0xff] 0.0
      %307 = vst [vmem:[#allocation2 + $0x50] sm:$0xff] 0.0
      %308 = vst [vmem:[#allocation2 + $0x58] sm:$0xff] 0.0
      %309 = vst [vmem:[#allocation2 + $0x60] sm:$0xff] 0.0
      %310 = vst [vmem:[#allocation2 + $0x68] sm:$0xff] 0.0
      %311 = vst [vmem:[#allocation2 + $0x70] sm:$0xff] 0.0
      %312 = vst [vmem:[#allocation2 + $0x78] sm:$0xff] 0.0
      %313 = vst [vmem:[#allocation2 + $0x80] sm:$0xff] 0.0
      %314 = vst [vmem:[#allocation2 + $0x88] sm:$0xff] 0.0
      %315 = vst [vmem:[#allocation2 + $0x90] sm:$0xff] 0.0
      %316 = vst [vmem:[#allocation2 + $0x98] sm:$0xff] 0.0
      %317 = vst [vmem:[#allocation2 + $0xa0] sm:$0xff] 0.0
      %318 = vst [vmem:[#allocation2 + $0xa8] sm:$0xff] 0.0
      %319 = vst [vmem:[#allocation2 + $0xb0] sm:$0xff] 0.0
      %320 = vst [vmem:[#allocation2 + $0xb8] sm:$0xff] 0.0
      %321 = vst [vmem:[#allocation2 + $0xc0] sm:$0xff] 0.0
      %322 = vst [vmem:[#allocation2 + $0xc8] sm:$0xff] 0.0
      %323 = vst [vmem:[#allocation2 + $0xd0] sm:$0xff] 0.0
      %324 = vst [vmem:[#allocation2 + $0xd8] sm:$0xff] 0.0
      %325 = vst [vmem:[#allocation2 + $0xe0] sm:$0xff] 0.0
      %326 = vst [vmem:[#allocation2 + $0xe8] sm:$0xff] 0.0
      %327 = vst [vmem:[#allocation2 + $0xf0] sm:$0xff] 0.0
      %328 = vst [vmem:[#allocation2 + $0xf8] sm:$0xff] 0.0
      %329 = vst [vmem:[#allocation2 + $0x100] sm:$0xff] 0.0
      %330 = vst [vmem:[#allocation2 + $0x108] sm:$0xff] 0.0
      %331 = vst [vmem:[#allocation2 + $0x110] sm:$0xff] 0.0
      %332 = vst [vmem:[#allocation2 + $0x118] sm:$0xff] 0.0
      %333 = vst [vmem:[#allocation2 + $0x120] sm:$0xff] 0.0
      %334 = vst [vmem:[#allocation2 + $0x128] sm:$0xff] 0.0
      %335 = vst [vmem:[#allocation2 + $0x130] sm:$0xff] 0.0
      %336 = vst [vmem:[#allocation2 + $0x138] sm:$0xff] 0.0
      %337 = vst [vmem:[#allocation2 + $0x140] sm:$0xff] 0.0
      %338 = vst [vmem:[#allocation2 + $0x148] sm:$0xff] 0.0
      %339 = vst [vmem:[#allocation2 + $0x150] sm:$0xff] 0.0
      %340 = vst [vmem:[#allocation2 + $0x158] sm:$0xff] 0.0
      %341 = vst [vmem:[#allocation2 + $0x160] sm:$0xff] 0.0
      %342 = vst [vmem:[#allocation2 + $0x168] sm:$0xff] 0.0
      %343 = vst [vmem:[#allocation2 + $0x170] sm:$0xff] 0.0
      %344 = vst [vmem:[#allocation2 + $0x178] sm:$0xff] 0.0
      %345 = vst [vmem:[#allocation2 + $0x180] sm:$0xff] 0.0
      %346 = vst [vmem:[#allocation2 + $0x188] sm:$0xff] 0.0
      %347 = vst [vmem:[#allocation2 + $0x190] sm:$0xff] 0.0
      %348 = vst [vmem:[#allocation2 + $0x198] sm:$0xff] 0.0
      %349 = vst [vmem:[#allocation2 + $0x1a0] sm:$0xff] 0.0
      %350 = vst [vmem:[#allocation2 + $0x1a8] sm:$0xff] 0.0
      %351 = vst [vmem:[#allocation2 + $0x1b0] sm:$0xff] 0.0
      %352 = vst [vmem:[#allocation2 + $0x1b8] sm:$0xff] 0.0
      %353 = vst [vmem:[#allocation2 + $0x1c0] sm:$0xff] 0.0
      %354 = vst [vmem:[#allocation2 + $0x1c8] sm:$0xff] 0.0
      %355 = vst [vmem:[#allocation2 + $0x1d0] sm:$0xff] 0.0
      %356 = vst [vmem:[#allocation2 + $0x1d8] sm:$0xff] 0.0
      %357 = vst [vmem:[#allocation2 + $0x1e0] sm:$0xff] 0.0
      %358 = vst [vmem:[#allocation2 + $0x1e8] sm:$0xff] 0.0
      %359 = vst [vmem:[#allocation2 + $0x1f0] sm:$0xff] 0.0
      %360 = vst [vmem:[#allocation2 + $0x1f8] sm:$0xff] 0.0
      %361 = vst [vmem:[#allocation2 + $0x200] sm:$0xff] 0.0
      %362 = vst [vmem:[#allocation2 + $0x208] sm:$0xff] 0.0
      %363 = vst [vmem:[#allocation2 + $0x210] sm:$0xff] 0.0
      %364 = vst [vmem:[#allocation2 + $0x218] sm:$0xff] 0.0
      %365 = vst [vmem:[#allocation2 + $0x220] sm:$0xff] 0.0
      %366 = vst [vmem:[#allocation2 + $0x228] sm:$0xff] 0.0
      %367 = vst [vmem:[#allocation2 + $0x230] sm:$0xff] 0.0
      %368 = vst [vmem:[#allocation2 + $0x238] sm:$0xff] 0.0
      %v369 = vld [vmem:[%s284] sm:$0xf]
      %v370 = vld [vmem:[%s284 + $0x4] sm:$0xf]
      %v371 = vld [vmem:[%s284 + $0x8] sm:$0xf]
      %v372 = vld [vmem:[%s284 + $0xc] sm:$0xf]
      %v373 = vld [vmem:[%s284 + $0x10] sm:$0xf]
      %v374 = vld [vmem:[%s284 + $0x14] sm:$0xf]
      %v375 = vld [vmem:[%s284 + $0x18] sm:$0xf]
      %v376 = vld [vmem:[%s284 + $0x1c] sm:$0xf]
      %v377 = vld [vmem:[%s284 + $0x20] sm:$0xf]
      %v378 = vld [vmem:[%s284 + $0x24] sm:$0xf]
      %v379 = vld [vmem:[%s284 + $0x28] sm:$0xf]
      %v380 = vld [vmem:[%s284 + $0x2c] sm:$0xf]
      %v381 = vld [vmem:[%s284 + $0x30] sm:$0xf]
      %v382 = vld [vmem:[%s284 + $0x34] sm:$0xf]
      %v383 = vld [vmem:[%s284 + $0x38] sm:$0xf]
      %v384 = vld [vmem:[%s284 + $0x3c] sm:$0xf]
      %v385 = vld [vmem:[%s284 + $0x40] sm:$0xf]
      %v386 = vld [vmem:[%s284 + $0x44] sm:$0xf]
      %v387 = vld [vmem:[%s284 + $0x48] sm:$0xf]
      %v388 = vld [vmem:[%s284 + $0x4c] sm:$0xf]
      %v389 = vld [vmem:[%s284 + $0x50] sm:$0xf]
      %v390 = vld [vmem:[%s284 + $0x54] sm:$0xf]
      %v391 = vld [vmem:[%s284 + $0x58] sm:$0xf]
      %v392 = vld [vmem:[%s284 + $0x5c] sm:$0xf]
      %v393 = vld [vmem:[%s284 + $0x60] sm:$0xf]
      %v394 = vld [vmem:[%s284 + $0x64] sm:$0xf]
      %v395 = vld [vmem:[%s284 + $0x68] sm:$0xf]
      %v396 = vld [vmem:[%s284 + $0x6c] sm:$0xf]
      %v397 = vld [vmem:[%s284 + $0x70] sm:$0xf]
      %v398 = vld [vmem:[%s284 + $0x74] sm:$0xf]
      %v399 = vld [vmem:[%s284 + $0x78] sm:$0xf]
      %v400 = vld [vmem:[%s284 + $0x7c] sm:$0xf]
      %v401 = vunpack.c.l.bf16 %v369
      %v402 = vunpack.c.l.bf16 %v370
      %v403 = vunpack.c.l.bf16 %v371
      %v404 = vunpack.c.l.bf16 %v372
      %v405 = vunpack.c.l.bf16 %v373
      %v406 = vunpack.c.l.bf16 %v374
      %v407 = vunpack.c.l.bf16 %v375
      %v408 = vunpack.c.l.bf16 %v376
      %v409 = vunpack.c.l.bf16 %v377
      %v410 = vunpack.c.l.bf16 %v378
      %v411 = vunpack.c.l.bf16 %v379
      %v412 = vunpack.c.l.bf16 %v380
      %v413 = vunpack.c.l.bf16 %v381
      %v414 = vunpack.c.l.bf16 %v382
      %v415 = vunpack.c.l.bf16 %v383
      %v416 = vunpack.c.l.bf16 %v384
      %v417 = vunpack.c.l.bf16 %v385
      %v418 = vunpack.c.l.bf16 %v386
      %v419 = vunpack.c.l.bf16 %v387
      %v420 = vunpack.c.l.bf16 %v388
      %v421 = vunpack.c.l.bf16 %v389
      %v422 = vunpack.c.l.bf16 %v390
      %v423 = vunpack.c.l.bf16 %v391
      %v424 = vunpack.c.l.bf16 %v392
      %v425 = vunpack.c.l.bf16 %v393
      %v426 = vunpack.c.l.bf16 %v394
      %v427 = vunpack.c.l.bf16 %v395
      %v428 = vunpack.c.l.bf16 %v396
      %v429 = vunpack.c.l.bf16 %v397
      %v430 = vunpack.c.l.bf16 %v398
      %v431 = vunpack.c.l.bf16 %v399
      %v432 = vunpack.c.l.bf16 %v400
      %s433 = scalar_lea.vmem [#allocation2], 32
      %434 = vst [vmem:[%s433 + $0x8] sm:$0xff] %v401
      %435 = vst [vmem:[%s433 + $0x10] sm:$0xff] %v402
      %436 = vst [vmem:[%s433 + $0x28] sm:$0xff] %v403
      %437 = vst [vmem:[%s433 + $0x30] sm:$0xff] %v404
      %438 = vst [vmem:[%s433 + $0x48] sm:$0xff] %v405
      %439 = vst [vmem:[%s433 + $0x50] sm:$0xff] %v406
      %440 = vst [vmem:[%s433 + $0x68] sm:$0xff] %v407
      %441 = vst [vmem:[%s433 + $0x70] sm:$0xff] %v408
      %442 = vst [vmem:[%s433 + $0x88] sm:$0xff] %v409
      %443 = vst [vmem:[%s433 + $0x90] sm:$0xff] %v410
      %444 = vst [vmem:[%s433 + $0xa8] sm:$0xff] %v411
      %445 = vst [vmem:[%s433 + $0xb0] sm:$0xff] %v412
      %446 = vst [vmem:[%s433 + $0xc8] sm:$0xff] %v413
      %447 = vst [vmem:[%s433 + $0xd0] sm:$0xff] %v414
      %448 = vst [vmem:[%s433 + $0xe8] sm:$0xff] %v415
      %449 = vst [vmem:[%s433 + $0xf0] sm:$0xff] %v416
      %450 = vst [vmem:[%s433 + $0x108] sm:$0xff] %v417
      %451 = vst [vmem:[%s433 + $0x110] sm:$0xff] %v418
      %452 = vst [vmem:[%s433 + $0x128] sm:$0xff] %v419
      %453 = vst [vmem:[%s433 + $0x130] sm:$0xff] %v420
      %454 = vst [vmem:[%s433 + $0x148] sm:$0xff] %v421
      %455 = vst [vmem:[%s433 + $0x150] sm:$0xff] %v422
      %456 = vst [vmem:[%s433 + $0x168] sm:$0xff] %v423
      %457 = vst [vmem:[%s433 + $0x170] sm:$0xff] %v424
      %458 = vst [vmem:[%s433 + $0x188] sm:$0xff] %v425
      %459 = vst [vmem:[%s433 + $0x190] sm:$0xff] %v426
      %460 = vst [vmem:[%s433 + $0x1a8] sm:$0xff] %v427
      %461 = vst [vmem:[%s433 + $0x1b0] sm:$0xff] %v428
      %462 = vst [vmem:[%s433 + $0x1c8] sm:$0xff] %v429
      %463 = vst [vmem:[%s433 + $0x1d0] sm:$0xff] %v430
      %464 = vst [vmem:[%s433 + $0x1e8] sm:$0xff] %v431
      %465 = vst [vmem:[%s433 + $0x1f0] sm:$0xff] %v432
      %v466 = vld [vmem:[#allocation2 + $0x7] sm:$0xff]
      %v467 = vld [vmem:[#allocation2 + $0xf] sm:$0xff]
      %v468 = vld [vmem:[#allocation2 + $0x27] sm:$0xff]
      %v469 = vld [vmem:[#allocation2 + $0x2f] sm:$0xff]
      %v470 = vld [vmem:[#allocation2 + $0x47] sm:$0xff]
      %v471 = vld [vmem:[#allocation2 + $0x4f] sm:$0xff]
      %v472 = vld [vmem:[#allocation2 + $0x67] sm:$0xff]
      %v473 = vld [vmem:[#allocation2 + $0x6f] sm:$0xff]
      %v474 = vld [vmem:[#allocation2 + $0x87] sm:$0xff]
      %v475 = vld [vmem:[#allocation2 + $0x8f] sm:$0xff]
      %v476 = vld [vmem:[#allocation2 + $0xa7] sm:$0xff]
      %v477 = vld [vmem:[#allocation2 + $0xaf] sm:$0xff]
      %v478 = vld [vmem:[#allocation2 + $0xc7] sm:$0xff]
      %v479 = vld [vmem:[#allocation2 + $0xcf] sm:$0xff]
      %v480 = vld [vmem:[#allocation2 + $0xe7] sm:$0xff]
      %v481 = vld [vmem:[#allocation2 + $0xef] sm:$0xff]
      %v482 = vld [vmem:[#allocation2 + $0x107] sm:$0xff]
      %v483 = vld [vmem:[#allocation2 + $0x10f] sm:$0xff]
      %v484 = vld [vmem:[#allocation2 + $0x127] sm:$0xff]
      %v485 = vld [vmem:[#allocation2 + $0x12f] sm:$0xff]
      %v486 = vld [vmem:[#allocation2 + $0x147] sm:$0xff]
      %v487 = vld [vmem:[#allocation2 + $0x14f] sm:$0xff]
      %v488 = vld [vmem:[#allocation2 + $0x167] sm:$0xff]
      %v489 = vld [vmem:[#allocation2 + $0x16f] sm:$0xff]
      %v490 = vld [vmem:[#allocation2 + $0x187] sm:$0xff]
      %v491 = vld [vmem:[#allocation2 + $0x18f] sm:$0xff]
      %v492 = vld [vmem:[#allocation2 + $0x1a7] sm:$0xff]
      %v493 = vld [vmem:[#allocation2 + $0x1af] sm:$0xff]
      %v494 = vld [vmem:[#allocation2 + $0x1c7] sm:$0xff]
      %v495 = vld [vmem:[#allocation2 + $0x1cf] sm:$0xff]
      %v496 = vld [vmem:[#allocation2 + $0x1e7] sm:$0xff]
      %v497 = vld [vmem:[#allocation2 + $0x1ef] sm:$0xff]
      %v498 = vpack.c.bf16 %v467, %v466
      %v499 = vpack.c.bf16 %v469, %v468
      %v500 = vpack.c.bf16 %v471, %v470
      %v501 = vpack.c.bf16 %v473, %v472
      %v502 = vpack.c.bf16 %v475, %v474
      %v503 = vpack.c.bf16 %v477, %v476
      %v504 = vpack.c.bf16 %v479, %v478
      %v505 = vpack.c.bf16 %v481, %v480
      %v506 = vpack.c.bf16 %v483, %v482
      %v507 = vpack.c.bf16 %v485, %v484
      %v508 = vpack.c.bf16 %v487, %v486
      %v509 = vpack.c.bf16 %v489, %v488
      %v510 = vpack.c.bf16 %v491, %v490
      %v511 = vpack.c.bf16 %v493, %v492
      %v512 = vpack.c.bf16 %v495, %v494
      %v513 = vpack.c.bf16 %v497, %v496
      %514 = vst [vmem:[#allocation3] sm:$0xff] %v498
      %515 = vst [vmem:[#allocation3 + $0x48] sm:$0xff] %v499
      %516 = vst [vmem:[#allocation3 + $0x90] sm:$0xff] %v500
      %517 = vst [vmem:[#allocation3 + $0xd8] sm:$0xff] %v501
      %518 = vst [vmem:[#allocation3 + $0x120] sm:$0xff] %v502
      %519 = vst [vmem:[#allocation3 + $0x168] sm:$0xff] %v503
      %520 = vst [vmem:[#allocation3 + $0x1b0] sm:$0xff] %v504
      %521 = vst [vmem:[#allocation3 + $0x1f8] sm:$0xff] %v505
      %522 = vst [vmem:[#allocation3 + $0x240] sm:$0xff] %v506
      %523 = vst [vmem:[#allocation3 + $0x288] sm:$0xff] %v507
      %524 = vst [vmem:[#allocation3 + $0x2d0] sm:$0xff] %v508
      %525 = vst [vmem:[#allocation3 + $0x318] sm:$0xff] %v509
      %526 = vst [vmem:[#allocation3 + $0x360] sm:$0xff] %v510
      %527 = vst [vmem:[#allocation3 + $0x3a8] sm:$0xff] %v511
      %528 = vst [vmem:[#allocation3 + $0x3f0] sm:$0xff] %v512
      %529 = vst [vmem:[#allocation3 + $0x438] sm:$0xff] %v513
      %v530 = vld [vmem:[#allocation2 + $0x8] sm:$0xff]
      %v531 = vld [vmem:[#allocation2 + $0x10] sm:$0xff]
      %v532 = vld [vmem:[#allocation2 + $0x28] sm:$0xff]
      %v533 = vld [vmem:[#allocation2 + $0x30] sm:$0xff]
      %v534 = vld [vmem:[#allocation2 + $0x48] sm:$0xff]
      %v535 = vld [vmem:[#allocation2 + $0x50] sm:$0xff]
      %v536 = vld [vmem:[#allocation2 + $0x68] sm:$0xff]
      %v537 = vld [vmem:[#allocation2 + $0x70] sm:$0xff]
      %v538 = vld [vmem:[#allocation2 + $0x88] sm:$0xff]
      %v539 = vld [vmem:[#allocation2 + $0x90] sm:$0xff]
      %v540 = vld [vmem:[#allocation2 + $0xa8] sm:$0xff]
      %v541 = vld [vmem:[#allocation2 + $0xb0] sm:$0xff]
      %v542 = vld [vmem:[#allocation2 + $0xc8] sm:$0xff]
      %v543 = vld [vmem:[#allocation2 + $0xd0] sm:$0xff]
      %v544 = vld [vmem:[#allocation2 + $0xe8] sm:$0xff]
      %v545 = vld [vmem:[#allocation2 + $0xf0] sm:$0xff]
      %v546 = vld [vmem:[#allocation2 + $0x108] sm:$0xff]
      %v547 = vld [vmem:[#allocation2 + $0x110] sm:$0xff]
      %v548 = vld [vmem:[#allocation2 + $0x128] sm:$0xff]
      %v549 = vld [vmem:[#allocation2 + $0x130] sm:$0xff]
      %v550 = vld [vmem:[#allocation2 + $0x148] sm:$0xff]
      %v551 = vld [vmem:[#allocation2 + $0x150] sm:$0xff]
      %v552 = vld [vmem:[#allocation2 + $0x168] sm:$0xff]
      %v553 = vld [vmem:[#allocation2 + $0x170] sm:$0xff]
      %v554 = vld [vmem:[#allocation2 + $0x188] sm:$0xff]
      %v555 = vld [vmem:[#allocation2 + $0x190] sm:$0xff]
      %v556 = vld [vmem:[#allocation2 + $0x1a8] sm:$0xff]
      %v557 = vld [vmem:[#allocation2 + $0x1b0] sm:$0xff]
      %v558 = vld [vmem:[#allocation2 + $0x1c8] sm:$0xff]
      %v559 = vld [vmem:[#allocation2 + $0x1d0] sm:$0xff]
      %v560 = vld [vmem:[#allocation2 + $0x1e8] sm:$0xff]
      %v561 = vld [vmem:[#allocation2 + $0x1f0] sm:$0xff]
      %v562 = vpack.c.bf16 %v531, %v530
      %v563 = vpack.c.bf16 %v533, %v532
      %v564 = vpack.c.bf16 %v535, %v534
      %v565 = vpack.c.bf16 %v537, %v536
      %v566 = vpack.c.bf16 %v539, %v538
      %v567 = vpack.c.bf16 %v541, %v540
      %v568 = vpack.c.bf16 %v543, %v542
      %v569 = vpack.c.bf16 %v545, %v544
      %v570 = vpack.c.bf16 %v547, %v546
      %v571 = vpack.c.bf16 %v549, %v548
      %v572 = vpack.c.bf16 %v551, %v550
      %v573 = vpack.c.bf16 %v553, %v552
      %v574 = vpack.c.bf16 %v555, %v554
      %v575 = vpack.c.bf16 %v557, %v556
      %v576 = vpack.c.bf16 %v559, %v558
      %v577 = vpack.c.bf16 %v561, %v560
      %578 = vst [vmem:[#allocation3 + $0x8] sm:$0xff] %v562
      %579 = vst [vmem:[#allocation3 + $0x50] sm:$0xff] %v563
      %580 = vst [vmem:[#allocation3 + $0x98] sm:$0xff] %v564
      %581 = vst [vmem:[#allocation3 + $0xe0] sm:$0xff] %v565
      %582 = vst [vmem:[#allocation3 + $0x128] sm:$0xff] %v566
      %583 = vst [vmem:[#allocation3 + $0x170] sm:$0xff] %v567
      %584 = vst [vmem:[#allocation3 + $0x1b8] sm:$0xff] %v568
      %585 = vst [vmem:[#allocation3 + $0x200] sm:$0xff] %v569
      %586 = vst [vmem:[#allocation3 + $0x248] sm:$0xff] %v570
      %587 = vst [vmem:[#allocation3 + $0x290] sm:$0xff] %v571
      %588 = vst [vmem:[#allocation3 + $0x2d8] sm:$0xff] %v572
      %589 = vst [vmem:[#allocation3 + $0x320] sm:$0xff] %v573
      %590 = vst [vmem:[#allocation3 + $0x368] sm:$0xff] %v574
      %591 = vst [vmem:[#allocation3 + $0x3b0] sm:$0xff] %v575
      %592 = vst [vmem:[#allocation3 + $0x3f8] sm:$0xff] %v576
      %593 = vst [vmem:[#allocation3 + $0x440] sm:$0xff] %v577
      %v594 = vld [vmem:[#allocation2 + $0x9] sm:$0xff]
      %v595 = vld [vmem:[#allocation2 + $0x11] sm:$0xff]
      %v596 = vld [vmem:[#allocation2 + $0x29] sm:$0xff]
      %v597 = vld [vmem:[#allocation2 + $0x31] sm:$0xff]
      %v598 = vld [vmem:[#allocation2 + $0x49] sm:$0xff]
      %v599 = vld [vmem:[#allocation2 + $0x51] sm:$0xff]
      %v600 = vld [vmem:[#allocation2 + $0x69] sm:$0xff]
      %v601 = vld [vmem:[#allocation2 + $0x71] sm:$0xff]
      %v602 = vld [vmem:[#allocation2 + $0x89] sm:$0xff]
      %v603 = vld [vmem:[#allocation2 + $0x91] sm:$0xff]
      %v604 = vld [vmem:[#allocation2 + $0xa9] sm:$0xff]
      %v605 = vld [vmem:[#allocation2 + $0xb1] sm:$0xff]
      %v606 = vld [vmem:[#allocation2 + $0xc9] sm:$0xff]
      %v607 = vld [vmem:[#allocation2 + $0xd1] sm:$0xff]
      %v608 = vld [vmem:[#allocation2 + $0xe9] sm:$0xff]
      %v609 = vld [vmem:[#allocation2 + $0xf1] sm:$0xff]
      %v610 = vld [vmem:[#allocation2 + $0x109] sm:$0xff]
      %v611 = vld [vmem:[#allocation2 + $0x111] sm:$0xff]
      %v612 = vld [vmem:[#allocation2 + $0x129] sm:$0xff]
      %v613 = vld [vmem:[#allocation2 + $0x131] sm:$0xff]
      %v614 = vld [vmem:[#allocation2 + $0x149] sm:$0xff]
      %v615 = vld [vmem:[#allocation2 + $0x151] sm:$0xff]
      %v616 = vld [vmem:[#allocation2 + $0x169] sm:$0xff]
      %v617 = vld [vmem:[#allocation2 + $0x171] sm:$0xff]
      %v618 = vld [vmem:[#allocation2 + $0x189] sm:$0xff]
      %v619 = vld [vmem:[#allocation2 + $0x191] sm:$0xff]
      %v620 = vld [vmem:[#allocation2 + $0x1a9] sm:$0xff]
      %v621 = vld [vmem:[#allocation2 + $0x1b1] sm:$0xff]
      %v622 = vld [vmem:[#allocation2 + $0x1c9] sm:$0xff]
      %v623 = vld [vmem:[#allocation2 + $0x1d1] sm:$0xff]
      %v624 = vld [vmem:[#allocation2 + $0x1e9] sm:$0xff]
      %v625 = vld [vmem:[#allocation2 + $0x1f1] sm:$0xff]
      %v626 = vpack.c.bf16 %v595, %v594
      %v627 = vpack.c.bf16 %v597, %v596
      %v628 = vpack.c.bf16 %v599, %v598
      %v629 = vpack.c.bf16 %v601, %v600
      %v630 = vpack.c.bf16 %v603, %v602
      %v631 = vpack.c.bf16 %v605, %v604
      %v632 = vpack.c.bf16 %v607, %v606
      %v633 = vpack.c.bf16 %v609, %v608
      %v634 = vpack.c.bf16 %v611, %v610
      %v635 = vpack.c.bf16 %v613, %v612
      %v636 = vpack.c.bf16 %v615, %v614
      %v637 = vpack.c.bf16 %v617, %v616
      %v638 = vpack.c.bf16 %v619, %v618
      %v639 = vpack.c.bf16 %v621, %v620
      %v640 = vpack.c.bf16 %v623, %v622
      %v641 = vpack.c.bf16 %v625, %v624
      %642 = vst [vmem:[#allocation3 + $0x10] sm:$0xff] %v626
      %643 = vst [vmem:[#allocation3 + $0x58] sm:$0xff] %v627
      %644 = vst [vmem:[#allocation3 + $0xa0] sm:$0xff] %v628
      %645 = vst [vmem:[#allocation3 + $0xe8] sm:$0xff] %v629
      %646 = vst [vmem:[#allocation3 + $0x130] sm:$0xff] %v630
      %647 = vst [vmem:[#allocation3 + $0x178] sm:$0xff] %v631
      %648 = vst [vmem:[#allocation3 + $0x1c0] sm:$0xff] %v632
      %649 = vst [vmem:[#allocation3 + $0x208] sm:$0xff] %v633
      %650 = vst [vmem:[#allocation3 + $0x250] sm:$0xff] %v634
      %651 = vst [vmem:[#allocation3 + $0x298] sm:$0xff] %v635
      %652 = vst [vmem:[#allocation3 + $0x2e0] sm:$0xff] %v636
      %653 = vst [vmem:[#allocation3 + $0x328] sm:$0xff] %v637
      %654 = vst [vmem:[#allocation3 + $0x370] sm:$0xff] %v638
      %655 = vst [vmem:[#allocation3 + $0x3b8] sm:$0xff] %v639
      %656 = vst [vmem:[#allocation3 + $0x400] sm:$0xff] %v640
      %657 = vst [vmem:[#allocation3 + $0x448] sm:$0xff] %v641
      %v658 = vld [vmem:[%s433 + $0x7] sm:$0xff]
      %v659 = vld [vmem:[%s433 + $0xf] sm:$0xff]
      %v660 = vld [vmem:[%s433 + $0x27] sm:$0xff]
      %v661 = vld [vmem:[%s433 + $0x2f] sm:$0xff]
      %v662 = vld [vmem:[%s433 + $0x47] sm:$0xff]
      %v663 = vld [vmem:[%s433 + $0x4f] sm:$0xff]
      %v664 = vld [vmem:[%s433 + $0x67] sm:$0xff]
      %v665 = vld [vmem:[%s433 + $0x6f] sm:$0xff]
      %v666 = vld [vmem:[%s433 + $0x87] sm:$0xff]
      %v667 = vld [vmem:[%s433 + $0x8f] sm:$0xff]
      %v668 = vld [vmem:[%s433 + $0xa7] sm:$0xff]
      %v669 = vld [vmem:[%s433 + $0xaf] sm:$0xff]
      %v670 = vld [vmem:[%s433 + $0xc7] sm:$0xff]
      %v671 = vld [vmem:[%s433 + $0xcf] sm:$0xff]
      %v672 = vld [vmem:[%s433 + $0xe7] sm:$0xff]
      %v673 = vld [vmem:[%s433 + $0xef] sm:$0xff]
      %v674 = vld [vmem:[%s433 + $0x107] sm:$0xff]
      %v675 = vld [vmem:[%s433 + $0x10f] sm:$0xff]
      %v676 = vld [vmem:[%s433 + $0x127] sm:$0xff]
      %v677 = vld [vmem:[%s433 + $0x12f] sm:$0xff]
      %v678 = vld [vmem:[%s433 + $0x147] sm:$0xff]
      %v679 = vld [vmem:[%s433 + $0x14f] sm:$0xff]
      %v680 = vld [vmem:[%s433 + $0x167] sm:$0xff]
      %v681 = vld [vmem:[%s433 + $0x16f] sm:$0xff]
      %v682 = vld [vmem:[%s433 + $0x187] sm:$0xff]
      %v683 = vld [vmem:[%s433 + $0x18f] sm:$0xff]
      %v684 = vld [vmem:[%s433 + $0x1a7] sm:$0xff]
      %v685 = vld [vmem:[%s433 + $0x1af] sm:$0xff]
      %v686 = vld [vmem:[%s433 + $0x1c7] sm:$0xff]
      %v687 = vld [vmem:[%s433 + $0x1cf] sm:$0xff]
      %v688 = vld [vmem:[%s433 + $0x1e7] sm:$0xff]
      %v689 = vld [vmem:[%s433 + $0x1ef] sm:$0xff]
      %v690 = vpack.c.bf16 %v659, %v658
      %v691 = vpack.c.bf16 %v661, %v660
      %v692 = vpack.c.bf16 %v663, %v662
      %v693 = vpack.c.bf16 %v665, %v664
      %v694 = vpack.c.bf16 %v667, %v666
      %v695 = vpack.c.bf16 %v669, %v668
      %v696 = vpack.c.bf16 %v671, %v670
      %v697 = vpack.c.bf16 %v673, %v672
      %v698 = vpack.c.bf16 %v675, %v674
      %v699 = vpack.c.bf16 %v677, %v676
      %v700 = vpack.c.bf16 %v679, %v678
      %v701 = vpack.c.bf16 %v681, %v680
      %v702 = vpack.c.bf16 %v683, %v682
      %v703 = vpack.c.bf16 %v685, %v684
      %v704 = vpack.c.bf16 %v687, %v686
      %v705 = vpack.c.bf16 %v689, %v688
      %706 = vst [vmem:[#allocation3 + $0x18] sm:$0xff] %v690
      %707 = vst [vmem:[#allocation3 + $0x60] sm:$0xff] %v691
      %708 = vst [vmem:[#allocation3 + $0xa8] sm:$0xff] %v692
      %709 = vst [vmem:[#allocation3 + $0xf0] sm:$0xff] %v693
      %710 = vst [vmem:[#allocation3 + $0x138] sm:$0xff] %v694
      %711 = vst [vmem:[#allocation3 + $0x180] sm:$0xff] %v695
      %712 = vst [vmem:[#allocation3 + $0x1c8] sm:$0xff] %v696
      %713 = vst [vmem:[#allocation3 + $0x210] sm:$0xff] %v697
      %714 = vst [vmem:[#allocation3 + $0x258] sm:$0xff] %v698
      %715 = vst [vmem:[#allocation3 + $0x2a0] sm:$0xff] %v699
      %716 = vst [vmem:[#allocation3 + $0x2e8] sm:$0xff] %v700
      %717 = vst [vmem:[#allocation3 + $0x330] sm:$0xff] %v701
      %718 = vst [vmem:[#allocation3 + $0x378] sm:$0xff] %v702
      %719 = vst [vmem:[#allocation3 + $0x3c0] sm:$0xff] %v703
      %720 = vst [vmem:[#allocation3 + $0x408] sm:$0xff] %v704
      %721 = vst [vmem:[#allocation3 + $0x450] sm:$0xff] %v705
      %v722 = vld [vmem:[%s433 + $0x8] sm:$0xff]
      %v723 = vld [vmem:[%s433 + $0x10] sm:$0xff]
      %v724 = vld [vmem:[%s433 + $0x28] sm:$0xff]
      %v725 = vld [vmem:[%s433 + $0x30] sm:$0xff]
      %v726 = vld [vmem:[%s433 + $0x48] sm:$0xff]
      %v727 = vld [vmem:[%s433 + $0x50] sm:$0xff]
      %v728 = vld [vmem:[%s433 + $0x68] sm:$0xff]
      %v729 = vld [vmem:[%s433 + $0x70] sm:$0xff]
      %v730 = vld [vmem:[%s433 + $0x88] sm:$0xff]
      %v731 = vld [vmem:[%s433 + $0x90] sm:$0xff]
      %v732 = vld [vmem:[%s433 + $0xa8] sm:$0xff]
      %v733 = vld [vmem:[%s433 + $0xb0] sm:$0xff]
      %v734 = vld [vmem:[%s433 + $0xc8] sm:$0xff]
      %v735 = vld [vmem:[%s433 + $0xd0] sm:$0xff]
      %v736 = vld [vmem:[%s433 + $0xe8] sm:$0xff]
      %v737 = vld [vmem:[%s433 + $0xf0] sm:$0xff]
      %v738 = vld [vmem:[%s433 + $0x108] sm:$0xff]
      %v739 = vld [vmem:[%s433 + $0x110] sm:$0xff]
      %v740 = vld [vmem:[%s433 + $0x128] sm:$0xff]
      %v741 = vld [vmem:[%s433 + $0x130] sm:$0xff]
      %v742 = vld [vmem:[%s433 + $0x148] sm:$0xff]
      %v743 = vld [vmem:[%s433 + $0x150] sm:$0xff]
      %v744 = vld [vmem:[%s433 + $0x168] sm:$0xff]
      %v745 = vld [vmem:[%s433 + $0x170] sm:$0xff]
      %v746 = vld [vmem:[%s433 + $0x188] sm:$0xff]
      %v747 = vld [vmem:[%s433 + $0x190] sm:$0xff]
      %v748 = vld [vmem:[%s433 + $0x1a8] sm:$0xff]
      %v749 = vld [vmem:[%s433 + $0x1b0] sm:$0xff]
      %v750 = vld [vmem:[%s433 + $0x1c8] sm:$0xff]
      %v751 = vld [vmem:[%s433 + $0x1d0] sm:$0xff]
      %v752 = vld [vmem:[%s433 + $0x1e8] sm:$0xff]
      %v753 = vld [vmem:[%s433 + $0x1f0] sm:$0xff]
      %v754 = vpack.c.bf16 %v723, %v722
      %v755 = vpack.c.bf16 %v725, %v724
      %v756 = vpack.c.bf16 %v727, %v726
      %v757 = vpack.c.bf16 %v729, %v728
      %v758 = vpack.c.bf16 %v731, %v730
      %v759 = vpack.c.bf16 %v733, %v732
      %v760 = vpack.c.bf16 %v735, %v734
      %v761 = vpack.c.bf16 %v737, %v736
      %v762 = vpack.c.bf16 %v739, %v738
      %v763 = vpack.c.bf16 %v741, %v740
      %v764 = vpack.c.bf16 %v743, %v742
      %v765 = vpack.c.bf16 %v745, %v744
      %v766 = vpack.c.bf16 %v747, %v746
      %v767 = vpack.c.bf16 %v749, %v748
      %v768 = vpack.c.bf16 %v751, %v750
      %v769 = vpack.c.bf16 %v753, %v752
      %770 = vst [vmem:[#allocation3 + $0x20] sm:$0xff] %v754
      %771 = vst [vmem:[#allocation3 + $0x68] sm:$0xff] %v755
      %772 = vst [vmem:[#allocation3 + $0xb0] sm:$0xff] %v756
      %773 = vst [vmem:[#allocation3 + $0xf8] sm:$0xff] %v757
      %774 = vst [vmem:[#allocation3 + $0x140] sm:$0xff] %v758
      %775 = vst [vmem:[#allocation3 + $0x188] sm:$0xff] %v759
      %776 = vst [vmem:[#allocation3 + $0x1d0] sm:$0xff] %v760
      %777 = vst [vmem:[#allocation3 + $0x218] sm:$0xff] %v761
      %778 = vst [vmem:[#allocation3 + $0x260] sm:$0xff] %v762
      %779 = vst [vmem:[#allocation3 + $0x2a8] sm:$0xff] %v763
      %780 = vst [vmem:[#allocation3 + $0x2f0] sm:$0xff] %v764
      %781 = vst [vmem:[#allocation3 + $0x338] sm:$0xff] %v765
      %782 = vst [vmem:[#allocation3 + $0x380] sm:$0xff] %v766
      %783 = vst [vmem:[#allocation3 + $0x3c8] sm:$0xff] %v767
      %784 = vst [vmem:[#allocation3 + $0x410] sm:$0xff] %v768
      %785 = vst [vmem:[#allocation3 + $0x458] sm:$0xff] %v769
      %v786 = vld [vmem:[%s433 + $0x9] sm:$0xff]
      %v787 = vld [vmem:[%s433 + $0x11] sm:$0xff]
      %v788 = vld [vmem:[%s433 + $0x29] sm:$0xff]
      %v789 = vld [vmem:[%s433 + $0x31] sm:$0xff]
      %v790 = vld [vmem:[%s433 + $0x49] sm:$0xff]
      %v791 = vld [vmem:[%s433 + $0x51] sm:$0xff]
      %v792 = vld [vmem:[%s433 + $0x69] sm:$0xff]
      %v793 = vld [vmem:[%s433 + $0x71] sm:$0xff]
      %v794 = vld [vmem:[%s433 + $0x89] sm:$0xff]
      %v795 = vld [vmem:[%s433 + $0x91] sm:$0xff]
      %v796 = vld [vmem:[%s433 + $0xa9] sm:$0xff]
      %v797 = vld [vmem:[%s433 + $0xb1] sm:$0xff]
      %v798 = vld [vmem:[%s433 + $0xc9] sm:$0xff]
      %v799 = vld [vmem:[%s433 + $0xd1] sm:$0xff]
      %v800 = vld [vmem:[%s433 + $0xe9] sm:$0xff]
      %v801 = vld [vmem:[%s433 + $0xf1] sm:$0xff]
      %v802 = vld [vmem:[%s433 + $0x109] sm:$0xff]
      %v803 = vld [vmem:[%s433 + $0x111] sm:$0xff]
      %v804 = vld [vmem:[%s433 + $0x129] sm:$0xff]
      %v805 = vld [vmem:[%s433 + $0x131] sm:$0xff]
      %v806 = vld [vmem:[%s433 + $0x149] sm:$0xff]
      %v807 = vld [vmem:[%s433 + $0x151] sm:$0xff]
      %v808 = vld [vmem:[%s433 + $0x169] sm:$0xff]
      %v809 = vld [vmem:[%s433 + $0x171] sm:$0xff]
      %v810 = vld [vmem:[%s433 + $0x189] sm:$0xff]
      %v811 = vld [vmem:[%s433 + $0x191] sm:$0xff]
      %v812 = vld [vmem:[%s433 + $0x1a9] sm:$0xff]
      %v813 = vld [vmem:[%s433 + $0x1b1] sm:$0xff]
      %v814 = vld [vmem:[%s433 + $0x1c9] sm:$0xff]
      %v815 = vld [vmem:[%s433 + $0x1d1] sm:$0xff]
      %v816 = vld [vmem:[%s433 + $0x1e9] sm:$0xff]
      %v817 = vld [vmem:[%s433 + $0x1f1] sm:$0xff]
      %v818 = vpack.c.bf16 %v787, %v786
      %v819 = vpack.c.bf16 %v789, %v788
      %v820 = vpack.c.bf16 %v791, %v790
      %v821 = vpack.c.bf16 %v793, %v792
      %v822 = vpack.c.bf16 %v795, %v794
      %v823 = vpack.c.bf16 %v797, %v796
      %v824 = vpack.c.bf16 %v799, %v798
      %v825 = vpack.c.bf16 %v801, %v800
      %v826 = vpack.c.bf16 %v803, %v802
      %v827 = vpack.c.bf16 %v805, %v804
      %v828 = vpack.c.bf16 %v807, %v806
      %v829 = vpack.c.bf16 %v809, %v808
      %v830 = vpack.c.bf16 %v811, %v810
      %v831 = vpack.c.bf16 %v813, %v812
      %v832 = vpack.c.bf16 %v815, %v814
      %v833 = vpack.c.bf16 %v817, %v816
      %834 = vst [vmem:[#allocation3 + $0x28] sm:$0xff] %v818
      %835 = vst [vmem:[#allocation3 + $0x70] sm:$0xff] %v819
      %836 = vst [vmem:[#allocation3 + $0xb8] sm:$0xff] %v820
      %837 = vst [vmem:[#allocation3 + $0x100] sm:$0xff] %v821
      %838 = vst [vmem:[#allocation3 + $0x148] sm:$0xff] %v822
      %839 = vst [vmem:[#allocation3 + $0x190] sm:$0xff] %v823
      %840 = vst [vmem:[#allocation3 + $0x1d8] sm:$0xff] %v824
      %841 = vst [vmem:[#allocation3 + $0x220] sm:$0xff] %v825
      %842 = vst [vmem:[#allocation3 + $0x268] sm:$0xff] %v826
      %843 = vst [vmem:[#allocation3 + $0x2b0] sm:$0xff] %v827
      %844 = vst [vmem:[#allocation3 + $0x2f8] sm:$0xff] %v828
      %845 = vst [vmem:[#allocation3 + $0x340] sm:$0xff] %v829
      %846 = vst [vmem:[#allocation3 + $0x388] sm:$0xff] %v830
      %847 = vst [vmem:[#allocation3 + $0x3d0] sm:$0xff] %v831
      %848 = vst [vmem:[#allocation3 + $0x418] sm:$0xff] %v832
      %849 = vst [vmem:[#allocation3 + $0x460] sm:$0xff] %v833
      %s850 = scalar_lea.vmem [#allocation2], 64
      %v851 = vld [vmem:[%s850 + $0x7] sm:$0xff]
      %v852 = vld [vmem:[%s850 + $0xf] sm:$0xff]
      %v853 = vld [vmem:[%s850 + $0x27] sm:$0xff]
      %v854 = vld [vmem:[%s850 + $0x2f] sm:$0xff]
      %v855 = vld [vmem:[%s850 + $0x47] sm:$0xff]
      %v856 = vld [vmem:[%s850 + $0x4f] sm:$0xff]
      %v857 = vld [vmem:[%s850 + $0x67] sm:$0xff]
      %v858 = vld [vmem:[%s850 + $0x6f] sm:$0xff]
      %v859 = vld [vmem:[%s850 + $0x87] sm:$0xff]
      %v860 = vld [vmem:[%s850 + $0x8f] sm:$0xff]
      %v861 = vld [vmem:[%s850 + $0xa7] sm:$0xff]
      %v862 = vld [vmem:[%s850 + $0xaf] sm:$0xff]
      %v863 = vld [vmem:[%s850 + $0xc7] sm:$0xff]
      %v864 = vld [vmem:[%s850 + $0xcf] sm:$0xff]
      %v865 = vld [vmem:[%s850 + $0xe7] sm:$0xff]
      %v866 = vld [vmem:[%s850 + $0xef] sm:$0xff]
      %v867 = vld [vmem:[%s850 + $0x107] sm:$0xff]
      %v868 = vld [vmem:[%s850 + $0x10f] sm:$0xff]
      %v869 = vld [vmem:[%s850 + $0x127] sm:$0xff]
      %v870 = vld [vmem:[%s850 + $0x12f] sm:$0xff]
      %v871 = vld [vmem:[%s850 + $0x147] sm:$0xff]
      %v872 = vld [vmem:[%s850 + $0x14f] sm:$0xff]
      %v873 = vld [vmem:[%s850 + $0x167] sm:$0xff]
      %v874 = vld [vmem:[%s850 + $0x16f] sm:$0xff]
      %v875 = vld [vmem:[%s850 + $0x187] sm:$0xff]
      %v876 = vld [vmem:[%s850 + $0x18f] sm:$0xff]
      %v877 = vld [vmem:[%s850 + $0x1a7] sm:$0xff]
      %v878 = vld [vmem:[%s850 + $0x1af] sm:$0xff]
      %v879 = vld [vmem:[%s850 + $0x1c7] sm:$0xff]
      %v880 = vld [vmem:[%s850 + $0x1cf] sm:$0xff]
      %v881 = vld [vmem:[%s850 + $0x1e7] sm:$0xff]
      %v882 = vld [vmem:[%s850 + $0x1ef] sm:$0xff]
      %v883 = vpack.c.bf16 %v852, %v851
      %v884 = vpack.c.bf16 %v854, %v853
      %v885 = vpack.c.bf16 %v856, %v855
      %v886 = vpack.c.bf16 %v858, %v857
      %v887 = vpack.c.bf16 %v860, %v859
      %v888 = vpack.c.bf16 %v862, %v861
      %v889 = vpack.c.bf16 %v864, %v863
      %v890 = vpack.c.bf16 %v866, %v865
      %v891 = vpack.c.bf16 %v868, %v867
      %v892 = vpack.c.bf16 %v870, %v869
      %v893 = vpack.c.bf16 %v872, %v871
      %v894 = vpack.c.bf16 %v874, %v873
      %v895 = vpack.c.bf16 %v876, %v875
      %v896 = vpack.c.bf16 %v878, %v877
      %v897 = vpack.c.bf16 %v880, %v879
      %v898 = vpack.c.bf16 %v882, %v881
      %899 = vst [vmem:[#allocation3 + $0x30] sm:$0xff] %v883
      %900 = vst [vmem:[#allocation3 + $0x78] sm:$0xff] %v884
      %901 = vst [vmem:[#allocation3 + $0xc0] sm:$0xff] %v885
      %902 = vst [vmem:[#allocation3 + $0x108] sm:$0xff] %v886
      %903 = vst [vmem:[#allocation3 + $0x150] sm:$0xff] %v887
      %904 = vst [vmem:[#allocation3 + $0x198] sm:$0xff] %v888
      %905 = vst [vmem:[#allocation3 + $0x1e0] sm:$0xff] %v889
      %906 = vst [vmem:[#allocation3 + $0x228] sm:$0xff] %v890
      %907 = vst [vmem:[#allocation3 + $0x270] sm:$0xff] %v891
      %908 = vst [vmem:[#allocation3 + $0x2b8] sm:$0xff] %v892
      %909 = vst [vmem:[#allocation3 + $0x300] sm:$0xff] %v893
      %910 = vst [vmem:[#allocation3 + $0x348] sm:$0xff] %v894
      %911 = vst [vmem:[#allocation3 + $0x390] sm:$0xff] %v895
      %912 = vst [vmem:[#allocation3 + $0x3d8] sm:$0xff] %v896
      %913 = vst [vmem:[#allocation3 + $0x420] sm:$0xff] %v897
      %914 = vst [vmem:[#allocation3 + $0x468] sm:$0xff] %v898
      %v915 = vld [vmem:[%s850 + $0x8] sm:$0xff]
      %v916 = vld [vmem:[%s850 + $0x10] sm:$0xff]
      %v917 = vld [vmem:[%s850 + $0x28] sm:$0xff]
      %v918 = vld [vmem:[%s850 + $0x30] sm:$0xff]
      %v919 = vld [vmem:[%s850 + $0x48] sm:$0xff]
      %v920 = vld [vmem:[%s850 + $0x50] sm:$0xff]
      %v921 = vld [vmem:[%s850 + $0x68] sm:$0xff]
      %v922 = vld [vmem:[%s850 + $0x70] sm:$0xff]
      %v923 = vld [vmem:[%s850 + $0x88] sm:$0xff]
      %v924 = vld [vmem:[%s850 + $0x90] sm:$0xff]
      %v925 = vld [vmem:[%s850 + $0xa8] sm:$0xff]
      %v926 = vld [vmem:[%s850 + $0xb0] sm:$0xff]
      %v927 = vld [vmem:[%s850 + $0xc8] sm:$0xff]
      %v928 = vld [vmem:[%s850 + $0xd0] sm:$0xff]
      %v929 = vld [vmem:[%s850 + $0xe8] sm:$0xff]
      %v930 = vld [vmem:[%s850 + $0xf0] sm:$0xff]
      %v931 = vld [vmem:[%s850 + $0x108] sm:$0xff]
      %v932 = vld [vmem:[%s850 + $0x110] sm:$0xff]
      %v933 = vld [vmem:[%s850 + $0x128] sm:$0xff]
      %v934 = vld [vmem:[%s850 + $0x130] sm:$0xff]
      %v935 = vld [vmem:[%s850 + $0x148] sm:$0xff]
      %v936 = vld [vmem:[%s850 + $0x150] sm:$0xff]
      %v937 = vld [vmem:[%s850 + $0x168] sm:$0xff]
      %v938 = vld [vmem:[%s850 + $0x170] sm:$0xff]
      %v939 = vld [vmem:[%s850 + $0x188] sm:$0xff]
      %v940 = vld [vmem:[%s850 + $0x190] sm:$0xff]
      %v941 = vld [vmem:[%s850 + $0x1a8] sm:$0xff]
      %v942 = vld [vmem:[%s850 + $0x1b0] sm:$0xff]
      %v943 = vld [vmem:[%s850 + $0x1c8] sm:$0xff]
      %v944 = vld [vmem:[%s850 + $0x1d0] sm:$0xff]
      %v945 = vld [vmem:[%s850 + $0x1e8] sm:$0xff]
      %v946 = vld [vmem:[%s850 + $0x1f0] sm:$0xff]
      %v947 = vpack.c.bf16 %v916, %v915
      %v948 = vpack.c.bf16 %v918, %v917
      %v949 = vpack.c.bf16 %v920, %v919
      %v950 = vpack.c.bf16 %v922, %v921
      %v951 = vpack.c.bf16 %v924, %v923
      %v952 = vpack.c.bf16 %v926, %v925
      %v953 = vpack.c.bf16 %v928, %v927
      %v954 = vpack.c.bf16 %v930, %v929
      %v955 = vpack.c.bf16 %v932, %v931
      %v956 = vpack.c.bf16 %v934, %v933
      %v957 = vpack.c.bf16 %v936, %v935
      %v958 = vpack.c.bf16 %v938, %v937
      %v959 = vpack.c.bf16 %v940, %v939
      %v960 = vpack.c.bf16 %v942, %v941
      %v961 = vpack.c.bf16 %v944, %v943
      %v962 = vpack.c.bf16 %v946, %v945
      %963 = vst [vmem:[#allocation3 + $0x38] sm:$0xff] %v947
      %964 = vst [vmem:[#allocation3 + $0x80] sm:$0xff] %v948
      %965 = vst [vmem:[#allocation3 + $0xc8] sm:$0xff] %v949
      %966 = vst [vmem:[#allocation3 + $0x110] sm:$0xff] %v950
      %967 = vst [vmem:[#allocation3 + $0x158] sm:$0xff] %v951
      %968 = vst [vmem:[#allocation3 + $0x1a0] sm:$0xff] %v952
      %969 = vst [vmem:[#allocation3 + $0x1e8] sm:$0xff] %v953
      %970 = vst [vmem:[#allocation3 + $0x230] sm:$0xff] %v954
      %971 = vst [vmem:[#allocation3 + $0x278] sm:$0xff] %v955
      %972 = vst [vmem:[#allocation3 + $0x2c0] sm:$0xff] %v956
      %973 = vst [vmem:[#allocation3 + $0x308] sm:$0xff] %v957
      %974 = vst [vmem:[#allocation3 + $0x350] sm:$0xff] %v958
      %975 = vst [vmem:[#allocation3 + $0x398] sm:$0xff] %v959
      %976 = vst [vmem:[#allocation3 + $0x3e0] sm:$0xff] %v960
      %977 = vst [vmem:[#allocation3 + $0x428] sm:$0xff] %v961
      %978 = vst [vmem:[#allocation3 + $0x470] sm:$0xff] %v962
      %v979 = vld [vmem:[%s850 + $0x9] sm:$0xff]
      %v980 = vld [vmem:[%s850 + $0x11] sm:$0xff]
      %v981 = vld [vmem:[%s850 + $0x29] sm:$0xff]
      %v982 = vld [vmem:[%s850 + $0x31] sm:$0xff]
      %v983 = vld [vmem:[%s850 + $0x49] sm:$0xff]
      %v984 = vld [vmem:[%s850 + $0x51] sm:$0xff]
      %v985 = vld [vmem:[%s850 + $0x69] sm:$0xff]
      %v986 = vld [vmem:[%s850 + $0x71] sm:$0xff]
      %v987 = vld [vmem:[%s850 + $0x89] sm:$0xff]
      %v988 = vld [vmem:[%s850 + $0x91] sm:$0xff]
      %v989 = vld [vmem:[%s850 + $0xa9] sm:$0xff]
      %v990 = vld [vmem:[%s850 + $0xb1] sm:$0xff]
      %v991 = vld [vmem:[%s850 + $0xc9] sm:$0xff]
      %v992 = vld [vmem:[%s850 + $0xd1] sm:$0xff]
      %v993 = vld [vmem:[%s850 + $0xe9] sm:$0xff]
      %v994 = vld [vmem:[%s850 + $0xf1] sm:$0xff]
      %v995 = vld [vmem:[%s850 + $0x109] sm:$0xff]
      %v996 = vld [vmem:[%s850 + $0x111] sm:$0xff]
      %v997 = vld [vmem:[%s850 + $0x129] sm:$0xff]
      %v998 = vld [vmem:[%s850 + $0x131] sm:$0xff]
      %v999 = vld [vmem:[%s850 + $0x149] sm:$0xff]
      %v1000 = vld [vmem:[%s850 + $0x151] sm:$0xff]
      %v1001 = vld [vmem:[%s850 + $0x169] sm:$0xff]
      %v1002 = vld [vmem:[%s850 + $0x171] sm:$0xff]
      %v1003 = vld [vmem:[%s850 + $0x189] sm:$0xff]
      %v1004 = vld [vmem:[%s850 + $0x191] sm:$0xff]
      %v1005 = vld [vmem:[%s850 + $0x1a9] sm:$0xff]
      %v1006 = vld [vmem:[%s850 + $0x1b1] sm:$0xff]
      %v1007 = vld [vmem:[%s850 + $0x1c9] sm:$0xff]
      %v1008 = vld [vmem:[%s850 + $0x1d1] sm:$0xff]
      %v1009 = vld [vmem:[%s850 + $0x1e9] sm:$0xff]
      %v1010 = vld [vmem:[%s850 + $0x1f1] sm:$0xff]
      %v1011 = vpack.c.bf16 %v980, %v979
      %v1012 = vpack.c.bf16 %v982, %v981
      %v1013 = vpack.c.bf16 %v984, %v983
      %v1014 = vpack.c.bf16 %v986, %v985
      %v1015 = vpack.c.bf16 %v988, %v987
      %v1016 = vpack.c.bf16 %v990, %v989
      %v1017 = vpack.c.bf16 %v992, %v991
      %v1018 = vpack.c.bf16 %v994, %v993
      %v1019 = vpack.c.bf16 %v996, %v995
      %v1020 = vpack.c.bf16 %v998, %v997
      %v1021 = vpack.c.bf16 %v1000, %v999
      %v1022 = vpack.c.bf16 %v1002, %v1001
      %v1023 = vpack.c.bf16 %v1004, %v1003
      %v1024 = vpack.c.bf16 %v1006, %v1005
      %v1025 = vpack.c.bf16 %v1008, %v1007
      %v1026 = vpack.c.bf16 %v1010, %v1009
      %1027 = vst [vmem:[#allocation3 + $0x40] sm:$0xff] %v1011
      %1028 = vst [vmem:[#allocation3 + $0x88] sm:$0xff] %v1012
      %1029 = vst [vmem:[#allocation3 + $0xd0] sm:$0xff] %v1013
      %1030 = vst [vmem:[#allocation3 + $0x118] sm:$0xff] %v1014
      %1031 = vst [vmem:[#allocation3 + $0x160] sm:$0xff] %v1015
      %1032 = vst [vmem:[#allocation3 + $0x1a8] sm:$0xff] %v1016
      %1033 = vst [vmem:[#allocation3 + $0x1f0] sm:$0xff] %v1017
      %1034 = vst [vmem:[#allocation3 + $0x238] sm:$0xff] %v1018
      %1035 = vst [vmem:[#allocation3 + $0x280] sm:$0xff] %v1019
      %1036 = vst [vmem:[#allocation3 + $0x2c8] sm:$0xff] %v1020
      %1037 = vst [vmem:[#allocation3 + $0x310] sm:$0xff] %v1021
      %1038 = vst [vmem:[#allocation3 + $0x358] sm:$0xff] %v1022
      %1039 = vst [vmem:[#allocation3 + $0x3a0] sm:$0xff] %v1023
      %1040 = vst [vmem:[#allocation3 + $0x3e8] sm:$0xff] %v1024
      %1041 = vst [vmem:[#allocation3 + $0x430] sm:$0xff] %v1025
      %1042 = vst [vmem:[#allocation3 + $0x478] sm:$0xff] %v1026
      %v1043 = vld [vmem:[#allocation3] sm:$0xff]
      %v1044 = vld [vmem:[#allocation3 + $0x8] sm:$0xff]
      %v1045 = vld [vmem:[#allocation3 + $0x10] sm:$0xff]
      %v1046 = vld [vmem:[#allocation3 + $0x18] sm:$0xff]
      %v1047 = vld [vmem:[#allocation3 + $0x20] sm:$0xff]
      %v1048 = vld [vmem:[#allocation3 + $0x28] sm:$0xff]
      %v1049 = vld [vmem:[#allocation3 + $0x30] sm:$0xff]
      %v1050 = vld [vmem:[#allocation3 + $0x38] sm:$0xff]
      %v1051 = vld [vmem:[#allocation3 + $0x40] sm:$0xff]
      %v1052 = vld [vmem:[#allocation3 + $0x48] sm:$0xff]
      %v1053 = vld [vmem:[#allocation3 + $0x50] sm:$0xff]
      %v1054 = vld [vmem:[#allocation3 + $0x58] sm:$0xff]
      %v1055 = vld [vmem:[#allocation3 + $0x60] sm:$0xff]
      %v1056 = vld [vmem:[#allocation3 + $0x68] sm:$0xff]
      %v1057 = vld [vmem:[#allocation3 + $0x70] sm:$0xff]
      %v1058 = vld [vmem:[#allocation3 + $0x78] sm:$0xff]
      %v1059 = vld [vmem:[#allocation3 + $0x80] sm:$0xff]
      %v1060 = vld [vmem:[#allocation3 + $0x88] sm:$0xff]
      %v1061 = vld [vmem:[#allocation3 + $0x90] sm:$0xff]
      %v1062 = vld [vmem:[#allocation3 + $0x98] sm:$0xff]
      %v1063 = vld [vmem:[#allocation3 + $0xa0] sm:$0xff]
      %v1064 = vld [vmem:[#allocation3 + $0xa8] sm:$0xff]
      %v1065 = vld [vmem:[#allocation3 + $0xb0] sm:$0xff]
      %v1066 = vld [vmem:[#allocation3 + $0xb8] sm:$0xff]
      %v1067 = vld [vmem:[#allocation3 + $0xc0] sm:$0xff]
      %v1068 = vld [vmem:[#allocation3 + $0xc8] sm:$0xff]
      %v1069 = vld [vmem:[#allocation3 + $0xd0] sm:$0xff]
      %v1070 = vld [vmem:[#allocation3 + $0xd8] sm:$0xff]
      %v1071 = vld [vmem:[#allocation3 + $0xe0] sm:$0xff]
      %v1072 = vld [vmem:[#allocation3 + $0xe8] sm:$0xff]
      %v1073 = vld [vmem:[#allocation3 + $0xf0] sm:$0xff]
      %v1074 = vld [vmem:[#allocation3 + $0xf8] sm:$0xff]
      %v1075 = vld [vmem:[#allocation3 + $0x100] sm:$0xff]
      %v1076 = vld [vmem:[#allocation3 + $0x108] sm:$0xff]
      %v1077 = vld [vmem:[#allocation3 + $0x110] sm:$0xff]
      %v1078 = vld [vmem:[#allocation3 + $0x118] sm:$0xff]
      %v1079 = vld [vmem:[#allocation3 + $0x120] sm:$0xff]
      %v1080 = vld [vmem:[#allocation3 + $0x128] sm:$0xff]
      %v1081 = vld [vmem:[#allocation3 + $0x130] sm:$0xff]
      %v1082 = vld [vmem:[#allocation3 + $0x138] sm:$0xff]
      %v1083 = vld [vmem:[#allocation3 + $0x140] sm:$0xff]
      %v1084 = vld [vmem:[#allocation3 + $0x148] sm:$0xff]
      %v1085 = vld [vmem:[#allocation3 + $0x150] sm:$0xff]
      %v1086 = vld [vmem:[#allocation3 + $0x158] sm:$0xff]
      %v1087 = vld [vmem:[#allocation3 + $0x160] sm:$0xff]
      %v1088 = vld [vmem:[#allocation3 + $0x168] sm:$0xff]
      %v1089 = vld [vmem:[#allocation3 + $0x170] sm:$0xff]
      %v1090 = vld [vmem:[#allocation3 + $0x178] sm:$0xff]
      %v1091 = vld [vmem:[#allocation3 + $0x180] sm:$0xff]
      %v1092 = vld [vmem:[#allocation3 + $0x188] sm:$0xff]
      %v1093 = vld [vmem:[#allocation3 + $0x190] sm:$0xff]
      %v1094 = vld [vmem:[#allocation3 + $0x198] sm:$0xff]
      %v1095 = vld [vmem:[#allocation3 + $0x1a0] sm:$0xff]
      %v1096 = vld [vmem:[#allocation3 + $0x1a8] sm:$0xff]
      %v1097 = vld [vmem:[#allocation3 + $0x1b0] sm:$0xff]
      %v1098 = vld [vmem:[#allocation3 + $0x1b8] sm:$0xff]
      %v1099 = vld [vmem:[#allocation3 + $0x1c0] sm:$0xff]
      %v1100 = vld [vmem:[#allocation3 + $0x1c8] sm:$0xff]
      %v1101 = vld [vmem:[#allocation3 + $0x1d0] sm:$0xff]
      %v1102 = vld [vmem:[#allocation3 + $0x1d8] sm:$0xff]
      %v1103 = vld [vmem:[#allocation3 + $0x1e0] sm:$0xff]
      %v1104 = vld [vmem:[#allocation3 + $0x1e8] sm:$0xff]
      %v1105 = vld [vmem:[#allocation3 + $0x1f0] sm:$0xff]
      %v1106 = vld [vmem:[#allocation3 + $0x1f8] sm:$0xff]
      %v1107 = vld [vmem:[#allocation3 + $0x200] sm:$0xff]
      %v1108 = vld [vmem:[#allocation3 + $0x208] sm:$0xff]
      %v1109 = vld [vmem:[#allocation3 + $0x210] sm:$0xff]
      %v1110 = vld [vmem:[#allocation3 + $0x218] sm:$0xff]
      %v1111 = vld [vmem:[#allocation3 + $0x220] sm:$0xff]
      %v1112 = vld [vmem:[#allocation3 + $0x228] sm:$0xff]
      %v1113 = vld [vmem:[#allocation3 + $0x230] sm:$0xff]
      %v1114 = vld [vmem:[#allocation3 + $0x238] sm:$0xff]
      %v1115 = vld [vmem:[#allocation3 + $0x240] sm:$0xff]
      %v1116 = vld [vmem:[#allocation3 + $0x248] sm:$0xff]
      %v1117 = vld [vmem:[#allocation3 + $0x250] sm:$0xff]
      %v1118 = vld [vmem:[#allocation3 + $0x258] sm:$0xff]
      %v1119 = vld [vmem:[#allocation3 + $0x260] sm:$0xff]
      %v1120 = vld [vmem:[#allocation3 + $0x268] sm:$0xff]
      %v1121 = vld [vmem:[#allocation3 + $0x270] sm:$0xff]
      %v1122 = vld [vmem:[#allocation3 + $0x278] sm:$0xff]
      %v1123 = vld [vmem:[#allocation3 + $0x280] sm:$0xff]
      %v1124 = vld [vmem:[#allocation3 + $0x288] sm:$0xff]
      %v1125 = vld [vmem:[#allocation3 + $0x290] sm:$0xff]
      %v1126 = vld [vmem:[#allocation3 + $0x298] sm:$0xff]
      %v1127 = vld [vmem:[#allocation3 + $0x2a0] sm:$0xff]
      %v1128 = vld [vmem:[#allocation3 + $0x2a8] sm:$0xff]
      %v1129 = vld [vmem:[#allocation3 + $0x2b0] sm:$0xff]
      %v1130 = vld [vmem:[#allocation3 + $0x2b8] sm:$0xff]
      %v1131 = vld [vmem:[#allocation3 + $0x2c0] sm:$0xff]
      %v1132 = vld [vmem:[#allocation3 + $0x2c8] sm:$0xff]
      %v1133 = vld [vmem:[#allocation3 + $0x2d0] sm:$0xff]
      %v1134 = vld [vmem:[#allocation3 + $0x2d8] sm:$0xff]
      %v1135 = vld [vmem:[#allocation3 + $0x2e0] sm:$0xff]
      %v1136 = vld [vmem:[#allocation3 + $0x2e8] sm:$0xff]
      %v1137 = vld [vmem:[#allocation3 + $0x2f0] sm:$0xff]
      %v1138 = vld [vmem:[#allocation3 + $0x2f8] sm:$0xff]
      %v1139 = vld [vmem:[#allocation3 + $0x300] sm:$0xff]
      %v1140 = vld [vmem:[#allocation3 + $0x308] sm:$0xff]
      %v1141 = vld [vmem:[#allocation3 + $0x310] sm:$0xff]
      %v1142 = vld [vmem:[#allocation3 + $0x318] sm:$0xff]
      %v1143 = vld [vmem:[#allocation3 + $0x320] sm:$0xff]
      %v1144 = vld [vmem:[#allocation3 + $0x328] sm:$0xff]
      %v1145 = vld [vmem:[#allocation3 + $0x330] sm:$0xff]
      %v1146 = vld [vmem:[#allocation3 + $0x338] sm:$0xff]
      %v1147 = vld [vmem:[#allocation3 + $0x340] sm:$0xff]
      %v1148 = vld [vmem:[#allocation3 + $0x348] sm:$0xff]
      %v1149 = vld [vmem:[#allocation3 + $0x350] sm:$0xff]
      %v1150 = vld [vmem:[#allocation3 + $0x358] sm:$0xff]
      %v1151 = vld [vmem:[#allocation3 + $0x360] sm:$0xff]
      %v1152 = vld [vmem:[#allocation3 + $0x368] sm:$0xff]
      %v1153 = vld [vmem:[#allocation3 + $0x370] sm:$0xff]
      %v1154 = vld [vmem:[#allocation3 + $0x378] sm:$0xff]
      %v1155 = vld [vmem:[#allocation3 + $0x380] sm:$0xff]
      %v1156 = vld [vmem:[#allocation3 + $0x388] sm:$0xff]
      %v1157 = vld [vmem:[#allocation3 + $0x390] sm:$0xff]
      %v1158 = vld [vmem:[#allocation3 + $0x398] sm:$0xff]
      %v1159 = vld [vmem:[#allocation3 + $0x3a0] sm:$0xff]
      %v1160 = vld [vmem:[#allocation3 + $0x3a8] sm:$0xff]
      %v1161 = vld [vmem:[#allocation3 + $0x3b0] sm:$0xff]
      %v1162 = vld [vmem:[#allocation3 + $0x3b8] sm:$0xff]
      %v1163 = vld [vmem:[#allocation3 + $0x3c0] sm:$0xff]
      %v1164 = vld [vmem:[#allocation3 + $0x3c8] sm:$0xff]
      %v1165 = vld [vmem:[#allocation3 + $0x3d0] sm:$0xff]
      %v1166 = vld [vmem:[#allocation3 + $0x3d8] sm:$0xff]
      %v1167 = vld [vmem:[#allocation3 + $0x3e0] sm:$0xff]
      %v1168 = vld [vmem:[#allocation3 + $0x3e8] sm:$0xff]
      %v1169 = vld [vmem:[#allocation3 + $0x3f0] sm:$0xff]
      %v1170 = vld [vmem:[#allocation3 + $0x3f8] sm:$0xff]
      %v1171 = vld [vmem:[#allocation3 + $0x400] sm:$0xff]
      %v1172 = vld [vmem:[#allocation3 + $0x408] sm:$0xff]
      %v1173 = vld [vmem:[#allocation3 + $0x410] sm:$0xff]
      %v1174 = vld [vmem:[#allocation3 + $0x418] sm:$0xff]
      %v1175 = vld [vmem:[#allocation3 + $0x420] sm:$0xff]
      %v1176 = vld [vmem:[#allocation3 + $0x428] sm:$0xff]
      %v1177 = vld [vmem:[#allocation3 + $0x430] sm:$0xff]
      %v1178 = vld [vmem:[#allocation3 + $0x438] sm:$0xff]
      %v1179 = vld [vmem:[#allocation3 + $0x440] sm:$0xff]
      %v1180 = vld [vmem:[#allocation3 + $0x448] sm:$0xff]
      %v1181 = vld [vmem:[#allocation3 + $0x450] sm:$0xff]
      %v1182 = vld [vmem:[#allocation3 + $0x458] sm:$0xff]
      %v1183 = vld [vmem:[#allocation3 + $0x460] sm:$0xff]
      %v1184 = vld [vmem:[#allocation3 + $0x468] sm:$0xff]
      %v1185 = vld [vmem:[#allocation3 + $0x470] sm:$0xff]
      %v1186 = vld [vmem:[#allocation3 + $0x478] sm:$0xff]
      %v1187 = vld [vmem:[%s3] sm:$0xf]
      %v1188 = vld [vmem:[%s3 + $0x4] sm:$0xf]
      %v1189 = vld [vmem:[%s3 + $0x8] sm:$0xf]
      %v1190 = vld [vmem:[%s3 + $0xc] sm:$0xf]
      %v1191 = vld [vmem:[%s3 + $0x10] sm:$0xf]
      %v1192 = vld [vmem:[%s3 + $0x14] sm:$0xf]
      %v1193 = vld [vmem:[%s3 + $0x18] sm:$0xf]
      %v1194 = vld [vmem:[%s3 + $0x1c] sm:$0xf]
      %v1195 = vld [vmem:[%s3 + $0x20] sm:$0xf]
      %v1196 = vld [vmem:[%s3 + $0x24] sm:$0xf]
      %v1197 = vld [vmem:[%s3 + $0x28] sm:$0xf]
      %v1198 = vld [vmem:[%s3 + $0x2c] sm:$0xf]
      %v1199 = vld [vmem:[%s3 + $0x30] sm:$0xf]
      %v1200 = vld [vmem:[%s3 + $0x34] sm:$0xf]
      %v1201 = vld [vmem:[%s3 + $0x38] sm:$0xf]
      %v1202 = vld [vmem:[%s3 + $0x3c] sm:$0xf]
      %v1203 = vld [vmem:[%s3 + $0x40] sm:$0xf]
      %v1204 = vld [vmem:[%s3 + $0x44] sm:$0xf]
      %v1205 = vld [vmem:[%s3 + $0x48] sm:$0xf]
      %v1206 = vld [vmem:[%s3 + $0x4c] sm:$0xf]
      %v1207 = vld [vmem:[%s3 + $0x50] sm:$0xf]
      %v1208 = vld [vmem:[%s3 + $0x54] sm:$0xf]
      %v1209 = vld [vmem:[%s3 + $0x58] sm:$0xf]
      %v1210 = vld [vmem:[%s3 + $0x5c] sm:$0xf]
      %v1211 = vld [vmem:[%s3 + $0x60] sm:$0xf]
      %v1212 = vld [vmem:[%s3 + $0x64] sm:$0xf]
      %v1213 = vld [vmem:[%s3 + $0x68] sm:$0xf]
      %v1214 = vld [vmem:[%s3 + $0x6c] sm:$0xf]
      %v1215 = vld [vmem:[%s3 + $0x70] sm:$0xf]
      %v1216 = vld [vmem:[%s3 + $0x74] sm:$0xf]
      %v1217 = vld [vmem:[%s3 + $0x78] sm:$0xf]
      %v1218 = vld [vmem:[%s3 + $0x7c] sm:$0xf]
      %v1219 = vld [vmem:[%s3 + $0x80] sm:$0xf]
      %v1220 = vld [vmem:[%s3 + $0x84] sm:$0xf]
      %v1221 = vld [vmem:[%s3 + $0x88] sm:$0xf]
      %v1222 = vld [vmem:[%s3 + $0x8c] sm:$0xf]
      %v1223 = vld [vmem:[%s3 + $0x90] sm:$0xf]
      %v1224 = vld [vmem:[%s3 + $0x94] sm:$0xf]
      %v1225 = vld [vmem:[%s3 + $0x98] sm:$0xf]
      %v1226 = vld [vmem:[%s3 + $0x9c] sm:$0xf]
      %v1227 = vld [vmem:[%s3 + $0xa0] sm:$0xf]
      %v1228 = vld [vmem:[%s3 + $0xa4] sm:$0xf]
      %v1229 = vld [vmem:[%s3 + $0xa8] sm:$0xf]
      %v1230 = vld [vmem:[%s3 + $0xac] sm:$0xf]
      %v1231 = vld [vmem:[%s3 + $0xb0] sm:$0xf]
      %v1232 = vld [vmem:[%s3 + $0xb4] sm:$0xf]
      %v1233 = vld [vmem:[%s3 + $0xb8] sm:$0xf]
      %v1234 = vld [vmem:[%s3 + $0xbc] sm:$0xf]
      %v1235 = vld [vmem:[%s3 + $0xc0] sm:$0xf]
      %v1236 = vld [vmem:[%s3 + $0xc4] sm:$0xf]
      %v1237 = vld [vmem:[%s3 + $0xc8] sm:$0xf]
      %v1238 = vld [vmem:[%s3 + $0xcc] sm:$0xf]
      %v1239 = vld [vmem:[%s3 + $0xd0] sm:$0xf]
      %v1240 = vld [vmem:[%s3 + $0xd4] sm:$0xf]
      %v1241 = vld [vmem:[%s3 + $0xd8] sm:$0xf]
      %v1242 = vld [vmem:[%s3 + $0xdc] sm:$0xf]
      %v1243 = vld [vmem:[%s3 + $0xe0] sm:$0xf]
      %v1244 = vld [vmem:[%s3 + $0xe4] sm:$0xf]
      %v1245 = vld [vmem:[%s3 + $0xe8] sm:$0xf]
      %v1246 = vld [vmem:[%s3 + $0xec] sm:$0xf]
      %v1247 = vld [vmem:[%s3 + $0xf0] sm:$0xf]
      %v1248 = vld [vmem:[%s3 + $0xf4] sm:$0xf]
      %v1249 = vld [vmem:[%s3 + $0xf8] sm:$0xf]
      %v1250 = vld [vmem:[%s3 + $0xfc] sm:$0xf]
      %v1251 = vld [vmem:[%s3 + $0x100] sm:$0xf]
      %v1252 = vld [vmem:[%s3 + $0x104] sm:$0xf]
      %v1253 = vld [vmem:[%s3 + $0x108] sm:$0xf]
      %v1254 = vld [vmem:[%s3 + $0x10c] sm:$0xf]
      %v1255 = vld [vmem:[%s3 + $0x110] sm:$0xf]
      %v1256 = vld [vmem:[%s3 + $0x114] sm:$0xf]
      %v1257 = vld [vmem:[%s3 + $0x118] sm:$0xf]
      %v1258 = vld [vmem:[%s3 + $0x11c] sm:$0xf]
      %v1259 = vld [vmem:[%s3 + $0x120] sm:$0xf]
      %v1260 = vld [vmem:[%s3 + $0x124] sm:$0xf]
      %v1261 = vld [vmem:[%s3 + $0x128] sm:$0xf]
      %v1262 = vld [vmem:[%s3 + $0x12c] sm:$0xf]
      %v1263 = vld [vmem:[%s3 + $0x130] sm:$0xf]
      %v1264 = vld [vmem:[%s3 + $0x134] sm:$0xf]
      %v1265 = vld [vmem:[%s3 + $0x138] sm:$0xf]
      %v1266 = vld [vmem:[%s3 + $0x13c] sm:$0xf]
      %v1267 = vld [vmem:[%s3 + $0x140] sm:$0xf]
      %v1268 = vld [vmem:[%s3 + $0x144] sm:$0xf]
      %v1269 = vld [vmem:[%s3 + $0x148] sm:$0xf]
      %v1270 = vld [vmem:[%s3 + $0x14c] sm:$0xf]
      %v1271 = vld [vmem:[%s3 + $0x150] sm:$0xf]
      %v1272 = vld [vmem:[%s3 + $0x154] sm:$0xf]
      %v1273 = vld [vmem:[%s3 + $0x158] sm:$0xf]
      %v1274 = vld [vmem:[%s3 + $0x15c] sm:$0xf]
      %v1275 = vld [vmem:[%s3 + $0x160] sm:$0xf]
      %v1276 = vld [vmem:[%s3 + $0x164] sm:$0xf]
      %v1277 = vld [vmem:[%s3 + $0x168] sm:$0xf]
      %v1278 = vld [vmem:[%s3 + $0x16c] sm:$0xf]
      %v1279 = vld [vmem:[%s3 + $0x170] sm:$0xf]
      %v1280 = vld [vmem:[%s3 + $0x174] sm:$0xf]
      %v1281 = vld [vmem:[%s3 + $0x178] sm:$0xf]
      %v1282 = vld [vmem:[%s3 + $0x17c] sm:$0xf]
      %v1283 = vld [vmem:[%s3 + $0x180] sm:$0xf]
      %v1284 = vld [vmem:[%s3 + $0x184] sm:$0xf]
      %v1285 = vld [vmem:[%s3 + $0x188] sm:$0xf]
      %v1286 = vld [vmem:[%s3 + $0x18c] sm:$0xf]
      %v1287 = vld [vmem:[%s3 + $0x190] sm:$0xf]
      %v1288 = vld [vmem:[%s3 + $0x194] sm:$0xf]
      %v1289 = vld [vmem:[%s3 + $0x198] sm:$0xf]
      %v1290 = vld [vmem:[%s3 + $0x19c] sm:$0xf]
      %v1291 = vld [vmem:[%s3 + $0x1a0] sm:$0xf]
      %v1292 = vld [vmem:[%s3 + $0x1a4] sm:$0xf]
      %v1293 = vld [vmem:[%s3 + $0x1a8] sm:$0xf]
      %v1294 = vld [vmem:[%s3 + $0x1ac] sm:$0xf]
      %v1295 = vld [vmem:[%s3 + $0x1b0] sm:$0xf]
      %v1296 = vld [vmem:[%s3 + $0x1b4] sm:$0xf]
      %v1297 = vld [vmem:[%s3 + $0x1b8] sm:$0xf]
      %v1298 = vld [vmem:[%s3 + $0x1bc] sm:$0xf]
      %v1299 = vld [vmem:[%s3 + $0x1c0] sm:$0xf]
      %v1300 = vld [vmem:[%s3 + $0x1c4] sm:$0xf]
      %v1301 = vld [vmem:[%s3 + $0x1c8] sm:$0xf]
      %v1302 = vld [vmem:[%s3 + $0x1cc] sm:$0xf]
      %v1303 = vld [vmem:[%s3 + $0x1d0] sm:$0xf]
      %v1304 = vld [vmem:[%s3 + $0x1d4] sm:$0xf]
      %v1305 = vld [vmem:[%s3 + $0x1d8] sm:$0xf]
      %v1306 = vld [vmem:[%s3 + $0x1dc] sm:$0xf]
      %v1307 = vld [vmem:[%s3 + $0x1e0] sm:$0xf]
      %v1308 = vld [vmem:[%s3 + $0x1e4] sm:$0xf]
      %v1309 = vld [vmem:[%s3 + $0x1e8] sm:$0xf]
      %v1310 = vld [vmem:[%s3 + $0x1ec] sm:$0xf]
      %v1311 = vld [vmem:[%s3 + $0x1f0] sm:$0xf]
      %v1312 = vld [vmem:[%s3 + $0x1f4] sm:$0xf]
      %v1313 = vld [vmem:[%s3 + $0x1f8] sm:$0xf]
      %v1314 = vld [vmem:[%s3 + $0x1fc] sm:$0xf]
      %v1315 = vld [vmem:[%s3 + $0x200] sm:$0xf]
      %v1316 = vld [vmem:[%s3 + $0x204] sm:$0xf]
      %v1317 = vld [vmem:[%s3 + $0x208] sm:$0xf]
      %v1318 = vld [vmem:[%s3 + $0x20c] sm:$0xf]
      %v1319 = vld [vmem:[%s3 + $0x210] sm:$0xf]
      %v1320 = vld [vmem:[%s3 + $0x214] sm:$0xf]
      %v1321 = vld [vmem:[%s3 + $0x218] sm:$0xf]
      %v1322 = vld [vmem:[%s3 + $0x21c] sm:$0xf]
      %v1323 = vld [vmem:[%s3 + $0x220] sm:$0xf]
      %v1324 = vld [vmem:[%s3 + $0x224] sm:$0xf]
      %v1325 = vld [vmem:[%s3 + $0x228] sm:$0xf]
      %v1326 = vld [vmem:[%s3 + $0x22c] sm:$0xf]
      %v1327 = vld [vmem:[%s3 + $0x230] sm:$0xf]
      %v1328 = vld [vmem:[%s3 + $0x234] sm:$0xf]
      %v1329 = vld [vmem:[%s3 + $0x238] sm:$0xf]
      %v1330 = vld [vmem:[%s3 + $0x23c] sm:$0xf]
      %v1331 = vld [vmem:[%s4] sm:$0x1]
      %v1333 = vlaneseq
      %v1334 = vshrl.u32 %v1333, 7
      %v1335 = vsub.s32 0, %v1334
      %v1336 = vrot.slane %v1331, %v1335
      %v1482 = vunpack.c.l.b16 %v1187
      %v1483 = vunpack.c.l.b16 %v1188
      %v1484 = vunpack.c.l.b16 %v1189
      %v1485 = vunpack.c.l.b16 %v1190
      %v1486 = vunpack.c.l.b16 %v1191
      %v1487 = vunpack.c.l.b16 %v1192
      %v1488 = vunpack.c.l.b16 %v1193
      %v1489 = vunpack.c.l.b16 %v1194
      %v1490 = vunpack.c.l.b16 %v1195
      %v1491 = vunpack.c.l.b16 %v1196
      %v1492 = vunpack.c.l.b16 %v1197
      %v1493 = vunpack.c.l.b16 %v1198
      %v1494 = vunpack.c.l.b16 %v1199
      %v1495 = vunpack.c.l.b16 %v1200
      %v1496 = vunpack.c.l.b16 %v1201
      %v1497 = vunpack.c.l.b16 %v1202
      %v1498 = vunpack.c.l.b16 %v1203
      %v1499 = vunpack.c.l.b16 %v1204
      %v1500 = vunpack.c.l.b16 %v1205
      %v1501 = vunpack.c.l.b16 %v1206
      %v1502 = vunpack.c.l.b16 %v1207
      %v1503 = vunpack.c.l.b16 %v1208
      %v1504 = vunpack.c.l.b16 %v1209
      %v1505 = vunpack.c.l.b16 %v1210
      %v1506 = vunpack.c.l.b16 %v1211
      %v1507 = vunpack.c.l.b16 %v1212
      %v1508 = vunpack.c.l.b16 %v1213
      %v1509 = vunpack.c.l.b16 %v1214
      %v1510 = vunpack.c.l.b16 %v1215
      %v1511 = vunpack.c.l.b16 %v1216
      %v1512 = vunpack.c.l.b16 %v1217
      %v1513 = vunpack.c.l.b16 %v1218
      %v1514 = vunpack.c.l.b16 %v1219
      %v1515 = vunpack.c.l.b16 %v1220
      %v1516 = vunpack.c.l.b16 %v1221
      %v1517 = vunpack.c.l.b16 %v1222
      %v1518 = vunpack.c.l.b16 %v1223
      %v1519 = vunpack.c.l.b16 %v1224
      %v1520 = vunpack.c.l.b16 %v1225
      %v1521 = vunpack.c.l.b16 %v1226
      %v1522 = vunpack.c.l.b16 %v1227
      %v1523 = vunpack.c.l.b16 %v1228
      %v1524 = vunpack.c.l.b16 %v1229
      %v1525 = vunpack.c.l.b16 %v1230
      %v1526 = vunpack.c.l.b16 %v1231
      %v1527 = vunpack.c.l.b16 %v1232
      %v1528 = vunpack.c.l.b16 %v1233
      %v1529 = vunpack.c.l.b16 %v1234
      %v1530 = vunpack.c.l.b16 %v1235
      %v1531 = vunpack.c.l.b16 %v1236
      %v1532 = vunpack.c.l.b16 %v1237
      %v1533 = vunpack.c.l.b16 %v1238
      %v1534 = vunpack.c.l.b16 %v1239
      %v1535 = vunpack.c.l.b16 %v1240
      %v1536 = vunpack.c.l.b16 %v1241
      %v1537 = vunpack.c.l.b16 %v1242
      %v1538 = vunpack.c.l.b16 %v1243
      %v1539 = vunpack.c.l.b16 %v1244
      %v1540 = vunpack.c.l.b16 %v1245
      %v1541 = vunpack.c.l.b16 %v1246
      %v1542 = vunpack.c.l.b16 %v1247
      %v1543 = vunpack.c.l.b16 %v1248
      %v1544 = vunpack.c.l.b16 %v1249
      %v1545 = vunpack.c.l.b16 %v1250
      %v1546 = vunpack.c.l.b16 %v1251
      %v1547 = vunpack.c.l.b16 %v1252
      %v1548 = vunpack.c.l.b16 %v1253
      %v1549 = vunpack.c.l.b16 %v1254
      %v1550 = vunpack.c.l.b16 %v1255
      %v1551 = vunpack.c.l.b16 %v1256
      %v1552 = vunpack.c.l.b16 %v1257
      %v1553 = vunpack.c.l.b16 %v1258
      %v1554 = vunpack.c.l.b16 %v1259
      %v1555 = vunpack.c.l.b16 %v1260
      %v1556 = vunpack.c.l.b16 %v1261
      %v1557 = vunpack.c.l.b16 %v1262
      %v1558 = vunpack.c.l.b16 %v1263
      %v1559 = vunpack.c.l.b16 %v1264
      %v1560 = vunpack.c.l.b16 %v1265
      %v1561 = vunpack.c.l.b16 %v1266
      %v1562 = vunpack.c.l.b16 %v1267
      %v1563 = vunpack.c.l.b16 %v1268
      %v1564 = vunpack.c.l.b16 %v1269
      %v1565 = vunpack.c.l.b16 %v1270
      %v1566 = vunpack.c.l.b16 %v1271
      %v1567 = vunpack.c.l.b16 %v1272
      %v1568 = vunpack.c.l.b16 %v1273
      %v1569 = vunpack.c.l.b16 %v1274
      %v1570 = vunpack.c.l.b16 %v1275
      %v1571 = vunpack.c.l.b16 %v1276
      %v1572 = vunpack.c.l.b16 %v1277
      %v1573 = vunpack.c.l.b16 %v1278
      %v1574 = vunpack.c.l.b16 %v1279
      %v1575 = vunpack.c.l.b16 %v1280
      %v1576 = vunpack.c.l.b16 %v1281
      %v1577 = vunpack.c.l.b16 %v1282
      %v1578 = vunpack.c.l.b16 %v1283
      %v1579 = vunpack.c.l.b16 %v1284
      %v1580 = vunpack.c.l.b16 %v1285
      %v1581 = vunpack.c.l.b16 %v1286
      %v1582 = vunpack.c.l.b16 %v1287
      %v1583 = vunpack.c.l.b16 %v1288
      %v1584 = vunpack.c.l.b16 %v1289
      %v1585 = vunpack.c.l.b16 %v1290
      %v1586 = vunpack.c.l.b16 %v1291
      %v1587 = vunpack.c.l.b16 %v1292
      %v1588 = vunpack.c.l.b16 %v1293
      %v1589 = vunpack.c.l.b16 %v1294
      %v1590 = vunpack.c.l.b16 %v1295
      %v1591 = vunpack.c.l.b16 %v1296
      %v1592 = vunpack.c.l.b16 %v1297
      %v1593 = vunpack.c.l.b16 %v1298
      %v1594 = vunpack.c.l.b16 %v1299
      %v1595 = vunpack.c.l.b16 %v1300
      %v1596 = vunpack.c.l.b16 %v1301
      %v1597 = vunpack.c.l.b16 %v1302
      %v1598 = vunpack.c.l.b16 %v1303
      %v1599 = vunpack.c.l.b16 %v1304
      %v1600 = vunpack.c.l.b16 %v1305
      %v1601 = vunpack.c.l.b16 %v1306
      %v1602 = vunpack.c.l.b16 %v1307
      %v1603 = vunpack.c.l.b16 %v1308
      %v1604 = vunpack.c.l.b16 %v1309
      %v1605 = vunpack.c.l.b16 %v1310
      %v1606 = vunpack.c.l.b16 %v1311
      %v1607 = vunpack.c.l.b16 %v1312
      %v1608 = vunpack.c.l.b16 %v1313
      %v1609 = vunpack.c.l.b16 %v1314
      %v1610 = vunpack.c.l.b16 %v1315
      %v1611 = vunpack.c.l.b16 %v1316
      %v1612 = vunpack.c.l.b16 %v1317
      %v1613 = vunpack.c.l.b16 %v1318
      %v1614 = vunpack.c.l.b16 %v1319
      %v1615 = vunpack.c.l.b16 %v1320
      %v1616 = vunpack.c.l.b16 %v1321
      %v1617 = vunpack.c.l.b16 %v1322
      %v1618 = vunpack.c.l.b16 %v1323
      %v1619 = vunpack.c.l.b16 %v1324
      %v1620 = vunpack.c.l.b16 %v1325
      %v1621 = vunpack.c.l.b16 %v1326
      %v1622 = vunpack.c.l.b16 %v1327
      %v1623 = vunpack.c.l.b16 %v1328
      %v1624 = vunpack.c.l.b16 %v1329
      %v1625 = vunpack.c.l.b16 %v1330
      %v1626 = vpack.c.b16 %v1483, %v1482
      %v1627 = vpack.c.b16 %v1485, %v1484
      %v1628 = vpack.c.b16 %v1487, %v1486
      %v1629 = vpack.c.b16 %v1489, %v1488
      %v1630 = vpack.c.b16 %v1491, %v1490
      %v1631 = vpack.c.b16 %v1493, %v1492
      %v1632 = vpack.c.b16 %v1495, %v1494
      %v1633 = vpack.c.b16 %v1497, %v1496
      %v1634 = vpack.c.b16 %v1499, %v1498
      %v1635 = vpack.c.b16 %v1501, %v1500
      %v1636 = vpack.c.b16 %v1503, %v1502
      %v1637 = vpack.c.b16 %v1505, %v1504
      %v1638 = vpack.c.b16 %v1507, %v1506
      %v1639 = vpack.c.b16 %v1509, %v1508
      %v1640 = vpack.c.b16 %v1511, %v1510
      %v1641 = vpack.c.b16 %v1513, %v1512
      %v1642 = vpack.c.b16 %v1515, %v1514
      %v1643 = vpack.c.b16 %v1517, %v1516
      %v1644 = vpack.c.b16 %v1519, %v1518
      %v1645 = vpack.c.b16 %v1521, %v1520
      %v1646 = vpack.c.b16 %v1523, %v1522
      %v1647 = vpack.c.b16 %v1525, %v1524
      %v1648 = vpack.c.b16 %v1527, %v1526
      %v1649 = vpack.c.b16 %v1529, %v1528
      %v1650 = vpack.c.b16 %v1531, %v1530
      %v1651 = vpack.c.b16 %v1533, %v1532
      %v1652 = vpack.c.b16 %v1535, %v1534
      %v1653 = vpack.c.b16 %v1537, %v1536
      %v1654 = vpack.c.b16 %v1539, %v1538
      %v1655 = vpack.c.b16 %v1541, %v1540
      %v1656 = vpack.c.b16 %v1543, %v1542
      %v1657 = vpack.c.b16 %v1545, %v1544
      %v1658 = vpack.c.b16 %v1547, %v1546
      %v1659 = vpack.c.b16 %v1549, %v1548
      %v1660 = vpack.c.b16 %v1551, %v1550
      %v1661 = vpack.c.b16 %v1553, %v1552
      %v1662 = vpack.c.b16 %v1555, %v1554
      %v1663 = vpack.c.b16 %v1557, %v1556
      %v1664 = vpack.c.b16 %v1559, %v1558
      %v1665 = vpack.c.b16 %v1561, %v1560
      %v1666 = vpack.c.b16 %v1563, %v1562
      %v1667 = vpack.c.b16 %v1565, %v1564
      %v1668 = vpack.c.b16 %v1567, %v1566
      %v1669 = vpack.c.b16 %v1569, %v1568
      %v1670 = vpack.c.b16 %v1571, %v1570
      %v1671 = vpack.c.b16 %v1573, %v1572
      %v1672 = vpack.c.b16 %v1575, %v1574
      %v1673 = vpack.c.b16 %v1577, %v1576
      %v1674 = vpack.c.b16 %v1579, %v1578
      %v1675 = vpack.c.b16 %v1581, %v1580
      %v1676 = vpack.c.b16 %v1583, %v1582
      %v1677 = vpack.c.b16 %v1585, %v1584
      %v1678 = vpack.c.b16 %v1587, %v1586
      %v1679 = vpack.c.b16 %v1589, %v1588
      %v1680 = vpack.c.b16 %v1591, %v1590
      %v1681 = vpack.c.b16 %v1593, %v1592
      %v1682 = vpack.c.b16 %v1595, %v1594
      %v1683 = vpack.c.b16 %v1597, %v1596
      %v1684 = vpack.c.b16 %v1599, %v1598
      %v1685 = vpack.c.b16 %v1601, %v1600
      %v1686 = vpack.c.b16 %v1603, %v1602
      %v1687 = vpack.c.b16 %v1605, %v1604
      %v1688 = vpack.c.b16 %v1607, %v1606
      %v1689 = vpack.c.b16 %v1609, %v1608
      %v1690 = vpack.c.b16 %v1611, %v1610
      %v1691 = vpack.c.b16 %v1613, %v1612
      %v1692 = vpack.c.b16 %v1615, %v1614
      %v1693 = vpack.c.b16 %v1617, %v1616
      %v1694 = vpack.c.b16 %v1619, %v1618
      %v1695 = vpack.c.b16 %v1621, %v1620
      %v1696 = vpack.c.b16 %v1623, %v1622
      %v1697 = vpack.c.b16 %v1625, %v1624
      %1770 = vmatprep.subr.bf16.mxu0 0
      %1771 = vmatpush1.bf16.msra.mxu0 %v1626
      %1772 = vmatprep.subr.bf16.mxu0 0
      %1773 = vmatpush1.bf16.msra.mxu0 %v1627
      %1774 = vmatprep.subr.bf16.mxu0 0
      %1775 = vmatpush1.bf16.msra.mxu0 %v1628
      %1776 = vmatprep.subr.bf16.mxu0 0
      %1777 = vmatpush1.bf16.msra.mxu0 %v1629
      %1778 = vmatprep.subr.bf16.mxu0 0
      %1779 = vmatpush1.bf16.msra.mxu0 %v1630
      %1780 = vmatprep.subr.bf16.mxu0 0
      %1781 = vmatpush1.bf16.msra.mxu0 %v1631
      %1782 = vmatprep.subr.bf16.mxu0 0
      %1783 = vmatpush1.bf16.msra.mxu0 %v1632
      %1784 = vmatprep.subr.bf16.mxu0 0
      %1785 = vmatpush1.bf16.msra.mxu0 %v1633
      %1786 = vmatprep.subr.bf16.mxu0 0
      %1787 = vmatpush1.bf16.msra.mxu0 %v1634
      %1788 = vmatprep.subr.bf16.mxu0 0
      %1789 = vmatpush1.bf16.msra.mxu0 %v1635
      %1790 = vmatprep.subr.bf16.mxu0 0
      %1791 = vmatpush1.bf16.msra.mxu0 %v1636
      %1792 = vmatprep.subr.bf16.mxu0 0
      %1793 = vmatpush1.bf16.msra.mxu0 %v1637
      %1794 = vmatprep.subr.bf16.mxu0 0
      %1795 = vmatpush1.bf16.msra.mxu0 %v1638
      %1796 = vmatprep.subr.bf16.mxu0 0
      %1797 = vmatpush1.bf16.msra.mxu0 %v1639
      %1798 = vmatprep.subr.bf16.mxu0 0
      %1799 = vmatpush1.bf16.msra.mxu0 %v1640
      %1800 = vmatprep.subr.bf16.mxu0 0
      %1801 = vmatpush1.bf16.msra.mxu0 %v1641
      %1802 = vmatprep.mubr.bf16.mxu0 %v1044
      %1803 = vmatmul.mubr.bf16.gmra.mrb[0].mxu0 %v1043
      %v1804 = vpop.f32.mrb[0].mxu0
      %v1805 = vadd.f32 %v1336, %v1804
      %v1806 = vpop.f32.mrb[0].mxu0
      %v1807 = vpop.f32.mrb[0].mxu0
      %v1808 = vadd.f32 %v1336, %v1807
      %v1809 = vpop.f32.mrb[0].mxu0
      %1810 = vmatprep.mubr.bf16.mxu0 %v1053
      %1811 = vmatmul.mubr.bf16.gmra.mrb[0].mxu0 %v1052
      %v1812 = vpop.f32.mrb[0].mxu0
      %v1813 = vadd.f32 %v1336, %v1812
      %v1814 = vpop.f32.mrb[0].mxu0
      %v1815 = vpop.f32.mrb[0].mxu0
      %v1816 = vadd.f32 %v1336, %v1815
      %v1817 = vpop.f32.mrb[0].mxu0
      %1818 = vmatprep.mubr.bf16.mxu0 %v1062
      %1819 = vmatmul.mubr.bf16.gmra.mrb[0].mxu0 %v1061
      %v1820 = vpop.f32.mrb[0].mxu0
      %v1821 = vadd.f32 %v1336, %v1820
      %v1822 = vpop.f32.mrb[0].mxu0
      %v1823 = vpop.f32.mrb[0].mxu0
      %v1824 = vadd.f32 %v1336, %v1823
      %v1825 = vpop.f32.mrb[0].mxu0
      %1826 = vmatprep.mubr.bf16.mxu0 %v1071
      %1827 = vmatmul.mubr.bf16.gmra.mrb[0].mxu0 %v1070
      %v1828 = vpop.f32.mrb[0].mxu0
      %v1829 = vadd.f32 %v1336, %v1828
      %v1830 = vpop.f32.mrb[0].mxu0
      %v1831 = vpop.f32.mrb[0].mxu0
      %v1832 = vadd.f32 %v1336, %v1831
      %v1833 = vpop.f32.mrb[0].mxu0
      %1834 = vmatprep.mubr.bf16.mxu0 %v1080
      %1835 = vmatmul.mubr.bf16.gmra.mrb[0].mxu0 %v1079
      %v1836 = vpop.f32.mrb[0].mxu0
      %v1837 = vadd.f32 %v1336, %v1836
      %v1838 = vpop.f32.mrb[0].mxu0
      %v1839 = vpop.f32.mrb[0].mxu0
      %v1840 = vadd.f32 %v1336, %v1839
      %v1841 = vpop.f32.mrb[0].mxu0
      %1842 = vmatprep.mubr.bf16.mxu0 %v1089
      %1843 = vmatmul.mubr.bf16.gmra.mrb[0].mxu0 %v1088
      %v1844 = vpop.f32.mrb[0].mxu0
      %v1845 = vadd.f32 %v1336, %v1844
      %v1846 = vpop.f32.mrb[0].mxu0
      %v1847 = vpop.f32.mrb[0].mxu0
      %v1848 = vadd.f32 %v1336, %v1847
      %v1849 = vpop.f32.mrb[0].mxu0
      %1850 = vmatprep.mubr.bf16.mxu0 %v1098
      %1851 = vmatmul.mubr.bf16.gmra.mrb[0].mxu0 %v1097
      %v1852 = vpop.f32.mrb[0].mxu0
      %v1853 = vadd.f32 %v1336, %v1852
      %v1854 = vpop.f32.mrb[0].mxu0
      %v1855 = vpop.f32.mrb[0].mxu0
      %v1856 = vadd.f32 %v1336, %v1855
      %v1857 = vpop.f32.mrb[0].mxu0
      %1858 = vmatprep.mubr.bf16.mxu0 %v1107
      %1859 = vmatmul.mubr.bf16.gmra.mrb[0].mxu0 %v1106
      %v1860 = vpop.f32.mrb[0].mxu0
      %v1861 = vadd.f32 %v1336, %v1860
      %v1862 = vpop.f32.mrb[0].mxu0
      %v1863 = vpop.f32.mrb[0].mxu0
      %v1864 = vadd.f32 %v1336, %v1863
      %v1865 = vpop.f32.mrb[0].mxu0
      %1866 = vmatprep.mubr.bf16.mxu0 %v1116
      %1867 = vmatmul.mubr.bf16.gmra.mrb[0].mxu0 %v1115
      %v1868 = vpop.f32.mrb[0].mxu0
      %v1869 = vadd.f32 %v1336, %v1868
      %v1870 = vpop.f32.mrb[0].mxu0
      %v1871 = vpop.f32.mrb[0].mxu0
      %v1872 = vadd.f32 %v1336, %v1871
      %v1873 = vpop.f32.mrb[0].mxu0
      %1874 = vmatprep.mubr.bf16.mxu0 %v1125
      %1875 = vmatmul.mubr.bf16.gmra.mrb[0].mxu0 %v1124
      %v1876 = vpop.f32.mrb[0].mxu0
      %v1877 = vadd.f32 %v1336, %v1876
      %v1878 = vpop.f32.mrb[0].mxu0
      %v1879 = vpop.f32.mrb[0].mxu0
      %v1880 = vadd.f32 %v1336, %v1879
      %v1881 = vpop.f32.mrb[0].mxu0
      %1882 = vmatprep.mubr.bf16.mxu0 %v1134
      %1883 = vmatmul.mubr.bf16.gmra.mrb[0].mxu0 %v1133
      %v1884 = vpop.f32.mrb[0].mxu0
      %v1885 = vadd.f32 %v1336, %v1884
      %v1886 = vpop.f32.mrb[0].mxu0
      %v1887 = vpop.f32.mrb[0].mxu0
      %v1888 = vadd.f32 %v1336, %v1887
      %v1889 = vpop.f32.mrb[0].mxu0
      %1890 = vmatprep.mubr.bf16.mxu0 %v1143
      %1891 = vmatmul.mubr.bf16.gmra.mrb[0].mxu0 %v1142
      %v1892 = vpop.f32.mrb[0].mxu0
      %v1893 = vadd.f32 %v1336, %v1892
      %v1894 = vpop.f32.mrb[0].mxu0
      %v1895 = vpop.f32.mrb[0].mxu0
      %v1896 = vadd.f32 %v1336, %v1895
      %v1897 = vpop.f32.mrb[0].mxu0
      %1898 = vmatprep.mubr.bf16.mxu0 %v1152
      %1899 = vmatmul.mubr.bf16.gmra.mrb[0].mxu0 %v1151
      %v1900 = vpop.f32.mrb[0].mxu0
      %v1901 = vadd.f32 %v1336, %v1900
      %v1902 = vpop.f32.mrb[0].mxu0
      %v1903 = vpop.f32.mrb[0].mxu0
      %v1904 = vadd.f32 %v1336, %v1903
      %v1905 = vpop.f32.mrb[0].mxu0
      %1906 = vmatprep.mubr.bf16.mxu0 %v1161
      %1907 = vmatmul.mubr.bf16.gmra.mrb[0].mxu0 %v1160
      %v1908 = vpop.f32.mrb[0].mxu0
      %v1909 = vadd.f32 %v1336, %v1908
      %v1910 = vpop.f32.mrb[0].mxu0
      %v1911 = vpop.f32.mrb[0].mxu0
      %v1912 = vadd.f32 %v1336, %v1911
      %v1913 = vpop.f32.mrb[0].mxu0
      %1914 = vmatprep.mubr.bf16.mxu0 %v1170
      %1915 = vmatmul.mubr.bf16.gmra.mrb[0].mxu0 %v1169
      %v1916 = vpop.f32.mrb[0].mxu0
      %v1917 = vadd.f32 %v1336, %v1916
      %v1918 = vpop.f32.mrb[0].mxu0
      %v1919 = vpop.f32.mrb[0].mxu0
      %v1920 = vadd.f32 %v1336, %v1919
      %v1921 = vpop.f32.mrb[0].mxu0
      %1922 = vmatprep.mubr.bf16.mxu0 %v1179
      %1923 = vmatmul.mubr.bf16.gmra.mrb[0].mxu0 %v1178
      %v1924 = vpop.f32.mrb[0].mxu0
      %v1925 = vadd.f32 %v1336, %v1924
      %v1926 = vpop.f32.mrb[0].mxu0
      %v1927 = vpop.f32.mrb[0].mxu0
      %v1928 = vadd.f32 %v1336, %v1927
      %v1929 = vpop.f32.mrb[0].mxu0
      %1930 = vdwg.mxu0
      %1931 = vmatprep.subr.bf16.mxu0 0
      %1932 = vmatpush1.bf16.msra.mxu0 %v1642
      %1933 = vmatprep.subr.bf16.mxu0 0
      %1934 = vmatpush1.bf16.msra.mxu0 %v1643
      %1935 = vmatprep.subr.bf16.mxu0 0
      %1936 = vmatpush1.bf16.msra.mxu0 %v1644
      %1937 = vmatprep.subr.bf16.mxu0 0
      %1938 = vmatpush1.bf16.msra.mxu0 %v1645
      %1939 = vmatprep.subr.bf16.mxu0 0
      %1940 = vmatpush1.bf16.msra.mxu0 %v1646
      %1941 = vmatprep.subr.bf16.mxu0 0
      %1942 = vmatpush1.bf16.msra.mxu0 %v1647
      %1943 = vmatprep.subr.bf16.mxu0 0
      %1944 = vmatpush1.bf16.msra.mxu0 %v1648
      %1945 = vmatprep.subr.bf16.mxu0 0
      %1946 = vmatpush1.bf16.msra.mxu0 %v1649
      %1947 = vmatprep.subr.bf16.mxu0 0
      %1948 = vmatpush1.bf16.msra.mxu0 %v1650
      %1949 = vmatprep.subr.bf16.mxu0 0
      %1950 = vmatpush1.bf16.msra.mxu0 %v1651
      %1951 = vmatprep.subr.bf16.mxu0 0
      %1952 = vmatpush1.bf16.msra.mxu0 %v1652
      %1953 = vmatprep.subr.bf16.mxu0 0
      %1954 = vmatpush1.bf16.msra.mxu0 %v1653
      %1955 = vmatprep.subr.bf16.mxu0 0
      %1956 = vmatpush1.bf16.msra.mxu0 %v1654
      %1957 = vmatprep.subr.bf16.mxu0 0
      %1958 = vmatpush1.bf16.msra.mxu0 %v1655
      %1959 = vmatprep.subr.bf16.mxu0 0
      %1960 = vmatpush1.bf16.msra.mxu0 %v1656
      %1961 = vmatprep.subr.bf16.mxu0 0
      %1962 = vmatpush1.bf16.msra.mxu0 %v1657
      %1963 = vmatprep.mubr.bf16.mxu0 %v1046
      %1964 = vmatmul.mubr.bf16.gmra.mrb[0].mxu0 %v1045
      %v1965 = vpop.f32.mrb[0].mxu0
      %v1966 = vadd.f32 %v1805, %v1965
      %v1967 = vpop.f32.mrb[0].mxu0
      %v1968 = vpop.f32.mrb[0].mxu0
      %v1969 = vadd.f32 %v1808, %v1968
      %v1970 = vpop.f32.mrb[0].mxu0
      %1971 = vmatprep.mubr.bf16.mxu0 %v1055
      %1972 = vmatmul.mubr.bf16.gmra.mrb[0].mxu0 %v1054
      %v1973 = vpop.f32.mrb[0].mxu0
      %v1974 = vadd.f32 %v1813, %v1973
      %v1975 = vpop.f32.mrb[0].mxu0
      %v1976 = vpop.f32.mrb[0].mxu0
      %v1977 = vadd.f32 %v1816, %v1976
      %v1978 = vpop.f32.mrb[0].mxu0
      %1979 = vmatprep.mubr.bf16.mxu0 %v1064
      %1980 = vmatmul.mubr.bf16.gmra.mrb[0].mxu0 %v1063
      %v1981 = vpop.f32.mrb[0].mxu0
      %v1982 = vadd.f32 %v1821, %v1981
      %v1983 = vpop.f32.mrb[0].mxu0
      %v1984 = vpop.f32.mrb[0].mxu0
      %v1985 = vadd.f32 %v1824, %v1984
      %v1986 = vpop.f32.mrb[0].mxu0
      %1987 = vmatprep.mubr.bf16.mxu0 %v1073
      %1988 = vmatmul.mubr.bf16.gmra.mrb[0].mxu0 %v1072
      %v1989 = vpop.f32.mrb[0].mxu0
      %v1990 = vadd.f32 %v1829, %v1989
      %v1991 = vpop.f32.mrb[0].mxu0
      %v1992 = vpop.f32.mrb[0].mxu0
      %v1993 = vadd.f32 %v1832, %v1992
      %v1994 = vpop.f32.mrb[0].mxu0
      %1995 = vmatprep.mubr.bf16.mxu0 %v1082
      %1996 = vmatmul.mubr.bf16.gmra.mrb[0].mxu0 %v1081
      %v1997 = vpop.f32.mrb[0].mxu0
      %v1998 = vadd.f32 %v1837, %v1997
      %v1999 = vpop.f32.mrb[0].mxu0
      %v2000 = vpop.f32.mrb[0].mxu0
      %v2001 = vadd.f32 %v1840, %v2000
      %v2002 = vpop.f32.mrb[0].mxu0
      %2003 = vmatprep.mubr.bf16.mxu0 %v1091
      %2004 = vmatmul.mubr.bf16.gmra.mrb[0].mxu0 %v1090
      %v2005 = vpop.f32.mrb[0].mxu0
      %v2006 = vadd.f32 %v1845, %v2005
      %v2007 = vpop.f32.mrb[0].mxu0
      %v2008 = vpop.f32.mrb[0].mxu0
      %v2009 = vadd.f32 %v1848, %v2008
      %v2010 = vpop.f32.mrb[0].mxu0
      %2011 = vmatprep.mubr.bf16.mxu0 %v1100
      %2012 = vmatmul.mubr.bf16.gmra.mrb[0].mxu0 %v1099
      %v2013 = vpop.f32.mrb[0].mxu0
      %v2014 = vadd.f32 %v1853, %v2013
      %v2015 = vpop.f32.mrb[0].mxu0
      %v2016 = vpop.f32.mrb[0].mxu0
      %v2017 = vadd.f32 %v1856, %v2016
      %v2018 = vpop.f32.mrb[0].mxu0
      %2019 = vmatprep.mubr.bf16.mxu0 %v1109
      %2020 = vmatmul.mubr.bf16.gmra.mrb[0].mxu0 %v1108
      %v2021 = vpop.f32.mrb[0].mxu0
      %v2022 = vadd.f32 %v1861, %v2021
      %v2023 = vpop.f32.mrb[0].mxu0
      %v2024 = vpop.f32.mrb[0].mxu0
      %v2025 = vadd.f32 %v1864, %v2024
      %v2026 = vpop.f32.mrb[0].mxu0
      %2027 = vmatprep.mubr.bf16.mxu0 %v1118
      %2028 = vmatmul.mubr.bf16.gmra.mrb[0].mxu0 %v1117
      %v2029 = vpop.f32.mrb[0].mxu0
      %v2030 = vadd.f32 %v1869, %v2029
      %v2031 = vpop.f32.mrb[0].mxu0
      %v2032 = vpop.f32.mrb[0].mxu0
      %v2033 = vadd.f32 %v1872, %v2032
      %v2034 = vpop.f32.mrb[0].mxu0
      %2035 = vmatprep.mubr.bf16.mxu0 %v1127
      %2036 = vmatmul.mubr.bf16.gmra.mrb[0].mxu0 %v1126
      %v2037 = vpop.f32.mrb[0].mxu0
      %v2038 = vadd.f32 %v1877, %v2037
      %v2039 = vpop.f32.mrb[0].mxu0
      %v2040 = vpop.f32.mrb[0].mxu0
      %v2041 = vadd.f32 %v1880, %v2040
      %v2042 = vpop.f32.mrb[0].mxu0
      %2043 = vmatprep.mubr.bf16.mxu0 %v1136
      %2044 = vmatmul.mubr.bf16.gmra.mrb[0].mxu0 %v1135
      %v2045 = vpop.f32.mrb[0].mxu0
      %v2046 = vadd.f32 %v1885, %v2045
      %v2047 = vpop.f32.mrb[0].mxu0
      %v2048 = vpop.f32.mrb[0].mxu0
      %v2049 = vadd.f32 %v1888, %v2048
      %v2050 = vpop.f32.mrb[0].mxu0
      %2051 = vmatprep.mubr.bf16.mxu0 %v1145
      %2052 = vmatmul.mubr.bf16.gmra.mrb[0].mxu0 %v1144
      %v2053 = vpop.f32.mrb[0].mxu0
      %v2054 = vadd.f32 %v1893, %v2053
      %v2055 = vpop.f32.mrb[0].mxu0
      %v2056 = vpop.f32.mrb[0].mxu0
      %v2057 = vadd.f32 %v1896, %v2056
      %v2058 = vpop.f32.mrb[0].mxu0
      %2059 = vmatprep.mubr.bf16.mxu0 %v1154
      %2060 = vmatmul.mubr.bf16.gmra.mrb[0].mxu0 %v1153
      %v2061 = vpop.f32.mrb[0].mxu0
      %v2062 = vadd.f32 %v1901, %v2061
      %v2063 = vpop.f32.mrb[0].mxu0
      %v2064 = vpop.f32.mrb[0].mxu0
      %v2065 = vadd.f32 %v1904, %v2064
      %v2066 = vpop.f32.mrb[0].mxu0
      %2067 = vmatprep.mubr.bf16.mxu0 %v1163
      %2068 = vmatmul.mubr.bf16.gmra.mrb[0].mxu0 %v1162
      %v2069 = vpop.f32.mrb[0].mxu0
      %v2070 = vadd.f32 %v1909, %v2069
      %v2071 = vpop.f32.mrb[0].mxu0
      %v2072 = vpop.f32.mrb[0].mxu0
      %v2073 = vadd.f32 %v1912, %v2072
      %v2074 = vpop.f32.mrb[0].mxu0
      %2075 = vmatprep.mubr.bf16.mxu0 %v1172
      %2076 = vmatmul.mubr.bf16.gmra.mrb[0].mxu0 %v1171
      %v2077 = vpop.f32.mrb[0].mxu0
      %v2078 = vadd.f32 %v1917, %v2077
      %v2079 = vpop.f32.mrb[0].mxu0
      %v2080 = vpop.f32.mrb[0].mxu0
      %v2081 = vadd.f32 %v1920, %v2080
      %v2082 = vpop.f32.mrb[0].mxu0
      %2083 = vmatprep.mubr.bf16.mxu0 %v1181
      %2084 = vmatmul.mubr.bf16.gmra.mrb[0].mxu0 %v1180
      %v2085 = vpop.f32.mrb[0].mxu0
      %v2086 = vadd.f32 %v1925, %v2085
      %v2087 = vpop.f32.mrb[0].mxu0
      %v2088 = vpop.f32.mrb[0].mxu0
      %v2089 = vadd.f32 %v1928, %v2088
      %v2090 = vpop.f32.mrb[0].mxu0
      %2091 = vdwg.mxu0
      %2092 = vmatprep.subr.bf16.mxu0 0
      %2093 = vmatpush1.bf16.msra.mxu0 %v1658
      %2094 = vmatprep.subr.bf16.mxu0 0
      %2095 = vmatpush1.bf16.msra.mxu0 %v1659
      %2096 = vmatprep.subr.bf16.mxu0 0
      %2097 = vmatpush1.bf16.msra.mxu0 %v1660
      %2098 = vmatprep.subr.bf16.mxu0 0
      %2099 = vmatpush1.bf16.msra.mxu0 %v1661
      %2100 = vmatprep.subr.bf16.mxu0 0
      %2101 = vmatpush1.bf16.msra.mxu0 %v1662
      %2102 = vmatprep.subr.bf16.mxu0 0
      %2103 = vmatpush1.bf16.msra.mxu0 %v1663
      %2104 = vmatprep.subr.bf16.mxu0 0
      %2105 = vmatpush1.bf16.msra.mxu0 %v1664
      %2106 = vmatprep.subr.bf16.mxu0 0
      %2107 = vmatpush1.bf16.msra.mxu0 %v1665
      %2108 = vmatprep.subr.bf16.mxu0 0
      %2109 = vmatpush1.bf16.msra.mxu0 %v1666
      %2110 = vmatprep.subr.bf16.mxu0 0
      %2111 = vmatpush1.bf16.msra.mxu0 %v1667
      %2112 = vmatprep.subr.bf16.mxu0 0
      %2113 = vmatpush1.bf16.msra.mxu0 %v1668
      %2114 = vmatprep.subr.bf16.mxu0 0
      %2115 = vmatpush1.bf16.msra.mxu0 %v1669
      %2116 = vmatprep.subr.bf16.mxu0 0
      %2117 = vmatpush1.bf16.msra.mxu0 %v1670
      %2118 = vmatprep.subr.bf16.mxu0 0
      %2119 = vmatpush1.bf16.msra.mxu0 %v1671
      %2120 = vmatprep.subr.bf16.mxu0 0
      %2121 = vmatpush1.bf16.msra.mxu0 %v1672
      %2122 = vmatprep.subr.bf16.mxu0 0
      %2123 = vmatpush1.bf16.msra.mxu0 %v1673
      %2124 = vmatprep.mubr.bf16.mxu0 %v1048
      %2125 = vmatmul.mubr.bf16.gmra.mrb[0].mxu0 %v1047
      %v2126 = vpop.f32.mrb[0].mxu0
      %v2127 = vadd.f32 %v1966, %v2126
      %v2128 = vpop.f32.mrb[0].mxu0
      %v2129 = vpop.f32.mrb[0].mxu0
      %v2130 = vadd.f32 %v1969, %v2129
      %v2131 = vpop.f32.mrb[0].mxu0
      %2132 = vmatprep.mubr.bf16.mxu0 %v1057
      %2133 = vmatmul.mubr.bf16.gmra.mrb[0].mxu0 %v1056
      %v2134 = vpop.f32.mrb[0].mxu0
      %v2135 = vadd.f32 %v1974, %v2134
      %v2136 = vpop.f32.mrb[0].mxu0
      %v2137 = vpop.f32.mrb[0].mxu0
      %v2138 = vadd.f32 %v1977, %v2137
      %v2139 = vpop.f32.mrb[0].mxu0
      %2140 = vmatprep.mubr.bf16.mxu0 %v1066
      %2141 = vmatmul.mubr.bf16.gmra.mrb[0].mxu0 %v1065
      %v2142 = vpop.f32.mrb[0].mxu0
      %v2143 = vadd.f32 %v1982, %v2142
      %v2144 = vpop.f32.mrb[0].mxu0
      %v2145 = vpop.f32.mrb[0].mxu0
      %v2146 = vadd.f32 %v1985, %v2145
      %v2147 = vpop.f32.mrb[0].mxu0
      %2148 = vmatprep.mubr.bf16.mxu0 %v1075
      %2149 = vmatmul.mubr.bf16.gmra.mrb[0].mxu0 %v1074
      %v2150 = vpop.f32.mrb[0].mxu0
      %v2151 = vadd.f32 %v1990, %v2150
      %v2152 = vpop.f32.mrb[0].mxu0
      %v2153 = vpop.f32.mrb[0].mxu0
      %v2154 = vadd.f32 %v1993, %v2153
      %v2155 = vpop.f32.mrb[0].mxu0
      %2156 = vmatprep.mubr.bf16.mxu0 %v1084
      %2157 = vmatmul.mubr.bf16.gmra.mrb[0].mxu0 %v1083
      %v2158 = vpop.f32.mrb[0].mxu0
      %v2159 = vadd.f32 %v1998, %v2158
      %v2160 = vpop.f32.mrb[0].mxu0
      %v2161 = vpop.f32.mrb[0].mxu0
      %v2162 = vadd.f32 %v2001, %v2161
      %v2163 = vpop.f32.mrb[0].mxu0
      %2164 = vmatprep.mubr.bf16.mxu0 %v1093
      %2165 = vmatmul.mubr.bf16.gmra.mrb[0].mxu0 %v1092
      %v2166 = vpop.f32.mrb[0].mxu0
      %v2167 = vadd.f32 %v2006, %v2166
      %v2168 = vpop.f32.mrb[0].mxu0
      %v2169 = vpop.f32.mrb[0].mxu0
      %v2170 = vadd.f32 %v2009, %v2169
      %v2171 = vpop.f32.mrb[0].mxu0
      %2172 = vmatprep.mubr.bf16.mxu0 %v1102
      %2173 = vmatmul.mubr.bf16.gmra.mrb[0].mxu0 %v1101
      %v2174 = vpop.f32.mrb[0].mxu0
      %v2175 = vadd.f32 %v2014, %v2174
      %v2176 = vpop.f32.mrb[0].mxu0
      %v2177 = vpop.f32.mrb[0].mxu0
      %v2178 = vadd.f32 %v2017, %v2177
      %v2179 = vpop.f32.mrb[0].mxu0
      %2180 = vmatprep.mubr.bf16.mxu0 %v1111
      %2181 = vmatmul.mubr.bf16.gmra.mrb[0].mxu0 %v1110
      %v2182 = vpop.f32.mrb[0].mxu0
      %v2183 = vadd.f32 %v2022, %v2182
      %v2184 = vpop.f32.mrb[0].mxu0
      %v2185 = vpop.f32.mrb[0].mxu0
      %v2186 = vadd.f32 %v2025, %v2185
      %v2187 = vpop.f32.mrb[0].mxu0
      %2188 = vmatprep.mubr.bf16.mxu0 %v1120
      %2189 = vmatmul.mubr.bf16.gmra.mrb[0].mxu0 %v1119
      %v2190 = vpop.f32.mrb[0].mxu0
      %v2191 = vadd.f32 %v2030, %v2190
      %v2192 = vpop.f32.mrb[0].mxu0
      %v2193 = vpop.f32.mrb[0].mxu0
      %v2194 = vadd.f32 %v2033, %v2193
      %v2195 = vpop.f32.mrb[0].mxu0
      %2196 = vmatprep.mubr.bf16.mxu0 %v1129
      %2197 = vmatmul.mubr.bf16.gmra.mrb[0].mxu0 %v1128
      %v2198 = vpop.f32.mrb[0].mxu0
      %v2199 = vadd.f32 %v2038, %v2198
      %v2200 = vpop.f32.mrb[0].mxu0
      %v2201 = vpop.f32.mrb[0].mxu0
      %v2202 = vadd.f32 %v2041, %v2201
      %v2203 = vpop.f32.mrb[0].mxu0
      %2204 = vmatprep.mubr.bf16.mxu0 %v1138
      %2205 = vmatmul.mubr.bf16.gmra.mrb[0].mxu0 %v1137
      %v2206 = vpop.f32.mrb[0].mxu0
      %v2207 = vadd.f32 %v2046, %v2206
      %v2208 = vpop.f32.mrb[0].mxu0
      %v2209 = vpop.f32.mrb[0].mxu0
      %v2210 = vadd.f32 %v2049, %v2209
      %v2211 = vpop.f32.mrb[0].mxu0
      %2212 = vmatprep.mubr.bf16.mxu0 %v1147
      %2213 = vmatmul.mubr.bf16.gmra.mrb[0].mxu0 %v1146
      %v2214 = vpop.f32.mrb[0].mxu0
      %v2215 = vadd.f32 %v2054, %v2214
      %v2216 = vpop.f32.mrb[0].mxu0
      %v2217 = vpop.f32.mrb[0].mxu0
      %v2218 = vadd.f32 %v2057, %v2217
      %v2219 = vpop.f32.mrb[0].mxu0
      %2220 = vmatprep.mubr.bf16.mxu0 %v1156
      %2221 = vmatmul.mubr.bf16.gmra.mrb[0].mxu0 %v1155
      %v2222 = vpop.f32.mrb[0].mxu0
      %v2223 = vadd.f32 %v2062, %v2222
      %v2224 = vpop.f32.mrb[0].mxu0
      %v2225 = vpop.f32.mrb[0].mxu0
      %v2226 = vadd.f32 %v2065, %v2225
      %v2227 = vpop.f32.mrb[0].mxu0
      %2228 = vmatprep.mubr.bf16.mxu0 %v1165
      %2229 = vmatmul.mubr.bf16.gmra.mrb[0].mxu0 %v1164
      %v2230 = vpop.f32.mrb[0].mxu0
      %v2231 = vadd.f32 %v2070, %v2230
      %v2232 = vpop.f32.mrb[0].mxu0
      %v2233 = vpop.f32.mrb[0].mxu0
      %v2234 = vadd.f32 %v2073, %v2233
      %v2235 = vpop.f32.mrb[0].mxu0
      %2236 = vmatprep.mubr.bf16.mxu0 %v1174
      %2237 = vmatmul.mubr.bf16.gmra.mrb[0].mxu0 %v1173
      %v2238 = vpop.f32.mrb[0].mxu0
      %v2239 = vadd.f32 %v2078, %v2238
      %v2240 = vpop.f32.mrb[0].mxu0
      %v2241 = vpop.f32.mrb[0].mxu0
      %v2242 = vadd.f32 %v2081, %v2241
      %v2243 = vpop.f32.mrb[0].mxu0
      %2244 = vmatprep.mubr.bf16.mxu0 %v1183
      %2245 = vmatmul.mubr.bf16.gmra.mrb[0].mxu0 %v1182
      %v2246 = vpop.f32.mrb[0].mxu0
      %v2247 = vadd.f32 %v2086, %v2246
      %v2248 = vpop.f32.mrb[0].mxu0
      %v2249 = vpop.f32.mrb[0].mxu0
      %v2250 = vadd.f32 %v2089, %v2249
      %v2251 = vpop.f32.mrb[0].mxu0
      %2252 = vdwg.mxu0
      %2253 = vmatprep.subr.bf16.mxu0 0
      %2254 = vmatpush1.bf16.msra.mxu0 %v1674
      %2255 = vmatprep.subr.bf16.mxu0 0
      %2256 = vmatpush1.bf16.msra.mxu0 %v1675
      %2257 = vmatprep.subr.bf16.mxu0 0
      %2258 = vmatpush1.bf16.msra.mxu0 %v1676
      %2259 = vmatprep.subr.bf16.mxu0 0
      %2260 = vmatpush1.bf16.msra.mxu0 %v1677
      %2261 = vmatprep.subr.bf16.mxu0 0
      %2262 = vmatpush1.bf16.msra.mxu0 %v1678
      %2263 = vmatprep.subr.bf16.mxu0 0
      %2264 = vmatpush1.bf16.msra.mxu0 %v1679
      %2265 = vmatprep.subr.bf16.mxu0 0
      %2266 = vmatpush1.bf16.msra.mxu0 %v1680
      %2267 = vmatprep.subr.bf16.mxu0 0
      %2268 = vmatpush1.bf16.msra.mxu0 %v1681
      %2269 = vmatprep.subr.bf16.mxu0 0
      %2270 = vmatpush1.bf16.msra.mxu0 %v1682
      %2271 = vmatprep.subr.bf16.mxu0 0
      %2272 = vmatpush1.bf16.msra.mxu0 %v1683
      %2273 = vmatprep.subr.bf16.mxu0 0
      %2274 = vmatpush1.bf16.msra.mxu0 %v1684
      %2275 = vmatprep.subr.bf16.mxu0 0
      %2276 = vmatpush1.bf16.msra.mxu0 %v1685
      %2277 = vmatprep.subr.bf16.mxu0 0
      %2278 = vmatpush1.bf16.msra.mxu0 %v1686
      %2279 = vmatprep.subr.bf16.mxu0 0
      %2280 = vmatpush1.bf16.msra.mxu0 %v1687
      %2281 = vmatprep.subr.bf16.mxu0 0
      %2282 = vmatpush1.bf16.msra.mxu0 %v1688
      %2283 = vmatprep.subr.bf16.mxu0 0
      %2284 = vmatpush1.bf16.msra.mxu0 %v1689
      %2285 = vmatprep.mubr.bf16.mxu0 %v1050
      %2286 = vmatmul.mubr.bf16.gmra.mrb[0].mxu0 %v1049
      %v2287 = vpop.f32.mrb[0].mxu0
      %v2288 = vadd.f32 %v2127, %v2287
      %v2289 = vpop.f32.mrb[0].mxu0
      %v2290 = vpop.f32.mrb[0].mxu0
      %v2291 = vadd.f32 %v2130, %v2290
      %v2292 = vpop.f32.mrb[0].mxu0
      %2293 = vmatprep.mubr.bf16.mxu0 %v1059
      %2294 = vmatmul.mubr.bf16.gmra.mrb[0].mxu0 %v1058
      %v2295 = vpop.f32.mrb[0].mxu0
      %v2296 = vadd.f32 %v2135, %v2295
      %v2297 = vpop.f32.mrb[0].mxu0
      %v2298 = vpop.f32.mrb[0].mxu0
      %v2299 = vadd.f32 %v2138, %v2298
      %v2300 = vpop.f32.mrb[0].mxu0
      %2301 = vmatprep.mubr.bf16.mxu0 %v1068
      %2302 = vmatmul.mubr.bf16.gmra.mrb[0].mxu0 %v1067
      %v2303 = vpop.f32.mrb[0].mxu0
      %v2304 = vadd.f32 %v2143, %v2303
      %v2305 = vpop.f32.mrb[0].mxu0
      %v2306 = vpop.f32.mrb[0].mxu0
      %v2307 = vadd.f32 %v2146, %v2306
      %v2308 = vpop.f32.mrb[0].mxu0
      %2309 = vmatprep.mubr.bf16.mxu0 %v1077
      %2310 = vmatmul.mubr.bf16.gmra.mrb[0].mxu0 %v1076
      %v2311 = vpop.f32.mrb[0].mxu0
      %v2312 = vadd.f32 %v2151, %v2311
      %v2313 = vpop.f32.mrb[0].mxu0
      %v2314 = vpop.f32.mrb[0].mxu0
      %v2315 = vadd.f32 %v2154, %v2314
      %v2316 = vpop.f32.mrb[0].mxu0
      %2317 = vmatprep.mubr.bf16.mxu0 %v1086
      %2318 = vmatmul.mubr.bf16.gmra.mrb[0].mxu0 %v1085
      %v2319 = vpop.f32.mrb[0].mxu0
      %v2320 = vadd.f32 %v2159, %v2319
      %v2321 = vpop.f32.mrb[0].mxu0
      %v2322 = vpop.f32.mrb[0].mxu0
      %v2323 = vadd.f32 %v2162, %v2322
      %v2324 = vpop.f32.mrb[0].mxu0
      %2325 = vmatprep.mubr.bf16.mxu0 %v1095
      %2326 = vmatmul.mubr.bf16.gmra.mrb[0].mxu0 %v1094
      %v2327 = vpop.f32.mrb[0].mxu0
      %v2328 = vadd.f32 %v2167, %v2327
      %v2329 = vpop.f32.mrb[0].mxu0
      %v2330 = vpop.f32.mrb[0].mxu0
      %v2331 = vadd.f32 %v2170, %v2330
      %v2332 = vpop.f32.mrb[0].mxu0
      %2333 = vmatprep.mubr.bf16.mxu0 %v1104
      %2334 = vmatmul.mubr.bf16.gmra.mrb[0].mxu0 %v1103
      %v2335 = vpop.f32.mrb[0].mxu0
      %v2336 = vadd.f32 %v2175, %v2335
      %v2337 = vpop.f32.mrb[0].mxu0
      %v2338 = vpop.f32.mrb[0].mxu0
      %v2339 = vadd.f32 %v2178, %v2338
      %v2340 = vpop.f32.mrb[0].mxu0
      %2341 = vmatprep.mubr.bf16.mxu0 %v1113
      %2342 = vmatmul.mubr.bf16.gmra.mrb[0].mxu0 %v1112
      %v2343 = vpop.f32.mrb[0].mxu0
      %v2344 = vadd.f32 %v2183, %v2343
      %v2345 = vpop.f32.mrb[0].mxu0
      %v2346 = vpop.f32.mrb[0].mxu0
      %v2347 = vadd.f32 %v2186, %v2346
      %v2348 = vpop.f32.mrb[0].mxu0
      %2349 = vmatprep.mubr.bf16.mxu0 %v1122
      %2350 = vmatmul.mubr.bf16.gmra.mrb[0].mxu0 %v1121
      %v2351 = vpop.f32.mrb[0].mxu0
      %v2352 = vadd.f32 %v2191, %v2351
      %v2353 = vpop.f32.mrb[0].mxu0
      %v2354 = vpop.f32.mrb[0].mxu0
      %v2355 = vadd.f32 %v2194, %v2354
      %v2356 = vpop.f32.mrb[0].mxu0
      %2357 = vmatprep.mubr.bf16.mxu0 %v1131
      %2358 = vmatmul.mubr.bf16.gmra.mrb[0].mxu0 %v1130
      %v2359 = vpop.f32.mrb[0].mxu0
      %v2360 = vadd.f32 %v2199, %v2359
      %v2361 = vpop.f32.mrb[0].mxu0
      %v2362 = vpop.f32.mrb[0].mxu0
      %v2363 = vadd.f32 %v2202, %v2362
      %v2364 = vpop.f32.mrb[0].mxu0
      %2365 = vmatprep.mubr.bf16.mxu0 %v1140
      %2366 = vmatmul.mubr.bf16.gmra.mrb[0].mxu0 %v1139
      %v2367 = vpop.f32.mrb[0].mxu0
      %v2368 = vadd.f32 %v2207, %v2367
      %v2369 = vpop.f32.mrb[0].mxu0
      %v2370 = vpop.f32.mrb[0].mxu0
      %v2371 = vadd.f32 %v2210, %v2370
      %v2372 = vpop.f32.mrb[0].mxu0
      %2373 = vmatprep.mubr.bf16.mxu0 %v1149
      %2374 = vmatmul.mubr.bf16.gmra.mrb[0].mxu0 %v1148
      %v2375 = vpop.f32.mrb[0].mxu0
      %v2376 = vadd.f32 %v2215, %v2375
      %v2377 = vpop.f32.mrb[0].mxu0
      %v2378 = vpop.f32.mrb[0].mxu0
      %v2379 = vadd.f32 %v2218, %v2378
      %v2380 = vpop.f32.mrb[0].mxu0
      %2381 = vmatprep.mubr.bf16.mxu0 %v1158
      %2382 = vmatmul.mubr.bf16.gmra.mrb[0].mxu0 %v1157
      %v2383 = vpop.f32.mrb[0].mxu0
      %v2384 = vadd.f32 %v2223, %v2383
      %v2385 = vpop.f32.mrb[0].mxu0
      %v2386 = vpop.f32.mrb[0].mxu0
      %v2387 = vadd.f32 %v2226, %v2386
      %v2388 = vpop.f32.mrb[0].mxu0
      %2389 = vmatprep.mubr.bf16.mxu0 %v1167
      %2390 = vmatmul.mubr.bf16.gmra.mrb[0].mxu0 %v1166
      %v2391 = vpop.f32.mrb[0].mxu0
      %v2392 = vadd.f32 %v2231, %v2391
      %v2393 = vpop.f32.mrb[0].mxu0
      %v2394 = vpop.f32.mrb[0].mxu0
      %v2395 = vadd.f32 %v2234, %v2394
      %v2396 = vpop.f32.mrb[0].mxu0
      %2397 = vmatprep.mubr.bf16.mxu0 %v1176
      %2398 = vmatmul.mubr.bf16.gmra.mrb[0].mxu0 %v1175
      %v2399 = vpop.f32.mrb[0].mxu0
      %v2400 = vadd.f32 %v2239, %v2399
      %v2401 = vpop.f32.mrb[0].mxu0
      %v2402 = vpop.f32.mrb[0].mxu0
      %v2403 = vadd.f32 %v2242, %v2402
      %v2404 = vpop.f32.mrb[0].mxu0
      %2405 = vmatprep.mubr.bf16.mxu0 %v1185
      %2406 = vmatmul.mubr.bf16.gmra.mrb[0].mxu0 %v1184
      %v2407 = vpop.f32.mrb[0].mxu0
      %v2408 = vadd.f32 %v2247, %v2407
      %v2409 = vpop.f32.mrb[0].mxu0
      %v2410 = vpop.f32.mrb[0].mxu0
      %v2411 = vadd.f32 %v2250, %v2410
      %v2412 = vpop.f32.mrb[0].mxu0
      %2413 = vdwg.mxu0
      %2414 = vmatprep.subr.bf16.mxu0 0
      %2415 = vmatpush1.bf16.msra.mxu0 %v1690
      %2416 = vmatprep.subr.bf16.mxu0 0
      %2417 = vmatpush1.bf16.msra.mxu0 %v1691
      %2418 = vmatprep.subr.bf16.mxu0 0
      %2419 = vmatpush1.bf16.msra.mxu0 %v1692
      %2420 = vmatprep.subr.bf16.mxu0 0
      %2421 = vmatpush1.bf16.msra.mxu0 %v1693
      %2422 = vmatprep.subr.bf16.mxu0 0
      %2423 = vmatpush1.bf16.msra.mxu0 %v1694
      %2424 = vmatprep.subr.bf16.mxu0 0
      %2425 = vmatpush1.bf16.msra.mxu0 %v1695
      %2426 = vmatprep.subr.bf16.mxu0 0
      %2427 = vmatpush1.bf16.msra.mxu0 %v1696
      %2428 = vmatprep.subr.bf16.mxu0 0
      %2429 = vmatpush1.bf16.msra.mxu0 %v1697
      %2430 = vmatprep.subr.bf16.mxu0 0
      %2431 = vmatpush1.bf16.msra.mxu0 0
      %2432 = vmatprep.subr.bf16.mxu0 0
      %2433 = vmatpush1.bf16.msra.mxu0 0
      %2434 = vmatprep.subr.bf16.mxu0 0
      %2435 = vmatpush1.bf16.msra.mxu0 0
      %2436 = vmatprep.subr.bf16.mxu0 0
      %2437 = vmatpush1.bf16.msra.mxu0 0
      %2438 = vmatprep.subr.bf16.mxu0 0
      %2439 = vmatpush1.bf16.msra.mxu0 0
      %2440 = vmatprep.subr.bf16.mxu0 0
      %2441 = vmatpush1.bf16.msra.mxu0 0
      %2442 = vmatprep.subr.bf16.mxu0 0
      %2443 = vmatpush1.bf16.msra.mxu0 0
      %2444 = vmatprep.subr.bf16.mxu0 0
      %2445 = vmatpush1.bf16.msra.mxu0 0
      %2446 = vmatprep.mubr.bf16.mxu0 0
      %2447 = vmatmul.mubr.bf16.gmra.mrb[0].mxu0 %v1051
      %v2448 = vpop.f32.mrb[0].mxu0
      %v2449 = vadd.f32 %v2288, %v2448
      %v2450 = vpop.f32.mrb[0].mxu0
      %v2451 = vpop.f32.mrb[0].mxu0
      %v2452 = vadd.f32 %v2291, %v2451
      %v2453 = vpop.f32.mrb[0].mxu0
      %2454 = vmatprep.mubr.bf16.mxu0 0
      %2455 = vmatmul.mubr.bf16.gmra.mrb[0].mxu0 %v1060
      %v2456 = vpop.f32.mrb[0].mxu0
      %v2457 = vadd.f32 %v2296, %v2456
      %v2458 = vpop.f32.mrb[0].mxu0
      %v2459 = vpop.f32.mrb[0].mxu0
      %v2460 = vadd.f32 %v2299, %v2459
      %v2461 = vpop.f32.mrb[0].mxu0
      %2462 = vmatprep.mubr.bf16.mxu0 0
      %2463 = vmatmul.mubr.bf16.gmra.mrb[0].mxu0 %v1069
      %v2464 = vpop.f32.mrb[0].mxu0
      %v2465 = vadd.f32 %v2304, %v2464
      %v2466 = vpop.f32.mrb[0].mxu0
      %v2467 = vpop.f32.mrb[0].mxu0
      %v2468 = vadd.f32 %v2307, %v2467
      %v2469 = vpop.f32.mrb[0].mxu0
      %2470 = vmatprep.mubr.bf16.mxu0 0
      %2471 = vmatmul.mubr.bf16.gmra.mrb[0].mxu0 %v1078
      %v2472 = vpop.f32.mrb[0].mxu0
      %v2473 = vadd.f32 %v2312, %v2472
      %v2474 = vpop.f32.mrb[0].mxu0
      %v2475 = vpop.f32.mrb[0].mxu0
      %v2476 = vadd.f32 %v2315, %v2475
      %v2477 = vpop.f32.mrb[0].mxu0
      %2478 = vmatprep.mubr.bf16.mxu0 0
      %2479 = vmatmul.mubr.bf16.gmra.mrb[0].mxu0 %v1087
      %v2480 = vpop.f32.mrb[0].mxu0
      %v2481 = vadd.f32 %v2320, %v2480
      %v2482 = vpop.f32.mrb[0].mxu0
      %v2483 = vpop.f32.mrb[0].mxu0
      %v2484 = vadd.f32 %v2323, %v2483
      %v2485 = vpop.f32.mrb[0].mxu0
      %2486 = vmatprep.mubr.bf16.mxu0 0
      %2487 = vmatmul.mubr.bf16.gmra.mrb[0].mxu0 %v1096
      %v2488 = vpop.f32.mrb[0].mxu0
      %v2489 = vadd.f32 %v2328, %v2488
      %v2490 = vpop.f32.mrb[0].mxu0
      %v2491 = vpop.f32.mrb[0].mxu0
      %v2492 = vadd.f32 %v2331, %v2491
      %v2493 = vpop.f32.mrb[0].mxu0
      %2494 = vmatprep.mubr.bf16.mxu0 0
      %2495 = vmatmul.mubr.bf16.gmra.mrb[0].mxu0 %v1105
      %v2496 = vpop.f32.mrb[0].mxu0
      %v2497 = vadd.f32 %v2336, %v2496
      %v2498 = vpop.f32.mrb[0].mxu0
      %v2499 = vpop.f32.mrb[0].mxu0
      %v2500 = vadd.f32 %v2339, %v2499
      %v2501 = vpop.f32.mrb[0].mxu0
      %2502 = vmatprep.mubr.bf16.mxu0 0
      %2503 = vmatmul.mubr.bf16.gmra.mrb[0].mxu0 %v1114
      %v2504 = vpop.f32.mrb[0].mxu0
      %v2505 = vadd.f32 %v2344, %v2504
      %v2506 = vpop.f32.mrb[0].mxu0
      %v2507 = vpop.f32.mrb[0].mxu0
      %v2508 = vadd.f32 %v2347, %v2507
      %v2509 = vpop.f32.mrb[0].mxu0
      %2510 = vmatprep.mubr.bf16.mxu0 0
      %2511 = vmatmul.mubr.bf16.gmra.mrb[0].mxu0 %v1123
      %v2512 = vpop.f32.mrb[0].mxu0
      %v2513 = vadd.f32 %v2352, %v2512
      %v2514 = vpop.f32.mrb[0].mxu0
      %v2515 = vpop.f32.mrb[0].mxu0
      %v2516 = vadd.f32 %v2355, %v2515
      %v2517 = vpop.f32.mrb[0].mxu0
      %2518 = vmatprep.mubr.bf16.mxu0 0
      %2519 = vmatmul.mubr.bf16.gmra.mrb[0].mxu0 %v1132
      %v2520 = vpop.f32.mrb[0].mxu0
      %v2521 = vadd.f32 %v2360, %v2520
      %v2522 = vpop.f32.mrb[0].mxu0
      %v2523 = vpop.f32.mrb[0].mxu0
      %v2524 = vadd.f32 %v2363, %v2523
      %v2525 = vpop.f32.mrb[0].mxu0
      %2526 = vmatprep.mubr.bf16.mxu0 0
      %2527 = vmatmul.mubr.bf16.gmra.mrb[0].mxu0 %v1141
      %v2528 = vpop.f32.mrb[0].mxu0
      %v2529 = vadd.f32 %v2368, %v2528
      %v2530 = vpop.f32.mrb[0].mxu0
      %v2531 = vpop.f32.mrb[0].mxu0
      %v2532 = vadd.f32 %v2371, %v2531
      %v2533 = vpop.f32.mrb[0].mxu0
      %2534 = vmatprep.mubr.bf16.mxu0 0
      %2535 = vmatmul.mubr.bf16.gmra.mrb[0].mxu0 %v1150
      %v2536 = vpop.f32.mrb[0].mxu0
      %v2537 = vadd.f32 %v2376, %v2536
      %v2538 = vpop.f32.mrb[0].mxu0
      %v2539 = vpop.f32.mrb[0].mxu0
      %v2540 = vadd.f32 %v2379, %v2539
      %v2541 = vpop.f32.mrb[0].mxu0
      %2542 = vmatprep.mubr.bf16.mxu0 0
      %2543 = vmatmul.mubr.bf16.gmra.mrb[0].mxu0 %v1159
      %v2544 = vpop.f32.mrb[0].mxu0
      %v2545 = vadd.f32 %v2384, %v2544
      %v2546 = vpop.f32.mrb[0].mxu0
      %v2547 = vpop.f32.mrb[0].mxu0
      %v2548 = vadd.f32 %v2387, %v2547
      %v2549 = vpop.f32.mrb[0].mxu0
      %2550 = vmatprep.mubr.bf16.mxu0 0
      %2551 = vmatmul.mubr.bf16.gmra.mrb[0].mxu0 %v1168
      %v2552 = vpop.f32.mrb[0].mxu0
      %v2553 = vadd.f32 %v2392, %v2552
      %v2554 = vpop.f32.mrb[0].mxu0
      %v2555 = vpop.f32.mrb[0].mxu0
      %v2556 = vadd.f32 %v2395, %v2555
      %v2557 = vpop.f32.mrb[0].mxu0
      %2558 = vmatprep.mubr.bf16.mxu0 0
      %2559 = vmatmul.mubr.bf16.gmra.mrb[0].mxu0 %v1177
      %v2560 = vpop.f32.mrb[0].mxu0
      %v2561 = vadd.f32 %v2400, %v2560
      %v2562 = vpop.f32.mrb[0].mxu0
      %v2563 = vpop.f32.mrb[0].mxu0
      %v2564 = vadd.f32 %v2403, %v2563
      %v2565 = vpop.f32.mrb[0].mxu0
      %2566 = vmatprep.mubr.bf16.mxu0 0
      %2567 = vmatmul.mubr.bf16.gmra.mrb[0].mxu0 %v1186
      %v2568 = vpop.f32.mrb[0].mxu0
      %v2569 = vadd.f32 %v2408, %v2568
      %v2570 = vpop.f32.mrb[0].mxu0
      %v2571 = vpop.f32.mrb[0].mxu0
      %v2572 = vadd.f32 %v2411, %v2571
      %v2573 = vpop.f32.mrb[0].mxu0
      %2574 = vdwg.mxu0
      %v2575 = vpack.c.bf16 %v2452, %v2449
      %v2576 = vpack.c.bf16 %v2460, %v2457
      %v2577 = vpack.c.bf16 %v2468, %v2465
      %v2578 = vpack.c.bf16 %v2476, %v2473
      %v2579 = vpack.c.bf16 %v2484, %v2481
      %v2580 = vpack.c.bf16 %v2492, %v2489
      %v2581 = vpack.c.bf16 %v2500, %v2497
      %v2582 = vpack.c.bf16 %v2508, %v2505
      %v2583 = vpack.c.bf16 %v2516, %v2513
      %v2584 = vpack.c.bf16 %v2524, %v2521
      %v2585 = vpack.c.bf16 %v2532, %v2529
      %v2586 = vpack.c.bf16 %v2540, %v2537
      %v2587 = vpack.c.bf16 %v2548, %v2545
      %v2588 = vpack.c.bf16 %v2556, %v2553
      %v2589 = vpack.c.bf16 %v2564, %v2561
      %v2590 = vpack.c.bf16 %v2572, %v2569
      %v2607 = vunpack.c.l.b16 %v2575
      %v2608 = vunpack.c.h.b16 %v2575
      %v2609 = vunpack.c.l.b16 %v2576
      %v2610 = vunpack.c.h.b16 %v2576
      %v2611 = vunpack.c.l.b16 %v2577
      %v2612 = vunpack.c.h.b16 %v2577
      %v2613 = vunpack.c.l.b16 %v2578
      %v2614 = vunpack.c.h.b16 %v2578
      %v2615 = vunpack.c.l.b16 %v2579
      %v2616 = vunpack.c.h.b16 %v2579
      %v2617 = vunpack.c.l.b16 %v2580
      %v2618 = vunpack.c.h.b16 %v2580
      %v2619 = vunpack.c.l.b16 %v2581
      %v2620 = vunpack.c.h.b16 %v2581
      %v2621 = vunpack.c.l.b16 %v2582
      %v2622 = vunpack.c.h.b16 %v2582
      %v2623 = vunpack.c.l.b16 %v2583
      %v2624 = vunpack.c.h.b16 %v2583
      %v2625 = vunpack.c.l.b16 %v2584
      %v2626 = vunpack.c.h.b16 %v2584
      %v2627 = vunpack.c.l.b16 %v2585
      %v2628 = vunpack.c.h.b16 %v2585
      %v2629 = vunpack.c.l.b16 %v2586
      %v2630 = vunpack.c.h.b16 %v2586
      %v2631 = vunpack.c.l.b16 %v2587
      %v2632 = vunpack.c.h.b16 %v2587
      %v2633 = vunpack.c.l.b16 %v2588
      %v2634 = vunpack.c.h.b16 %v2588
      %v2635 = vunpack.c.l.b16 %v2589
      %v2636 = vunpack.c.h.b16 %v2589
      %v2637 = vunpack.c.l.b16 %v2590
      %v2638 = vunpack.c.h.b16 %v2590
      %v2639 = vpack.c.b16 %v2607, %v2607
      %v2640 = vpack.c.b16 %v2608, %v2608
      %v2641 = vpack.c.b16 %v2609, %v2609
      %v2642 = vpack.c.b16 %v2610, %v2610
      %v2643 = vpack.c.b16 %v2611, %v2611
      %v2644 = vpack.c.b16 %v2612, %v2612
      %v2645 = vpack.c.b16 %v2613, %v2613
      %v2646 = vpack.c.b16 %v2614, %v2614
      %v2647 = vpack.c.b16 %v2615, %v2615
      %v2648 = vpack.c.b16 %v2616, %v2616
      %v2649 = vpack.c.b16 %v2617, %v2617
      %v2650 = vpack.c.b16 %v2618, %v2618
      %v2651 = vpack.c.b16 %v2619, %v2619
      %v2652 = vpack.c.b16 %v2620, %v2620
      %v2653 = vpack.c.b16 %v2621, %v2621
      %v2654 = vpack.c.b16 %v2622, %v2622
      %v2655 = vpack.c.b16 %v2623, %v2623
      %v2656 = vpack.c.b16 %v2624, %v2624
      %v2657 = vpack.c.b16 %v2625, %v2625
      %v2658 = vpack.c.b16 %v2626, %v2626
      %v2659 = vpack.c.b16 %v2627, %v2627
      %v2660 = vpack.c.b16 %v2628, %v2628
      %v2661 = vpack.c.b16 %v2629, %v2629
      %v2662 = vpack.c.b16 %v2630, %v2630
      %v2663 = vpack.c.b16 %v2631, %v2631
      %v2664 = vpack.c.b16 %v2632, %v2632
      %v2665 = vpack.c.b16 %v2633, %v2633
      %v2666 = vpack.c.b16 %v2634, %v2634
      %v2667 = vpack.c.b16 %v2635, %v2635
      %v2668 = vpack.c.b16 %v2636, %v2636
      %v2669 = vpack.c.b16 %v2637, %v2637
      %v2670 = vpack.c.b16 %v2638, %v2638
      %2703 = vst [vmem:[%s289] sm:$0xf] %v2639
      %2704 = vst [vmem:[%s289 + $0x4] sm:$0xf] %v2640
      %2705 = vst [vmem:[%s289 + $0x8] sm:$0xf] %v2641
      %2706 = vst [vmem:[%s289 + $0xc] sm:$0xf] %v2642
      %2707 = vst [vmem:[%s289 + $0x10] sm:$0xf] %v2643
      %2708 = vst [vmem:[%s289 + $0x14] sm:$0xf] %v2644
      %2709 = vst [vmem:[%s289 + $0x18] sm:$0xf] %v2645
      %2710 = vst [vmem:[%s289 + $0x1c] sm:$0xf] %v2646
      %2711 = vst [vmem:[%s289 + $0x20] sm:$0xf] %v2647
      %2712 = vst [vmem:[%s289 + $0x24] sm:$0xf] %v2648
      %2713 = vst [vmem:[%s289 + $0x28] sm:$0xf] %v2649
      %2714 = vst [vmem:[%s289 + $0x2c] sm:$0xf] %v2650
      %2715 = vst [vmem:[%s289 + $0x30] sm:$0xf] %v2651
      %2716 = vst [vmem:[%s289 + $0x34] sm:$0xf] %v2652
      %2717 = vst [vmem:[%s289 + $0x38] sm:$0xf] %v2653
      %2718 = vst [vmem:[%s289 + $0x3c] sm:$0xf] %v2654
      %2719 = vst [vmem:[%s289 + $0x40] sm:$0xf] %v2655
      %2720 = vst [vmem:[%s289 + $0x44] sm:$0xf] %v2656
      %2721 = vst [vmem:[%s289 + $0x48] sm:$0xf] %v2657
      %2722 = vst [vmem:[%s289 + $0x4c] sm:$0xf] %v2658
      %2723 = vst [vmem:[%s289 + $0x50] sm:$0xf] %v2659
      %2724 = vst [vmem:[%s289 + $0x54] sm:$0xf] %v2660
      %2725 = vst [vmem:[%s289 + $0x58] sm:$0xf] %v2661
      %2726 = vst [vmem:[%s289 + $0x5c] sm:$0xf] %v2662
      %2727 = vst [vmem:[%s289 + $0x60] sm:$0xf] %v2663
      %2728 = vst [vmem:[%s289 + $0x64] sm:$0xf] %v2664
      %2729 = vst [vmem:[%s289 + $0x68] sm:$0xf] %v2665
      %2730 = vst [vmem:[%s289 + $0x6c] sm:$0xf] %v2666
      %2731 = vst [vmem:[%s289 + $0x70] sm:$0xf] %v2667
      %2732 = vst [vmem:[%s289 + $0x74] sm:$0xf] %v2668
      %2733 = vst [vmem:[%s289 + $0x78] sm:$0xf] %v2669
      %2734 = vst [vmem:[%s289 + $0x7c] sm:$0xf] %v2670
      %v2735 = vadd.f32 %v2449, %v2452
      %v2736 = vadd.f32 %v2735, %v2457
      %v2737 = vadd.f32 %v2736, %v2460
      %v2738 = vadd.f32 %v2737, %v2465
      %v2739 = vadd.f32 %v2738, %v2468
      %v2740 = vadd.f32 %v2739, %v2473
      %v2741 = vadd.f32 %v2740, %v2476
      %v2742 = vadd.f32 %v2741, %v2481
      %v2743 = vadd.f32 %v2742, %v2484
      %v2744 = vadd.f32 %v2743, %v2489
      %v2745 = vadd.f32 %v2744, %v2492
      %v2746 = vadd.f32 %v2745, %v2497
      %v2747 = vadd.f32 %v2746, %v2500
      %v2748 = vadd.f32 %v2747, %v2505
      %v2749 = vadd.f32 %v2748, %v2508
      %v2750 = vadd.f32 %v2749, %v2513
      %v2751 = vadd.f32 %v2750, %v2516
      %v2752 = vadd.f32 %v2751, %v2521
      %v2753 = vadd.f32 %v2752, %v2524
      %v2754 = vadd.f32 %v2753, %v2529
      %v2755 = vadd.f32 %v2754, %v2532
      %v2756 = vadd.f32 %v2755, %v2537
      %v2757 = vadd.f32 %v2756, %v2540
      %v2758 = vadd.f32 %v2757, %v2545
      %v2759 = vadd.f32 %v2758, %v2548
      %v2760 = vadd.f32 %v2759, %v2553
      %v2761 = vadd.f32 %v2760, %v2556
      %v2762 = vadd.f32 %v2761, %v2561
      %v2763 = vadd.f32 %v2762, %v2564
      %v2764 = vadd.f32 %v2763, %v2569
      %v2765 = vadd.f32 %v2764, %v2572
      %v2766 = vrot.slane %v2765, 4
      %v2767 = vadd.f32 %v2765, %v2766
      %v2768 = vrot.slane %v2767, 2
      %v2769 = vadd.f32 %v2767, %v2768
      %v2770 = vrot.slane %v2769, 1
      %v2771 = vadd.f32 %v2769, %v2770
      %2772 = vst [vmem:[%s292] sm:$0x1] %v2771
      %v2773 = vmul.f32 %v2449, %v2449
      %v2774 = vmul.f32 %v2452, %v2452
      %v2775 = vmul.f32 %v2457, %v2457
      %v2776 = vmul.f32 %v2460, %v2460
      %v2777 = vmul.f32 %v2465, %v2465
      %v2778 = vmul.f32 %v2468, %v2468
      %v2779 = vmul.f32 %v2473, %v2473
      %v2780 = vmul.f32 %v2476, %v2476
      %v2781 = vmul.f32 %v2481, %v2481
      %v2782 = vmul.f32 %v2484, %v2484
      %v2783 = vmul.f32 %v2489, %v2489
      %v2784 = vmul.f32 %v2492, %v2492
      %v2785 = vmul.f32 %v2497, %v2497
      %v2786 = vmul.f32 %v2500, %v2500
      %v2787 = vmul.f32 %v2505, %v2505
      %v2788 = vmul.f32 %v2508, %v2508
      %v2789 = vmul.f32 %v2513, %v2513
      %v2790 = vmul.f32 %v2516, %v2516
      %v2791 = vmul.f32 %v2521, %v2521
      %v2792 = vmul.f32 %v2524, %v2524
      %v2793 = vmul.f32 %v2529, %v2529
      %v2794 = vmul.f32 %v2532, %v2532
      %v2795 = vmul.f32 %v2537, %v2537
      %v2796 = vmul.f32 %v2540, %v2540
      %v2797 = vmul.f32 %v2545, %v2545
      %v2798 = vmul.f32 %v2548, %v2548
      %v2799 = vmul.f32 %v2553, %v2553
      %v2800 = vmul.f32 %v2556, %v2556
      %v2801 = vmul.f32 %v2561, %v2561
      %v2802 = vmul.f32 %v2564, %v2564
      %v2803 = vmul.f32 %v2569, %v2569
      %v2804 = vmul.f32 %v2572, %v2572
      %v2805 = vadd.f32 %v2773, %v2774
      %v2806 = vadd.f32 %v2805, %v2775
      %v2807 = vadd.f32 %v2806, %v2776
      %v2808 = vadd.f32 %v2807, %v2777
      %v2809 = vadd.f32 %v2808, %v2778
      %v2810 = vadd.f32 %v2809, %v2779
      %v2811 = vadd.f32 %v2810, %v2780
      %v2812 = vadd.f32 %v2811, %v2781
      %v2813 = vadd.f32 %v2812, %v2782
      %v2814 = vadd.f32 %v2813, %v2783
      %v2815 = vadd.f32 %v2814, %v2784
      %v2816 = vadd.f32 %v2815, %v2785
      %v2817 = vadd.f32 %v2816, %v2786
      %v2818 = vadd.f32 %v2817, %v2787
      %v2819 = vadd.f32 %v2818, %v2788
      %v2820 = vadd.f32 %v2819, %v2789
      %v2821 = vadd.f32 %v2820, %v2790
      %v2822 = vadd.f32 %v2821, %v2791
      %v2823 = vadd.f32 %v2822, %v2792
      %v2824 = vadd.f32 %v2823, %v2793
      %v2825 = vadd.f32 %v2824, %v2794
      %v2826 = vadd.f32 %v2825, %v2795
      %v2827 = vadd.f32 %v2826, %v2796
      %v2828 = vadd.f32 %v2827, %v2797
      %v2829 = vadd.f32 %v2828, %v2798
      %v2830 = vadd.f32 %v2829, %v2799
      %v2831 = vadd.f32 %v2830, %v2800
      %v2832 = vadd.f32 %v2831, %v2801
      %v2833 = vadd.f32 %v2832, %v2802
      %v2834 = vadd.f32 %v2833, %v2803
      %v2835 = vadd.f32 %v2834, %v2804
      %v2836 = vrot.slane %v2835, 4
      %v2837 = vadd.f32 %v2835, %v2836
      %v2838 = vrot.slane %v2837, 2
      %v2839 = vadd.f32 %v2837, %v2838
      %v2840 = vrot.slane %v2839, 1
      %v2841 = vadd.f32 %v2839, %v2840
      %2842 = vst [vmem:[%s295] sm:$0x1] %v2841
      %p2843 = scmp.lt.s32.totalorder %s19, 1
      %s2844 = scalar_select %p2843, %s19, 1
      %s2845 = smul.addr %s2844, 32
      %s2846 = smul.addr %s2845, 4
      %s2847 = scalar_lea.vmem %s5, %s2846
      %p2848 = scmp.lt.s32.totalorder %s19, 1
      %s2849 = scalar_select %p2848, %s19, 1
      %s2850 = scalar_lea.vmem %s6, %s2849
      %p2851 = scmp.lt.s32.totalorder %s19, 1
      %s2852 = scalar_select %p2851, %s19, 1
      %s2853 = scalar_lea.vmem %s7, %s2852
      // Predicated region
      $region41: #{double_conv_forward.3} parent=39 // pred_check
        %p2854 = pneg %p147
      $region42: #{double_conv_forward.3} parent=39 // pred_check_branch
        %2856 = sbr.rel (%p2854) target = $region44
      $region43: #{double_conv_forward.3} parent=39 // pred_region
        _
      $region44: #{double_conv_forward.3} parent=39 // pred_fallthru
        _
      // Predicated region
      $region45: #{double_conv_forward.3} parent=39 // pred_check
        %p2857 = pneg %p173
      $region46: #{double_conv_forward.3} parent=39 // pred_check_branch
        %2859 = sbr.rel (%p2857) target = $region48
      $region47: #{double_conv_forward.3} parent=39 // pred_region
        _
      $region48: #{double_conv_forward.3} parent=39 // pred_fallthru
        _
      // Predicated region
      $region49: #{double_conv_forward.3} parent=39 // pred_check
        %p2860 = pneg %p199
      $region50: #{double_conv_forward.3} parent=39 // pred_check_branch
        %2862 = sbr.rel (%p2860) target = $region52
      $region51: #{double_conv_forward.3} parent=39 // pred_region
        _
      $region52: #{double_conv_forward.3} parent=39 // pred_fallthru
        _
    $region40: #{double_conv_forward.3} parent=5 // pred_fallthru
      _
    %p2863 = scmp.le.s32.totalorder 2, %s14
    // Predicated region
    $region53: #{double_conv_forward.3} parent=5 // pred_check
      %p2864 = pneg %p2863
    $region54: #{double_conv_forward.3} parent=5 // pred_check_branch
      %2866 = sbr.rel (%p2864) target = $region56
    $region55: #{double_conv_forward.3} parent=5 // pred_region
      %s2867 = ssub.s32 %s14, 2
      // Predicated region
      $region57: #{double_conv_forward.3} parent=55 // pred_check
        %p2868 = pneg %p153
      $region58: #{double_conv_forward.3} parent=55 // pred_check_branch
        %2870 = sbr.rel (%p2868) target = $region60
      $region59: #{double_conv_forward.3} parent=55 // pred_region
        %p2871 = scmp.lt.s32.totalorder %s20, 1
        %s2872 = scalar_select %p2871, %s20, 1
        %s2873 = smul.addr %s2872, 32
        %s2874 = smul.addr %s2873, 4
        %s2875 = scalar_lea.vmem %s5, %s2874
      $region60: #{double_conv_forward.3} parent=55 // pred_fallthru
        _
      // Predicated region
      $region61: #{double_conv_forward.3} parent=55 // pred_check
        %p2876 = pneg %p179
      $region62: #{double_conv_forward.3} parent=55 // pred_check_branch
        %2878 = sbr.rel (%p2876) target = $region64
      $region63: #{double_conv_forward.3} parent=55 // pred_region
        %p2879 = scmp.lt.s32.totalorder %s20, 1
        %s2880 = scalar_select %p2879, %s20, 1
        %s2881 = scalar_lea.vmem %s6, %s2880
      $region64: #{double_conv_forward.3} parent=55 // pred_fallthru
        _
      // Predicated region
      $region65: #{double_conv_forward.3} parent=55 // pred_check
        %p2882 = pneg %p205
      $region66: #{double_conv_forward.3} parent=55 // pred_check_branch
        %2884 = sbr.rel (%p2882) target = $region68
      $region67: #{double_conv_forward.3} parent=55 // pred_region
        %p2885 = scmp.lt.s32.totalorder %s20, 1
        %s2886 = scalar_select %p2885, %s20, 1
        %s2887 = scalar_lea.vmem %s7, %s2886
      $region68: #{double_conv_forward.3} parent=55 // pred_fallthru
        _
    $region56: #{double_conv_forward.3} parent=5 // pred_fallthru
      _
  $region6: #{double_conv_forward.3} parent=0 // loop_footer
    %s18 = sadd.s32 1, %s14
  $region7: #{double_conv_forward.3} parent=0 // loop_footer_branch
    %13 = sbr.rel target = $region3
  $region8: #{double_conv_forward.3} parent=0 // loop_exit
    _

</llo_original>
